<compile_context>
chip_gen: v7x
topology: tpu7x:2x2x1
jax: 0.10.0
libtpu: 0.0.40
codegen_flags: <defaults>
</compile_context>

<pallas_src>
import functools

import jax
import jax.numpy as jnp
from jax.experimental import pallas as pl
from jax.experimental.pallas import tpu as pltpu

BN_EPS = 1e-5

_TM_MAX = 512        # M tile; sized for v7x 64 MiB VMEM (and ~32 MiB scoped default)
_SINGLE_K_MAX = 4096 # largest K handled as one MXU block (covers all convs here)
_TK_TILED = 512      # K tile when K > _SINGLE_K_MAX


def _round_up(x, m):
    return (x + m - 1) // m * m


# ---------------------------------------------------------------------------
# Pallas kernels: (M,K)@(K,Cout) tiled over grid (M tiles, K tiles).
#   bias folded in at k == 0; residual / ReLU applied at k == last;
#   accumulation happens directly in the f32 output ref.
# ---------------------------------------------------------------------------
def _mm_kernel(a_ref, b_ref, bias_ref, o_ref, *, relu):
    k = pl.program_id(1)

    @pl.when(k == 0)
    def _():
        o_ref[...] = jnp.broadcast_to(bias_ref[...], o_ref.shape)

    o_ref[...] += jnp.dot(a_ref[...], b_ref[...],
                          preferred_element_type=jnp.float32)

    if relu:
        @pl.when(k == pl.num_programs(1) - 1)
        def _():
            o_ref[...] = jnp.maximum(o_ref[...], 0.0)


def _mm_res_kernel(a_ref, b_ref, bias_ref, res_ref, o_ref, *, relu):
    k = pl.program_id(1)

    @pl.when(k == 0)
    def _():
        o_ref[...] = jnp.broadcast_to(bias_ref[...], o_ref.shape)

    o_ref[...] += jnp.dot(a_ref[...], b_ref[...],
                          preferred_element_type=jnp.float32)

    @pl.when(k == pl.num_programs(1) - 1)
    def _():
        r = o_ref[...] + res_ref[...]
        if relu:
            r = jnp.maximum(r, 0.0)
        o_ref[...] = r


def _matmul_bias_act(patches, w2d, bias, residual, relu):
    """patches: (M, K), w2d: (K, Cout), bias: (Cout,), residual: (M, Cout)|None."""
    M, K = patches.shape
    Cout = w2d.shape[1]

    # M tile: multiple of 16 (dense bf16 sublane packing), capped for VMEM.
    tm = min(_TM_MAX, _round_up(M, 16))
    Mp = _round_up(M, tm)

    # K: one block when it fits comfortably (no padding, no k-step overhead).
    if K <= _SINGLE_K_MAX:
        tk, Kp = K, K
    else:
        tk = _TK_TILED
        Kp = _round_up(K, tk)

    a = patches.astype(jnp.bfloat16)
    if Mp != M or Kp != K:
        a = jnp.pad(a, ((0, Mp - M), (0, Kp - K)))
    b = w2d.astype(jnp.bfloat16)
    if Kp != K:
        b = jnp.pad(b, ((0, Kp - K), (0, 0)))
    bias2d = bias.reshape(1, Cout).astype(jnp.float32)

    in_specs = [
        pl.BlockSpec((tm, tk), lambda m, k: (m, k)),
        pl.BlockSpec((tk, Cout), lambda m, k: (k, 0)),
        pl.BlockSpec((1, Cout), lambda m, k: (0, 0)),
    ]
    args = [a, b, bias2d]
    if residual is not None:
        res = residual.astype(jnp.float32)
        if Mp != M:
            res = jnp.pad(res, ((0, Mp - M), (0, 0)))
        in_specs.append(pl.BlockSpec((tm, Cout), lambda m, k: (m, 0)))
        args.append(res)
        kernel = functools.partial(_mm_res_kernel, relu=relu)
    else:
        kernel = functools.partial(_mm_kernel, relu=relu)

    out = pl.pallas_call(
        kernel,
        out_shape=jax.ShapeDtypeStruct((Mp, Cout), jnp.float32),
        grid_spec=pltpu.PrefetchScalarGridSpec(
            num_scalar_prefetch=0,
            grid=(Mp // tm, Kp // tk),
            in_specs=in_specs,
            out_specs=pl.BlockSpec((tm, Cout), lambda m, k: (m, 0)),
        ),
        compiler_params=pltpu.CompilerParams(
            dimension_semantics=("parallel", "arbitrary")),
    )(*args)

    if Mp != M:
        out = out[:M]
    return out


# ---------------------------------------------------------------------------
# Conv helpers (im2col glue in plain JAX, matmul hot path in Pallas)
# ---------------------------------------------------------------------------
# TODO(synk): fold the kh*kw taps into the K grid axis (padded NHWC activation
# streamed straight from HBM) to avoid materializing the 9x im2col patches.
def _im2col(x, kh, kw, stride, pad, dil):
    N, H, W, C = x.shape
    Hout = (H + 2 * pad - dil * (kh - 1) - 1) // stride + 1
    Wout = (W + 2 * pad - dil * (kw - 1) - 1) // stride + 1
    xp = jnp.pad(x, ((0, 0), (pad, pad), (pad, pad), (0, 0)))
    cols = []
    for i in range(kh):
        for j in range(kw):
            patch = xp[:, i * dil: i * dil + stride * (Hout - 1) + 1: stride,
                          j * dil: j * dil + stride * (Wout - 1) + 1: stride, :]
            cols.append(patch)
    patches = jnp.concatenate(cols, axis=-1)            # (N, Hout, Wout, kh*kw*C)
    return patches.reshape(N * Hout * Wout, kh * kw * C), Hout, Wout


def _conv2d(x, w_oihw, bias, stride, pad, dil, relu, residual=None):
    """x: (N,H,W,Cin) NHWC.  w_oihw: PyTorch-layout (Cout,Cin,kh,kw)."""
    Cout, Cin, kh, kw = w_oihw.shape
    N = x.shape[0]
    if kh == 1 and kw == 1 and pad == 0 and dil == 1:
        # 1x1 conv fast path: no im2col / concat, just a (strided) reshape.
        xs = x[:, ::stride, ::stride, :] if stride > 1 else x
        Hout, Wout = xs.shape[1], xs.shape[2]
        patches = xs.reshape(N * Hout * Wout, Cin)
        w2d = w_oihw.reshape(Cout, Cin).T
    else:
        w2d = jnp.transpose(w_oihw, (2, 3, 1, 0)).reshape(kh * kw * Cin, Cout)
        patches, Hout, Wout = _im2col(x, kh, kw, stride, pad, dil)
    res2d = None if residual is None else residual.reshape(N * Hout * Wout, Cout)
    out = _matmul_bias_act(patches, w2d, bias, res2d, relu)
    return out.reshape(N, Hout, Wout, Cout)


def _convbn_apply(p, x, stride, pad, dil, relu, residual=None):
    # BatchNorm folded with fixed (running) statistics -> eval-mode semantics.
    s = p['gamma'] * jax.lax.rsqrt(p['var'] + BN_EPS)
    bias = p['beta'] - p['mean'] * s
    w_f = p['w'] * s[:, None, None, None]
    return _conv2d(x, w_f, bias, stride, pad, dil, relu, residual)


# ---------------------------------------------------------------------------
# Parameter construction (deterministic, mirrors the PyTorch __init__)
# ---------------------------------------------------------------------------
def _convbn_params(key, cin, cout, k):
    kw_, kg, kb, km, kv = jax.random.split(key, 5)
    fan_in = cin * k * k
    return dict(
        w=jax.random.normal(kw_, (cout, cin, k, k), jnp.float32)
        * (2.0 / fan_in) ** 0.5,
        gamma=1.0 + 0.1 * jax.random.normal(kg, (cout,), jnp.float32),
        beta=0.1 * jax.random.normal(kb, (cout,), jnp.float32),
        mean=0.1 * jax.random.normal(km, (cout,), jnp.float32),
        var=1.0 + 0.1 * jnp.abs(jax.random.normal(kv, (cout,), jnp.float32)),
    )


def init_feature_extraction(key, concat_feature=False, concat_feature_channel=12):
    keys = iter(jax.random.split(key, 256))
    params = {}
    params['firstconv'] = [
        _convbn_params(next(keys), 3, 32, 3),
        _convbn_params(next(keys), 32, 32, 3),
        _convbn_params(next(keys), 32, 32, 3),
    ]
    inplanes = 32

    def make_layer(planes, blocks, stride):
        nonlocal inplanes
        layer = []
        for b in range(blocks):
            blk = dict(
                conv1=_convbn_params(next(keys), inplanes, planes, 3),
                conv2=_convbn_params(next(keys), planes, planes, 3),
                downsample=None,
            )
            if b == 0 and (stride != 1 or inplanes != planes):
                blk['downsample'] = _convbn_params(next(keys), inplanes, planes, 1)
            layer.append(blk)
            inplanes = planes
        return layer

    params['layer1'] = make_layer(32, 3, 1)
    params['layer2'] = make_layer(64, 16, 2)
    params['layer3'] = make_layer(128, 3, 1)
    params['layer4'] = make_layer(128, 3, 1)

    if concat_feature:
        params['lastconv'] = dict(
            convbn=_convbn_params(next(keys), 320, 128, 3),
            conv1x1_w=0.05 * jax.random.normal(
                next(keys), (concat_feature_channel, 128, 1, 1), jnp.float32),
        )
    return params


# ---------------------------------------------------------------------------
# Forward pass (matches feature_extraction.forward)
# ---------------------------------------------------------------------------
def _basic_block(p, x, stride, pad, dilation):
    padding = dilation if dilation > 1 else pad       # convbn padding rule
    out = _convbn_apply(p['conv1'], x, stride, padding, dilation, relu=True)
    if p['downsample'] is not None:
        identity = _convbn_apply(p['downsample'], x, stride, 0, 1, relu=False)
    else:
        identity = x
    # conv2 + BN + residual add (no ReLU after the add, as in GWCNet BasicBlock)
    return _convbn_apply(p['conv2'], out, 1, padding, dilation, relu=False,
                         residual=identity)


def _run_layer(layer_params, x, stride, pad, dilation):
    for b, blk in enumerate(layer_params):
        s = stride if b == 0 else 1
        x = _basic_block(blk, x, s, pad, dilation)
    return x


def feature_extraction_forward(params, x_nchw):
    x = jnp.transpose(x_nchw, (0, 2, 3, 1)).astype(jnp.float32)   # NCHW -> NHWC

    for p, s in zip(params['firstconv'], (2, 1, 1)):
        x = _convbn_apply(p, x, s, 1, 1, relu=True)

    x = _run_layer(params['layer1'], x, 1, 1, 1)
    l2 = _run_layer(params['layer2'], x, 2, 1, 1)
    l3 = _run_layer(params['layer3'], l2, 1, 1, 1)
    l4 = _run_layer(params['layer4'], l3, 1, 1, 2)

    gwc = jnp.concatenate([l2, l3, l4], axis=-1)                  # NHWC, C=320
    result = {'gwc_feature': jnp.transpose(gwc, (0, 3, 1, 2))}    # back to NCHW

    if 'lastconv' in params:
        y = _convbn_apply(params['lastconv']['convbn'], gwc, 1, 1, 1, relu=True)
        w = params['lastconv']['conv1x1_w']
        y = _conv2d(y, w, jnp.zeros((w.shape[0],), jnp.float32),
                    1, 0, 1, relu=False)
        result['concat_feature'] = jnp.transpose(y, (0, 3, 1, 2))
    return result


if __name__ == "__main__":
    key = jax.random.PRNGKey(0)
    pkey, xkey = jax.random.split(key)

    params = init_feature_extraction(pkey, concat_feature=False)
    # Small RGB input, NCHW like the PyTorch module.
    x = jax.random.normal(xkey, (2, 3, 16, 16), jnp.float32)

    out = jax.jit(feature_extraction_forward)(params, x)
    jax.block_until_ready(out)

    gwc = out['gwc_feature']
    assert gwc.shape == (2, 320, 4, 4), gwc.shape          # 64 + 128 + 128 channels, H/4, W/4
    assert jnp.all(jnp.isfinite(gwc))
    print("KERNEL_OK")
</pallas_src>

<mosaic_0001>
module attributes {stable_mosaic.version = 11 : i64} {
  func.func @_mm_kernel(%arg0: i32, %arg1: i32, %arg2: memref<128x27xbf16, #tpu.memory_space<vmem>>, %arg3: memref<27x32xbf16, #tpu.memory_space<vmem>>, %arg4: memref<1x32xf32, #tpu.memory_space<vmem>>, %arg5: memref<128x32xf32, #tpu.memory_space<vmem>>) attributes {dimension_semantics = [#tpu.dimension_semantics<parallel>, #tpu.dimension_semantics<arbitrary>], iteration_bounds = array<i64: 1, 1>, scalar_prefetch = 0 : i64, scratch_operands = 0 : i64, tpu.core_type = #tpu.core_type<tc>, window_params = [{transform_indices = @transform_0, window_bounds = array<i64: 128, 27>}, {transform_indices = @transform_1, window_bounds = array<i64: 27, 32>}, {pipeline_mode = #tpu.pipeline_mode<synchronous>, transform_indices = @transform_2, window_bounds = array<i64: 1, 32>}, {transform_indices = @transform_3, window_bounds = array<i64: 128, 32>}]} {
    %c0_i32 = arith.constant 0 : i32
    %0 = arith.cmpi eq, %arg1, %c0_i32 : i32
    %1 = arith.extui %0 : i1 to i32
    %c0_i32_0 = arith.constant 0 : i32
    %2 = arith.cmpi ne, %1, %c0_i32_0 : i32
    scf.if %2 {
      %c0_10 = arith.constant 0 : index
      %c0_11 = arith.constant 0 : index
      %12 = vector.load %arg4[%c0_10, %c0_11] : memref<1x32xf32, #tpu.memory_space<vmem>>, vector<1x32xf32>
      %13 = vector.shape_cast %12 : vector<1x32xf32> to vector<1x32xf32>
      %14 = vector.broadcast %13 : vector<1x32xf32> to vector<128x32xf32>
      %c0_12 = arith.constant 0 : index
      %c0_13 = arith.constant 0 : index
      %15 = vector.load %arg5[%c0_12, %c0_13] : memref<128x32xf32, #tpu.memory_space<vmem>>, vector<128x32xf32>
      tpu.vector_store %arg5[%c0_12, %c0_13], %14 {strides = array<i32>} : memref<128x32xf32, #tpu.memory_space<vmem>>, vector<128x32xf32>,
    } else {
    }
    %c0 = arith.constant 0 : index
    %c0_1 = arith.constant 0 : index
    %3 = vector.load %arg5[%c0, %c0_1] : memref<128x32xf32, #tpu.memory_space<vmem>>, vector<128x32xf32>
    %c0_2 = arith.constant 0 : index
    %c0_3 = arith.constant 0 : index
    %4 = vector.load %arg2[%c0_2, %c0_3] : memref<128x27xbf16, #tpu.memory_space<vmem>>, vector<128x27xbf16>
    %c0_4 = arith.constant 0 : index
    %c0_5 = arith.constant 0 : index
    %5 = vector.load %arg3[%c0_4, %c0_5] : memref<27x32xbf16, #tpu.memory_space<vmem>>, vector<27x32xbf16>
    %cst = arith.constant dense<0.000000e+00> : vector<128x32xf32>
    %6 = tpu.matmul %4, %5, %cst {dimension_numbers = #tpu.dot_dimension_numbers<[1], [0], [0], [1], [0, 0, 1, 1], [], []>} : vector<128x27xbf16>, vector<27x32xbf16>, vector<128x32xf32> -> vector<128x32xf32>
    %7 = arith.addf %3, %6 : vector<128x32xf32>
    %c0_6 = arith.constant 0 : index
    %c0_7 = arith.constant 0 : index
    %8 = vector.load %arg5[%c0_6, %c0_7] : memref<128x32xf32, #tpu.memory_space<vmem>>, vector<128x32xf32>
    tpu.vector_store %arg5[%c0_6, %c0_7], %7 {strides = array<i32>} : memref<128x32xf32, #tpu.memory_space<vmem>>, vector<128x32xf32>,
    %c0_i32_8 = arith.constant 0 : i32
    %9 = arith.cmpi eq, %arg1, %c0_i32_8 : i32
    %10 = arith.extui %9 : i1 to i32
    %c0_i32_9 = arith.constant 0 : i32
    %11 = arith.cmpi ne, %10, %c0_i32_9 : i32
    scf.if %11 {
      %c0_10 = arith.constant 0 : index
      %c0_11 = arith.constant 0 : index
      %12 = vector.load %arg5[%c0_10, %c0_11] : memref<128x32xf32, #tpu.memory_space<vmem>>, vector<128x32xf32>
      %cst_12 = arith.constant 0.000000e+00 : f32
      %13 = vector.broadcast %cst_12 : f32 to vector<128x32xf32>
      %14 = arith.maximumf %12, %13 : vector<128x32xf32>
      %c0_13 = arith.constant 0 : index
      %c0_14 = arith.constant 0 : index
      %15 = vector.load %arg5[%c0_13, %c0_14] : memref<128x32xf32, #tpu.memory_space<vmem>>, vector<128x32xf32>
      tpu.vector_store %arg5[%c0_13, %c0_14], %14 {strides = array<i32>} : memref<128x32xf32, #tpu.memory_space<vmem>>, vector<128x32xf32>,
    } else {
    }
    return
  }
  func.func @transform_0(%arg0: i32, %arg1: i32) -> (i32, i32) {
    %c0_i32 = arith.constant 0 : i32
    return %arg0, %arg1 : i32, i32
  }
  func.func @transform_1(%arg0: i32, %arg1: i32) -> (i32, i32) {
    %c0_i32 = arith.constant 0 : i32
    %c0_i32_0 = arith.constant 0 : i32
    return %arg1, %c0_i32 : i32, i32
  }
  func.func @transform_2(%arg0: i32, %arg1: i32) -> (i32, i32) {
    %c0_i32 = arith.constant 0 : i32
    %c0_i32_0 = arith.constant 0 : i32
    %c0_i32_1 = arith.constant 0 : i32
    return %c0_i32, %c0_i32_0 : i32, i32
  }
  func.func @transform_3(%arg0: i32, %arg1: i32) -> (i32, i32) {
    %c0_i32 = arith.constant 0 : i32
    %c0_i32_0 = arith.constant 0 : i32
    return %arg0, %c0_i32 : i32, i32
  }
}

module attributes {stable_mosaic.version = 11 : i64} {
  func.func @_mm_kernel(%arg0: i32, %arg1: i32, %arg2: memref<128x288xbf16, #tpu.memory_space<vmem>>, %arg3: memref<288x32xbf16, #tpu.memory_space<vmem>>, %arg4: memref<1x32xf32, #tpu.memory_space<vmem>>, %arg5: memref<128x32xf32, #tpu.memory_space<vmem>>) attributes {dimension_semantics = [#tpu.dimension_semantics<parallel>, #tpu.dimension_semantics<arbitrary>], iteration_bounds = array<i64: 1, 1>, scalar_prefetch = 0 : i64, scratch_operands = 0 : i64, tpu.core_type = #tpu.core_type<tc>, window_params = [{transform_indices = @transform_0, window_bounds = array<i64: 128, 288>}, {transform_indices = @transform_1, window_bounds = array<i64: 288, 32>}, {pipeline_mode = #tpu.pipeline_mode<synchronous>, transform_indices = @transform_2, window_bounds = array<i64: 1, 32>}, {transform_indices = @transform_3, window_bounds = array<i64: 128, 32>}]} {
    %c0_i32 = arith.constant 0 : i32
    %0 = arith.cmpi eq, %arg1, %c0_i32 : i32
    %1 = arith.extui %0 : i1 to i32
    %c0_i32_0 = arith.constant 0 : i32
    %2 = arith.cmpi ne, %1, %c0_i32_0 : i32
    scf.if %2 {
      %c0_10 = arith.constant 0 : index
      %c0_11 = arith.constant 0 : index
      %12 = vector.load %arg4[%c0_10, %c0_11] : memref<1x32xf32, #tpu.memory_space<vmem>>, vector<1x32xf32>
      %13 = vector.shape_cast %12 : vector<1x32xf32> to vector<1x32xf32>
      %14 = vector.broadcast %13 : vector<1x32xf32> to vector<128x32xf32>
      %c0_12 = arith.constant 0 : index
      %c0_13 = arith.constant 0 : index
      %15 = vector.load %arg5[%c0_12, %c0_13] : memref<128x32xf32, #tpu.memory_space<vmem>>, vector<128x32xf32>
      tpu.vector_store %arg5[%c0_12, %c0_13], %14 {strides = array<i32>} : memref<128x32xf32, #tpu.memory_space<vmem>>, vector<128x32xf32>,
    } else {
    }
    %c0 = arith.constant 0 : index
    %c0_1 = arith.constant 0 : index
    %3 = vector.load %arg5[%c0, %c0_1] : memref<128x32xf32, #tpu.memory_space<vmem>>, vector<128x32xf32>
    %c0_2 = arith.constant 0 : index
    %c0_3 = arith.constant 0 : index
    %4 = vector.load %arg2[%c0_2, %c0_3] : memref<128x288xbf16, #tpu.memory_space<vmem>>, vector<128x288xbf16>
    %c0_4 = arith.constant 0 : index
    %c0_5 = arith.constant 0 : index
    %5 = vector.load %arg3[%c0_4, %c0_5] : memref<288x32xbf16, #tpu.memory_space<vmem>>, vector<288x32xbf16>
    %cst = arith.constant dense<0.000000e+00> : vector<128x32xf32>
    %6 = tpu.matmul %4, %5, %cst {dimension_numbers = #tpu.dot_dimension_numbers<[1], [0], [0], [1], [0, 0, 1, 1], [], []>} : vector<128x288xbf16>, vector<288x32xbf16>, vector<128x32xf32> -> vector<128x32xf32>
    %7 = arith.addf %3, %6 : vector<128x32xf32>
    %c0_6 = arith.constant 0 : index
    %c0_7 = arith.constant 0 : index
    %8 = vector.load %arg5[%c0_6, %c0_7] : memref<128x32xf32, #tpu.memory_space<vmem>>, vector<128x32xf32>
    tpu.vector_store %arg5[%c0_6, %c0_7], %7 {strides = array<i32>} : memref<128x32xf32, #tpu.memory_space<vmem>>, vector<128x32xf32>,
    %c0_i32_8 = arith.constant 0 : i32
    %9 = arith.cmpi eq, %arg1, %c0_i32_8 : i32
    %10 = arith.extui %9 : i1 to i32
    %c0_i32_9 = arith.constant 0 : i32
    %11 = arith.cmpi ne, %10, %c0_i32_9 : i32
    scf.if %11 {
      %c0_10 = arith.constant 0 : index
      %c0_11 = arith.constant 0 : index
      %12 = vector.load %arg5[%c0_10, %c0_11] : memref<128x32xf32, #tpu.memory_space<vmem>>, vector<128x32xf32>
      %cst_12 = arith.constant 0.000000e+00 : f32
      %13 = vector.broadcast %cst_12 : f32 to vector<128x32xf32>
      %14 = arith.maximumf %12, %13 : vector<128x32xf32>
      %c0_13 = arith.constant 0 : index
      %c0_14 = arith.constant 0 : index
      %15 = vector.load %arg5[%c0_13, %c0_14] : memref<128x32xf32, #tpu.memory_space<vmem>>, vector<128x32xf32>
      tpu.vector_store %arg5[%c0_13, %c0_14], %14 {strides = array<i32>} : memref<128x32xf32, #tpu.memory_space<vmem>>, vector<128x32xf32>,
    } else {
    }
    return
  }
  func.func @transform_0(%arg0: i32, %arg1: i32) -> (i32, i32) {
    %c0_i32 = arith.constant 0 : i32
    return %arg0, %arg1 : i32, i32
  }
  func.func @transform_1(%arg0: i32, %arg1: i32) -> (i32, i32) {
    %c0_i32 = arith.constant 0 : i32
    %c0_i32_0 = arith.constant 0 : i32
    return %arg1, %c0_i32 : i32, i32
  }
  func.func @transform_2(%arg0: i32, %arg1: i32) -> (i32, i32) {
    %c0_i32 = arith.constant 0 : i32
    %c0_i32_0 = arith.constant 0 : i32
    %c0_i32_1 = arith.constant 0 : i32
    return %c0_i32, %c0_i32_0 : i32, i32
  }
  func.func @transform_3(%arg0: i32, %arg1: i32) -> (i32, i32) {
    %c0_i32 = arith.constant 0 : i32
    %c0_i32_0 = arith.constant 0 : i32
    return %arg0, %c0_i32 : i32, i32
  }
}

module attributes {stable_mosaic.version = 11 : i64} {
  func.func @_mm_res_kernel(%arg0: i32, %arg1: i32, %arg2: memref<128x288xbf16, #tpu.memory_space<vmem>>, %arg3: memref<288x32xbf16, #tpu.memory_space<vmem>>, %arg4: memref<1x32xf32, #tpu.memory_space<vmem>>, %arg5: memref<128x32xf32, #tpu.memory_space<vmem>>, %arg6: memref<128x32xf32, #tpu.memory_space<vmem>>) attributes {dimension_semantics = [#tpu.dimension_semantics<parallel>, #tpu.dimension_semantics<arbitrary>], iteration_bounds = array<i64: 1, 1>, scalar_prefetch = 0 : i64, scratch_operands = 0 : i64, tpu.core_type = #tpu.core_type<tc>, window_params = [{transform_indices = @transform_0, window_bounds = array<i64: 128, 288>}, {transform_indices = @transform_1, window_bounds = array<i64: 288, 32>}, {pipeline_mode = #tpu.pipeline_mode<synchronous>, transform_indices = @transform_2, window_bounds = array<i64: 1, 32>}, {transform_indices = @transform_3, window_bounds = array<i64: 128, 32>}, {transform_indices = @transform_4, window_bounds = array<i64: 128, 32>}]} {
    %c0_i32 = arith.constant 0 : i32
    %0 = arith.cmpi eq, %arg1, %c0_i32 : i32
    %1 = arith.extui %0 : i1 to i32
    %c0_i32_0 = arith.constant 0 : i32
    %2 = arith.cmpi ne, %1, %c0_i32_0 : i32
    scf.if %2 {
      %c0_10 = arith.constant 0 : index
      %c0_11 = arith.constant 0 : index
      %12 = vector.load %arg4[%c0_10, %c0_11] : memref<1x32xf32, #tpu.memory_space<vmem>>, vector<1x32xf32>
      %13 = vector.shape_cast %12 : vector<1x32xf32> to vector<1x32xf32>
      %14 = vector.broadcast %13 : vector<1x32xf32> to vector<128x32xf32>
      %c0_12 = arith.constant 0 : index
      %c0_13 = arith.constant 0 : index
      %15 = vector.load %arg6[%c0_12, %c0_13] : memref<128x32xf32, #tpu.memory_space<vmem>>, vector<128x32xf32>
      tpu.vector_store %arg6[%c0_12, %c0_13], %14 {strides = array<i32>} : memref<128x32xf32, #tpu.memory_space<vmem>>, vector<128x32xf32>,
    } else {
    }
    %c0 = arith.constant 0 : index
    %c0_1 = arith.constant 0 : index
    %3 = vector.load %arg6[%c0, %c0_1] : memref<128x32xf32, #tpu.memory_space<vmem>>, vector<128x32xf32>
    %c0_2 = arith.constant 0 : index
    %c0_3 = arith.constant 0 : index
    %4 = vector.load %arg2[%c0_2, %c0_3] : memref<128x288xbf16, #tpu.memory_space<vmem>>, vector<128x288xbf16>
    %c0_4 = arith.constant 0 : index
    %c0_5 = arith.constant 0 : index
    %5 = vector.load %arg3[%c0_4, %c0_5] : memref<288x32xbf16, #tpu.memory_space<vmem>>, vector<288x32xbf16>
    %cst = arith.constant dense<0.000000e+00> : vector<128x32xf32>
    %6 = tpu.matmul %4, %5, %cst {dimension_numbers = #tpu.dot_dimension_numbers<[1], [0], [0], [1], [0, 0, 1, 1], [], []>} : vector<128x288xbf16>, vector<288x32xbf16>, vector<128x32xf32> -> vector<128x32xf32>
    %7 = arith.addf %3, %6 : vector<128x32xf32>
    %c0_6 = arith.constant 0 : index
    %c0_7 = arith.constant 0 : index
    %8 = vector.load %arg6[%c0_6, %c0_7] : memref<128x32xf32, #tpu.memory_space<vmem>>, vector<128x32xf32>
    tpu.vector_store %arg6[%c0_6, %c0_7], %7 {strides = array<i32>} : memref<128x32xf32, #tpu.memory_space<vmem>>, vector<128x32xf32>,
    %c0_i32_8 = arith.constant 0 : i32
    %9 = arith.cmpi eq, %arg1, %c0_i32_8 : i32
    %10 = arith.extui %9 : i1 to i32
    %c0_i32_9 = arith.constant 0 : i32
    %11 = arith.cmpi ne, %10, %c0_i32_9 : i32
    scf.if %11 {
      %c0_10 = arith.constant 0 : index
      %c0_11 = arith.constant 0 : index
      %12 = vector.load %arg6[%c0_10, %c0_11] : memref<128x32xf32, #tpu.memory_space<vmem>>, vector<128x32xf32>
      %c0_12 = arith.constant 0 : index
      %c0_13 = arith.constant 0 : index
      %13 = vector.load %arg5[%c0_12, %c0_13] : memref<128x32xf32, #tpu.memory_space<vmem>>, vector<128x32xf32>
      %14 = arith.addf %12, %13 : vector<128x32xf32>
      %c0_14 = arith.constant 0 : index
      %c0_15 = arith.constant 0 : index
      %15 = vector.load %arg6[%c0_14, %c0_15] : memref<128x32xf32, #tpu.memory_space<vmem>>, vector<128x32xf32>
      tpu.vector_store %arg6[%c0_14, %c0_15], %14 {strides = array<i32>} : memref<128x32xf32, #tpu.memory_space<vmem>>, vector<128x32xf32>,
    } else {
    }
    return
  }
  func.func @transform_0(%arg0: i32, %arg1: i32) -> (i32, i32) {
    %c0_i32 = arith.constant 0 : i32
    return %arg0, %arg1 : i32, i32
  }
  func.func @transform_1(%arg0: i32, %arg1: i32) -> (i32, i32) {
    %c0_i32 = arith.constant 0 : i32
    %c0_i32_0 = arith.constant 0 : i32
    return %arg1, %c0_i32 : i32, i32
  }
  func.func @transform_2(%arg0: i32, %arg1: i32) -> (i32, i32) {
    %c0_i32 = arith.constant 0 : i32
    %c0_i32_0 = arith.constant 0 : i32
    %c0_i32_1 = arith.constant 0 : i32
    return %c0_i32, %c0_i32_0 : i32, i32
  }
  func.func @transform_3(%arg0: i32, %arg1: i32) -> (i32, i32) {
    %c0_i32 = arith.constant 0 : i32
    %c0_i32_0 = arith.constant 0 : i32
    return %arg0, %c0_i32 : i32, i32
  }
  func.func @transform_4(%arg0: i32, %arg1: i32) -> (i32, i32) {
    %c0_i32 = arith.constant 0 : i32
    %c0_i32_0 = arith.constant 0 : i32
    return %arg0, %c0_i32 : i32, i32
  }
}

module attributes {stable_mosaic.version = 11 : i64} {
  func.func @_mm_kernel(%arg0: i32, %arg1: i32, %arg2: memref<32x288xbf16, #tpu.memory_space<vmem>>, %arg3: memref<288x64xbf16, #tpu.memory_space<vmem>>, %arg4: memref<1x64xf32, #tpu.memory_space<vmem>>, %arg5: memref<32x64xf32, #tpu.memory_space<vmem>>) attributes {dimension_semantics = [#tpu.dimension_semantics<parallel>, #tpu.dimension_semantics<arbitrary>], iteration_bounds = array<i64: 1, 1>, scalar_prefetch = 0 : i64, scratch_operands = 0 : i64, tpu.core_type = #tpu.core_type<tc>, window_params = [{transform_indices = @transform_0, window_bounds = array<i64: 32, 288>}, {transform_indices = @transform_1, window_bounds = array<i64: 288, 64>}, {pipeline_mode = #tpu.pipeline_mode<synchronous>, transform_indices = @transform_2, window_bounds = array<i64: 1, 64>}, {transform_indices = @transform_3, window_bounds = array<i64: 32, 64>}]} {
    %c0_i32 = arith.constant 0 : i32
    %0 = arith.cmpi eq, %arg1, %c0_i32 : i32
    %1 = arith.extui %0 : i1 to i32
    %c0_i32_0 = arith.constant 0 : i32
    %2 = arith.cmpi ne, %1, %c0_i32_0 : i32
    scf.if %2 {
      %c0_10 = arith.constant 0 : index
      %c0_11 = arith.constant 0 : index
      %12 = vector.load %arg4[%c0_10, %c0_11] : memref<1x64xf32, #tpu.memory_space<vmem>>, vector<1x64xf32>
      %13 = vector.shape_cast %12 : vector<1x64xf32> to vector<1x64xf32>
      %14 = vector.broadcast %13 : vector<1x64xf32> to vector<32x64xf32>
      %c0_12 = arith.constant 0 : index
      %c0_13 = arith.constant 0 : index
      %15 = vector.load %arg5[%c0_12, %c0_13] : memref<32x64xf32, #tpu.memory_space<vmem>>, vector<32x64xf32>
      tpu.vector_store %arg5[%c0_12, %c0_13], %14 {strides = array<i32>} : memref<32x64xf32, #tpu.memory_space<vmem>>, vector<32x64xf32>,
    } else {
    }
    %c0 = arith.constant 0 : index
    %c0_1 = arith.constant 0 : index
    %3 = vector.load %arg5[%c0, %c0_1] : memref<32x64xf32, #tpu.memory_space<vmem>>, vector<32x64xf32>
    %c0_2 = arith.constant 0 : index
    %c0_3 = arith.constant 0 : index
    %4 = vector.load %arg2[%c0_2, %c0_3] : memref<32x288xbf16, #tpu.memory_space<vmem>>, vector<32x288xbf16>
    %c0_4 = arith.constant 0 : index
    %c0_5 = arith.constant 0 : index
    %5 = vector.load %arg3[%c0_4, %c0_5] : memref<288x64xbf16, #tpu.memory_space<vmem>>, vector<288x64xbf16>
    %cst = arith.constant dense<0.000000e+00> : vector<32x64xf32>
    %6 = tpu.matmul %4, %5, %cst {dimension_numbers = #tpu.dot_dimension_numbers<[1], [0], [0], [1], [0, 0, 1, 1], [], []>} : vector<32x288xbf16>, vector<288x64xbf16>, vector<32x64xf32> -> vector<32x64xf32>
    %7 = arith.addf %3, %6 : vector<32x64xf32>
    %c0_6 = arith.constant 0 : index
    %c0_7 = arith.constant 0 : index
    %8 = vector.load %arg5[%c0_6, %c0_7] : memref<32x64xf32, #tpu.memory_space<vmem>>, vector<32x64xf32>
    tpu.vector_store %arg5[%c0_6, %c0_7], %7 {strides = array<i32>} : memref<32x64xf32, #tpu.memory_space<vmem>>, vector<32x64xf32>,
    %c0_i32_8 = arith.constant 0 : i32
    %9 = arith.cmpi eq, %arg1, %c0_i32_8 : i32
    %10 = arith.extui %9 : i1 to i32
    %c0_i32_9 = arith.constant 0 : i32
    %11 = arith.cmpi ne, %10, %c0_i32_9 : i32
    scf.if %11 {
      %c0_10 = arith.constant 0 : index
      %c0_11 = arith.constant 0 : index
      %12 = vector.load %arg5[%c0_10, %c0_11] : memref<32x64xf32, #tpu.memory_space<vmem>>, vector<32x64xf32>
      %cst_12 = arith.constant 0.000000e+00 : f32
      %13 = vector.broadcast %cst_12 : f32 to vector<32x64xf32>
      %14 = arith.maximumf %12, %13 : vector<32x64xf32>
      %c0_13 = arith.constant 0 : index
      %c0_14 = arith.constant 0 : index
      %15 = vector.load %arg5[%c0_13, %c0_14] : memref<32x64xf32, #tpu.memory_space<vmem>>, vector<32x64xf32>
      tpu.vector_store %arg5[%c0_13, %c0_14], %14 {strides = array<i32>} : memref<32x64xf32, #tpu.memory_space<vmem>>, vector<32x64xf32>,
    } else {
    }
    return
  }
  func.func @transform_0(%arg0: i32, %arg1: i32) -> (i32, i32) {
    %c0_i32 = arith.constant 0 : i32
    return %arg0, %arg1 : i32, i32
  }
  func.func @transform_1(%arg0: i32, %arg1: i32) -> (i32, i32) {
    %c0_i32 = arith.constant 0 : i32
    %c0_i32_0 = arith.constant 0 : i32
    return %arg1, %c0_i32 : i32, i32
  }
  func.func @transform_2(%arg0: i32, %arg1: i32) -> (i32, i32) {
    %c0_i32 = arith.constant 0 : i32
    %c0_i32_0 = arith.constant 0 : i32
    %c0_i32_1 = arith.constant 0 : i32
    return %c0_i32, %c0_i32_0 : i32, i32
  }
  func.func @transform_3(%arg0: i32, %arg1: i32) -> (i32, i32) {
    %c0_i32 = arith.constant 0 : i32
    %c0_i32_0 = arith.constant 0 : i32
    return %arg0, %c0_i32 : i32, i32
  }
}

module attributes {stable_mosaic.version = 11 : i64} {
  func.func @_mm_kernel(%arg0: i32, %arg1: i32, %arg2: memref<32x32xbf16, #tpu.memory_space<vmem>>, %arg3: memref<32x64xbf16, #tpu.memory_space<vmem>>, %arg4: memref<1x64xf32, #tpu.memory_space<vmem>>, %arg5: memref<32x64xf32, #tpu.memory_space<vmem>>) attributes {dimension_semantics = [#tpu.dimension_semantics<parallel>, #tpu.dimension_semantics<arbitrary>], iteration_bounds = array<i64: 1, 1>, scalar_prefetch = 0 : i64, scratch_operands = 0 : i64, tpu.core_type = #tpu.core_type<tc>, window_params = [{transform_indices = @transform_0, window_bounds = array<i64: 32, 32>}, {transform_indices = @transform_1, window_bounds = array<i64: 32, 64>}, {pipeline_mode = #tpu.pipeline_mode<synchronous>, transform_indices = @transform_2, window_bounds = array<i64: 1, 64>}, {transform_indices = @transform_3, window_bounds = array<i64: 32, 64>}]} {
    %c0_i32 = arith.constant 0 : i32
    %0 = arith.cmpi eq, %arg1, %c0_i32 : i32
    %1 = arith.extui %0 : i1 to i32
    %c0_i32_0 = arith.constant 0 : i32
    %2 = arith.cmpi ne, %1, %c0_i32_0 : i32
    scf.if %2 {
      %c0_8 = arith.constant 0 : index
      %c0_9 = arith.constant 0 : index
      %9 = vector.load %arg4[%c0_8, %c0_9] : memref<1x64xf32, #tpu.memory_space<vmem>>, vector<1x64xf32>
      %10 = vector.shape_cast %9 : vector<1x64xf32> to vector<1x64xf32>
      %11 = vector.broadcast %10 : vector<1x64xf32> to vector<32x64xf32>
      %c0_10 = arith.constant 0 : index
      %c0_11 = arith.constant 0 : index
      %12 = vector.load %arg5[%c0_10, %c0_11] : memref<32x64xf32, #tpu.memory_space<vmem>>, vector<32x64xf32>
      tpu.vector_store %arg5[%c0_10, %c0_11], %11 {strides = array<i32>} : memref<32x64xf32, #tpu.memory_space<vmem>>, vector<32x64xf32>,
    } else {
    }
    %c0 = arith.constant 0 : index
    %c0_1 = arith.constant 0 : index
    %3 = vector.load %arg5[%c0, %c0_1] : memref<32x64xf32, #tpu.memory_space<vmem>>, vector<32x64xf32>
    %c0_2 = arith.constant 0 : index
    %c0_3 = arith.constant 0 : index
    %4 = vector.load %arg2[%c0_2, %c0_3] : memref<32x32xbf16, #tpu.memory_space<vmem>>, vector<32x32xbf16>
    %c0_4 = arith.constant 0 : index
    %c0_5 = arith.constant 0 : index
    %5 = vector.load %arg3[%c0_4, %c0_5] : memref<32x64xbf16, #tpu.memory_space<vmem>>, vector<32x64xbf16>
    %cst = arith.constant dense<0.000000e+00> : vector<32x64xf32>
    %6 = tpu.matmul %4, %5, %cst {dimension_numbers = #tpu.dot_dimension_numbers<[1], [0], [0], [1], [0, 0, 1, 1], [], []>} : vector<32x32xbf16>, vector<32x64xbf16>, vector<32x64xf32> -> vector<32x64xf32>
    %7 = arith.addf %3, %6 : vector<32x64xf32>
    %c0_6 = arith.constant 0 : index
    %c0_7 = arith.constant 0 : index
    %8 = vector.load %arg5[%c0_6, %c0_7] : memref<32x64xf32, #tpu.memory_space<vmem>>, vector<32x64xf32>
    tpu.vector_store %arg5[%c0_6, %c0_7], %7 {strides = array<i32>} : memref<32x64xf32, #tpu.memory_space<vmem>>, vector<32x64xf32>,
    return
  }
  func.func @transform_0(%arg0: i32, %arg1: i32) -> (i32, i32) {
    %c0_i32 = arith.constant 0 : i32
    return %arg0, %arg1 : i32, i32
  }
  func.func @transform_1(%arg0: i32, %arg1: i32) -> (i32, i32) {
    %c0_i32 = arith.constant 0 : i32
    %c0_i32_0 = arith.constant 0 : i32
    return %arg1, %c0_i32 : i32, i32
  }
  func.func @transform_2(%arg0: i32, %arg1: i32) -> (i32, i32) {
    %c0_i32 = arith.constant 0 : i32
    %c0_i32_0 = arith.constant 0 : i32
    %c0_i32_1 = arith.constant 0 : i32
    return %c0_i32, %c0_i32_0 : i32, i32
  }
  func.func @transform_3(%arg0: i32, %arg1: i32) -> (i32, i32) {
    %c0_i32 = arith.constant 0 : i32
    %c0_i32_0 = arith.constant 0 : i32
    return %arg0, %c0_i32 : i32, i32
  }
}

module attributes {stable_mosaic.version = 11 : i64} {
  func.func @_mm_kernel(%arg0: i32, %arg1: i32, %arg2: memref<32x576xbf16, #tpu.memory_space<vmem>>, %arg3: memref<576x64xbf16, #tpu.memory_space<vmem>>, %arg4: memref<1x64xf32, #tpu.memory_space<vmem>>, %arg5: memref<32x64xf32, #tpu.memory_space<vmem>>) attributes {dimension_semantics = [#tpu.dimension_semantics<parallel>, #tpu.dimension_semantics<arbitrary>], iteration_bounds = array<i64: 1, 1>, scalar_prefetch = 0 : i64, scratch_operands = 0 : i64, tpu.core_type = #tpu.core_type<tc>, window_params = [{transform_indices = @transform_0, window_bounds = array<i64: 32, 576>}, {transform_indices = @transform_1, window_bounds = array<i64: 576, 64>}, {pipeline_mode = #tpu.pipeline_mode<synchronous>, transform_indices = @transform_2, window_bounds = array<i64: 1, 64>}, {transform_indices = @transform_3, window_bounds = array<i64: 32, 64>}]} {
    %c0_i32 = arith.constant 0 : i32
    %0 = arith.cmpi eq, %arg1, %c0_i32 : i32
    %1 = arith.extui %0 : i1 to i32
    %c0_i32_0 = arith.constant 0 : i32
    %2 = arith.cmpi ne, %1, %c0_i32_0 : i32
    scf.if %2 {
      %c0_10 = arith.constant 0 : index
      %c0_11 = arith.constant 0 : index
      %12 = vector.load %arg4[%c0_10, %c0_11] : memref<1x64xf32, #tpu.memory_space<vmem>>, vector<1x64xf32>
      %13 = vector.shape_cast %12 : vector<1x64xf32> to vector<1x64xf32>
      %14 = vector.broadcast %13 : vector<1x64xf32> to vector<32x64xf32>
      %c0_12 = arith.constant 0 : index
      %c0_13 = arith.constant 0 : index
      %15 = vector.load %arg5[%c0_12, %c0_13] : memref<32x64xf32, #tpu.memory_space<vmem>>, vector<32x64xf32>
      tpu.vector_store %arg5[%c0_12, %c0_13], %14 {strides = array<i32>} : memref<32x64xf32, #tpu.memory_space<vmem>>, vector<32x64xf32>,
    } else {
    }
    %c0 = arith.constant 0 : index
    %c0_1 = arith.constant 0 : index
    %3 = vector.load %arg5[%c0, %c0_1] : memref<32x64xf32, #tpu.memory_space<vmem>>, vector<32x64xf32>
    %c0_2 = arith.constant 0 : index
    %c0_3 = arith.constant 0 : index
    %4 = vector.load %arg2[%c0_2, %c0_3] : memref<32x576xbf16, #tpu.memory_space<vmem>>, vector<32x576xbf16>
    %c0_4 = arith.constant 0 : index
    %c0_5 = arith.constant 0 : index
    %5 = vector.load %arg3[%c0_4, %c0_5] : memref<576x64xbf16, #tpu.memory_space<vmem>>, vector<576x64xbf16>
    %cst = arith.constant dense<0.000000e+00> : vector<32x64xf32>
    %6 = tpu.matmul %4, %5, %cst {dimension_numbers = #tpu.dot_dimension_numbers<[1], [0], [0], [1], [0, 0, 1, 1], [], []>} : vector<32x576xbf16>, vector<576x64xbf16>, vector<32x64xf32> -> vector<32x64xf32>
    %7 = arith.addf %3, %6 : vector<32x64xf32>
    %c0_6 = arith.constant 0 : index
    %c0_7 = arith.constant 0 : index
    %8 = vector.load %arg5[%c0_6, %c0_7] : memref<32x64xf32, #tpu.memory_space<vmem>>, vector<32x64xf32>
    tpu.vector_store %arg5[%c0_6, %c0_7], %7 {strides = array<i32>} : memref<32x64xf32, #tpu.memory_space<vmem>>, vector<32x64xf32>,
    %c0_i32_8 = arith.constant 0 : i32
    %9 = arith.cmpi eq, %arg1, %c0_i32_8 : i32
    %10 = arith.extui %9 : i1 to i32
    %c0_i32_9 = arith.constant 0 : i32
    %11 = arith.cmpi ne, %10, %c0_i32_9 : i32
    scf.if %11 {
      %c0_10 = arith.constant 0 : index
      %c0_11 = arith.constant 0 : index
      %12 = vector.load %arg5[%c0_10, %c0_11] : memref<32x64xf32, #tpu.memory_space<vmem>>, vector<32x64xf32>
      %cst_12 = arith.constant 0.000000e+00 : f32
      %13 = vector.broadcast %cst_12 : f32 to vector<32x64xf32>
      %14 = arith.maximumf %12, %13 : vector<32x64xf32>
      %c0_13 = arith.constant 0 : index
      %c0_14 = arith.constant 0 : index
      %15 = vector.load %arg5[%c0_13, %c0_14] : memref<32x64xf32, #tpu.memory_space<vmem>>, vector<32x64xf32>
      tpu.vector_store %arg5[%c0_13, %c0_14], %14 {strides = array<i32>} : memref<32x64xf32, #tpu.memory_space<vmem>>, vector<32x64xf32>,
    } else {
    }
    return
  }
  func.func @transform_0(%arg0: i32, %arg1: i32) -> (i32, i32) {
    %c0_i32 = arith.constant 0 : i32
    return %arg0, %arg1 : i32, i32
  }
  func.func @transform_1(%arg0: i32, %arg1: i32) -> (i32, i32) {
    %c0_i32 = arith.constant 0 : i32
    %c0_i32_0 = arith.constant 0 : i32
    return %arg1, %c0_i32 : i32, i32
  }
  func.func @transform_2(%arg0: i32, %arg1: i32) -> (i32, i32) {
    %c0_i32 = arith.constant 0 : i32
    %c0_i32_0 = arith.constant 0 : i32
    %c0_i32_1 = arith.constant 0 : i32
    return %c0_i32, %c0_i32_0 : i32, i32
  }
  func.func @transform_3(%arg0: i32, %arg1: i32) -> (i32, i32) {
    %c0_i32 = arith.constant 0 : i32
    %c0_i32_0 = arith.constant 0 : i32
    return %arg0, %c0_i32 : i32, i32
  }
}

module attributes {stable_mosaic.version = 11 : i64} {
  func.func @_mm_res_kernel(%arg0: i32, %arg1: i32, %arg2: memref<32x576xbf16, #tpu.memory_space<vmem>>, %arg3: memref<576x64xbf16, #tpu.memory_space<vmem>>, %arg4: memref<1x64xf32, #tpu.memory_space<vmem>>, %arg5: memref<32x64xf32, #tpu.memory_space<vmem>>, %arg6: memref<32x64xf32, #tpu.memory_space<vmem>>) attributes {dimension_semantics = [#tpu.dimension_semantics<parallel>, #tpu.dimension_semantics<arbitrary>], iteration_bounds = array<i64: 1, 1>, scalar_prefetch = 0 : i64, scratch_operands = 0 : i64, tpu.core_type = #tpu.core_type<tc>, window_params = [{transform_indices = @transform_0, window_bounds = array<i64: 32, 576>}, {transform_indices = @transform_1, window_bounds = array<i64: 576, 64>}, {pipeline_mode = #tpu.pipeline_mode<synchronous>, transform_indices = @transform_2, window_bounds = array<i64: 1, 64>}, {transform_indices = @transform_3, window_bounds = array<i64: 32, 64>}, {transform_indices = @transform_4, window_bounds = array<i64: 32, 64>}]} {
    %c0_i32 = arith.constant 0 : i32
    %0 = arith.cmpi eq, %arg1, %c0_i32 : i32
    %1 = arith.extui %0 : i1 to i32
    %c0_i32_0 = arith.constant 0 : i32
    %2 = arith.cmpi ne, %1, %c0_i32_0 : i32
    scf.if %2 {
      %c0_10 = arith.constant 0 : index
      %c0_11 = arith.constant 0 : index
      %12 = vector.load %arg4[%c0_10, %c0_11] : memref<1x64xf32, #tpu.memory_space<vmem>>, vector<1x64xf32>
      %13 = vector.shape_cast %12 : vector<1x64xf32> to vector<1x64xf32>
      %14 = vector.broadcast %13 : vector<1x64xf32> to vector<32x64xf32>
      %c0_12 = arith.constant 0 : index
      %c0_13 = arith.constant 0 : index
      %15 = vector.load %arg6[%c0_12, %c0_13] : memref<32x64xf32, #tpu.memory_space<vmem>>, vector<32x64xf32>
      tpu.vector_store %arg6[%c0_12, %c0_13], %14 {strides = array<i32>} : memref<32x64xf32, #tpu.memory_space<vmem>>, vector<32x64xf32>,
    } else {
    }
    %c0 = arith.constant 0 : index
    %c0_1 = arith.constant 0 : index
    %3 = vector.load %arg6[%c0, %c0_1] : memref<32x64xf32, #tpu.memory_space<vmem>>, vector<32x64xf32>
    %c0_2 = arith.constant 0 : index
    %c0_3 = arith.constant 0 : index
    %4 = vector.load %arg2[%c0_2, %c0_3] : memref<32x576xbf16, #tpu.memory_space<vmem>>, vector<32x576xbf16>
    %c0_4 = arith.constant 0 : index
    %c0_5 = arith.constant 0 : index
    %5 = vector.load %arg3[%c0_4, %c0_5] : memref<576x64xbf16, #tpu.memory_space<vmem>>, vector<576x64xbf16>
    %cst = arith.constant dense<0.000000e+00> : vector<32x64xf32>
    %6 = tpu.matmul %4, %5, %cst {dimension_numbers = #tpu.dot_dimension_numbers<[1], [0], [0], [1], [0, 0, 1, 1], [], []>} : vector<32x576xbf16>, vector<576x64xbf16>, vector<32x64xf32> -> vector<32x64xf32>
    %7 = arith.addf %3, %6 : vector<32x64xf32>
    %c0_6 = arith.constant 0 : index
    %c0_7 = arith.constant 0 : index
    %8 = vector.load %arg6[%c0_6, %c0_7] : memref<32x64xf32, #tpu.memory_space<vmem>>, vector<32x64xf32>
    tpu.vector_store %arg6[%c0_6, %c0_7], %7 {strides = array<i32>} : memref<32x64xf32, #tpu.memory_space<vmem>>, vector<32x64xf32>,
    %c0_i32_8 = arith.constant 0 : i32
    %9 = arith.cmpi eq, %arg1, %c0_i32_8 : i32
    %10 = arith.extui %9 : i1 to i32
    %c0_i32_9 = arith.constant 0 : i32
    %11 = arith.cmpi ne, %10, %c0_i32_9 : i32
    scf.if %11 {
      %c0_10 = arith.constant 0 : index
      %c0_11 = arith.constant 0 : index
      %12 = vector.load %arg6[%c0_10, %c0_11] : memref<32x64xf32, #tpu.memory_space<vmem>>, vector<32x64xf32>
      %c0_12 = arith.constant 0 : index
      %c0_13 = arith.constant 0 : index
      %13 = vector.load %arg5[%c0_12, %c0_13] : memref<32x64xf32, #tpu.memory_space<vmem>>, vector<32x64xf32>
      %14 = arith.addf %12, %13 : vector<32x64xf32>
      %c0_14 = arith.constant 0 : index
      %c0_15 = arith.constant 0 : index
      %15 = vector.load %arg6[%c0_14, %c0_15] : memref<32x64xf32, #tpu.memory_space<vmem>>, vector<32x64xf32>
      tpu.vector_store %arg6[%c0_14, %c0_15], %14 {strides = array<i32>} : memref<32x64xf32, #tpu.memory_space<vmem>>, vector<32x64xf32>,
    } else {
    }
    return
  }
  func.func @transform_0(%arg0: i32, %arg1: i32) -> (i32, i32) {
    %c0_i32 = arith.constant 0 : i32
    return %arg0, %arg1 : i32, i32
  }
  func.func @transform_1(%arg0: i32, %arg1: i32) -> (i32, i32) {
    %c0_i32 = arith.constant 0 : i32
    %c0_i32_0 = arith.constant 0 : i32
    return %arg1, %c0_i32 : i32, i32
  }
  func.func @transform_2(%arg0: i32, %arg1: i32) -> (i32, i32) {
    %c0_i32 = arith.constant 0 : i32
    %c0_i32_0 = arith.constant 0 : i32
    %c0_i32_1 = arith.constant 0 : i32
    return %c0_i32, %c0_i32_0 : i32, i32
  }
  func.func @transform_3(%arg0: i32, %arg1: i32) -> (i32, i32) {
    %c0_i32 = arith.constant 0 : i32
    %c0_i32_0 = arith.constant 0 : i32
    return %arg0, %c0_i32 : i32, i32
  }
  func.func @transform_4(%arg0: i32, %arg1: i32) -> (i32, i32) {
    %c0_i32 = arith.constant 0 : i32
    %c0_i32_0 = arith.constant 0 : i32
    return %arg0, %c0_i32 : i32, i32
  }
}

module attributes {stable_mosaic.version = 11 : i64} {
  func.func @_mm_kernel(%arg0: i32, %arg1: i32, %arg2: memref<32x576xbf16, #tpu.memory_space<vmem>>, %arg3: memref<576x128xbf16, #tpu.memory_space<vmem>>, %arg4: memref<1x128xf32, #tpu.memory_space<vmem>>, %arg5: memref<32x128xf32, #tpu.memory_space<vmem>>) attributes {dimension_semantics = [#tpu.dimension_semantics<parallel>, #tpu.dimension_semantics<arbitrary>], iteration_bounds = array<i64: 1, 1>, scalar_prefetch = 0 : i64, scratch_operands = 0 : i64, tpu.core_type = #tpu.core_type<tc>, window_params = [{transform_indices = @transform_0, window_bounds = array<i64: 32, 576>}, {transform_indices = @transform_1, window_bounds = array<i64: 576, 128>}, {pipeline_mode = #tpu.pipeline_mode<synchronous>, transform_indices = @transform_2, window_bounds = array<i64: 1, 128>}, {transform_indices = @transform_3, window_bounds = array<i64: 32, 128>}]} {
    %c0_i32 = arith.constant 0 : i32
    %0 = arith.cmpi eq, %arg1, %c0_i32 : i32
    %1 = arith.extui %0 : i1 to i32
    %c0_i32_0 = arith.constant 0 : i32
    %2 = arith.cmpi ne, %1, %c0_i32_0 : i32
    scf.if %2 {
      %c0_10 = arith.constant 0 : index
      %c0_11 = arith.constant 0 : index
      %12 = vector.load %arg4[%c0_10, %c0_11] : memref<1x128xf32, #tpu.memory_space<vmem>>, vector<1x128xf32>
      %13 = vector.shape_cast %12 : vector<1x128xf32> to vector<1x128xf32>
      %14 = vector.broadcast %13 : vector<1x128xf32> to vector<32x128xf32>
      %c0_12 = arith.constant 0 : index
      %c0_13 = arith.constant 0 : index
      %15 = vector.load %arg5[%c0_12, %c0_13] : memref<32x128xf32, #tpu.memory_space<vmem>>, vector<32x128xf32>
      tpu.vector_store %arg5[%c0_12, %c0_13], %14 {strides = array<i32>} : memref<32x128xf32, #tpu.memory_space<vmem>>, vector<32x128xf32>,
    } else {
    }
    %c0 = arith.constant 0 : index
    %c0_1 = arith.constant 0 : index
    %3 = vector.load %arg5[%c0, %c0_1] : memref<32x128xf32, #tpu.memory_space<vmem>>, vector<32x128xf32>
    %c0_2 = arith.constant 0 : index
    %c0_3 = arith.constant 0 : index
    %4 = vector.load %arg2[%c0_2, %c0_3] : memref<32x576xbf16, #tpu.memory_space<vmem>>, vector<32x576xbf16>
    %c0_4 = arith.constant 0 : index
    %c0_5 = arith.constant 0 : index
    %5 = vector.load %arg3[%c0_4, %c0_5] : memref<576x128xbf16, #tpu.memory_space<vmem>>, vector<576x128xbf16>
    %cst = arith.constant dense<0.000000e+00> : vector<32x128xf32>
    %6 = tpu.matmul %4, %5, %cst {dimension_numbers = #tpu.dot_dimension_numbers<[1], [0], [0], [1], [0, 0, 1, 1], [], []>} : vector<32x576xbf16>, vector<576x128xbf16>, vector<32x128xf32> -> vector<32x128xf32>
    %7 = arith.addf %3, %6 : vector<32x128xf32>
    %c0_6 = arith.constant 0 : index
    %c0_7 = arith.constant 0 : index
    %8 = vector.load %arg5[%c0_6, %c0_7] : memref<32x128xf32, #tpu.memory_space<vmem>>, vector<32x128xf32>
    tpu.vector_store %arg5[%c0_6, %c0_7], %7 {strides = array<i32>} : memref<32x128xf32, #tpu.memory_space<vmem>>, vector<32x128xf32>,
    %c0_i32_8 = arith.constant 0 : i32
    %9 = arith.cmpi eq, %arg1, %c0_i32_8 : i32
    %10 = arith.extui %9 : i1 to i32
    %c0_i32_9 = arith.constant 0 : i32
    %11 = arith.cmpi ne, %10, %c0_i32_9 : i32
    scf.if %11 {
      %c0_10 = arith.constant 0 : index
      %c0_11 = arith.constant 0 : index
      %12 = vector.load %arg5[%c0_10, %c0_11] : memref<32x128xf32, #tpu.memory_space<vmem>>, vector<32x128xf32>
      %cst_12 = arith.constant 0.000000e+00 : f32
      %13 = vector.broadcast %cst_12 : f32 to vector<32x128xf32>
      %14 = arith.maximumf %12, %13 : vector<32x128xf32>
      %c0_13 = arith.constant 0 : index
      %c0_14 = arith.constant 0 : index
      %15 = vector.load %arg5[%c0_13, %c0_14] : memref<32x128xf32, #tpu.memory_space<vmem>>, vector<32x128xf32>
      tpu.vector_store %arg5[%c0_13, %c0_14], %14 {strides = array<i32>} : memref<32x128xf32, #tpu.memory_space<vmem>>, vector<32x128xf32>,
    } else {
    }
    return
  }
  func.func @transform_0(%arg0: i32, %arg1: i32) -> (i32, i32) {
    %c0_i32 = arith.constant 0 : i32
    return %arg0, %arg1 : i32, i32
  }
  func.func @transform_1(%arg0: i32, %arg1: i32) -> (i32, i32) {
    %c0_i32 = arith.constant 0 : i32
    %c0_i32_0 = arith.constant 0 : i32
    return %arg1, %c0_i32 : i32, i32
  }
  func.func @transform_2(%arg0: i32, %arg1: i32) -> (i32, i32) {
    %c0_i32 = arith.constant 0 : i32
    %c0_i32_0 = arith.constant 0 : i32
    %c0_i32_1 = arith.constant 0 : i32
    return %c0_i32, %c0_i32_0 : i32, i32
  }
  func.func @transform_3(%arg0: i32, %arg1: i32) -> (i32, i32) {
    %c0_i32 = arith.constant 0 : i32
    %c0_i32_0 = arith.constant 0 : i32
    return %arg0, %c0_i32 : i32, i32
  }
}

module attributes {stable_mosaic.version = 11 : i64} {
  func.func @_mm_kernel(%arg0: i32, %arg1: i32, %arg2: memref<32x64xbf16, #tpu.memory_space<vmem>>, %arg3: memref<64x128xbf16, #tpu.memory_space<vmem>>, %arg4: memref<1x128xf32, #tpu.memory_space<vmem>>, %arg5: memref<32x128xf32, #tpu.memory_space<vmem>>) attributes {dimension_semantics = [#tpu.dimension_semantics<parallel>, #tpu.dimension_semantics<arbitrary>], iteration_bounds = array<i64: 1, 1>, scalar_prefetch = 0 : i64, scratch_operands = 0 : i64, tpu.core_type = #tpu.core_type<tc>, window_params = [{transform_indices = @transform_0, window_bounds = array<i64: 32, 64>}, {transform_indices = @transform_1, window_bounds = array<i64: 64, 128>}, {pipeline_mode = #tpu.pipeline_mode<synchronous>, transform_indices = @transform_2, window_bounds = array<i64: 1, 128>}, {transform_indices = @transform_3, window_bounds = array<i64: 32, 128>}]} {
    %c0_i32 = arith.constant 0 : i32
    %0 = arith.cmpi eq, %arg1, %c0_i32 : i32
    %1 = arith.extui %0 : i1 to i32
    %c0_i32_0 = arith.constant 0 : i32
    %2 = arith.cmpi ne, %1, %c0_i32_0 : i32
    scf.if %2 {
      %c0_8 = arith.constant 0 : index
      %c0_9 = arith.constant 0 : index
      %9 = vector.load %arg4[%c0_8, %c0_9] : memref<1x128xf32, #tpu.memory_space<vmem>>, vector<1x128xf32>
      %10 = vector.shape_cast %9 : vector<1x128xf32> to vector<1x128xf32>
      %11 = vector.broadcast %10 : vector<1x128xf32> to vector<32x128xf32>
      %c0_10 = arith.constant 0 : index
      %c0_11 = arith.constant 0 : index
      %12 = vector.load %arg5[%c0_10, %c0_11] : memref<32x128xf32, #tpu.memory_space<vmem>>, vector<32x128xf32>
      tpu.vector_store %arg5[%c0_10, %c0_11], %11 {strides = array<i32>} : memref<32x128xf32, #tpu.memory_space<vmem>>, vector<32x128xf32>,
    } else {
    }
    %c0 = arith.constant 0 : index
    %c0_1 = arith.constant 0 : index
    %3 = vector.load %arg5[%c0, %c0_1] : memref<32x128xf32, #tpu.memory_space<vmem>>, vector<32x128xf32>
    %c0_2 = arith.constant 0 : index
    %c0_3 = arith.constant 0 : index
    %4 = vector.load %arg2[%c0_2, %c0_3] : memref<32x64xbf16, #tpu.memory_space<vmem>>, vector<32x64xbf16>
    %c0_4 = arith.constant 0 : index
    %c0_5 = arith.constant 0 : index
    %5 = vector.load %arg3[%c0_4, %c0_5] : memref<64x128xbf16, #tpu.memory_space<vmem>>, vector<64x128xbf16>
    %cst = arith.constant dense<0.000000e+00> : vector<32x128xf32>
    %6 = tpu.matmul %4, %5, %cst {dimension_numbers = #tpu.dot_dimension_numbers<[1], [0], [0], [1], [0, 0, 1, 1], [], []>} : vector<32x64xbf16>, vector<64x128xbf16>, vector<32x128xf32> -> vector<32x128xf32>
    %7 = arith.addf %3, %6 : vector<32x128xf32>
    %c0_6 = arith.constant 0 : index
    %c0_7 = arith.constant 0 : index
    %8 = vector.load %arg5[%c0_6, %c0_7] : memref<32x128xf32, #tpu.memory_space<vmem>>, vector<32x128xf32>
    tpu.vector_store %arg5[%c0_6, %c0_7], %7 {strides = array<i32>} : memref<32x128xf32, #tpu.memory_space<vmem>>, vector<32x128xf32>,
    return
  }
  func.func @transform_0(%arg0: i32, %arg1: i32) -> (i32, i32) {
    %c0_i32 = arith.constant 0 : i32
    return %arg0, %arg1 : i32, i32
  }
  func.func @transform_1(%arg0: i32, %arg1: i32) -> (i32, i32) {
    %c0_i32 = arith.constant 0 : i32
    %c0_i32_0 = arith.constant 0 : i32
    return %arg1, %c0_i32 : i32, i32
  }
  func.func @transform_2(%arg0: i32, %arg1: i32) -> (i32, i32) {
    %c0_i32 = arith.constant 0 : i32
    %c0_i32_0 = arith.constant 0 : i32
    %c0_i32_1 = arith.constant 0 : i32
    return %c0_i32, %c0_i32_0 : i32, i32
  }
  func.func @transform_3(%arg0: i32, %arg1: i32) -> (i32, i32) {
    %c0_i32 = arith.constant 0 : i32
    %c0_i32_0 = arith.constant 0 : i32
    return %arg0, %c0_i32 : i32, i32
  }
}

module attributes {stable_mosaic.version = 11 : i64} {
  func.func @_mm_res_kernel(%arg0: i32, %arg1: i32, %arg2: memref<32x1152xbf16, #tpu.memory_space<vmem>>, %arg3: memref<1152x128xbf16, #tpu.memory_space<vmem>>, %arg4: memref<1x128xf32, #tpu.memory_space<vmem>>, %arg5: memref<32x128xf32, #tpu.memory_space<vmem>>, %arg6: memref<32x128xf32, #tpu.memory_space<vmem>>) attributes {dimension_semantics = [#tpu.dimension_semantics<parallel>, #tpu.dimension_semantics<arbitrary>], iteration_bounds = array<i64: 1, 1>, scalar_prefetch = 0 : i64, scratch_operands = 0 : i64, tpu.core_type = #tpu.core_type<tc>, window_params = [{transform_indices = @transform_0, window_bounds = array<i64: 32, 1152>}, {transform_indices = @transform_1, window_bounds = array<i64: 1152, 128>}, {pipeline_mode = #tpu.pipeline_mode<synchronous>, transform_indices = @transform_2, window_bounds = array<i64: 1, 128>}, {transform_indices = @transform_3, window_bounds = array<i64: 32, 128>}, {transform_indices = @transform_4, window_bounds = array<i64: 32, 128>}]} {
    %c0_i32 = arith.constant 0 : i32
    %0 = arith.cmpi eq, %arg1, %c0_i32 : i32
    %1 = arith.extui %0 : i1 to i32
    %c0_i32_0 = arith.constant 0 : i32
    %2 = arith.cmpi ne, %1, %c0_i32_0 : i32
    scf.if %2 {
      %c0_10 = arith.constant 0 : index
      %c0_11 = arith.constant 0 : index
      %12 = vector.load %arg4[%c0_10, %c0_11] : memref<1x128xf32, #tpu.memory_space<vmem>>, vector<1x128xf32>
      %13 = vector.shape_cast %12 : vector<1x128xf32> to vector<1x128xf32>
      %14 = vector.broadcast %13 : vector<1x128xf32> to vector<32x128xf32>
      %c0_12 = arith.constant 0 : index
      %c0_13 = arith.constant 0 : index
      %15 = vector.load %arg6[%c0_12, %c0_13] : memref<32x128xf32, #tpu.memory_space<vmem>>, vector<32x128xf32>
      tpu.vector_store %arg6[%c0_12, %c0_13], %14 {strides = array<i32>} : memref<32x128xf32, #tpu.memory_space<vmem>>, vector<32x128xf32>,
    } else {
    }
    %c0 = arith.constant 0 : index
    %c0_1 = arith.constant 0 : index
    %3 = vector.load %arg6[%c0, %c0_1] : memref<32x128xf32, #tpu.memory_space<vmem>>, vector<32x128xf32>
    %c0_2 = arith.constant 0 : index
    %c0_3 = arith.constant 0 : index
    %4 = vector.load %arg2[%c0_2, %c0_3] : memref<32x1152xbf16, #tpu.memory_space<vmem>>, vector<32x1152xbf16>
    %c0_4 = arith.constant 0 : index
    %c0_5 = arith.constant 0 : index
    %5 = vector.load %arg3[%c0_4, %c0_5] : memref<1152x128xbf16, #tpu.memory_space<vmem>>, vector<1152x128xbf16>
    %cst = arith.constant dense<0.000000e+00> : vector<32x128xf32>
    %6 = tpu.matmul %4, %5, %cst {dimension_numbers = #tpu.dot_dimension_numbers<[1], [0], [0], [1], [0, 0, 1, 1], [], []>} : vector<32x1152xbf16>, vector<1152x128xbf16>, vector<32x128xf32> -> vector<32x128xf32>
    %7 = arith.addf %3, %6 : vector<32x128xf32>
    %c0_6 = arith.constant 0 : index
    %c0_7 = arith.constant 0 : index
    %8 = vector.load %arg6[%c0_6, %c0_7] : memref<32x128xf32, #tpu.memory_space<vmem>>, vector<32x128xf32>
    tpu.vector_store %arg6[%c0_6, %c0_7], %7 {strides = array<i32>} : memref<32x128xf32, #tpu.memory_space<vmem>>, vector<32x128xf32>,
    %c0_i32_8 = arith.constant 0 : i32
    %9 = arith.cmpi eq, %arg1, %c0_i32_8 : i32
    %10 = arith.extui %9 : i1 to i32
    %c0_i32_9 = arith.constant 0 : i32
    %11 = arith.cmpi ne, %10, %c0_i32_9 : i32
    scf.if %11 {
      %c0_10 = arith.constant 0 : index
      %c0_11 = arith.constant 0 : index
      %12 = vector.load %arg6[%c0_10, %c0_11] : memref<32x128xf32, #tpu.memory_space<vmem>>, vector<32x128xf32>
      %c0_12 = arith.constant 0 : index
      %c0_13 = arith.constant 0 : index
      %13 = vector.load %arg5[%c0_12, %c0_13] : memref<32x128xf32, #tpu.memory_space<vmem>>, vector<32x128xf32>
      %14 = arith.addf %12, %13 : vector<32x128xf32>
      %c0_14 = arith.constant 0 : index
      %c0_15 = arith.constant 0 : index
      %15 = vector.load %arg6[%c0_14, %c0_15] : memref<32x128xf32, #tpu.memory_space<vmem>>, vector<32x128xf32>
      tpu.vector_store %arg6[%c0_14, %c0_15], %14 {strides = array<i32>} : memref<32x128xf32, #tpu.memory_space<vmem>>, vector<32x128xf32>,
    } else {
    }
    return
  }
  func.func @transform_0(%arg0: i32, %arg1: i32) -> (i32, i32) {
    %c0_i32 = arith.constant 0 : i32
    return %arg0, %arg1 : i32, i32
  }
  func.func @transform_1(%arg0: i32, %arg1: i32) -> (i32, i32) {
    %c0_i32 = arith.constant 0 : i32
    %c0_i32_0 = arith.constant 0 : i32
    return %arg1, %c0_i32 : i32, i32
  }
  func.func @transform_2(%arg0: i32, %arg1: i32) -> (i32, i32) {
    %c0_i32 = arith.constant 0 : i32
    %c0_i32_0 = arith.constant 0 : i32
    %c0_i32_1 = arith.constant 0 : i32
    return %c0_i32, %c0_i32_0 : i32, i32
  }
  func.func @transform_3(%arg0: i32, %arg1: i32) -> (i32, i32) {
    %c0_i32 = arith.constant 0 : i32
    %c0_i32_0 = arith.constant 0 : i32
    return %arg0, %c0_i32 : i32, i32
  }
  func.func @transform_4(%arg0: i32, %arg1: i32) -> (i32, i32) {
    %c0_i32 = arith.constant 0 : i32
    %c0_i32_0 = arith.constant 0 : i32
    return %arg0, %c0_i32 : i32, i32
  }
}

module attributes {stable_mosaic.version = 11 : i64} {
  func.func @_mm_kernel(%arg0: i32, %arg1: i32, %arg2: memref<32x1152xbf16, #tpu.memory_space<vmem>>, %arg3: memref<1152x128xbf16, #tpu.memory_space<vmem>>, %arg4: memref<1x128xf32, #tpu.memory_space<vmem>>, %arg5: memref<32x128xf32, #tpu.memory_space<vmem>>) attributes {dimension_semantics = [#tpu.dimension_semantics<parallel>, #tpu.dimension_semantics<arbitrary>], iteration_bounds = array<i64: 1, 1>, scalar_prefetch = 0 : i64, scratch_operands = 0 : i64, tpu.core_type = #tpu.core_type<tc>, window_params = [{transform_indices = @transform_0, window_bounds = array<i64: 32, 1152>}, {transform_indices = @transform_1, window_bounds = array<i64: 1152, 128>}, {pipeline_mode = #tpu.pipeline_mode<synchronous>, transform_indices = @transform_2, window_bounds = array<i64: 1, 128>}, {transform_indices = @transform_3, window_bounds = array<i64: 32, 128>}]} {
    %c0_i32 = arith.constant 0 : i32
    %0 = arith.cmpi eq, %arg1, %c0_i32 : i32
    %1 = arith.extui %0 : i1 to i32
    %c0_i32_0 = arith.constant 0 : i32
    %2 = arith.cmpi ne, %1, %c0_i32_0 : i32
    scf.if %2 {
      %c0_10 = arith.constant 0 : index
      %c0_11 = arith.constant 0 : index
      %12 = vector.load %arg4[%c0_10, %c0_11] : memref<1x128xf32, #tpu.memory_space<vmem>>, vector<1x128xf32>
      %13 = vector.shape_cast %12 : vector<1x128xf32> to vector<1x128xf32>
      %14 = vector.broadcast %13 : vector<1x128xf32> to vector<32x128xf32>
      %c0_12 = arith.constant 0 : index
      %c0_13 = arith.constant 0 : index
      %15 = vector.load %arg5[%c0_12, %c0_13] : memref<32x128xf32, #tpu.memory_space<vmem>>, vector<32x128xf32>
      tpu.vector_store %arg5[%c0_12, %c0_13], %14 {strides = array<i32>} : memref<32x128xf32, #tpu.memory_space<vmem>>, vector<32x128xf32>,
    } else {
    }
    %c0 = arith.constant 0 : index
    %c0_1 = arith.constant 0 : index
    %3 = vector.load %arg5[%c0, %c0_1] : memref<32x128xf32, #tpu.memory_space<vmem>>, vector<32x128xf32>
    %c0_2 = arith.constant 0 : index
    %c0_3 = arith.constant 0 : index
    %4 = vector.load %arg2[%c0_2, %c0_3] : memref<32x1152xbf16, #tpu.memory_space<vmem>>, vector<32x1152xbf16>
    %c0_4 = arith.constant 0 : index
    %c0_5 = arith.constant 0 : index
    %5 = vector.load %arg3[%c0_4, %c0_5] : memref<1152x128xbf16, #tpu.memory_space<vmem>>, vector<1152x128xbf16>
    %cst = arith.constant dense<0.000000e+00> : vector<32x128xf32>
    %6 = tpu.matmul %4, %5, %cst {dimension_numbers = #tpu.dot_dimension_numbers<[1], [0], [0], [1], [0, 0, 1, 1], [], []>} : vector<32x1152xbf16>, vector<1152x128xbf16>, vector<32x128xf32> -> vector<32x128xf32>
    %7 = arith.addf %3, %6 : vector<32x128xf32>
    %c0_6 = arith.constant 0 : index
    %c0_7 = arith.constant 0 : index
    %8 = vector.load %arg5[%c0_6, %c0_7] : memref<32x128xf32, #tpu.memory_space<vmem>>, vector<32x128xf32>
    tpu.vector_store %arg5[%c0_6, %c0_7], %7 {strides = array<i32>} : memref<32x128xf32, #tpu.memory_space<vmem>>, vector<32x128xf32>,
    %c0_i32_8 = arith.constant 0 : i32
    %9 = arith.cmpi eq, %arg1, %c0_i32_8 : i32
    %10 = arith.extui %9 : i1 to i32
    %c0_i32_9 = arith.constant 0 : i32
    %11 = arith.cmpi ne, %10, %c0_i32_9 : i32
    scf.if %11 {
      %c0_10 = arith.constant 0 : index
      %c0_11 = arith.constant 0 : index
      %12 = vector.load %arg5[%c0_10, %c0_11] : memref<32x128xf32, #tpu.memory_space<vmem>>, vector<32x128xf32>
      %cst_12 = arith.constant 0.000000e+00 : f32
      %13 = vector.broadcast %cst_12 : f32 to vector<32x128xf32>
      %14 = arith.maximumf %12, %13 : vector<32x128xf32>
      %c0_13 = arith.constant 0 : index
      %c0_14 = arith.constant 0 : index
      %15 = vector.load %arg5[%c0_13, %c0_14] : memref<32x128xf32, #tpu.memory_space<vmem>>, vector<32x128xf32>
      tpu.vector_store %arg5[%c0_13, %c0_14], %14 {strides = array<i32>} : memref<32x128xf32, #tpu.memory_space<vmem>>, vector<32x128xf32>,
    } else {
    }
    return
  }
  func.func @transform_0(%arg0: i32, %arg1: i32) -> (i32, i32) {
    %c0_i32 = arith.constant 0 : i32
    return %arg0, %arg1 : i32, i32
  }
  func.func @transform_1(%arg0: i32, %arg1: i32) -> (i32, i32) {
    %c0_i32 = arith.constant 0 : i32
    %c0_i32_0 = arith.constant 0 : i32
    return %arg1, %c0_i32 : i32, i32
  }
  func.func @transform_2(%arg0: i32, %arg1: i32) -> (i32, i32) {
    %c0_i32 = arith.constant 0 : i32
    %c0_i32_0 = arith.constant 0 : i32
    %c0_i32_1 = arith.constant 0 : i32
    return %c0_i32, %c0_i32_0 : i32, i32
  }
  func.func @transform_3(%arg0: i32, %arg1: i32) -> (i32, i32) {
    %c0_i32 = arith.constant 0 : i32
    %c0_i32_0 = arith.constant 0 : i32
    return %arg0, %c0_i32 : i32, i32
  }
}

</mosaic_0001>

<llo_original>
// kernel: feature_extraction_forward.55
$region0: #{feature_extraction_forward.55}
  #allocation0 [shape = 'u32[]', space=smem, size = 0x4, offset = 0x4, fixed_abs, tag = 'smem constant byte address 0x4 - core index']
  #allocation1 [shape = 'u32[144,128]{1,0:T(1,128)}', space=vmem, size = 0x12000, scoped, tag = 'internal scratch']
  %s0 = inlined_call_operand.vmem [shape: bf16[128,27], index: 0, kind: input, shape index: {}]
  %s1 = inlined_call_operand.vmem [shape: bf16[27,32], index: 1, kind: input, shape index: {}]
  %s2 = inlined_call_operand.vmem [shape: f32[1,32], index: 2, kind: input, shape index: {}]
  %s3 = inlined_call_operand.vmem [shape: f32[128,32], index: 3, kind: output, shape index: {}]
  %s4 = sld [smem:[#allocation0]]
  $region30: #{feature_extraction_forward.55} parent=0
    _
  %s6 = ssub.s32 1, %s4
  %s7 = scalar_select 0, %s6, %s4
  // Predicated region
  $region2: #{feature_extraction_forward.55} parent=0 // pred_check
    _
  $region3: #{feature_extraction_forward.55} parent=0 // pred_check_branch
    %9 = sbr.rel (0) target = $region5
  $region4: #{feature_extraction_forward.55} parent=0 // pred_region
    _
  $region5: #{feature_extraction_forward.55} parent=0 // pred_fallthru
    _
  // Predicated region
  $region6: #{feature_extraction_forward.55} parent=0 // pred_check
    _
  $region7: #{feature_extraction_forward.55} parent=0 // pred_check_branch
    %11 = sbr.rel (0) target = $region9
  $region8: #{feature_extraction_forward.55} parent=0 // pred_region
    _
  $region9: #{feature_extraction_forward.55} parent=0 // pred_fallthru
    _
  // Predicated region
  $region10: #{feature_extraction_forward.55} parent=0 // pred_check
    _
  $region11: #{feature_extraction_forward.55} parent=0 // pred_check_branch
    %13 = sbr.rel (0) target = $region13
  $region12: #{feature_extraction_forward.55} parent=0 // pred_region
    _
  $region13: #{feature_extraction_forward.55} parent=0 // pred_fallthru
    _
  %p15 = scmp.eq.s32.totalorder 0, 0
  // Predicated region
  $region14: #{feature_extraction_forward.55} parent=0 // pred_check
    %p16 = pneg %p15
  $region15: #{feature_extraction_forward.55} parent=0 // pred_check_branch
    %18 = sbr.rel (%p16) target = $region17
  $region16: #{feature_extraction_forward.55} parent=0 // pred_region
    %v19 = vld [vmem:[%s2] sm:$0x1]
    %v21 = vlaneseq
    %v22 = vshrl.u32 %v21, 7
    %v23 = vsub.s32 0, %v22
    %v24 = vrot.slane %v19, %v23
    %vm26 = vcmask 261120
    %27 = vst.msk [vmem:[%s3] sm:$0xff] %vm26, %v24
    %28 = vst.msk [vmem:[%s3 + $0x8] sm:$0xff] %vm26, %v24
    %29 = vst.msk [vmem:[%s3 + $0x10] sm:$0xff] %vm26, %v24
    %30 = vst.msk [vmem:[%s3 + $0x18] sm:$0xff] %vm26, %v24
    %31 = vst.msk [vmem:[%s3 + $0x20] sm:$0xff] %vm26, %v24
    %32 = vst.msk [vmem:[%s3 + $0x28] sm:$0xff] %vm26, %v24
    %33 = vst.msk [vmem:[%s3 + $0x30] sm:$0xff] %vm26, %v24
    %34 = vst.msk [vmem:[%s3 + $0x38] sm:$0xff] %vm26, %v24
    %35 = vst.msk [vmem:[%s3 + $0x40] sm:$0xff] %vm26, %v24
    %36 = vst.msk [vmem:[%s3 + $0x48] sm:$0xff] %vm26, %v24
    %37 = vst.msk [vmem:[%s3 + $0x50] sm:$0xff] %vm26, %v24
    %38 = vst.msk [vmem:[%s3 + $0x58] sm:$0xff] %vm26, %v24
    %39 = vst.msk [vmem:[%s3 + $0x60] sm:$0xff] %vm26, %v24
    %40 = vst.msk [vmem:[%s3 + $0x68] sm:$0xff] %vm26, %v24
    %41 = vst.msk [vmem:[%s3 + $0x70] sm:$0xff] %vm26, %v24
    %42 = vst.msk [vmem:[%s3 + $0x78] sm:$0xff] %vm26, %v24
  $region17: #{feature_extraction_forward.55} parent=0 // pred_fallthru
    _
  %v43 = vld [vmem:[%s3] sm:$0xff]
  %v44 = vld [vmem:[%s3 + $0x8] sm:$0xff]
  %v45 = vld [vmem:[%s3 + $0x10] sm:$0xff]
  %v46 = vld [vmem:[%s3 + $0x18] sm:$0xff]
  %v47 = vld [vmem:[%s3 + $0x20] sm:$0xff]
  %v48 = vld [vmem:[%s3 + $0x28] sm:$0xff]
  %v49 = vld [vmem:[%s3 + $0x30] sm:$0xff]
  %v50 = vld [vmem:[%s3 + $0x38] sm:$0xff]
  %v51 = vld [vmem:[%s3 + $0x40] sm:$0xff]
  %v52 = vld [vmem:[%s3 + $0x48] sm:$0xff]
  %v53 = vld [vmem:[%s3 + $0x50] sm:$0xff]
  %v54 = vld [vmem:[%s3 + $0x58] sm:$0xff]
  %v55 = vld [vmem:[%s3 + $0x60] sm:$0xff]
  %v56 = vld [vmem:[%s3 + $0x68] sm:$0xff]
  %v57 = vld [vmem:[%s3 + $0x70] sm:$0xff]
  %v58 = vld [vmem:[%s3 + $0x78] sm:$0xff]
  %v59 = vld [vmem:[%s0] sm:$0xf]
  %v60 = vld [vmem:[%s0 + $0x4] sm:$0xf]
  %v61 = vld [vmem:[%s0 + $0x8] sm:$0xf]
  %v62 = vld [vmem:[%s0 + $0xc] sm:$0xf]
  %v63 = vld [vmem:[%s0 + $0x10] sm:$0xf]
  %v64 = vld [vmem:[%s0 + $0x14] sm:$0xf]
  %v65 = vld [vmem:[%s0 + $0x18] sm:$0xf]
  %v66 = vld [vmem:[%s0 + $0x1c] sm:$0xf]
  %v67 = vld [vmem:[%s0 + $0x20] sm:$0xf]
  %v68 = vld [vmem:[%s0 + $0x24] sm:$0xf]
  %v69 = vld [vmem:[%s0 + $0x28] sm:$0xf]
  %v70 = vld [vmem:[%s0 + $0x2c] sm:$0xf]
  %v71 = vld [vmem:[%s0 + $0x30] sm:$0xf]
  %v72 = vld [vmem:[%s0 + $0x34] sm:$0xf]
  %v73 = vld [vmem:[%s0 + $0x38] sm:$0xf]
  %v74 = vld [vmem:[%s0 + $0x3c] sm:$0xf]
  %v75 = vld [vmem:[%s1] sm:$0xf]
  %v76 = vld [vmem:[%s1 + $0x4] sm:$0xf]
  %v77 = vld [vmem:[%s1 + $0x8] sm:$0xf]
  %v78 = vld [vmem:[%s1 + $0xc] sm:$0x3]
  %v95 = vunpack.c.l.b16 %v59
  %v96 = vunpack.c.l.b16 %v60
  %v97 = vunpack.c.l.b16 %v61
  %v98 = vunpack.c.l.b16 %v62
  %v99 = vunpack.c.l.b16 %v63
  %v100 = vunpack.c.l.b16 %v64
  %v101 = vunpack.c.l.b16 %v65
  %v102 = vunpack.c.l.b16 %v66
  %v103 = vunpack.c.l.b16 %v67
  %v104 = vunpack.c.l.b16 %v68
  %v105 = vunpack.c.l.b16 %v69
  %v106 = vunpack.c.l.b16 %v70
  %v107 = vunpack.c.l.b16 %v71
  %v108 = vunpack.c.l.b16 %v72
  %v109 = vunpack.c.l.b16 %v73
  %v110 = vunpack.c.l.b16 %v74
  %v111 = vpack.c.b16 %v96, %v95
  %v112 = vpack.c.b16 %v98, %v97
  %v113 = vpack.c.b16 %v100, %v99
  %v114 = vpack.c.b16 %v102, %v101
  %v115 = vpack.c.b16 %v104, %v103
  %v116 = vpack.c.b16 %v106, %v105
  %v117 = vpack.c.b16 %v108, %v107
  %v118 = vpack.c.b16 %v110, %v109
  %v123 = vunpack.c.l.b16 %v75
  %v124 = vunpack.c.l.b16 %v76
  %v125 = vunpack.c.l.b16 %v77
  %v126 = vunpack.c.l.b16 %v78
  %v127 = vpack.c.b16 %v124, %v123
  %v128 = vpack.c.b16 %v126, %v125
  %vm130 = vcmask 220160
  %v132 = vsel %vm130, %v111, 0
  %v135 = vsel %vm130, %v112, 0
  %v138 = vsel %vm130, %v113, 0
  %v141 = vsel %vm130, %v114, 0
  %v144 = vsel %vm130, %v115, 0
  %v147 = vsel %vm130, %v116, 0
  %v150 = vsel %vm130, %v117, 0
  %v153 = vsel %vm130, %v118, 0
  %vm155 = vcmask 1044480
  %vm156 = vcmask 1045504
  %v157 = vsel %vm155, 4294967295, 65535
  %v158 = vsel %vm156, %v157, 0
  %v160 = vand.u32 %v128, %v158
  %162 = vmatprep.subr.bf16.mxu0 0
  %163 = vmatpush1.bf16.msra.mxu0 %v127
  %164 = vmatprep.subr.bf16.mxu0 0
  %165 = vmatpush1.bf16.msra.mxu0 %v160
  %166 = vmatprep.subr.bf16.mxu0 0
  %167 = vmatpush1.bf16.msra.mxu0 0
  %168 = vmatprep.subr.bf16.mxu0 0
  %169 = vmatpush1.bf16.msra.mxu0 0
  %170 = vmatprep.subr.bf16.mxu0 0
  %171 = vmatpush1.bf16.msra.mxu0 0
  %172 = vmatprep.subr.bf16.mxu0 0
  %173 = vmatpush1.bf16.msra.mxu0 0
  %174 = vmatprep.subr.bf16.mxu0 0
  %175 = vmatpush1.bf16.msra.mxu0 0
  %176 = vmatprep.subr.bf16.mxu0 0
  %177 = vmatpush1.bf16.msra.mxu0 0
  %178 = vmatprep.subr.bf16.mxu0 0
  %179 = vmatpush1.bf16.msra.mxu0 0
  %180 = vmatprep.subr.bf16.mxu0 0
  %181 = vmatpush1.bf16.msra.mxu0 0
  %182 = vmatprep.subr.bf16.mxu0 0
  %183 = vmatpush1.bf16.msra.mxu0 0
  %184 = vmatprep.subr.bf16.mxu0 0
  %185 = vmatpush1.bf16.msra.mxu0 0
  %186 = vmatprep.subr.bf16.mxu0 0
  %187 = vmatpush1.bf16.msra.mxu0 0
  %188 = vmatprep.subr.bf16.mxu0 0
  %189 = vmatpush1.bf16.msra.mxu0 0
  %190 = vmatprep.subr.bf16.mxu0 0
  %191 = vmatpush1.bf16.msra.mxu0 0
  %192 = vmatprep.subr.bf16.mxu0 0
  %193 = vmatpush1.bf16.msra.mxu0 0
  %194 = vmatprep.mubr.bf16.mxu0 0
  %195 = vmatmul.mubr.bf16.gmra.mrb[0].mxu0 %v132
  %v196 = vpop.f32.mrb[0].mxu0
  %v197 = vadd.f32 0.0, %v196
  %v198 = vpop.f32.mrb[0].mxu0
  %v199 = vpop.f32.mrb[0].mxu0
  %v200 = vadd.f32 0.0, %v199
  %v201 = vpop.f32.mrb[0].mxu0
  %202 = vmatprep.mubr.bf16.mxu0 0
  %203 = vmatmul.mubr.bf16.gmra.mrb[0].mxu0 %v135
  %v204 = vpop.f32.mrb[0].mxu0
  %v205 = vadd.f32 0.0, %v204
  %v206 = vpop.f32.mrb[0].mxu0
  %v207 = vpop.f32.mrb[0].mxu0
  %v208 = vadd.f32 0.0, %v207
  %v209 = vpop.f32.mrb[0].mxu0
  %210 = vmatprep.mubr.bf16.mxu0 0
  %211 = vmatmul.mubr.bf16.gmra.mrb[0].mxu0 %v138
  %v212 = vpop.f32.mrb[0].mxu0
  %v213 = vadd.f32 0.0, %v212
  %v214 = vpop.f32.mrb[0].mxu0
  %v215 = vpop.f32.mrb[0].mxu0
  %v216 = vadd.f32 0.0, %v215
  %v217 = vpop.f32.mrb[0].mxu0
  %218 = vmatprep.mubr.bf16.mxu0 0
  %219 = vmatmul.mubr.bf16.gmra.mrb[0].mxu0 %v141
  %v220 = vpop.f32.mrb[0].mxu0
  %v221 = vadd.f32 0.0, %v220
  %v222 = vpop.f32.mrb[0].mxu0
  %v223 = vpop.f32.mrb[0].mxu0
  %v224 = vadd.f32 0.0, %v223
  %v225 = vpop.f32.mrb[0].mxu0
  %226 = vmatprep.mubr.bf16.mxu0 0
  %227 = vmatmul.mubr.bf16.gmra.mrb[0].mxu0 %v144
  %v228 = vpop.f32.mrb[0].mxu0
  %v229 = vadd.f32 0.0, %v228
  %v230 = vpop.f32.mrb[0].mxu0
  %v231 = vpop.f32.mrb[0].mxu0
  %v232 = vadd.f32 0.0, %v231
  %v233 = vpop.f32.mrb[0].mxu0
  %234 = vmatprep.mubr.bf16.mxu0 0
  %235 = vmatmul.mubr.bf16.gmra.mrb[0].mxu0 %v147
  %v236 = vpop.f32.mrb[0].mxu0
  %v237 = vadd.f32 0.0, %v236
  %v238 = vpop.f32.mrb[0].mxu0
  %v239 = vpop.f32.mrb[0].mxu0
  %v240 = vadd.f32 0.0, %v239
  %v241 = vpop.f32.mrb[0].mxu0
  %242 = vmatprep.mubr.bf16.mxu0 0
  %243 = vmatmul.mubr.bf16.gmra.mrb[0].mxu0 %v150
  %v244 = vpop.f32.mrb[0].mxu0
  %v245 = vadd.f32 0.0, %v244
  %v246 = vpop.f32.mrb[0].mxu0
  %v247 = vpop.f32.mrb[0].mxu0
  %v248 = vadd.f32 0.0, %v247
  %v249 = vpop.f32.mrb[0].mxu0
  %250 = vmatprep.mubr.bf16.mxu0 0
  %251 = vmatmul.mubr.bf16.gmra.mrb[0].mxu0 %v153
  %v252 = vpop.f32.mrb[0].mxu0
  %v253 = vadd.f32 0.0, %v252
  %v254 = vpop.f32.mrb[0].mxu0
  %v255 = vpop.f32.mrb[0].mxu0
  %v256 = vadd.f32 0.0, %v255
  %v257 = vpop.f32.mrb[0].mxu0
  %258 = vdwg.mxu0
  %v259 = vadd.f32 %v43, %v197
  %v260 = vadd.f32 %v44, %v200
  %v261 = vadd.f32 %v45, %v205
  %v262 = vadd.f32 %v46, %v208
  %v263 = vadd.f32 %v47, %v213
  %v264 = vadd.f32 %v48, %v216
  %v265 = vadd.f32 %v49, %v221
  %v266 = vadd.f32 %v50, %v224
  %v267 = vadd.f32 %v51, %v229
  %v268 = vadd.f32 %v52, %v232
  %v269 = vadd.f32 %v53, %v237
  %v270 = vadd.f32 %v54, %v240
  %v271 = vadd.f32 %v55, %v245
  %v272 = vadd.f32 %v56, %v248
  %v273 = vadd.f32 %v57, %v253
  %v274 = vadd.f32 %v58, %v256
  %vm275 = vcmask 261120
  %276 = vst.msk [vmem:[%s3] sm:$0xff] %vm275, %v259
  %277 = vst.msk [vmem:[%s3 + $0x8] sm:$0xff] %vm275, %v260
  %278 = vst.msk [vmem:[%s3 + $0x10] sm:$0xff] %vm275, %v261
  %279 = vst.msk [vmem:[%s3 + $0x18] sm:$0xff] %vm275, %v262
  %280 = vst.msk [vmem:[%s3 + $0x20] sm:$0xff] %vm275, %v263
  %281 = vst.msk [vmem:[%s3 + $0x28] sm:$0xff] %vm275, %v264
  %282 = vst.msk [vmem:[%s3 + $0x30] sm:$0xff] %vm275, %v265
  %283 = vst.msk [vmem:[%s3 + $0x38] sm:$0xff] %vm275, %v266
  %284 = vst.msk [vmem:[%s3 + $0x40] sm:$0xff] %vm275, %v267
  %285 = vst.msk [vmem:[%s3 + $0x48] sm:$0xff] %vm275, %v268
  %286 = vst.msk [vmem:[%s3 + $0x50] sm:$0xff] %vm275, %v269
  %287 = vst.msk [vmem:[%s3 + $0x58] sm:$0xff] %vm275, %v270
  %288 = vst.msk [vmem:[%s3 + $0x60] sm:$0xff] %vm275, %v271
  %289 = vst.msk [vmem:[%s3 + $0x68] sm:$0xff] %vm275, %v272
  %290 = vst.msk [vmem:[%s3 + $0x70] sm:$0xff] %vm275, %v273
  %291 = vst.msk [vmem:[%s3 + $0x78] sm:$0xff] %vm275, %v274
  // Predicated region
  $region18: #{feature_extraction_forward.55} parent=0 // pred_check
    %p292 = pneg %p15
  $region19: #{feature_extraction_forward.55} parent=0 // pred_check_branch
    %294 = sbr.rel (%p292) target = $region21
  $region20: #{feature_extraction_forward.55} parent=0 // pred_region
    %v295 = vld [vmem:[%s3] sm:$0xff]
    %v296 = vld [vmem:[%s3 + $0x8] sm:$0xff]
    %v297 = vld [vmem:[%s3 + $0x10] sm:$0xff]
    %v298 = vld [vmem:[%s3 + $0x18] sm:$0xff]
    %v299 = vld [vmem:[%s3 + $0x20] sm:$0xff]
    %v300 = vld [vmem:[%s3 + $0x28] sm:$0xff]
    %v301 = vld [vmem:[%s3 + $0x30] sm:$0xff]
    %v302 = vld [vmem:[%s3 + $0x38] sm:$0xff]
    %v303 = vld [vmem:[%s3 + $0x40] sm:$0xff]
    %v304 = vld [vmem:[%s3 + $0x48] sm:$0xff]
    %v305 = vld [vmem:[%s3 + $0x50] sm:$0xff]
    %v306 = vld [vmem:[%s3 + $0x58] sm:$0xff]
    %v307 = vld [vmem:[%s3 + $0x60] sm:$0xff]
    %v308 = vld [vmem:[%s3 + $0x68] sm:$0xff]
    %v309 = vld [vmem:[%s3 + $0x70] sm:$0xff]
    %v310 = vld [vmem:[%s3 + $0x78] sm:$0xff]
    %v311 = vmax.f32 %v295, 0.0
    %v312 = vmax.f32 %v296, 0.0
    %v313 = vmax.f32 %v297, 0.0
    %v314 = vmax.f32 %v298, 0.0
    %v315 = vmax.f32 %v299, 0.0
    %v316 = vmax.f32 %v300, 0.0
    %v317 = vmax.f32 %v301, 0.0
    %v318 = vmax.f32 %v302, 0.0
    %v319 = vmax.f32 %v303, 0.0
    %v320 = vmax.f32 %v304, 0.0
    %v321 = vmax.f32 %v305, 0.0
    %v322 = vmax.f32 %v306, 0.0
    %v323 = vmax.f32 %v307, 0.0
    %v324 = vmax.f32 %v308, 0.0
    %v325 = vmax.f32 %v309, 0.0
    %v326 = vmax.f32 %v310, 0.0
    %327 = vst.msk [vmem:[%s3] sm:$0xff] %vm275, %v311
    %328 = vst.msk [vmem:[%s3 + $0x8] sm:$0xff] %vm275, %v312
    %329 = vst.msk [vmem:[%s3 + $0x10] sm:$0xff] %vm275, %v313
    %330 = vst.msk [vmem:[%s3 + $0x18] sm:$0xff] %vm275, %v314
    %331 = vst.msk [vmem:[%s3 + $0x20] sm:$0xff] %vm275, %v315
    %332 = vst.msk [vmem:[%s3 + $0x28] sm:$0xff] %vm275, %v316
    %333 = vst.msk [vmem:[%s3 + $0x30] sm:$0xff] %vm275, %v317
    %334 = vst.msk [vmem:[%s3 + $0x38] sm:$0xff] %vm275, %v318
    %335 = vst.msk [vmem:[%s3 + $0x40] sm:$0xff] %vm275, %v319
    %336 = vst.msk [vmem:[%s3 + $0x48] sm:$0xff] %vm275, %v320
    %337 = vst.msk [vmem:[%s3 + $0x50] sm:$0xff] %vm275, %v321
    %338 = vst.msk [vmem:[%s3 + $0x58] sm:$0xff] %vm275, %v322
    %339 = vst.msk [vmem:[%s3 + $0x60] sm:$0xff] %vm275, %v323
    %340 = vst.msk [vmem:[%s3 + $0x68] sm:$0xff] %vm275, %v324
    %341 = vst.msk [vmem:[%s3 + $0x70] sm:$0xff] %vm275, %v325
    %342 = vst.msk [vmem:[%s3 + $0x78] sm:$0xff] %vm275, %v326
  $region21: #{feature_extraction_forward.55} parent=0 // pred_fallthru
    _
  // Predicated region
  $region22: #{feature_extraction_forward.55} parent=0 // pred_check
    _
  $region23: #{feature_extraction_forward.55} parent=0 // pred_check_branch
    %344 = sbr.rel (0) target = $region25
  $region24: #{feature_extraction_forward.55} parent=0 // pred_region
    _
  $region25: #{feature_extraction_forward.55} parent=0 // pred_fallthru
    _
  // Predicated region
  $region26: #{feature_extraction_forward.55} parent=0 // pred_check
    _
  $region27: #{feature_extraction_forward.55} parent=0 // pred_check_branch
    %346 = sbr.rel (0) target = $region29
  $region28: #{feature_extraction_forward.55} parent=0 // pred_region
    _
  $region29: #{feature_extraction_forward.55} parent=0 // pred_fallthru
    _

// kernel: feature_extraction_forward.56
$region0: #{feature_extraction_forward.56}
  #allocation0 [shape = 'u32[]', space=smem, size = 0x4, offset = 0x4, fixed_abs, tag = 'smem constant byte address 0x4 - core index']
  #allocation1 [shape = 'u32[144,128]{1,0:T(1,128)}', space=vmem, size = 0x12000, scoped, tag = 'internal scratch']
  %s0 = inlined_call_operand.vmem [shape: bf16[128,288], index: 0, kind: input, shape index: {}]
  %s1 = inlined_call_operand.vmem [shape: bf16[288,32], index: 1, kind: input, shape index: {}]
  %s2 = inlined_call_operand.vmem [shape: f32[1,32], index: 2, kind: input, shape index: {}]
  %s3 = inlined_call_operand.vmem [shape: f32[128,32], index: 3, kind: output, shape index: {}]
  %s4 = sld [smem:[#allocation0]]
  $region30: #{feature_extraction_forward.56} parent=0
    _
  %s6 = ssub.s32 1, %s4
  %s7 = scalar_select 0, %s6, %s4
  // Predicated region
  $region2: #{feature_extraction_forward.56} parent=0 // pred_check
    _
  $region3: #{feature_extraction_forward.56} parent=0 // pred_check_branch
    %9 = sbr.rel (0) target = $region5
  $region4: #{feature_extraction_forward.56} parent=0 // pred_region
    _
  $region5: #{feature_extraction_forward.56} parent=0 // pred_fallthru
    _
  // Predicated region
  $region6: #{feature_extraction_forward.56} parent=0 // pred_check
    _
  $region7: #{feature_extraction_forward.56} parent=0 // pred_check_branch
    %11 = sbr.rel (0) target = $region9
  $region8: #{feature_extraction_forward.56} parent=0 // pred_region
    _
  $region9: #{feature_extraction_forward.56} parent=0 // pred_fallthru
    _
  // Predicated region
  $region10: #{feature_extraction_forward.56} parent=0 // pred_check
    _
  $region11: #{feature_extraction_forward.56} parent=0 // pred_check_branch
    %13 = sbr.rel (0) target = $region13
  $region12: #{feature_extraction_forward.56} parent=0 // pred_region
    _
  $region13: #{feature_extraction_forward.56} parent=0 // pred_fallthru
    _
  %p15 = scmp.eq.s32.totalorder 0, 0
  // Predicated region
  $region14: #{feature_extraction_forward.56} parent=0 // pred_check
    %p16 = pneg %p15
  $region15: #{feature_extraction_forward.56} parent=0 // pred_check_branch
    %18 = sbr.rel (%p16) target = $region17
  $region16: #{feature_extraction_forward.56} parent=0 // pred_region
    %v19 = vld [vmem:[%s2] sm:$0x1]
    %v21 = vlaneseq
    %v22 = vshrl.u32 %v21, 7
    %v23 = vsub.s32 0, %v22
    %v24 = vrot.slane %v19, %v23
    %vm26 = vcmask 261120
    %27 = vst.msk [vmem:[%s3] sm:$0xff] %vm26, %v24
    %28 = vst.msk [vmem:[%s3 + $0x8] sm:$0xff] %vm26, %v24
    %29 = vst.msk [vmem:[%s3 + $0x10] sm:$0xff] %vm26, %v24
    %30 = vst.msk [vmem:[%s3 + $0x18] sm:$0xff] %vm26, %v24
    %31 = vst.msk [vmem:[%s3 + $0x20] sm:$0xff] %vm26, %v24
    %32 = vst.msk [vmem:[%s3 + $0x28] sm:$0xff] %vm26, %v24
    %33 = vst.msk [vmem:[%s3 + $0x30] sm:$0xff] %vm26, %v24
    %34 = vst.msk [vmem:[%s3 + $0x38] sm:$0xff] %vm26, %v24
    %35 = vst.msk [vmem:[%s3 + $0x40] sm:$0xff] %vm26, %v24
    %36 = vst.msk [vmem:[%s3 + $0x48] sm:$0xff] %vm26, %v24
    %37 = vst.msk [vmem:[%s3 + $0x50] sm:$0xff] %vm26, %v24
    %38 = vst.msk [vmem:[%s3 + $0x58] sm:$0xff] %vm26, %v24
    %39 = vst.msk [vmem:[%s3 + $0x60] sm:$0xff] %vm26, %v24
    %40 = vst.msk [vmem:[%s3 + $0x68] sm:$0xff] %vm26, %v24
    %41 = vst.msk [vmem:[%s3 + $0x70] sm:$0xff] %vm26, %v24
    %42 = vst.msk [vmem:[%s3 + $0x78] sm:$0xff] %vm26, %v24
  $region17: #{feature_extraction_forward.56} parent=0 // pred_fallthru
    _
  %v43 = vld [vmem:[%s3] sm:$0xff]
  %v44 = vld [vmem:[%s3 + $0x8] sm:$0xff]
  %v45 = vld [vmem:[%s3 + $0x10] sm:$0xff]
  %v46 = vld [vmem:[%s3 + $0x18] sm:$0xff]
  %v47 = vld [vmem:[%s3 + $0x20] sm:$0xff]
  %v48 = vld [vmem:[%s3 + $0x28] sm:$0xff]
  %v49 = vld [vmem:[%s3 + $0x30] sm:$0xff]
  %v50 = vld [vmem:[%s3 + $0x38] sm:$0xff]
  %v51 = vld [vmem:[%s3 + $0x40] sm:$0xff]
  %v52 = vld [vmem:[%s3 + $0x48] sm:$0xff]
  %v53 = vld [vmem:[%s3 + $0x50] sm:$0xff]
  %v54 = vld [vmem:[%s3 + $0x58] sm:$0xff]
  %v55 = vld [vmem:[%s3 + $0x60] sm:$0xff]
  %v56 = vld [vmem:[%s3 + $0x68] sm:$0xff]
  %v57 = vld [vmem:[%s3 + $0x70] sm:$0xff]
  %v58 = vld [vmem:[%s3 + $0x78] sm:$0xff]
  %v59 = vld [vmem:[%s0] sm:$0xff]
  %v60 = vld [vmem:[%s0 + $0x8] sm:$0xf]
  %v61 = vld [vmem:[%s0 + $0xc] sm:$0xff]
  %v62 = vld [vmem:[%s0 + $0x14] sm:$0xf]
  %v63 = vld [vmem:[%s0 + $0x18] sm:$0xff]
  %v64 = vld [vmem:[%s0 + $0x20] sm:$0xf]
  %v65 = vld [vmem:[%s0 + $0x24] sm:$0xff]
  %v66 = vld [vmem:[%s0 + $0x2c] sm:$0xf]
  %v67 = vld [vmem:[%s0 + $0x30] sm:$0xff]
  %v68 = vld [vmem:[%s0 + $0x38] sm:$0xf]
  %v69 = vld [vmem:[%s0 + $0x3c] sm:$0xff]
  %v70 = vld [vmem:[%s0 + $0x44] sm:$0xf]
  %v71 = vld [vmem:[%s0 + $0x48] sm:$0xff]
  %v72 = vld [vmem:[%s0 + $0x50] sm:$0xf]
  %v73 = vld [vmem:[%s0 + $0x54] sm:$0xff]
  %v74 = vld [vmem:[%s0 + $0x5c] sm:$0xf]
  %v75 = vld [vmem:[%s0 + $0x60] sm:$0xff]
  %v76 = vld [vmem:[%s0 + $0x68] sm:$0xf]
  %v77 = vld [vmem:[%s0 + $0x6c] sm:$0xff]
  %v78 = vld [vmem:[%s0 + $0x74] sm:$0xf]
  %v79 = vld [vmem:[%s0 + $0x78] sm:$0xff]
  %v80 = vld [vmem:[%s0 + $0x80] sm:$0xf]
  %v81 = vld [vmem:[%s0 + $0x84] sm:$0xff]
  %v82 = vld [vmem:[%s0 + $0x8c] sm:$0xf]
  %v83 = vld [vmem:[%s0 + $0x90] sm:$0xff]
  %v84 = vld [vmem:[%s0 + $0x98] sm:$0xf]
  %v85 = vld [vmem:[%s0 + $0x9c] sm:$0xff]
  %v86 = vld [vmem:[%s0 + $0xa4] sm:$0xf]
  %v87 = vld [vmem:[%s0 + $0xa8] sm:$0xff]
  %v88 = vld [vmem:[%s0 + $0xb0] sm:$0xf]
  %v89 = vld [vmem:[%s0 + $0xb4] sm:$0xff]
  %v90 = vld [vmem:[%s0 + $0xbc] sm:$0xf]
  %v91 = vld [vmem:[%s1] sm:$0xf]
  %v92 = vld [vmem:[%s1 + $0x4] sm:$0xf]
  %v93 = vld [vmem:[%s1 + $0x8] sm:$0xf]
  %v94 = vld [vmem:[%s1 + $0xc] sm:$0xf]
  %v95 = vld [vmem:[%s1 + $0x10] sm:$0xf]
  %v96 = vld [vmem:[%s1 + $0x14] sm:$0xf]
  %v97 = vld [vmem:[%s1 + $0x18] sm:$0xf]
  %v98 = vld [vmem:[%s1 + $0x1c] sm:$0xf]
  %v99 = vld [vmem:[%s1 + $0x20] sm:$0xf]
  %v100 = vld [vmem:[%s1 + $0x24] sm:$0xf]
  %v101 = vld [vmem:[%s1 + $0x28] sm:$0xf]
  %v102 = vld [vmem:[%s1 + $0x2c] sm:$0xf]
  %v103 = vld [vmem:[%s1 + $0x30] sm:$0xf]
  %v104 = vld [vmem:[%s1 + $0x34] sm:$0xf]
  %v105 = vld [vmem:[%s1 + $0x38] sm:$0xf]
  %v106 = vld [vmem:[%s1 + $0x3c] sm:$0xf]
  %v107 = vld [vmem:[%s1 + $0x40] sm:$0xf]
  %v108 = vld [vmem:[%s1 + $0x44] sm:$0xf]
  %v109 = vld [vmem:[%s1 + $0x48] sm:$0xf]
  %v110 = vld [vmem:[%s1 + $0x4c] sm:$0xf]
  %v111 = vld [vmem:[%s1 + $0x50] sm:$0xf]
  %v112 = vld [vmem:[%s1 + $0x54] sm:$0xf]
  %v113 = vld [vmem:[%s1 + $0x58] sm:$0xf]
  %v114 = vld [vmem:[%s1 + $0x5c] sm:$0xf]
  %v115 = vld [vmem:[%s1 + $0x60] sm:$0xf]
  %v116 = vld [vmem:[%s1 + $0x64] sm:$0xf]
  %v117 = vld [vmem:[%s1 + $0x68] sm:$0xf]
  %v118 = vld [vmem:[%s1 + $0x6c] sm:$0xf]
  %v119 = vld [vmem:[%s1 + $0x70] sm:$0xf]
  %v120 = vld [vmem:[%s1 + $0x74] sm:$0xf]
  %v121 = vld [vmem:[%s1 + $0x78] sm:$0xf]
  %v122 = vld [vmem:[%s1 + $0x7c] sm:$0xf]
  %v123 = vld [vmem:[%s1 + $0x80] sm:$0xf]
  %v124 = vld [vmem:[%s1 + $0x84] sm:$0xf]
  %v125 = vld [vmem:[%s1 + $0x88] sm:$0xf]
  %v126 = vld [vmem:[%s1 + $0x8c] sm:$0xf]
  %v159 = vunpack.c.l.b16 %v59
  %v160 = vunpack.c.h.b16 %v59
  %v161 = vunpack.c.l.b16 %v60
  %v162 = vunpack.c.l.b16 %v61
  %v163 = vunpack.c.h.b16 %v61
  %v164 = vunpack.c.l.b16 %v62
  %v165 = vunpack.c.l.b16 %v63
  %v166 = vunpack.c.h.b16 %v63
  %v167 = vunpack.c.l.b16 %v64
  %v168 = vunpack.c.l.b16 %v65
  %v169 = vunpack.c.h.b16 %v65
  %v170 = vunpack.c.l.b16 %v66
  %v171 = vunpack.c.l.b16 %v67
  %v172 = vunpack.c.h.b16 %v67
  %v173 = vunpack.c.l.b16 %v68
  %v174 = vunpack.c.l.b16 %v69
  %v175 = vunpack.c.h.b16 %v69
  %v176 = vunpack.c.l.b16 %v70
  %v177 = vunpack.c.l.b16 %v71
  %v178 = vunpack.c.h.b16 %v71
  %v179 = vunpack.c.l.b16 %v72
  %v180 = vunpack.c.l.b16 %v73
  %v181 = vunpack.c.h.b16 %v73
  %v182 = vunpack.c.l.b16 %v74
  %v183 = vunpack.c.l.b16 %v75
  %v184 = vunpack.c.h.b16 %v75
  %v185 = vunpack.c.l.b16 %v76
  %v186 = vunpack.c.l.b16 %v77
  %v187 = vunpack.c.h.b16 %v77
  %v188 = vunpack.c.l.b16 %v78
  %v189 = vunpack.c.l.b16 %v79
  %v190 = vunpack.c.h.b16 %v79
  %v191 = vunpack.c.l.b16 %v80
  %v192 = vunpack.c.l.b16 %v81
  %v193 = vunpack.c.h.b16 %v81
  %v194 = vunpack.c.l.b16 %v82
  %v195 = vunpack.c.l.b16 %v83
  %v196 = vunpack.c.h.b16 %v83
  %v197 = vunpack.c.l.b16 %v84
  %v198 = vunpack.c.l.b16 %v85
  %v199 = vunpack.c.h.b16 %v85
  %v200 = vunpack.c.l.b16 %v86
  %v201 = vunpack.c.l.b16 %v87
  %v202 = vunpack.c.h.b16 %v87
  %v203 = vunpack.c.l.b16 %v88
  %v204 = vunpack.c.l.b16 %v89
  %v205 = vunpack.c.h.b16 %v89
  %v206 = vunpack.c.l.b16 %v90
  %v207 = vpack.c.b16 %v162, %v159
  %v208 = vpack.c.b16 %v163, %v160
  %v209 = vpack.c.b16 %v164, %v161
  %v210 = vpack.c.b16 %v168, %v165
  %v211 = vpack.c.b16 %v169, %v166
  %v212 = vpack.c.b16 %v170, %v167
  %v213 = vpack.c.b16 %v174, %v171
  %v214 = vpack.c.b16 %v175, %v172
  %v215 = vpack.c.b16 %v176, %v173
  %v216 = vpack.c.b16 %v180, %v177
  %v217 = vpack.c.b16 %v181, %v178
  %v218 = vpack.c.b16 %v182, %v179
  %v219 = vpack.c.b16 %v186, %v183
  %v220 = vpack.c.b16 %v187, %v184
  %v221 = vpack.c.b16 %v188, %v185
  %v222 = vpack.c.b16 %v192, %v189
  %v223 = vpack.c.b16 %v193, %v190
  %v224 = vpack.c.b16 %v194, %v191
  %v225 = vpack.c.b16 %v198, %v195
  %v226 = vpack.c.b16 %v199, %v196
  %v227 = vpack.c.b16 %v200, %v197
  %v228 = vpack.c.b16 %v204, %v201
  %v229 = vpack.c.b16 %v205, %v202
  %v230 = vpack.c.b16 %v206, %v203
  %v283 = vunpack.c.l.b16 %v91
  %v284 = vunpack.c.l.b16 %v92
  %v285 = vunpack.c.l.b16 %v93
  %v286 = vunpack.c.l.b16 %v94
  %v287 = vunpack.c.l.b16 %v95
  %v288 = vunpack.c.l.b16 %v96
  %v289 = vunpack.c.l.b16 %v97
  %v290 = vunpack.c.l.b16 %v98
  %v291 = vunpack.c.l.b16 %v99
  %v292 = vunpack.c.l.b16 %v100
  %v293 = vunpack.c.l.b16 %v101
  %v294 = vunpack.c.l.b16 %v102
  %v295 = vunpack.c.l.b16 %v103
  %v296 = vunpack.c.l.b16 %v104
  %v297 = vunpack.c.l.b16 %v105
  %v298 = vunpack.c.l.b16 %v106
  %v299 = vunpack.c.l.b16 %v107
  %v300 = vunpack.c.l.b16 %v108
  %v301 = vunpack.c.l.b16 %v109
  %v302 = vunpack.c.l.b16 %v110
  %v303 = vunpack.c.l.b16 %v111
  %v304 = vunpack.c.l.b16 %v112
  %v305 = vunpack.c.l.b16 %v113
  %v306 = vunpack.c.l.b16 %v114
  %v307 = vunpack.c.l.b16 %v115
  %v308 = vunpack.c.l.b16 %v116
  %v309 = vunpack.c.l.b16 %v117
  %v310 = vunpack.c.l.b16 %v118
  %v311 = vunpack.c.l.b16 %v119
  %v312 = vunpack.c.l.b16 %v120
  %v313 = vunpack.c.l.b16 %v121
  %v314 = vunpack.c.l.b16 %v122
  %v315 = vunpack.c.l.b16 %v123
  %v316 = vunpack.c.l.b16 %v124
  %v317 = vunpack.c.l.b16 %v125
  %v318 = vunpack.c.l.b16 %v126
  %v319 = vpack.c.b16 %v284, %v283
  %v320 = vpack.c.b16 %v286, %v285
  %v321 = vpack.c.b16 %v288, %v287
  %v322 = vpack.c.b16 %v290, %v289
  %v323 = vpack.c.b16 %v292, %v291
  %v324 = vpack.c.b16 %v294, %v293
  %v325 = vpack.c.b16 %v296, %v295
  %v326 = vpack.c.b16 %v298, %v297
  %v327 = vpack.c.b16 %v300, %v299
  %v328 = vpack.c.b16 %v302, %v301
  %v329 = vpack.c.b16 %v304, %v303
  %v330 = vpack.c.b16 %v306, %v305
  %v331 = vpack.c.b16 %v308, %v307
  %v332 = vpack.c.b16 %v310, %v309
  %v333 = vpack.c.b16 %v312, %v311
  %v334 = vpack.c.b16 %v314, %v313
  %v335 = vpack.c.b16 %v316, %v315
  %v336 = vpack.c.b16 %v318, %v317
  %vm355 = vcmask 261120
  %v357 = vsel %vm355, %v209, 0
  %v360 = vsel %vm355, %v212, 0
  %v363 = vsel %vm355, %v215, 0
  %v366 = vsel %vm355, %v218, 0
  %v369 = vsel %vm355, %v221, 0
  %v372 = vsel %vm355, %v224, 0
  %v375 = vsel %vm355, %v227, 0
  %v378 = vsel %vm355, %v230, 0
  %380 = vmatprep.subr.bf16.mxu0 0
  %381 = vmatpush1.bf16.msra.mxu0 %v319
  %382 = vmatprep.subr.bf16.mxu0 0
  %383 = vmatpush1.bf16.msra.mxu0 %v320
  %384 = vmatprep.subr.bf16.mxu0 0
  %385 = vmatpush1.bf16.msra.mxu0 %v321
  %386 = vmatprep.subr.bf16.mxu0 0
  %387 = vmatpush1.bf16.msra.mxu0 %v322
  %388 = vmatprep.subr.bf16.mxu0 0
  %389 = vmatpush1.bf16.msra.mxu0 %v323
  %390 = vmatprep.subr.bf16.mxu0 0
  %391 = vmatpush1.bf16.msra.mxu0 %v324
  %392 = vmatprep.subr.bf16.mxu0 0
  %393 = vmatpush1.bf16.msra.mxu0 %v325
  %394 = vmatprep.subr.bf16.mxu0 0
  %395 = vmatpush1.bf16.msra.mxu0 %v326
  %396 = vmatprep.subr.bf16.mxu0 0
  %397 = vmatpush1.bf16.msra.mxu0 %v327
  %398 = vmatprep.subr.bf16.mxu0 0
  %399 = vmatpush1.bf16.msra.mxu0 %v328
  %400 = vmatprep.subr.bf16.mxu0 0
  %401 = vmatpush1.bf16.msra.mxu0 %v329
  %402 = vmatprep.subr.bf16.mxu0 0
  %403 = vmatpush1.bf16.msra.mxu0 %v330
  %404 = vmatprep.subr.bf16.mxu0 0
  %405 = vmatpush1.bf16.msra.mxu0 %v331
  %406 = vmatprep.subr.bf16.mxu0 0
  %407 = vmatpush1.bf16.msra.mxu0 %v332
  %408 = vmatprep.subr.bf16.mxu0 0
  %409 = vmatpush1.bf16.msra.mxu0 %v333
  %410 = vmatprep.subr.bf16.mxu0 0
  %411 = vmatpush1.bf16.msra.mxu0 %v334
  %412 = vmatprep.mubr.bf16.mxu0 %v208
  %413 = vmatmul.mubr.bf16.gmra.mrb[0].mxu0 %v207
  %v414 = vpop.f32.mrb[0].mxu0
  %v415 = vadd.f32 0.0, %v414
  %v416 = vpop.f32.mrb[0].mxu0
  %v417 = vpop.f32.mrb[0].mxu0
  %v418 = vadd.f32 0.0, %v417
  %v419 = vpop.f32.mrb[0].mxu0
  %420 = vmatprep.mubr.bf16.mxu0 %v211
  %421 = vmatmul.mubr.bf16.gmra.mrb[0].mxu0 %v210
  %v422 = vpop.f32.mrb[0].mxu0
  %v423 = vadd.f32 0.0, %v422
  %v424 = vpop.f32.mrb[0].mxu0
  %v425 = vpop.f32.mrb[0].mxu0
  %v426 = vadd.f32 0.0, %v425
  %v427 = vpop.f32.mrb[0].mxu0
  %428 = vmatprep.mubr.bf16.mxu0 %v214
  %429 = vmatmul.mubr.bf16.gmra.mrb[0].mxu0 %v213
  %v430 = vpop.f32.mrb[0].mxu0
  %v431 = vadd.f32 0.0, %v430
  %v432 = vpop.f32.mrb[0].mxu0
  %v433 = vpop.f32.mrb[0].mxu0
  %v434 = vadd.f32 0.0, %v433
  %v435 = vpop.f32.mrb[0].mxu0
  %436 = vmatprep.mubr.bf16.mxu0 %v217
  %437 = vmatmul.mubr.bf16.gmra.mrb[0].mxu0 %v216
  %v438 = vpop.f32.mrb[0].mxu0
  %v439 = vadd.f32 0.0, %v438
  %v440 = vpop.f32.mrb[0].mxu0
  %v441 = vpop.f32.mrb[0].mxu0
  %v442 = vadd.f32 0.0, %v441
  %v443 = vpop.f32.mrb[0].mxu0
  %444 = vmatprep.mubr.bf16.mxu0 %v220
  %445 = vmatmul.mubr.bf16.gmra.mrb[0].mxu0 %v219
  %v446 = vpop.f32.mrb[0].mxu0
  %v447 = vadd.f32 0.0, %v446
  %v448 = vpop.f32.mrb[0].mxu0
  %v449 = vpop.f32.mrb[0].mxu0
  %v450 = vadd.f32 0.0, %v449
  %v451 = vpop.f32.mrb[0].mxu0
  %452 = vmatprep.mubr.bf16.mxu0 %v223
  %453 = vmatmul.mubr.bf16.gmra.mrb[0].mxu0 %v222
  %v454 = vpop.f32.mrb[0].mxu0
  %v455 = vadd.f32 0.0, %v454
  %v456 = vpop.f32.mrb[0].mxu0
  %v457 = vpop.f32.mrb[0].mxu0
  %v458 = vadd.f32 0.0, %v457
  %v459 = vpop.f32.mrb[0].mxu0
  %460 = vmatprep.mubr.bf16.mxu0 %v226
  %461 = vmatmul.mubr.bf16.gmra.mrb[0].mxu0 %v225
  %v462 = vpop.f32.mrb[0].mxu0
  %v463 = vadd.f32 0.0, %v462
  %v464 = vpop.f32.mrb[0].mxu0
  %v465 = vpop.f32.mrb[0].mxu0
  %v466 = vadd.f32 0.0, %v465
  %v467 = vpop.f32.mrb[0].mxu0
  %468 = vmatprep.mubr.bf16.mxu0 %v229
  %469 = vmatmul.mubr.bf16.gmra.mrb[0].mxu0 %v228
  %v470 = vpop.f32.mrb[0].mxu0
  %v471 = vadd.f32 0.0, %v470
  %v472 = vpop.f32.mrb[0].mxu0
  %v473 = vpop.f32.mrb[0].mxu0
  %v474 = vadd.f32 0.0, %v473
  %v475 = vpop.f32.mrb[0].mxu0
  %476 = vdwg.mxu0
  %477 = vmatprep.subr.bf16.mxu0 0
  %478 = vmatpush1.bf16.msra.mxu0 %v335
  %479 = vmatprep.subr.bf16.mxu0 0
  %480 = vmatpush1.bf16.msra.mxu0 %v336
  %481 = vmatprep.subr.bf16.mxu0 0
  %482 = vmatpush1.bf16.msra.mxu0 0
  %483 = vmatprep.subr.bf16.mxu0 0
  %484 = vmatpush1.bf16.msra.mxu0 0
  %485 = vmatprep.subr.bf16.mxu0 0
  %486 = vmatpush1.bf16.msra.mxu0 0
  %487 = vmatprep.subr.bf16.mxu0 0
  %488 = vmatpush1.bf16.msra.mxu0 0
  %489 = vmatprep.subr.bf16.mxu0 0
  %490 = vmatpush1.bf16.msra.mxu0 0
  %491 = vmatprep.subr.bf16.mxu0 0
  %492 = vmatpush1.bf16.msra.mxu0 0
  %493 = vmatprep.subr.bf16.mxu0 0
  %494 = vmatpush1.bf16.msra.mxu0 0
  %495 = vmatprep.subr.bf16.mxu0 0
  %496 = vmatpush1.bf16.msra.mxu0 0
  %497 = vmatprep.subr.bf16.mxu0 0
  %498 = vmatpush1.bf16.msra.mxu0 0
  %499 = vmatprep.subr.bf16.mxu0 0
  %500 = vmatpush1.bf16.msra.mxu0 0
  %501 = vmatprep.subr.bf16.mxu0 0
  %502 = vmatpush1.bf16.msra.mxu0 0
  %503 = vmatprep.subr.bf16.mxu0 0
  %504 = vmatpush1.bf16.msra.mxu0 0
  %505 = vmatprep.subr.bf16.mxu0 0
  %506 = vmatpush1.bf16.msra.mxu0 0
  %507 = vmatprep.subr.bf16.mxu0 0
  %508 = vmatpush1.bf16.msra.mxu0 0
  %509 = vmatprep.mubr.bf16.mxu0 0
  %510 = vmatmul.mubr.bf16.gmra.mrb[0].mxu0 %v357
  %v511 = vpop.f32.mrb[0].mxu0
  %v512 = vadd.f32 %v415, %v511
  %v513 = vpop.f32.mrb[0].mxu0
  %v514 = vpop.f32.mrb[0].mxu0
  %v515 = vadd.f32 %v418, %v514
  %v516 = vpop.f32.mrb[0].mxu0
  %517 = vmatprep.mubr.bf16.mxu0 0
  %518 = vmatmul.mubr.bf16.gmra.mrb[0].mxu0 %v360
  %v519 = vpop.f32.mrb[0].mxu0
  %v520 = vadd.f32 %v423, %v519
  %v521 = vpop.f32.mrb[0].mxu0
  %v522 = vpop.f32.mrb[0].mxu0
  %v523 = vadd.f32 %v426, %v522
  %v524 = vpop.f32.mrb[0].mxu0
  %525 = vmatprep.mubr.bf16.mxu0 0
  %526 = vmatmul.mubr.bf16.gmra.mrb[0].mxu0 %v363
  %v527 = vpop.f32.mrb[0].mxu0
  %v528 = vadd.f32 %v431, %v527
  %v529 = vpop.f32.mrb[0].mxu0
  %v530 = vpop.f32.mrb[0].mxu0
  %v531 = vadd.f32 %v434, %v530
  %v532 = vpop.f32.mrb[0].mxu0
  %533 = vmatprep.mubr.bf16.mxu0 0
  %534 = vmatmul.mubr.bf16.gmra.mrb[0].mxu0 %v366
  %v535 = vpop.f32.mrb[0].mxu0
  %v536 = vadd.f32 %v439, %v535
  %v537 = vpop.f32.mrb[0].mxu0
  %v538 = vpop.f32.mrb[0].mxu0
  %v539 = vadd.f32 %v442, %v538
  %v540 = vpop.f32.mrb[0].mxu0
  %541 = vmatprep.mubr.bf16.mxu0 0
  %542 = vmatmul.mubr.bf16.gmra.mrb[0].mxu0 %v369
  %v543 = vpop.f32.mrb[0].mxu0
  %v544 = vadd.f32 %v447, %v543
  %v545 = vpop.f32.mrb[0].mxu0
  %v546 = vpop.f32.mrb[0].mxu0
  %v547 = vadd.f32 %v450, %v546
  %v548 = vpop.f32.mrb[0].mxu0
  %549 = vmatprep.mubr.bf16.mxu0 0
  %550 = vmatmul.mubr.bf16.gmra.mrb[0].mxu0 %v372
  %v551 = vpop.f32.mrb[0].mxu0
  %v552 = vadd.f32 %v455, %v551
  %v553 = vpop.f32.mrb[0].mxu0
  %v554 = vpop.f32.mrb[0].mxu0
  %v555 = vadd.f32 %v458, %v554
  %v556 = vpop.f32.mrb[0].mxu0
  %557 = vmatprep.mubr.bf16.mxu0 0
  %558 = vmatmul.mubr.bf16.gmra.mrb[0].mxu0 %v375
  %v559 = vpop.f32.mrb[0].mxu0
  %v560 = vadd.f32 %v463, %v559
  %v561 = vpop.f32.mrb[0].mxu0
  %v562 = vpop.f32.mrb[0].mxu0
  %v563 = vadd.f32 %v466, %v562
  %v564 = vpop.f32.mrb[0].mxu0
  %565 = vmatprep.mubr.bf16.mxu0 0
  %566 = vmatmul.mubr.bf16.gmra.mrb[0].mxu0 %v378
  %v567 = vpop.f32.mrb[0].mxu0
  %v568 = vadd.f32 %v471, %v567
  %v569 = vpop.f32.mrb[0].mxu0
  %v570 = vpop.f32.mrb[0].mxu0
  %v571 = vadd.f32 %v474, %v570
  %v572 = vpop.f32.mrb[0].mxu0
  %573 = vdwg.mxu0
  %v574 = vadd.f32 %v43, %v512
  %v575 = vadd.f32 %v44, %v515
  %v576 = vadd.f32 %v45, %v520
  %v577 = vadd.f32 %v46, %v523
  %v578 = vadd.f32 %v47, %v528
  %v579 = vadd.f32 %v48, %v531
  %v580 = vadd.f32 %v49, %v536
  %v581 = vadd.f32 %v50, %v539
  %v582 = vadd.f32 %v51, %v544
  %v583 = vadd.f32 %v52, %v547
  %v584 = vadd.f32 %v53, %v552
  %v585 = vadd.f32 %v54, %v555
  %v586 = vadd.f32 %v55, %v560
  %v587 = vadd.f32 %v56, %v563
  %v588 = vadd.f32 %v57, %v568
  %v589 = vadd.f32 %v58, %v571
  %590 = vst.msk [vmem:[%s3] sm:$0xff] %vm355, %v574
  %591 = vst.msk [vmem:[%s3 + $0x8] sm:$0xff] %vm355, %v575
  %592 = vst.msk [vmem:[%s3 + $0x10] sm:$0xff] %vm355, %v576
  %593 = vst.msk [vmem:[%s3 + $0x18] sm:$0xff] %vm355, %v577
  %594 = vst.msk [vmem:[%s3 + $0x20] sm:$0xff] %vm355, %v578
  %595 = vst.msk [vmem:[%s3 + $0x28] sm:$0xff] %vm355, %v579
  %596 = vst.msk [vmem:[%s3 + $0x30] sm:$0xff] %vm355, %v580
  %597 = vst.msk [vmem:[%s3 + $0x38] sm:$0xff] %vm355, %v581
  %598 = vst.msk [vmem:[%s3 + $0x40] sm:$0xff] %vm355, %v582
  %599 = vst.msk [vmem:[%s3 + $0x48] sm:$0xff] %vm355, %v583
  %600 = vst.msk [vmem:[%s3 + $0x50] sm:$0xff] %vm355, %v584
  %601 = vst.msk [vmem:[%s3 + $0x58] sm:$0xff] %vm355, %v585
  %602 = vst.msk [vmem:[%s3 + $0x60] sm:$0xff] %vm355, %v586
  %603 = vst.msk [vmem:[%s3 + $0x68] sm:$0xff] %vm355, %v587
  %604 = vst.msk [vmem:[%s3 + $0x70] sm:$0xff] %vm355, %v588
  %605 = vst.msk [vmem:[%s3 + $0x78] sm:$0xff] %vm355, %v589
  // Predicated region
  $region18: #{feature_extraction_forward.56} parent=0 // pred_check
    %p606 = pneg %p15
  $region19: #{feature_extraction_forward.56} parent=0 // pred_check_branch
    %608 = sbr.rel (%p606) target = $region21
  $region20: #{feature_extraction_forward.56} parent=0 // pred_region
    %v609 = vld [vmem:[%s3] sm:$0xff]
    %v610 = vld [vmem:[%s3 + $0x8] sm:$0xff]
    %v611 = vld [vmem:[%s3 + $0x10] sm:$0xff]
    %v612 = vld [vmem:[%s3 + $0x18] sm:$0xff]
    %v613 = vld [vmem:[%s3 + $0x20] sm:$0xff]
    %v614 = vld [vmem:[%s3 + $0x28] sm:$0xff]
    %v615 = vld [vmem:[%s3 + $0x30] sm:$0xff]
    %v616 = vld [vmem:[%s3 + $0x38] sm:$0xff]
    %v617 = vld [vmem:[%s3 + $0x40] sm:$0xff]
    %v618 = vld [vmem:[%s3 + $0x48] sm:$0xff]
    %v619 = vld [vmem:[%s3 + $0x50] sm:$0xff]
    %v620 = vld [vmem:[%s3 + $0x58] sm:$0xff]
    %v621 = vld [vmem:[%s3 + $0x60] sm:$0xff]
    %v622 = vld [vmem:[%s3 + $0x68] sm:$0xff]
    %v623 = vld [vmem:[%s3 + $0x70] sm:$0xff]
    %v624 = vld [vmem:[%s3 + $0x78] sm:$0xff]
    %v625 = vmax.f32 %v609, 0.0
    %v626 = vmax.f32 %v610, 0.0
    %v627 = vmax.f32 %v611, 0.0
    %v628 = vmax.f32 %v612, 0.0
    %v629 = vmax.f32 %v613, 0.0
    %v630 = vmax.f32 %v614, 0.0
    %v631 = vmax.f32 %v615, 0.0
    %v632 = vmax.f32 %v616, 0.0
    %v633 = vmax.f32 %v617, 0.0
    %v634 = vmax.f32 %v618, 0.0
    %v635 = vmax.f32 %v619, 0.0
    %v636 = vmax.f32 %v620, 0.0
    %v637 = vmax.f32 %v621, 0.0
    %v638 = vmax.f32 %v622, 0.0
    %v639 = vmax.f32 %v623, 0.0
    %v640 = vmax.f32 %v624, 0.0
    %641 = vst.msk [vmem:[%s3] sm:$0xff] %vm355, %v625
    %642 = vst.msk [vmem:[%s3 + $0x8] sm:$0xff] %vm355, %v626
    %643 = vst.msk [vmem:[%s3 + $0x10] sm:$0xff] %vm355, %v627
    %644 = vst.msk [vmem:[%s3 + $0x18] sm:$0xff] %vm355, %v628
    %645 = vst.msk [vmem:[%s3 + $0x20] sm:$0xff] %vm355, %v629
    %646 = vst.msk [vmem:[%s3 + $0x28] sm:$0xff] %vm355, %v630
    %647 = vst.msk [vmem:[%s3 + $0x30] sm:$0xff] %vm355, %v631
    %648 = vst.msk [vmem:[%s3 + $0x38] sm:$0xff] %vm355, %v632
    %649 = vst.msk [vmem:[%s3 + $0x40] sm:$0xff] %vm355, %v633
    %650 = vst.msk [vmem:[%s3 + $0x48] sm:$0xff] %vm355, %v634
    %651 = vst.msk [vmem:[%s3 + $0x50] sm:$0xff] %vm355, %v635
    %652 = vst.msk [vmem:[%s3 + $0x58] sm:$0xff] %vm355, %v636
    %653 = vst.msk [vmem:[%s3 + $0x60] sm:$0xff] %vm355, %v637
    %654 = vst.msk [vmem:[%s3 + $0x68] sm:$0xff] %vm355, %v638
    %655 = vst.msk [vmem:[%s3 + $0x70] sm:$0xff] %vm355, %v639
    %656 = vst.msk [vmem:[%s3 + $0x78] sm:$0xff] %vm355, %v640
  $region21: #{feature_extraction_forward.56} parent=0 // pred_fallthru
    _
  // Predicated region
  $region22: #{feature_extraction_forward.56} parent=0 // pred_check
    _
  $region23: #{feature_extraction_forward.56} parent=0 // pred_check_branch
    %658 = sbr.rel (0) target = $region25
  $region24: #{feature_extraction_forward.56} parent=0 // pred_region
    _
  $region25: #{feature_extraction_forward.56} parent=0 // pred_fallthru
    _
  // Predicated region
  $region26: #{feature_extraction_forward.56} parent=0 // pred_check
    _
  $region27: #{feature_extraction_forward.56} parent=0 // pred_check_branch
    %660 = sbr.rel (0) target = $region29
  $region28: #{feature_extraction_forward.56} parent=0 // pred_region
    _
  $region29: #{feature_extraction_forward.56} parent=0 // pred_fallthru
    _

// kernel: feature_extraction_forward.59
$region0: #{feature_extraction_forward.59}
  #allocation0 [shape = 'u32[]', space=smem, size = 0x4, offset = 0x4, fixed_abs, tag = 'smem constant byte address 0x4 - core index']
  #allocation1 [shape = 'u32[144,128]{1,0:T(1,128)}', space=vmem, size = 0x12000, scoped, tag = 'internal scratch']
  %s0 = inlined_call_operand.vmem [shape: bf16[128,288], index: 0, kind: input, shape index: {}]
  %s1 = inlined_call_operand.vmem [shape: bf16[288,32], index: 1, kind: input, shape index: {}]
  %s2 = inlined_call_operand.vmem [shape: f32[1,32], index: 2, kind: input, shape index: {}]
  %s3 = inlined_call_operand.vmem [shape: f32[128,32], index: 3, kind: input, shape index: {}]
  %s4 = inlined_call_operand.vmem [shape: f32[128,32], index: 4, kind: output, shape index: {}]
  %s5 = sld [smem:[#allocation0]]
  $region34: #{feature_extraction_forward.59} parent=0
    _
  %s7 = ssub.s32 1, %s5
  %s8 = scalar_select 0, %s7, %s5
  // Predicated region
  $region2: #{feature_extraction_forward.59} parent=0 // pred_check
    _
  $region3: #{feature_extraction_forward.59} parent=0 // pred_check_branch
    %10 = sbr.rel (0) target = $region5
  $region4: #{feature_extraction_forward.59} parent=0 // pred_region
    _
  $region5: #{feature_extraction_forward.59} parent=0 // pred_fallthru
    _
  // Predicated region
  $region6: #{feature_extraction_forward.59} parent=0 // pred_check
    _
  $region7: #{feature_extraction_forward.59} parent=0 // pred_check_branch
    %12 = sbr.rel (0) target = $region9
  $region8: #{feature_extraction_forward.59} parent=0 // pred_region
    _
  $region9: #{feature_extraction_forward.59} parent=0 // pred_fallthru
    _
  // Predicated region
  $region10: #{feature_extraction_forward.59} parent=0 // pred_check
    _
  $region11: #{feature_extraction_forward.59} parent=0 // pred_check_branch
    %14 = sbr.rel (0) target = $region13
  $region12: #{feature_extraction_forward.59} parent=0 // pred_region
    _
  $region13: #{feature_extraction_forward.59} parent=0 // pred_fallthru
    _
  // Predicated region
  $region14: #{feature_extraction_forward.59} parent=0 // pred_check
    _
  $region15: #{feature_extraction_forward.59} parent=0 // pred_check_branch
    %16 = sbr.rel (0) target = $region17
  $region16: #{feature_extraction_forward.59} parent=0 // pred_region
    _
  $region17: #{feature_extraction_forward.59} parent=0 // pred_fallthru
    _
  %p18 = scmp.eq.s32.totalorder 0, 0
  // Predicated region
  $region18: #{feature_extraction_forward.59} parent=0 // pred_check
    %p19 = pneg %p18
  $region19: #{feature_extraction_forward.59} parent=0 // pred_check_branch
    %21 = sbr.rel (%p19) target = $region21
  $region20: #{feature_extraction_forward.59} parent=0 // pred_region
    %v22 = vld [vmem:[%s2] sm:$0x1]
    %v24 = vlaneseq
    %v25 = vshrl.u32 %v24, 7
    %v26 = vsub.s32 0, %v25
    %v27 = vrot.slane %v22, %v26
    %vm29 = vcmask 261120
    %30 = vst.msk [vmem:[%s4] sm:$0xff] %vm29, %v27
    %31 = vst.msk [vmem:[%s4 + $0x8] sm:$0xff] %vm29, %v27
    %32 = vst.msk [vmem:[%s4 + $0x10] sm:$0xff] %vm29, %v27
    %33 = vst.msk [vmem:[%s4 + $0x18] sm:$0xff] %vm29, %v27
    %34 = vst.msk [vmem:[%s4 + $0x20] sm:$0xff] %vm29, %v27
    %35 = vst.msk [vmem:[%s4 + $0x28] sm:$0xff] %vm29, %v27
    %36 = vst.msk [vmem:[%s4 + $0x30] sm:$0xff] %vm29, %v27
    %37 = vst.msk [vmem:[%s4 + $0x38] sm:$0xff] %vm29, %v27
    %38 = vst.msk [vmem:[%s4 + $0x40] sm:$0xff] %vm29, %v27
    %39 = vst.msk [vmem:[%s4 + $0x48] sm:$0xff] %vm29, %v27
    %40 = vst.msk [vmem:[%s4 + $0x50] sm:$0xff] %vm29, %v27
    %41 = vst.msk [vmem:[%s4 + $0x58] sm:$0xff] %vm29, %v27
    %42 = vst.msk [vmem:[%s4 + $0x60] sm:$0xff] %vm29, %v27
    %43 = vst.msk [vmem:[%s4 + $0x68] sm:$0xff] %vm29, %v27
    %44 = vst.msk [vmem:[%s4 + $0x70] sm:$0xff] %vm29, %v27
    %45 = vst.msk [vmem:[%s4 + $0x78] sm:$0xff] %vm29, %v27
  $region21: #{feature_extraction_forward.59} parent=0 // pred_fallthru
    _
  %v46 = vld [vmem:[%s4] sm:$0xff]
  %v47 = vld [vmem:[%s4 + $0x8] sm:$0xff]
  %v48 = vld [vmem:[%s4 + $0x10] sm:$0xff]
  %v49 = vld [vmem:[%s4 + $0x18] sm:$0xff]
  %v50 = vld [vmem:[%s4 + $0x20] sm:$0xff]
  %v51 = vld [vmem:[%s4 + $0x28] sm:$0xff]
  %v52 = vld [vmem:[%s4 + $0x30] sm:$0xff]
  %v53 = vld [vmem:[%s4 + $0x38] sm:$0xff]
  %v54 = vld [vmem:[%s4 + $0x40] sm:$0xff]
  %v55 = vld [vmem:[%s4 + $0x48] sm:$0xff]
  %v56 = vld [vmem:[%s4 + $0x50] sm:$0xff]
  %v57 = vld [vmem:[%s4 + $0x58] sm:$0xff]
  %v58 = vld [vmem:[%s4 + $0x60] sm:$0xff]
  %v59 = vld [vmem:[%s4 + $0x68] sm:$0xff]
  %v60 = vld [vmem:[%s4 + $0x70] sm:$0xff]
  %v61 = vld [vmem:[%s4 + $0x78] sm:$0xff]
  %v62 = vld [vmem:[%s0] sm:$0xff]
  %v63 = vld [vmem:[%s0 + $0x8] sm:$0xf]
  %v64 = vld [vmem:[%s0 + $0xc] sm:$0xff]
  %v65 = vld [vmem:[%s0 + $0x14] sm:$0xf]
  %v66 = vld [vmem:[%s0 + $0x18] sm:$0xff]
  %v67 = vld [vmem:[%s0 + $0x20] sm:$0xf]
  %v68 = vld [vmem:[%s0 + $0x24] sm:$0xff]
  %v69 = vld [vmem:[%s0 + $0x2c] sm:$0xf]
  %v70 = vld [vmem:[%s0 + $0x30] sm:$0xff]
  %v71 = vld [vmem:[%s0 + $0x38] sm:$0xf]
  %v72 = vld [vmem:[%s0 + $0x3c] sm:$0xff]
  %v73 = vld [vmem:[%s0 + $0x44] sm:$0xf]
  %v74 = vld [vmem:[%s0 + $0x48] sm:$0xff]
  %v75 = vld [vmem:[%s0 + $0x50] sm:$0xf]
  %v76 = vld [vmem:[%s0 + $0x54] sm:$0xff]
  %v77 = vld [vmem:[%s0 + $0x5c] sm:$0xf]
  %v78 = vld [vmem:[%s0 + $0x60] sm:$0xff]
  %v79 = vld [vmem:[%s0 + $0x68] sm:$0xf]
  %v80 = vld [vmem:[%s0 + $0x6c] sm:$0xff]
  %v81 = vld [vmem:[%s0 + $0x74] sm:$0xf]
  %v82 = vld [vmem:[%s0 + $0x78] sm:$0xff]
  %v83 = vld [vmem:[%s0 + $0x80] sm:$0xf]
  %v84 = vld [vmem:[%s0 + $0x84] sm:$0xff]
  %v85 = vld [vmem:[%s0 + $0x8c] sm:$0xf]
  %v86 = vld [vmem:[%s0 + $0x90] sm:$0xff]
  %v87 = vld [vmem:[%s0 + $0x98] sm:$0xf]
  %v88 = vld [vmem:[%s0 + $0x9c] sm:$0xff]
  %v89 = vld [vmem:[%s0 + $0xa4] sm:$0xf]
  %v90 = vld [vmem:[%s0 + $0xa8] sm:$0xff]
  %v91 = vld [vmem:[%s0 + $0xb0] sm:$0xf]
  %v92 = vld [vmem:[%s0 + $0xb4] sm:$0xff]
  %v93 = vld [vmem:[%s0 + $0xbc] sm:$0xf]
  %v94 = vld [vmem:[%s1] sm:$0xf]
  %v95 = vld [vmem:[%s1 + $0x4] sm:$0xf]
  %v96 = vld [vmem:[%s1 + $0x8] sm:$0xf]
  %v97 = vld [vmem:[%s1 + $0xc] sm:$0xf]
  %v98 = vld [vmem:[%s1 + $0x10] sm:$0xf]
  %v99 = vld [vmem:[%s1 + $0x14] sm:$0xf]
  %v100 = vld [vmem:[%s1 + $0x18] sm:$0xf]
  %v101 = vld [vmem:[%s1 + $0x1c] sm:$0xf]
  %v102 = vld [vmem:[%s1 + $0x20] sm:$0xf]
  %v103 = vld [vmem:[%s1 + $0x24] sm:$0xf]
  %v104 = vld [vmem:[%s1 + $0x28] sm:$0xf]
  %v105 = vld [vmem:[%s1 + $0x2c] sm:$0xf]
  %v106 = vld [vmem:[%s1 + $0x30] sm:$0xf]
  %v107 = vld [vmem:[%s1 + $0x34] sm:$0xf]
  %v108 = vld [vmem:[%s1 + $0x38] sm:$0xf]
  %v109 = vld [vmem:[%s1 + $0x3c] sm:$0xf]
  %v110 = vld [vmem:[%s1 + $0x40] sm:$0xf]
  %v111 = vld [vmem:[%s1 + $0x44] sm:$0xf]
  %v112 = vld [vmem:[%s1 + $0x48] sm:$0xf]
  %v113 = vld [vmem:[%s1 + $0x4c] sm:$0xf]
  %v114 = vld [vmem:[%s1 + $0x50] sm:$0xf]
  %v115 = vld [vmem:[%s1 + $0x54] sm:$0xf]
  %v116 = vld [vmem:[%s1 + $0x58] sm:$0xf]
  %v117 = vld [vmem:[%s1 + $0x5c] sm:$0xf]
  %v118 = vld [vmem:[%s1 + $0x60] sm:$0xf]
  %v119 = vld [vmem:[%s1 + $0x64] sm:$0xf]
  %v120 = vld [vmem:[%s1 + $0x68] sm:$0xf]
  %v121 = vld [vmem:[%s1 + $0x6c] sm:$0xf]
  %v122 = vld [vmem:[%s1 + $0x70] sm:$0xf]
  %v123 = vld [vmem:[%s1 + $0x74] sm:$0xf]
  %v124 = vld [vmem:[%s1 + $0x78] sm:$0xf]
  %v125 = vld [vmem:[%s1 + $0x7c] sm:$0xf]
  %v126 = vld [vmem:[%s1 + $0x80] sm:$0xf]
  %v127 = vld [vmem:[%s1 + $0x84] sm:$0xf]
  %v128 = vld [vmem:[%s1 + $0x88] sm:$0xf]
  %v129 = vld [vmem:[%s1 + $0x8c] sm:$0xf]
  %v162 = vunpack.c.l.b16 %v62
  %v163 = vunpack.c.h.b16 %v62
  %v164 = vunpack.c.l.b16 %v63
  %v165 = vunpack.c.l.b16 %v64
  %v166 = vunpack.c.h.b16 %v64
  %v167 = vunpack.c.l.b16 %v65
  %v168 = vunpack.c.l.b16 %v66
  %v169 = vunpack.c.h.b16 %v66
  %v170 = vunpack.c.l.b16 %v67
  %v171 = vunpack.c.l.b16 %v68
  %v172 = vunpack.c.h.b16 %v68
  %v173 = vunpack.c.l.b16 %v69
  %v174 = vunpack.c.l.b16 %v70
  %v175 = vunpack.c.h.b16 %v70
  %v176 = vunpack.c.l.b16 %v71
  %v177 = vunpack.c.l.b16 %v72
  %v178 = vunpack.c.h.b16 %v72
  %v179 = vunpack.c.l.b16 %v73
  %v180 = vunpack.c.l.b16 %v74
  %v181 = vunpack.c.h.b16 %v74
  %v182 = vunpack.c.l.b16 %v75
  %v183 = vunpack.c.l.b16 %v76
  %v184 = vunpack.c.h.b16 %v76
  %v185 = vunpack.c.l.b16 %v77
  %v186 = vunpack.c.l.b16 %v78
  %v187 = vunpack.c.h.b16 %v78
  %v188 = vunpack.c.l.b16 %v79
  %v189 = vunpack.c.l.b16 %v80
  %v190 = vunpack.c.h.b16 %v80
  %v191 = vunpack.c.l.b16 %v81
  %v192 = vunpack.c.l.b16 %v82
  %v193 = vunpack.c.h.b16 %v82
  %v194 = vunpack.c.l.b16 %v83
  %v195 = vunpack.c.l.b16 %v84
  %v196 = vunpack.c.h.b16 %v84
  %v197 = vunpack.c.l.b16 %v85
  %v198 = vunpack.c.l.b16 %v86
  %v199 = vunpack.c.h.b16 %v86
  %v200 = vunpack.c.l.b16 %v87
  %v201 = vunpack.c.l.b16 %v88
  %v202 = vunpack.c.h.b16 %v88
  %v203 = vunpack.c.l.b16 %v89
  %v204 = vunpack.c.l.b16 %v90
  %v205 = vunpack.c.h.b16 %v90
  %v206 = vunpack.c.l.b16 %v91
  %v207 = vunpack.c.l.b16 %v92
  %v208 = vunpack.c.h.b16 %v92
  %v209 = vunpack.c.l.b16 %v93
  %v210 = vpack.c.b16 %v165, %v162
  %v211 = vpack.c.b16 %v166, %v163
  %v212 = vpack.c.b16 %v167, %v164
  %v213 = vpack.c.b16 %v171, %v168
  %v214 = vpack.c.b16 %v172, %v169
  %v215 = vpack.c.b16 %v173, %v170
  %v216 = vpack.c.b16 %v177, %v174
  %v217 = vpack.c.b16 %v178, %v175
  %v218 = vpack.c.b16 %v179, %v176
  %v219 = vpack.c.b16 %v183, %v180
  %v220 = vpack.c.b16 %v184, %v181
  %v221 = vpack.c.b16 %v185, %v182
  %v222 = vpack.c.b16 %v189, %v186
  %v223 = vpack.c.b16 %v190, %v187
  %v224 = vpack.c.b16 %v191, %v188
  %v225 = vpack.c.b16 %v195, %v192
  %v226 = vpack.c.b16 %v196, %v193
  %v227 = vpack.c.b16 %v197, %v194
  %v228 = vpack.c.b16 %v201, %v198
  %v229 = vpack.c.b16 %v202, %v199
  %v230 = vpack.c.b16 %v203, %v200
  %v231 = vpack.c.b16 %v207, %v204
  %v232 = vpack.c.b16 %v208, %v205
  %v233 = vpack.c.b16 %v209, %v206
  %v286 = vunpack.c.l.b16 %v94
  %v287 = vunpack.c.l.b16 %v95
  %v288 = vunpack.c.l.b16 %v96
  %v289 = vunpack.c.l.b16 %v97
  %v290 = vunpack.c.l.b16 %v98
  %v291 = vunpack.c.l.b16 %v99
  %v292 = vunpack.c.l.b16 %v100
  %v293 = vunpack.c.l.b16 %v101
  %v294 = vunpack.c.l.b16 %v102
  %v295 = vunpack.c.l.b16 %v103
  %v296 = vunpack.c.l.b16 %v104
  %v297 = vunpack.c.l.b16 %v105
  %v298 = vunpack.c.l.b16 %v106
  %v299 = vunpack.c.l.b16 %v107
  %v300 = vunpack.c.l.b16 %v108
  %v301 = vunpack.c.l.b16 %v109
  %v302 = vunpack.c.l.b16 %v110
  %v303 = vunpack.c.l.b16 %v111
  %v304 = vunpack.c.l.b16 %v112
  %v305 = vunpack.c.l.b16 %v113
  %v306 = vunpack.c.l.b16 %v114
  %v307 = vunpack.c.l.b16 %v115
  %v308 = vunpack.c.l.b16 %v116
  %v309 = vunpack.c.l.b16 %v117
  %v310 = vunpack.c.l.b16 %v118
  %v311 = vunpack.c.l.b16 %v119
  %v312 = vunpack.c.l.b16 %v120
  %v313 = vunpack.c.l.b16 %v121
  %v314 = vunpack.c.l.b16 %v122
  %v315 = vunpack.c.l.b16 %v123
  %v316 = vunpack.c.l.b16 %v124
  %v317 = vunpack.c.l.b16 %v125
  %v318 = vunpack.c.l.b16 %v126
  %v319 = vunpack.c.l.b16 %v127
  %v320 = vunpack.c.l.b16 %v128
  %v321 = vunpack.c.l.b16 %v129
  %v322 = vpack.c.b16 %v287, %v286
  %v323 = vpack.c.b16 %v289, %v288
  %v324 = vpack.c.b16 %v291, %v290
  %v325 = vpack.c.b16 %v293, %v292
  %v326 = vpack.c.b16 %v295, %v294
  %v327 = vpack.c.b16 %v297, %v296
  %v328 = vpack.c.b16 %v299, %v298
  %v329 = vpack.c.b16 %v301, %v300
  %v330 = vpack.c.b16 %v303, %v302
  %v331 = vpack.c.b16 %v305, %v304
  %v332 = vpack.c.b16 %v307, %v306
  %v333 = vpack.c.b16 %v309, %v308
  %v334 = vpack.c.b16 %v311, %v310
  %v335 = vpack.c.b16 %v313, %v312
  %v336 = vpack.c.b16 %v315, %v314
  %v337 = vpack.c.b16 %v317, %v316
  %v338 = vpack.c.b16 %v319, %v318
  %v339 = vpack.c.b16 %v321, %v320
  %vm358 = vcmask 261120
  %v360 = vsel %vm358, %v212, 0
  %v363 = vsel %vm358, %v215, 0
  %v366 = vsel %vm358, %v218, 0
  %v369 = vsel %vm358, %v221, 0
  %v372 = vsel %vm358, %v224, 0
  %v375 = vsel %vm358, %v227, 0
  %v378 = vsel %vm358, %v230, 0
  %v381 = vsel %vm358, %v233, 0
  %383 = vmatprep.subr.bf16.mxu0 0
  %384 = vmatpush1.bf16.msra.mxu0 %v322
  %385 = vmatprep.subr.bf16.mxu0 0
  %386 = vmatpush1.bf16.msra.mxu0 %v323
  %387 = vmatprep.subr.bf16.mxu0 0
  %388 = vmatpush1.bf16.msra.mxu0 %v324
  %389 = vmatprep.subr.bf16.mxu0 0
  %390 = vmatpush1.bf16.msra.mxu0 %v325
  %391 = vmatprep.subr.bf16.mxu0 0
  %392 = vmatpush1.bf16.msra.mxu0 %v326
  %393 = vmatprep.subr.bf16.mxu0 0
  %394 = vmatpush1.bf16.msra.mxu0 %v327
  %395 = vmatprep.subr.bf16.mxu0 0
  %396 = vmatpush1.bf16.msra.mxu0 %v328
  %397 = vmatprep.subr.bf16.mxu0 0
  %398 = vmatpush1.bf16.msra.mxu0 %v329
  %399 = vmatprep.subr.bf16.mxu0 0
  %400 = vmatpush1.bf16.msra.mxu0 %v330
  %401 = vmatprep.subr.bf16.mxu0 0
  %402 = vmatpush1.bf16.msra.mxu0 %v331
  %403 = vmatprep.subr.bf16.mxu0 0
  %404 = vmatpush1.bf16.msra.mxu0 %v332
  %405 = vmatprep.subr.bf16.mxu0 0
  %406 = vmatpush1.bf16.msra.mxu0 %v333
  %407 = vmatprep.subr.bf16.mxu0 0
  %408 = vmatpush1.bf16.msra.mxu0 %v334
  %409 = vmatprep.subr.bf16.mxu0 0
  %410 = vmatpush1.bf16.msra.mxu0 %v335
  %411 = vmatprep.subr.bf16.mxu0 0
  %412 = vmatpush1.bf16.msra.mxu0 %v336
  %413 = vmatprep.subr.bf16.mxu0 0
  %414 = vmatpush1.bf16.msra.mxu0 %v337
  %415 = vmatprep.mubr.bf16.mxu0 %v211
  %416 = vmatmul.mubr.bf16.gmra.mrb[0].mxu0 %v210
  %v417 = vpop.f32.mrb[0].mxu0
  %v418 = vadd.f32 0.0, %v417
  %v419 = vpop.f32.mrb[0].mxu0
  %v420 = vpop.f32.mrb[0].mxu0
  %v421 = vadd.f32 0.0, %v420
  %v422 = vpop.f32.mrb[0].mxu0
  %423 = vmatprep.mubr.bf16.mxu0 %v214
  %424 = vmatmul.mubr.bf16.gmra.mrb[0].mxu0 %v213
  %v425 = vpop.f32.mrb[0].mxu0
  %v426 = vadd.f32 0.0, %v425
  %v427 = vpop.f32.mrb[0].mxu0
  %v428 = vpop.f32.mrb[0].mxu0
  %v429 = vadd.f32 0.0, %v428
  %v430 = vpop.f32.mrb[0].mxu0
  %431 = vmatprep.mubr.bf16.mxu0 %v217
  %432 = vmatmul.mubr.bf16.gmra.mrb[0].mxu0 %v216
  %v433 = vpop.f32.mrb[0].mxu0
  %v434 = vadd.f32 0.0, %v433
  %v435 = vpop.f32.mrb[0].mxu0
  %v436 = vpop.f32.mrb[0].mxu0
  %v437 = vadd.f32 0.0, %v436
  %v438 = vpop.f32.mrb[0].mxu0
  %439 = vmatprep.mubr.bf16.mxu0 %v220
  %440 = vmatmul.mubr.bf16.gmra.mrb[0].mxu0 %v219
  %v441 = vpop.f32.mrb[0].mxu0
  %v442 = vadd.f32 0.0, %v441
  %v443 = vpop.f32.mrb[0].mxu0
  %v444 = vpop.f32.mrb[0].mxu0
  %v445 = vadd.f32 0.0, %v444
  %v446 = vpop.f32.mrb[0].mxu0
  %447 = vmatprep.mubr.bf16.mxu0 %v223
  %448 = vmatmul.mubr.bf16.gmra.mrb[0].mxu0 %v222
  %v449 = vpop.f32.mrb[0].mxu0
  %v450 = vadd.f32 0.0, %v449
  %v451 = vpop.f32.mrb[0].mxu0
  %v452 = vpop.f32.mrb[0].mxu0
  %v453 = vadd.f32 0.0, %v452
  %v454 = vpop.f32.mrb[0].mxu0
  %455 = vmatprep.mubr.bf16.mxu0 %v226
  %456 = vmatmul.mubr.bf16.gmra.mrb[0].mxu0 %v225
  %v457 = vpop.f32.mrb[0].mxu0
  %v458 = vadd.f32 0.0, %v457
  %v459 = vpop.f32.mrb[0].mxu0
  %v460 = vpop.f32.mrb[0].mxu0
  %v461 = vadd.f32 0.0, %v460
  %v462 = vpop.f32.mrb[0].mxu0
  %463 = vmatprep.mubr.bf16.mxu0 %v229
  %464 = vmatmul.mubr.bf16.gmra.mrb[0].mxu0 %v228
  %v465 = vpop.f32.mrb[0].mxu0
  %v466 = vadd.f32 0.0, %v465
  %v467 = vpop.f32.mrb[0].mxu0
  %v468 = vpop.f32.mrb[0].mxu0
  %v469 = vadd.f32 0.0, %v468
  %v470 = vpop.f32.mrb[0].mxu0
  %471 = vmatprep.mubr.bf16.mxu0 %v232
  %472 = vmatmul.mubr.bf16.gmra.mrb[0].mxu0 %v231
  %v473 = vpop.f32.mrb[0].mxu0
  %v474 = vadd.f32 0.0, %v473
  %v475 = vpop.f32.mrb[0].mxu0
  %v476 = vpop.f32.mrb[0].mxu0
  %v477 = vadd.f32 0.0, %v476
  %v478 = vpop.f32.mrb[0].mxu0
  %479 = vdwg.mxu0
  %480 = vmatprep.subr.bf16.mxu0 0
  %481 = vmatpush1.bf16.msra.mxu0 %v338
  %482 = vmatprep.subr.bf16.mxu0 0
  %483 = vmatpush1.bf16.msra.mxu0 %v339
  %484 = vmatprep.subr.bf16.mxu0 0
  %485 = vmatpush1.bf16.msra.mxu0 0
  %486 = vmatprep.subr.bf16.mxu0 0
  %487 = vmatpush1.bf16.msra.mxu0 0
  %488 = vmatprep.subr.bf16.mxu0 0
  %489 = vmatpush1.bf16.msra.mxu0 0
  %490 = vmatprep.subr.bf16.mxu0 0
  %491 = vmatpush1.bf16.msra.mxu0 0
  %492 = vmatprep.subr.bf16.mxu0 0
  %493 = vmatpush1.bf16.msra.mxu0 0
  %494 = vmatprep.subr.bf16.mxu0 0
  %495 = vmatpush1.bf16.msra.mxu0 0
  %496 = vmatprep.subr.bf16.mxu0 0
  %497 = vmatpush1.bf16.msra.mxu0 0
  %498 = vmatprep.subr.bf16.mxu0 0
  %499 = vmatpush1.bf16.msra.mxu0 0
  %500 = vmatprep.subr.bf16.mxu0 0
  %501 = vmatpush1.bf16.msra.mxu0 0
  %502 = vmatprep.subr.bf16.mxu0 0
  %503 = vmatpush1.bf16.msra.mxu0 0
  %504 = vmatprep.subr.bf16.mxu0 0
  %505 = vmatpush1.bf16.msra.mxu0 0
  %506 = vmatprep.subr.bf16.mxu0 0
  %507 = vmatpush1.bf16.msra.mxu0 0
  %508 = vmatprep.subr.bf16.mxu0 0
  %509 = vmatpush1.bf16.msra.mxu0 0
  %510 = vmatprep.subr.bf16.mxu0 0
  %511 = vmatpush1.bf16.msra.mxu0 0
  %512 = vmatprep.mubr.bf16.mxu0 0
  %513 = vmatmul.mubr.bf16.gmra.mrb[0].mxu0 %v360
  %v514 = vpop.f32.mrb[0].mxu0
  %v515 = vadd.f32 %v418, %v514
  %v516 = vpop.f32.mrb[0].mxu0
  %v517 = vpop.f32.mrb[0].mxu0
  %v518 = vadd.f32 %v421, %v517
  %v519 = vpop.f32.mrb[0].mxu0
  %520 = vmatprep.mubr.bf16.mxu0 0
  %521 = vmatmul.mubr.bf16.gmra.mrb[0].mxu0 %v363
  %v522 = vpop.f32.mrb[0].mxu0
  %v523 = vadd.f32 %v426, %v522
  %v524 = vpop.f32.mrb[0].mxu0
  %v525 = vpop.f32.mrb[0].mxu0
  %v526 = vadd.f32 %v429, %v525
  %v527 = vpop.f32.mrb[0].mxu0
  %528 = vmatprep.mubr.bf16.mxu0 0
  %529 = vmatmul.mubr.bf16.gmra.mrb[0].mxu0 %v366
  %v530 = vpop.f32.mrb[0].mxu0
  %v531 = vadd.f32 %v434, %v530
  %v532 = vpop.f32.mrb[0].mxu0
  %v533 = vpop.f32.mrb[0].mxu0
  %v534 = vadd.f32 %v437, %v533
  %v535 = vpop.f32.mrb[0].mxu0
  %536 = vmatprep.mubr.bf16.mxu0 0
  %537 = vmatmul.mubr.bf16.gmra.mrb[0].mxu0 %v369
  %v538 = vpop.f32.mrb[0].mxu0
  %v539 = vadd.f32 %v442, %v538
  %v540 = vpop.f32.mrb[0].mxu0
  %v541 = vpop.f32.mrb[0].mxu0
  %v542 = vadd.f32 %v445, %v541
  %v543 = vpop.f32.mrb[0].mxu0
  %544 = vmatprep.mubr.bf16.mxu0 0
  %545 = vmatmul.mubr.bf16.gmra.mrb[0].mxu0 %v372
  %v546 = vpop.f32.mrb[0].mxu0
  %v547 = vadd.f32 %v450, %v546
  %v548 = vpop.f32.mrb[0].mxu0
  %v549 = vpop.f32.mrb[0].mxu0
  %v550 = vadd.f32 %v453, %v549
  %v551 = vpop.f32.mrb[0].mxu0
  %552 = vmatprep.mubr.bf16.mxu0 0
  %553 = vmatmul.mubr.bf16.gmra.mrb[0].mxu0 %v375
  %v554 = vpop.f32.mrb[0].mxu0
  %v555 = vadd.f32 %v458, %v554
  %v556 = vpop.f32.mrb[0].mxu0
  %v557 = vpop.f32.mrb[0].mxu0
  %v558 = vadd.f32 %v461, %v557
  %v559 = vpop.f32.mrb[0].mxu0
  %560 = vmatprep.mubr.bf16.mxu0 0
  %561 = vmatmul.mubr.bf16.gmra.mrb[0].mxu0 %v378
  %v562 = vpop.f32.mrb[0].mxu0
  %v563 = vadd.f32 %v466, %v562
  %v564 = vpop.f32.mrb[0].mxu0
  %v565 = vpop.f32.mrb[0].mxu0
  %v566 = vadd.f32 %v469, %v565
  %v567 = vpop.f32.mrb[0].mxu0
  %568 = vmatprep.mubr.bf16.mxu0 0
  %569 = vmatmul.mubr.bf16.gmra.mrb[0].mxu0 %v381
  %v570 = vpop.f32.mrb[0].mxu0
  %v571 = vadd.f32 %v474, %v570
  %v572 = vpop.f32.mrb[0].mxu0
  %v573 = vpop.f32.mrb[0].mxu0
  %v574 = vadd.f32 %v477, %v573
  %v575 = vpop.f32.mrb[0].mxu0
  %576 = vdwg.mxu0
  %v577 = vadd.f32 %v46, %v515
  %v578 = vadd.f32 %v47, %v518
  %v579 = vadd.f32 %v48, %v523
  %v580 = vadd.f32 %v49, %v526
  %v581 = vadd.f32 %v50, %v531
  %v582 = vadd.f32 %v51, %v534
  %v583 = vadd.f32 %v52, %v539
  %v584 = vadd.f32 %v53, %v542
  %v585 = vadd.f32 %v54, %v547
  %v586 = vadd.f32 %v55, %v550
  %v587 = vadd.f32 %v56, %v555
  %v588 = vadd.f32 %v57, %v558
  %v589 = vadd.f32 %v58, %v563
  %v590 = vadd.f32 %v59, %v566
  %v591 = vadd.f32 %v60, %v571
  %v592 = vadd.f32 %v61, %v574
  %593 = vst.msk [vmem:[%s4] sm:$0xff] %vm358, %v577
  %594 = vst.msk [vmem:[%s4 + $0x8] sm:$0xff] %vm358, %v578
  %595 = vst.msk [vmem:[%s4 + $0x10] sm:$0xff] %vm358, %v579
  %596 = vst.msk [vmem:[%s4 + $0x18] sm:$0xff] %vm358, %v580
  %597 = vst.msk [vmem:[%s4 + $0x20] sm:$0xff] %vm358, %v581
  %598 = vst.msk [vmem:[%s4 + $0x28] sm:$0xff] %vm358, %v582
  %599 = vst.msk [vmem:[%s4 + $0x30] sm:$0xff] %vm358, %v583
  %600 = vst.msk [vmem:[%s4 + $0x38] sm:$0xff] %vm358, %v584
  %601 = vst.msk [vmem:[%s4 + $0x40] sm:$0xff] %vm358, %v585
  %602 = vst.msk [vmem:[%s4 + $0x48] sm:$0xff] %vm358, %v586
  %603 = vst.msk [vmem:[%s4 + $0x50] sm:$0xff] %vm358, %v587
  %604 = vst.msk [vmem:[%s4 + $0x58] sm:$0xff] %vm358, %v588
  %605 = vst.msk [vmem:[%s4 + $0x60] sm:$0xff] %vm358, %v589
  %606 = vst.msk [vmem:[%s4 + $0x68] sm:$0xff] %vm358, %v590
  %607 = vst.msk [vmem:[%s4 + $0x70] sm:$0xff] %vm358, %v591
  %608 = vst.msk [vmem:[%s4 + $0x78] sm:$0xff] %vm358, %v592
  // Predicated region
  $region22: #{feature_extraction_forward.59} parent=0 // pred_check
    %p609 = pneg %p18
  $region23: #{feature_extraction_forward.59} parent=0 // pred_check_branch
    %611 = sbr.rel (%p609) target = $region25
  $region24: #{feature_extraction_forward.59} parent=0 // pred_region
    %v612 = vld [vmem:[%s4] sm:$0xff]
    %v613 = vld [vmem:[%s4 + $0x8] sm:$0xff]
    %v614 = vld [vmem:[%s4 + $0x10] sm:$0xff]
    %v615 = vld [vmem:[%s4 + $0x18] sm:$0xff]
    %v616 = vld [vmem:[%s4 + $0x20] sm:$0xff]
    %v617 = vld [vmem:[%s4 + $0x28] sm:$0xff]
    %v618 = vld [vmem:[%s4 + $0x30] sm:$0xff]
    %v619 = vld [vmem:[%s4 + $0x38] sm:$0xff]
    %v620 = vld [vmem:[%s4 + $0x40] sm:$0xff]
    %v621 = vld [vmem:[%s4 + $0x48] sm:$0xff]
    %v622 = vld [vmem:[%s4 + $0x50] sm:$0xff]
    %v623 = vld [vmem:[%s4 + $0x58] sm:$0xff]
    %v624 = vld [vmem:[%s4 + $0x60] sm:$0xff]
    %v625 = vld [vmem:[%s4 + $0x68] sm:$0xff]
    %v626 = vld [vmem:[%s4 + $0x70] sm:$0xff]
    %v627 = vld [vmem:[%s4 + $0x78] sm:$0xff]
    %v628 = vld [vmem:[%s3] sm:$0xff]
    %v629 = vld [vmem:[%s3 + $0x8] sm:$0xff]
    %v630 = vld [vmem:[%s3 + $0x10] sm:$0xff]
    %v631 = vld [vmem:[%s3 + $0x18] sm:$0xff]
    %v632 = vld [vmem:[%s3 + $0x20] sm:$0xff]
    %v633 = vld [vmem:[%s3 + $0x28] sm:$0xff]
    %v634 = vld [vmem:[%s3 + $0x30] sm:$0xff]
    %v635 = vld [vmem:[%s3 + $0x38] sm:$0xff]
    %v636 = vld [vmem:[%s3 + $0x40] sm:$0xff]
    %v637 = vld [vmem:[%s3 + $0x48] sm:$0xff]
    %v638 = vld [vmem:[%s3 + $0x50] sm:$0xff]
    %v639 = vld [vmem:[%s3 + $0x58] sm:$0xff]
    %v640 = vld [vmem:[%s3 + $0x60] sm:$0xff]
    %v641 = vld [vmem:[%s3 + $0x68] sm:$0xff]
    %v642 = vld [vmem:[%s3 + $0x70] sm:$0xff]
    %v643 = vld [vmem:[%s3 + $0x78] sm:$0xff]
    %v644 = vadd.f32 %v612, %v628
    %v645 = vadd.f32 %v613, %v629
    %v646 = vadd.f32 %v614, %v630
    %v647 = vadd.f32 %v615, %v631
    %v648 = vadd.f32 %v616, %v632
    %v649 = vadd.f32 %v617, %v633
    %v650 = vadd.f32 %v618, %v634
    %v651 = vadd.f32 %v619, %v635
    %v652 = vadd.f32 %v620, %v636
    %v653 = vadd.f32 %v621, %v637
    %v654 = vadd.f32 %v622, %v638
    %v655 = vadd.f32 %v623, %v639
    %v656 = vadd.f32 %v624, %v640
    %v657 = vadd.f32 %v625, %v641
    %v658 = vadd.f32 %v626, %v642
    %v659 = vadd.f32 %v627, %v643
    %660 = vst.msk [vmem:[%s4] sm:$0xff] %vm358, %v644
    %661 = vst.msk [vmem:[%s4 + $0x8] sm:$0xff] %vm358, %v645
    %662 = vst.msk [vmem:[%s4 + $0x10] sm:$0xff] %vm358, %v646
    %663 = vst.msk [vmem:[%s4 + $0x18] sm:$0xff] %vm358, %v647
    %664 = vst.msk [vmem:[%s4 + $0x20] sm:$0xff] %vm358, %v648
    %665 = vst.msk [vmem:[%s4 + $0x28] sm:$0xff] %vm358, %v649
    %666 = vst.msk [vmem:[%s4 + $0x30] sm:$0xff] %vm358, %v650
    %667 = vst.msk [vmem:[%s4 + $0x38] sm:$0xff] %vm358, %v651
    %668 = vst.msk [vmem:[%s4 + $0x40] sm:$0xff] %vm358, %v652
    %669 = vst.msk [vmem:[%s4 + $0x48] sm:$0xff] %vm358, %v653
    %670 = vst.msk [vmem:[%s4 + $0x50] sm:$0xff] %vm358, %v654
    %671 = vst.msk [vmem:[%s4 + $0x58] sm:$0xff] %vm358, %v655
    %672 = vst.msk [vmem:[%s4 + $0x60] sm:$0xff] %vm358, %v656
    %673 = vst.msk [vmem:[%s4 + $0x68] sm:$0xff] %vm358, %v657
    %674 = vst.msk [vmem:[%s4 + $0x70] sm:$0xff] %vm358, %v658
    %675 = vst.msk [vmem:[%s4 + $0x78] sm:$0xff] %vm358, %v659
  $region25: #{feature_extraction_forward.59} parent=0 // pred_fallthru
    _
  // Predicated region
  $region26: #{feature_extraction_forward.59} parent=0 // pred_check
    _
  $region27: #{feature_extraction_forward.59} parent=0 // pred_check_branch
    %677 = sbr.rel (0) target = $region29
  $region28: #{feature_extraction_forward.59} parent=0 // pred_region
    _
  $region29: #{feature_extraction_forward.59} parent=0 // pred_fallthru
    _
  // Predicated region
  $region30: #{feature_extraction_forward.59} parent=0 // pred_check
    _
  $region31: #{feature_extraction_forward.59} parent=0 // pred_check_branch
    %679 = sbr.rel (0) target = $region33
  $region32: #{feature_extraction_forward.59} parent=0 // pred_region
    _
  $region33: #{feature_extraction_forward.59} parent=0 // pred_fallthru
    _

// kernel: feature_extraction_forward.64
$region0: #{feature_extraction_forward.64}
  #allocation0 [shape = 'u32[]', space=smem, size = 0x4, offset = 0x4, fixed_abs, tag = 'smem constant byte address 0x4 - core index']
  #allocation1 [shape = 'u32[144,128]{1,0:T(1,128)}', space=vmem, size = 0x12000, scoped, tag = 'internal scratch']
  %s0 = inlined_call_operand.vmem [shape: bf16[32,288], index: 0, kind: input, shape index: {}]
  %s1 = inlined_call_operand.vmem [shape: bf16[288,64], index: 1, kind: input, shape index: {}]
  %s2 = inlined_call_operand.vmem [shape: f32[1,64], index: 2, kind: input, shape index: {}]
  %s3 = inlined_call_operand.vmem [shape: f32[32,64], index: 3, kind: output, shape index: {}]
  %s4 = sld [smem:[#allocation0]]
  $region30: #{feature_extraction_forward.64} parent=0
    _
  %s6 = ssub.s32 1, %s4
  %s7 = scalar_select 0, %s6, %s4
  // Predicated region
  $region2: #{feature_extraction_forward.64} parent=0 // pred_check
    _
  $region3: #{feature_extraction_forward.64} parent=0 // pred_check_branch
    %9 = sbr.rel (0) target = $region5
  $region4: #{feature_extraction_forward.64} parent=0 // pred_region
    _
  $region5: #{feature_extraction_forward.64} parent=0 // pred_fallthru
    _
  // Predicated region
  $region6: #{feature_extraction_forward.64} parent=0 // pred_check
    _
  $region7: #{feature_extraction_forward.64} parent=0 // pred_check_branch
    %11 = sbr.rel (0) target = $region9
  $region8: #{feature_extraction_forward.64} parent=0 // pred_region
    _
  $region9: #{feature_extraction_forward.64} parent=0 // pred_fallthru
    _
  // Predicated region
  $region10: #{feature_extraction_forward.64} parent=0 // pred_check
    _
  $region11: #{feature_extraction_forward.64} parent=0 // pred_check_branch
    %13 = sbr.rel (0) target = $region13
  $region12: #{feature_extraction_forward.64} parent=0 // pred_region
    _
  $region13: #{feature_extraction_forward.64} parent=0 // pred_fallthru
    _
  %p15 = scmp.eq.s32.totalorder 0, 0
  // Predicated region
  $region14: #{feature_extraction_forward.64} parent=0 // pred_check
    %p16 = pneg %p15
  $region15: #{feature_extraction_forward.64} parent=0 // pred_check_branch
    %18 = sbr.rel (%p16) target = $region17
  $region16: #{feature_extraction_forward.64} parent=0 // pred_region
    %v19 = vld [vmem:[%s2] sm:$0x1]
    %v21 = vlaneseq
    %v22 = vshrl.u32 %v21, 7
    %v23 = vsub.s32 0, %v22
    %v24 = vrot.slane %v19, %v23
    %vm26 = vcmask 523264
    %27 = vst.msk [vmem:[%s3] sm:$0xff] %vm26, %v24
    %28 = vst.msk [vmem:[%s3 + $0x8] sm:$0xff] %vm26, %v24
    %29 = vst.msk [vmem:[%s3 + $0x10] sm:$0xff] %vm26, %v24
    %30 = vst.msk [vmem:[%s3 + $0x18] sm:$0xff] %vm26, %v24
  $region17: #{feature_extraction_forward.64} parent=0 // pred_fallthru
    _
  %v31 = vld [vmem:[%s3] sm:$0xff]
  %v32 = vld [vmem:[%s3 + $0x8] sm:$0xff]
  %v33 = vld [vmem:[%s3 + $0x10] sm:$0xff]
  %v34 = vld [vmem:[%s3 + $0x18] sm:$0xff]
  %v35 = vld [vmem:[%s0] sm:$0xff]
  %v36 = vld [vmem:[%s0 + $0x8] sm:$0xf]
  %v37 = vld [vmem:[%s0 + $0xc] sm:$0xff]
  %v38 = vld [vmem:[%s0 + $0x14] sm:$0xf]
  %v39 = vld [vmem:[%s0 + $0x18] sm:$0xff]
  %v40 = vld [vmem:[%s0 + $0x20] sm:$0xf]
  %v41 = vld [vmem:[%s0 + $0x24] sm:$0xff]
  %v42 = vld [vmem:[%s0 + $0x2c] sm:$0xf]
  %v43 = vld [vmem:[%s1] sm:$0xf]
  %v44 = vld [vmem:[%s1 + $0x4] sm:$0xf]
  %v45 = vld [vmem:[%s1 + $0x8] sm:$0xf]
  %v46 = vld [vmem:[%s1 + $0xc] sm:$0xf]
  %v47 = vld [vmem:[%s1 + $0x10] sm:$0xf]
  %v48 = vld [vmem:[%s1 + $0x14] sm:$0xf]
  %v49 = vld [vmem:[%s1 + $0x18] sm:$0xf]
  %v50 = vld [vmem:[%s1 + $0x1c] sm:$0xf]
  %v51 = vld [vmem:[%s1 + $0x20] sm:$0xf]
  %v52 = vld [vmem:[%s1 + $0x24] sm:$0xf]
  %v53 = vld [vmem:[%s1 + $0x28] sm:$0xf]
  %v54 = vld [vmem:[%s1 + $0x2c] sm:$0xf]
  %v55 = vld [vmem:[%s1 + $0x30] sm:$0xf]
  %v56 = vld [vmem:[%s1 + $0x34] sm:$0xf]
  %v57 = vld [vmem:[%s1 + $0x38] sm:$0xf]
  %v58 = vld [vmem:[%s1 + $0x3c] sm:$0xf]
  %v59 = vld [vmem:[%s1 + $0x40] sm:$0xf]
  %v60 = vld [vmem:[%s1 + $0x44] sm:$0xf]
  %v61 = vld [vmem:[%s1 + $0x48] sm:$0xf]
  %v62 = vld [vmem:[%s1 + $0x4c] sm:$0xf]
  %v63 = vld [vmem:[%s1 + $0x50] sm:$0xf]
  %v64 = vld [vmem:[%s1 + $0x54] sm:$0xf]
  %v65 = vld [vmem:[%s1 + $0x58] sm:$0xf]
  %v66 = vld [vmem:[%s1 + $0x5c] sm:$0xf]
  %v67 = vld [vmem:[%s1 + $0x60] sm:$0xf]
  %v68 = vld [vmem:[%s1 + $0x64] sm:$0xf]
  %v69 = vld [vmem:[%s1 + $0x68] sm:$0xf]
  %v70 = vld [vmem:[%s1 + $0x6c] sm:$0xf]
  %v71 = vld [vmem:[%s1 + $0x70] sm:$0xf]
  %v72 = vld [vmem:[%s1 + $0x74] sm:$0xf]
  %v73 = vld [vmem:[%s1 + $0x78] sm:$0xf]
  %v74 = vld [vmem:[%s1 + $0x7c] sm:$0xf]
  %v75 = vld [vmem:[%s1 + $0x80] sm:$0xf]
  %v76 = vld [vmem:[%s1 + $0x84] sm:$0xf]
  %v77 = vld [vmem:[%s1 + $0x88] sm:$0xf]
  %v78 = vld [vmem:[%s1 + $0x8c] sm:$0xf]
  %v87 = vunpack.c.l.b16 %v35
  %v88 = vunpack.c.h.b16 %v35
  %v89 = vunpack.c.l.b16 %v36
  %v90 = vunpack.c.l.b16 %v37
  %v91 = vunpack.c.h.b16 %v37
  %v92 = vunpack.c.l.b16 %v38
  %v93 = vunpack.c.l.b16 %v39
  %v94 = vunpack.c.h.b16 %v39
  %v95 = vunpack.c.l.b16 %v40
  %v96 = vunpack.c.l.b16 %v41
  %v97 = vunpack.c.h.b16 %v41
  %v98 = vunpack.c.l.b16 %v42
  %v99 = vpack.c.b16 %v90, %v87
  %v100 = vpack.c.b16 %v91, %v88
  %v101 = vpack.c.b16 %v92, %v89
  %v102 = vpack.c.b16 %v96, %v93
  %v103 = vpack.c.b16 %v97, %v94
  %v104 = vpack.c.b16 %v98, %v95
  %v145 = vunpack.c.l.b16 %v43
  %v146 = vunpack.c.l.b16 %v44
  %v147 = vunpack.c.l.b16 %v45
  %v148 = vunpack.c.l.b16 %v46
  %v149 = vunpack.c.l.b16 %v47
  %v150 = vunpack.c.l.b16 %v48
  %v151 = vunpack.c.l.b16 %v49
  %v152 = vunpack.c.l.b16 %v50
  %v153 = vunpack.c.l.b16 %v51
  %v154 = vunpack.c.l.b16 %v52
  %v155 = vunpack.c.l.b16 %v53
  %v156 = vunpack.c.l.b16 %v54
  %v157 = vunpack.c.l.b16 %v55
  %v158 = vunpack.c.l.b16 %v56
  %v159 = vunpack.c.l.b16 %v57
  %v160 = vunpack.c.l.b16 %v58
  %v161 = vunpack.c.l.b16 %v59
  %v162 = vunpack.c.l.b16 %v60
  %v163 = vunpack.c.l.b16 %v61
  %v164 = vunpack.c.l.b16 %v62
  %v165 = vunpack.c.l.b16 %v63
  %v166 = vunpack.c.l.b16 %v64
  %v167 = vunpack.c.l.b16 %v65
  %v168 = vunpack.c.l.b16 %v66
  %v169 = vunpack.c.l.b16 %v67
  %v170 = vunpack.c.l.b16 %v68
  %v171 = vunpack.c.l.b16 %v69
  %v172 = vunpack.c.l.b16 %v70
  %v173 = vunpack.c.l.b16 %v71
  %v174 = vunpack.c.l.b16 %v72
  %v175 = vunpack.c.l.b16 %v73
  %v176 = vunpack.c.l.b16 %v74
  %v177 = vunpack.c.l.b16 %v75
  %v178 = vunpack.c.l.b16 %v76
  %v179 = vunpack.c.l.b16 %v77
  %v180 = vunpack.c.l.b16 %v78
  %v181 = vpack.c.b16 %v146, %v145
  %v182 = vpack.c.b16 %v148, %v147
  %v183 = vpack.c.b16 %v150, %v149
  %v184 = vpack.c.b16 %v152, %v151
  %v185 = vpack.c.b16 %v154, %v153
  %v186 = vpack.c.b16 %v156, %v155
  %v187 = vpack.c.b16 %v158, %v157
  %v188 = vpack.c.b16 %v160, %v159
  %v189 = vpack.c.b16 %v162, %v161
  %v190 = vpack.c.b16 %v164, %v163
  %v191 = vpack.c.b16 %v166, %v165
  %v192 = vpack.c.b16 %v168, %v167
  %v193 = vpack.c.b16 %v170, %v169
  %v194 = vpack.c.b16 %v172, %v171
  %v195 = vpack.c.b16 %v174, %v173
  %v196 = vpack.c.b16 %v176, %v175
  %v197 = vpack.c.b16 %v178, %v177
  %v198 = vpack.c.b16 %v180, %v179
  %vm217 = vcmask 261120
  %v219 = vsel %vm217, %v101, 0
  %v222 = vsel %vm217, %v104, 0
  %224 = vmatprep.subr.bf16.mxu0 0
  %225 = vmatpush1.bf16.msra.mxu0 %v181
  %226 = vmatprep.subr.bf16.mxu0 0
  %227 = vmatpush1.bf16.msra.mxu0 %v182
  %228 = vmatprep.subr.bf16.mxu0 0
  %229 = vmatpush1.bf16.msra.mxu0 %v183
  %230 = vmatprep.subr.bf16.mxu0 0
  %231 = vmatpush1.bf16.msra.mxu0 %v184
  %232 = vmatprep.subr.bf16.mxu0 0
  %233 = vmatpush1.bf16.msra.mxu0 %v185
  %234 = vmatprep.subr.bf16.mxu0 0
  %235 = vmatpush1.bf16.msra.mxu0 %v186
  %236 = vmatprep.subr.bf16.mxu0 0
  %237 = vmatpush1.bf16.msra.mxu0 %v187
  %238 = vmatprep.subr.bf16.mxu0 0
  %239 = vmatpush1.bf16.msra.mxu0 %v188
  %240 = vmatprep.subr.bf16.mxu0 0
  %241 = vmatpush1.bf16.msra.mxu0 %v189
  %242 = vmatprep.subr.bf16.mxu0 0
  %243 = vmatpush1.bf16.msra.mxu0 %v190
  %244 = vmatprep.subr.bf16.mxu0 0
  %245 = vmatpush1.bf16.msra.mxu0 %v191
  %246 = vmatprep.subr.bf16.mxu0 0
  %247 = vmatpush1.bf16.msra.mxu0 %v192
  %248 = vmatprep.subr.bf16.mxu0 0
  %249 = vmatpush1.bf16.msra.mxu0 %v193
  %250 = vmatprep.subr.bf16.mxu0 0
  %251 = vmatpush1.bf16.msra.mxu0 %v194
  %252 = vmatprep.subr.bf16.mxu0 0
  %253 = vmatpush1.bf16.msra.mxu0 %v195
  %254 = vmatprep.subr.bf16.mxu0 0
  %255 = vmatpush1.bf16.msra.mxu0 %v196
  %256 = vmatprep.mubr.bf16.mxu0 %v100
  %257 = vmatmul.mubr.bf16.gmra.mrb[0].mxu0 %v99
  %v258 = vpop.f32.mrb[0].mxu0
  %v259 = vadd.f32 0.0, %v258
  %v260 = vpop.f32.mrb[0].mxu0
  %v261 = vpop.f32.mrb[0].mxu0
  %v262 = vadd.f32 0.0, %v261
  %v263 = vpop.f32.mrb[0].mxu0
  %264 = vmatprep.mubr.bf16.mxu0 %v103
  %265 = vmatmul.mubr.bf16.gmra.mrb[0].mxu0 %v102
  %v266 = vpop.f32.mrb[0].mxu0
  %v267 = vadd.f32 0.0, %v266
  %v268 = vpop.f32.mrb[0].mxu0
  %v269 = vpop.f32.mrb[0].mxu0
  %v270 = vadd.f32 0.0, %v269
  %v271 = vpop.f32.mrb[0].mxu0
  %272 = vdwg.mxu0
  %273 = vmatprep.subr.bf16.mxu0 0
  %274 = vmatpush1.bf16.msra.mxu0 %v197
  %275 = vmatprep.subr.bf16.mxu0 0
  %276 = vmatpush1.bf16.msra.mxu0 %v198
  %277 = vmatprep.subr.bf16.mxu0 0
  %278 = vmatpush1.bf16.msra.mxu0 0
  %279 = vmatprep.subr.bf16.mxu0 0
  %280 = vmatpush1.bf16.msra.mxu0 0
  %281 = vmatprep.subr.bf16.mxu0 0
  %282 = vmatpush1.bf16.msra.mxu0 0
  %283 = vmatprep.subr.bf16.mxu0 0
  %284 = vmatpush1.bf16.msra.mxu0 0
  %285 = vmatprep.subr.bf16.mxu0 0
  %286 = vmatpush1.bf16.msra.mxu0 0
  %287 = vmatprep.subr.bf16.mxu0 0
  %288 = vmatpush1.bf16.msra.mxu0 0
  %289 = vmatprep.subr.bf16.mxu0 0
  %290 = vmatpush1.bf16.msra.mxu0 0
  %291 = vmatprep.subr.bf16.mxu0 0
  %292 = vmatpush1.bf16.msra.mxu0 0
  %293 = vmatprep.subr.bf16.mxu0 0
  %294 = vmatpush1.bf16.msra.mxu0 0
  %295 = vmatprep.subr.bf16.mxu0 0
  %296 = vmatpush1.bf16.msra.mxu0 0
  %297 = vmatprep.subr.bf16.mxu0 0
  %298 = vmatpush1.bf16.msra.mxu0 0
  %299 = vmatprep.subr.bf16.mxu0 0
  %300 = vmatpush1.bf16.msra.mxu0 0
  %301 = vmatprep.subr.bf16.mxu0 0
  %302 = vmatpush1.bf16.msra.mxu0 0
  %303 = vmatprep.subr.bf16.mxu0 0
  %304 = vmatpush1.bf16.msra.mxu0 0
  %305 = vmatprep.mubr.bf16.mxu0 0
  %306 = vmatmul.mubr.bf16.gmra.mrb[0].mxu0 %v219
  %v307 = vpop.f32.mrb[0].mxu0
  %v308 = vadd.f32 %v259, %v307
  %v309 = vpop.f32.mrb[0].mxu0
  %v310 = vpop.f32.mrb[0].mxu0
  %v311 = vadd.f32 %v262, %v310
  %v312 = vpop.f32.mrb[0].mxu0
  %313 = vmatprep.mubr.bf16.mxu0 0
  %314 = vmatmul.mubr.bf16.gmra.mrb[0].mxu0 %v222
  %v315 = vpop.f32.mrb[0].mxu0
  %v316 = vadd.f32 %v267, %v315
  %v317 = vpop.f32.mrb[0].mxu0
  %v318 = vpop.f32.mrb[0].mxu0
  %v319 = vadd.f32 %v270, %v318
  %v320 = vpop.f32.mrb[0].mxu0
  %321 = vdwg.mxu0
  %v322 = vadd.f32 %v31, %v308
  %v323 = vadd.f32 %v32, %v311
  %v324 = vadd.f32 %v33, %v316
  %v325 = vadd.f32 %v34, %v319
  %vm326 = vcmask 523264
  %327 = vst.msk [vmem:[%s3] sm:$0xff] %vm326, %v322
  %328 = vst.msk [vmem:[%s3 + $0x8] sm:$0xff] %vm326, %v323
  %329 = vst.msk [vmem:[%s3 + $0x10] sm:$0xff] %vm326, %v324
  %330 = vst.msk [vmem:[%s3 + $0x18] sm:$0xff] %vm326, %v325
  // Predicated region
  $region18: #{feature_extraction_forward.64} parent=0 // pred_check
    %p331 = pneg %p15
  $region19: #{feature_extraction_forward.64} parent=0 // pred_check_branch
    %333 = sbr.rel (%p331) target = $region21
  $region20: #{feature_extraction_forward.64} parent=0 // pred_region
    %v334 = vld [vmem:[%s3] sm:$0xff]
    %v335 = vld [vmem:[%s3 + $0x8] sm:$0xff]
    %v336 = vld [vmem:[%s3 + $0x10] sm:$0xff]
    %v337 = vld [vmem:[%s3 + $0x18] sm:$0xff]
    %v338 = vmax.f32 %v334, 0.0
    %v339 = vmax.f32 %v335, 0.0
    %v340 = vmax.f32 %v336, 0.0
    %v341 = vmax.f32 %v337, 0.0
    %342 = vst.msk [vmem:[%s3] sm:$0xff] %vm326, %v338
    %343 = vst.msk [vmem:[%s3 + $0x8] sm:$0xff] %vm326, %v339
    %344 = vst.msk [vmem:[%s3 + $0x10] sm:$0xff] %vm326, %v340
    %345 = vst.msk [vmem:[%s3 + $0x18] sm:$0xff] %vm326, %v341
  $region21: #{feature_extraction_forward.64} parent=0 // pred_fallthru
    _
  // Predicated region
  $region22: #{feature_extraction_forward.64} parent=0 // pred_check
    _
  $region23: #{feature_extraction_forward.64} parent=0 // pred_check_branch
    %347 = sbr.rel (0) target = $region25
  $region24: #{feature_extraction_forward.64} parent=0 // pred_region
    _
  $region25: #{feature_extraction_forward.64} parent=0 // pred_fallthru
    _
  // Predicated region
  $region26: #{feature_extraction_forward.64} parent=0 // pred_check
    _
  $region27: #{feature_extraction_forward.64} parent=0 // pred_check_branch
    %349 = sbr.rel (0) target = $region29
  $region28: #{feature_extraction_forward.64} parent=0 // pred_region
    _
  $region29: #{feature_extraction_forward.64} parent=0 // pred_fallthru
    _

// kernel: feature_extraction_forward.65
$region0: #{feature_extraction_forward.65}
  #allocation0 [shape = 'u32[]', space=smem, size = 0x4, offset = 0x4, fixed_abs, tag = 'smem constant byte address 0x4 - core index']
  #allocation1 [shape = 'u32[144,128]{1,0:T(1,128)}', space=vmem, size = 0x12000, scoped, tag = 'internal scratch']
  %s0 = inlined_call_operand.vmem [shape: bf16[32,32], index: 0, kind: input, shape index: {}]
  %s1 = inlined_call_operand.vmem [shape: bf16[32,64], index: 1, kind: input, shape index: {}]
  %s2 = inlined_call_operand.vmem [shape: f32[1,64], index: 2, kind: input, shape index: {}]
  %s3 = inlined_call_operand.vmem [shape: f32[32,64], index: 3, kind: output, shape index: {}]
  %s4 = sld [smem:[#allocation0]]
  $region26: #{feature_extraction_forward.65} parent=0
    _
  %s6 = ssub.s32 1, %s4
  %s7 = scalar_select 0, %s6, %s4
  // Predicated region
  $region2: #{feature_extraction_forward.65} parent=0 // pred_check
    _
  $region3: #{feature_extraction_forward.65} parent=0 // pred_check_branch
    %9 = sbr.rel (0) target = $region5
  $region4: #{feature_extraction_forward.65} parent=0 // pred_region
    _
  $region5: #{feature_extraction_forward.65} parent=0 // pred_fallthru
    _
  // Predicated region
  $region6: #{feature_extraction_forward.65} parent=0 // pred_check
    _
  $region7: #{feature_extraction_forward.65} parent=0 // pred_check_branch
    %11 = sbr.rel (0) target = $region9
  $region8: #{feature_extraction_forward.65} parent=0 // pred_region
    _
  $region9: #{feature_extraction_forward.65} parent=0 // pred_fallthru
    _
  // Predicated region
  $region10: #{feature_extraction_forward.65} parent=0 // pred_check
    _
  $region11: #{feature_extraction_forward.65} parent=0 // pred_check_branch
    %13 = sbr.rel (0) target = $region13
  $region12: #{feature_extraction_forward.65} parent=0 // pred_region
    _
  $region13: #{feature_extraction_forward.65} parent=0 // pred_fallthru
    _
  %p15 = scmp.eq.s32.totalorder 0, 0
  // Predicated region
  $region14: #{feature_extraction_forward.65} parent=0 // pred_check
    %p16 = pneg %p15
  $region15: #{feature_extraction_forward.65} parent=0 // pred_check_branch
    %18 = sbr.rel (%p16) target = $region17
  $region16: #{feature_extraction_forward.65} parent=0 // pred_region
    %v19 = vld [vmem:[%s2] sm:$0x1]
    %v21 = vlaneseq
    %v22 = vshrl.u32 %v21, 7
    %v23 = vsub.s32 0, %v22
    %v24 = vrot.slane %v19, %v23
    %vm26 = vcmask 523264
    %27 = vst.msk [vmem:[%s3] sm:$0xff] %vm26, %v24
    %28 = vst.msk [vmem:[%s3 + $0x8] sm:$0xff] %vm26, %v24
    %29 = vst.msk [vmem:[%s3 + $0x10] sm:$0xff] %vm26, %v24
    %30 = vst.msk [vmem:[%s3 + $0x18] sm:$0xff] %vm26, %v24
  $region17: #{feature_extraction_forward.65} parent=0 // pred_fallthru
    _
  %v31 = vld [vmem:[%s3] sm:$0xff]
  %v32 = vld [vmem:[%s3 + $0x8] sm:$0xff]
  %v33 = vld [vmem:[%s3 + $0x10] sm:$0xff]
  %v34 = vld [vmem:[%s3 + $0x18] sm:$0xff]
  %v35 = vld [vmem:[%s0] sm:$0xf]
  %v36 = vld [vmem:[%s0 + $0x4] sm:$0xf]
  %v37 = vld [vmem:[%s0 + $0x8] sm:$0xf]
  %v38 = vld [vmem:[%s0 + $0xc] sm:$0xf]
  %v39 = vld [vmem:[%s1] sm:$0xf]
  %v40 = vld [vmem:[%s1 + $0x4] sm:$0xf]
  %v41 = vld [vmem:[%s1 + $0x8] sm:$0xf]
  %v42 = vld [vmem:[%s1 + $0xc] sm:$0xf]
  %v47 = vunpack.c.l.b16 %v35
  %v48 = vunpack.c.l.b16 %v36
  %v49 = vunpack.c.l.b16 %v37
  %v50 = vunpack.c.l.b16 %v38
  %v51 = vpack.c.b16 %v48, %v47
  %v52 = vpack.c.b16 %v50, %v49
  %v57 = vunpack.c.l.b16 %v39
  %v58 = vunpack.c.l.b16 %v40
  %v59 = vunpack.c.l.b16 %v41
  %v60 = vunpack.c.l.b16 %v42
  %v61 = vpack.c.b16 %v58, %v57
  %v62 = vpack.c.b16 %v60, %v59
  %vm65 = vcmask 261120
  %v67 = vsel %vm65, %v51, 0
  %v70 = vsel %vm65, %v52, 0
  %72 = vmatprep.subr.bf16.mxu0 0
  %73 = vmatpush1.bf16.msra.mxu0 %v61
  %74 = vmatprep.subr.bf16.mxu0 0
  %75 = vmatpush1.bf16.msra.mxu0 %v62
  %76 = vmatprep.subr.bf16.mxu0 0
  %77 = vmatpush1.bf16.msra.mxu0 0
  %78 = vmatprep.subr.bf16.mxu0 0
  %79 = vmatpush1.bf16.msra.mxu0 0
  %80 = vmatprep.subr.bf16.mxu0 0
  %81 = vmatpush1.bf16.msra.mxu0 0
  %82 = vmatprep.subr.bf16.mxu0 0
  %83 = vmatpush1.bf16.msra.mxu0 0
  %84 = vmatprep.subr.bf16.mxu0 0
  %85 = vmatpush1.bf16.msra.mxu0 0
  %86 = vmatprep.subr.bf16.mxu0 0
  %87 = vmatpush1.bf16.msra.mxu0 0
  %88 = vmatprep.subr.bf16.mxu0 0
  %89 = vmatpush1.bf16.msra.mxu0 0
  %90 = vmatprep.subr.bf16.mxu0 0
  %91 = vmatpush1.bf16.msra.mxu0 0
  %92 = vmatprep.subr.bf16.mxu0 0
  %93 = vmatpush1.bf16.msra.mxu0 0
  %94 = vmatprep.subr.bf16.mxu0 0
  %95 = vmatpush1.bf16.msra.mxu0 0
  %96 = vmatprep.subr.bf16.mxu0 0
  %97 = vmatpush1.bf16.msra.mxu0 0
  %98 = vmatprep.subr.bf16.mxu0 0
  %99 = vmatpush1.bf16.msra.mxu0 0
  %100 = vmatprep.subr.bf16.mxu0 0
  %101 = vmatpush1.bf16.msra.mxu0 0
  %102 = vmatprep.subr.bf16.mxu0 0
  %103 = vmatpush1.bf16.msra.mxu0 0
  %104 = vmatprep.mubr.bf16.mxu0 0
  %105 = vmatmul.mubr.bf16.gmra.mrb[0].mxu0 %v67
  %v106 = vpop.f32.mrb[0].mxu0
  %v107 = vadd.f32 0.0, %v106
  %v108 = vpop.f32.mrb[0].mxu0
  %v109 = vpop.f32.mrb[0].mxu0
  %v110 = vadd.f32 0.0, %v109
  %v111 = vpop.f32.mrb[0].mxu0
  %112 = vmatprep.mubr.bf16.mxu0 0
  %113 = vmatmul.mubr.bf16.gmra.mrb[0].mxu0 %v70
  %v114 = vpop.f32.mrb[0].mxu0
  %v115 = vadd.f32 0.0, %v114
  %v116 = vpop.f32.mrb[0].mxu0
  %v117 = vpop.f32.mrb[0].mxu0
  %v118 = vadd.f32 0.0, %v117
  %v119 = vpop.f32.mrb[0].mxu0
  %120 = vdwg.mxu0
  %v121 = vadd.f32 %v31, %v107
  %v122 = vadd.f32 %v32, %v110
  %v123 = vadd.f32 %v33, %v115
  %v124 = vadd.f32 %v34, %v118
  %vm125 = vcmask 523264
  %126 = vst.msk [vmem:[%s3] sm:$0xff] %vm125, %v121
  %127 = vst.msk [vmem:[%s3 + $0x8] sm:$0xff] %vm125, %v122
  %128 = vst.msk [vmem:[%s3 + $0x10] sm:$0xff] %vm125, %v123
  %129 = vst.msk [vmem:[%s3 + $0x18] sm:$0xff] %vm125, %v124
  // Predicated region
  $region18: #{feature_extraction_forward.65} parent=0 // pred_check
    _
  $region19: #{feature_extraction_forward.65} parent=0 // pred_check_branch
    %131 = sbr.rel (0) target = $region21
  $region20: #{feature_extraction_forward.65} parent=0 // pred_region
    _
  $region21: #{feature_extraction_forward.65} parent=0 // pred_fallthru
    _
  // Predicated region
  $region22: #{feature_extraction_forward.65} parent=0 // pred_check
    _
  $region23: #{feature_extraction_forward.65} parent=0 // pred_check_branch
    %133 = sbr.rel (0) target = $region25
  $region24: #{feature_extraction_forward.65} parent=0 // pred_region
    _
  $region25: #{feature_extraction_forward.65} parent=0 // pred_fallthru
    _

// kernel: feature_extraction_forward.67
$region0: #{feature_extraction_forward.67}
  #allocation0 [shape = 'u32[]', space=smem, size = 0x4, offset = 0x4, fixed_abs, tag = 'smem constant byte address 0x4 - core index']
  #allocation1 [shape = 'u32[144,128]{1,0:T(1,128)}', space=vmem, size = 0x12000, scoped, tag = 'internal scratch']
  %s0 = inlined_call_operand.vmem [shape: bf16[32,576], index: 0, kind: input, shape index: {}]
  %s1 = inlined_call_operand.vmem [shape: bf16[576,64], index: 1, kind: input, shape index: {}]
  %s2 = inlined_call_operand.vmem [shape: f32[1,64], index: 2, kind: input, shape index: {}]
  %s3 = inlined_call_operand.vmem [shape: f32[32,64], index: 3, kind: output, shape index: {}]
  %s4 = sld [smem:[#allocation0]]
  $region30: #{feature_extraction_forward.67} parent=0
    _
  %s6 = ssub.s32 1, %s4
  %s7 = scalar_select 0, %s6, %s4
  // Predicated region
  $region2: #{feature_extraction_forward.67} parent=0 // pred_check
    _
  $region3: #{feature_extraction_forward.67} parent=0 // pred_check_branch
    %9 = sbr.rel (0) target = $region5
  $region4: #{feature_extraction_forward.67} parent=0 // pred_region
    _
  $region5: #{feature_extraction_forward.67} parent=0 // pred_fallthru
    _
  // Predicated region
  $region6: #{feature_extraction_forward.67} parent=0 // pred_check
    _
  $region7: #{feature_extraction_forward.67} parent=0 // pred_check_branch
    %11 = sbr.rel (0) target = $region9
  $region8: #{feature_extraction_forward.67} parent=0 // pred_region
    _
  $region9: #{feature_extraction_forward.67} parent=0 // pred_fallthru
    _
  // Predicated region
  $region10: #{feature_extraction_forward.67} parent=0 // pred_check
    _
  $region11: #{feature_extraction_forward.67} parent=0 // pred_check_branch
    %13 = sbr.rel (0) target = $region13
  $region12: #{feature_extraction_forward.67} parent=0 // pred_region
    _
  $region13: #{feature_extraction_forward.67} parent=0 // pred_fallthru
    _
  %p15 = scmp.eq.s32.totalorder 0, 0
  // Predicated region
  $region14: #{feature_extraction_forward.67} parent=0 // pred_check
    %p16 = pneg %p15
  $region15: #{feature_extraction_forward.67} parent=0 // pred_check_branch
    %18 = sbr.rel (%p16) target = $region17
  $region16: #{feature_extraction_forward.67} parent=0 // pred_region
    %v19 = vld [vmem:[%s2] sm:$0x1]
    %v21 = vlaneseq
    %v22 = vshrl.u32 %v21, 7
    %v23 = vsub.s32 0, %v22
    %v24 = vrot.slane %v19, %v23
    %vm26 = vcmask 523264
    %27 = vst.msk [vmem:[%s3] sm:$0xff] %vm26, %v24
    %28 = vst.msk [vmem:[%s3 + $0x8] sm:$0xff] %vm26, %v24
    %29 = vst.msk [vmem:[%s3 + $0x10] sm:$0xff] %vm26, %v24
    %30 = vst.msk [vmem:[%s3 + $0x18] sm:$0xff] %vm26, %v24
  $region17: #{feature_extraction_forward.67} parent=0 // pred_fallthru
    _
  %v31 = vld [vmem:[%s3] sm:$0xff]
  %v32 = vld [vmem:[%s3 + $0x8] sm:$0xff]
  %v33 = vld [vmem:[%s3 + $0x10] sm:$0xff]
  %v34 = vld [vmem:[%s3 + $0x18] sm:$0xff]
  %v35 = vld [vmem:[%s0] sm:$0xff]
  %v36 = vld [vmem:[%s0 + $0x8] sm:$0xff]
  %v37 = vld [vmem:[%s0 + $0x10] sm:$0xf]
  %v38 = vld [vmem:[%s0 + $0x14] sm:$0xff]
  %v39 = vld [vmem:[%s0 + $0x1c] sm:$0xff]
  %v40 = vld [vmem:[%s0 + $0x24] sm:$0xf]
  %v41 = vld [vmem:[%s0 + $0x28] sm:$0xff]
  %v42 = vld [vmem:[%s0 + $0x30] sm:$0xff]
  %v43 = vld [vmem:[%s0 + $0x38] sm:$0xf]
  %v44 = vld [vmem:[%s0 + $0x3c] sm:$0xff]
  %v45 = vld [vmem:[%s0 + $0x44] sm:$0xff]
  %v46 = vld [vmem:[%s0 + $0x4c] sm:$0xf]
  %v47 = vld [vmem:[%s1] sm:$0xf]
  %v48 = vld [vmem:[%s1 + $0x4] sm:$0xf]
  %v49 = vld [vmem:[%s1 + $0x8] sm:$0xf]
  %v50 = vld [vmem:[%s1 + $0xc] sm:$0xf]
  %v51 = vld [vmem:[%s1 + $0x10] sm:$0xf]
  %v52 = vld [vmem:[%s1 + $0x14] sm:$0xf]
  %v53 = vld [vmem:[%s1 + $0x18] sm:$0xf]
  %v54 = vld [vmem:[%s1 + $0x1c] sm:$0xf]
  %v55 = vld [vmem:[%s1 + $0x20] sm:$0xf]
  %v56 = vld [vmem:[%s1 + $0x24] sm:$0xf]
  %v57 = vld [vmem:[%s1 + $0x28] sm:$0xf]
  %v58 = vld [vmem:[%s1 + $0x2c] sm:$0xf]
  %v59 = vld [vmem:[%s1 + $0x30] sm:$0xf]
  %v60 = vld [vmem:[%s1 + $0x34] sm:$0xf]
  %v61 = vld [vmem:[%s1 + $0x38] sm:$0xf]
  %v62 = vld [vmem:[%s1 + $0x3c] sm:$0xf]
  %v63 = vld [vmem:[%s1 + $0x40] sm:$0xf]
  %v64 = vld [vmem:[%s1 + $0x44] sm:$0xf]
  %v65 = vld [vmem:[%s1 + $0x48] sm:$0xf]
  %v66 = vld [vmem:[%s1 + $0x4c] sm:$0xf]
  %v67 = vld [vmem:[%s1 + $0x50] sm:$0xf]
  %v68 = vld [vmem:[%s1 + $0x54] sm:$0xf]
  %v69 = vld [vmem:[%s1 + $0x58] sm:$0xf]
  %v70 = vld [vmem:[%s1 + $0x5c] sm:$0xf]
  %v71 = vld [vmem:[%s1 + $0x60] sm:$0xf]
  %v72 = vld [vmem:[%s1 + $0x64] sm:$0xf]
  %v73 = vld [vmem:[%s1 + $0x68] sm:$0xf]
  %v74 = vld [vmem:[%s1 + $0x6c] sm:$0xf]
  %v75 = vld [vmem:[%s1 + $0x70] sm:$0xf]
  %v76 = vld [vmem:[%s1 + $0x74] sm:$0xf]
  %v77 = vld [vmem:[%s1 + $0x78] sm:$0xf]
  %v78 = vld [vmem:[%s1 + $0x7c] sm:$0xf]
  %v79 = vld [vmem:[%s1 + $0x80] sm:$0xf]
  %v80 = vld [vmem:[%s1 + $0x84] sm:$0xf]
  %v81 = vld [vmem:[%s1 + $0x88] sm:$0xf]
  %v82 = vld [vmem:[%s1 + $0x8c] sm:$0xf]
  %v83 = vld [vmem:[%s1 + $0x90] sm:$0xf]
  %v84 = vld [vmem:[%s1 + $0x94] sm:$0xf]
  %v85 = vld [vmem:[%s1 + $0x98] sm:$0xf]
  %v86 = vld [vmem:[%s1 + $0x9c] sm:$0xf]
  %v87 = vld [vmem:[%s1 + $0xa0] sm:$0xf]
  %v88 = vld [vmem:[%s1 + $0xa4] sm:$0xf]
  %v89 = vld [vmem:[%s1 + $0xa8] sm:$0xf]
  %v90 = vld [vmem:[%s1 + $0xac] sm:$0xf]
  %v91 = vld [vmem:[%s1 + $0xb0] sm:$0xf]
  %v92 = vld [vmem:[%s1 + $0xb4] sm:$0xf]
  %v93 = vld [vmem:[%s1 + $0xb8] sm:$0xf]
  %v94 = vld [vmem:[%s1 + $0xbc] sm:$0xf]
  %v95 = vld [vmem:[%s1 + $0xc0] sm:$0xf]
  %v96 = vld [vmem:[%s1 + $0xc4] sm:$0xf]
  %v97 = vld [vmem:[%s1 + $0xc8] sm:$0xf]
  %v98 = vld [vmem:[%s1 + $0xcc] sm:$0xf]
  %v99 = vld [vmem:[%s1 + $0xd0] sm:$0xf]
  %v100 = vld [vmem:[%s1 + $0xd4] sm:$0xf]
  %v101 = vld [vmem:[%s1 + $0xd8] sm:$0xf]
  %v102 = vld [vmem:[%s1 + $0xdc] sm:$0xf]
  %v103 = vld [vmem:[%s1 + $0xe0] sm:$0xf]
  %v104 = vld [vmem:[%s1 + $0xe4] sm:$0xf]
  %v105 = vld [vmem:[%s1 + $0xe8] sm:$0xf]
  %v106 = vld [vmem:[%s1 + $0xec] sm:$0xf]
  %v107 = vld [vmem:[%s1 + $0xf0] sm:$0xf]
  %v108 = vld [vmem:[%s1 + $0xf4] sm:$0xf]
  %v109 = vld [vmem:[%s1 + $0xf8] sm:$0xf]
  %v110 = vld [vmem:[%s1 + $0xfc] sm:$0xf]
  %v111 = vld [vmem:[%s1 + $0x100] sm:$0xf]
  %v112 = vld [vmem:[%s1 + $0x104] sm:$0xf]
  %v113 = vld [vmem:[%s1 + $0x108] sm:$0xf]
  %v114 = vld [vmem:[%s1 + $0x10c] sm:$0xf]
  %v115 = vld [vmem:[%s1 + $0x110] sm:$0xf]
  %v116 = vld [vmem:[%s1 + $0x114] sm:$0xf]
  %v117 = vld [vmem:[%s1 + $0x118] sm:$0xf]
  %v118 = vld [vmem:[%s1 + $0x11c] sm:$0xf]
  %v131 = vunpack.c.l.b16 %v35
  %v132 = vunpack.c.h.b16 %v35
  %v133 = vunpack.c.l.b16 %v36
  %v134 = vunpack.c.h.b16 %v36
  %v135 = vunpack.c.l.b16 %v37
  %v136 = vunpack.c.l.b16 %v38
  %v137 = vunpack.c.h.b16 %v38
  %v138 = vunpack.c.l.b16 %v39
  %v139 = vunpack.c.h.b16 %v39
  %v140 = vunpack.c.l.b16 %v40
  %v141 = vunpack.c.l.b16 %v41
  %v142 = vunpack.c.h.b16 %v41
  %v143 = vunpack.c.l.b16 %v42
  %v144 = vunpack.c.h.b16 %v42
  %v145 = vunpack.c.l.b16 %v43
  %v146 = vunpack.c.l.b16 %v44
  %v147 = vunpack.c.h.b16 %v44
  %v148 = vunpack.c.l.b16 %v45
  %v149 = vunpack.c.h.b16 %v45
  %v150 = vunpack.c.l.b16 %v46
  %v151 = vpack.c.b16 %v136, %v131
  %v152 = vpack.c.b16 %v137, %v132
  %v153 = vpack.c.b16 %v138, %v133
  %v154 = vpack.c.b16 %v139, %v134
  %v155 = vpack.c.b16 %v140, %v135
  %v156 = vpack.c.b16 %v146, %v141
  %v157 = vpack.c.b16 %v147, %v142
  %v158 = vpack.c.b16 %v148, %v143
  %v159 = vpack.c.b16 %v149, %v144
  %v160 = vpack.c.b16 %v150, %v145
  %v241 = vunpack.c.l.b16 %v47
  %v242 = vunpack.c.l.b16 %v48
  %v243 = vunpack.c.l.b16 %v49
  %v244 = vunpack.c.l.b16 %v50
  %v245 = vunpack.c.l.b16 %v51
  %v246 = vunpack.c.l.b16 %v52
  %v247 = vunpack.c.l.b16 %v53
  %v248 = vunpack.c.l.b16 %v54
  %v249 = vunpack.c.l.b16 %v55
  %v250 = vunpack.c.l.b16 %v56
  %v251 = vunpack.c.l.b16 %v57
  %v252 = vunpack.c.l.b16 %v58
  %v253 = vunpack.c.l.b16 %v59
  %v254 = vunpack.c.l.b16 %v60
  %v255 = vunpack.c.l.b16 %v61
  %v256 = vunpack.c.l.b16 %v62
  %v257 = vunpack.c.l.b16 %v63
  %v258 = vunpack.c.l.b16 %v64
  %v259 = vunpack.c.l.b16 %v65
  %v260 = vunpack.c.l.b16 %v66
  %v261 = vunpack.c.l.b16 %v67
  %v262 = vunpack.c.l.b16 %v68
  %v263 = vunpack.c.l.b16 %v69
  %v264 = vunpack.c.l.b16 %v70
  %v265 = vunpack.c.l.b16 %v71
  %v266 = vunpack.c.l.b16 %v72
  %v267 = vunpack.c.l.b16 %v73
  %v268 = vunpack.c.l.b16 %v74
  %v269 = vunpack.c.l.b16 %v75
  %v270 = vunpack.c.l.b16 %v76
  %v271 = vunpack.c.l.b16 %v77
  %v272 = vunpack.c.l.b16 %v78
  %v273 = vunpack.c.l.b16 %v79
  %v274 = vunpack.c.l.b16 %v80
  %v275 = vunpack.c.l.b16 %v81
  %v276 = vunpack.c.l.b16 %v82
  %v277 = vunpack.c.l.b16 %v83
  %v278 = vunpack.c.l.b16 %v84
  %v279 = vunpack.c.l.b16 %v85
  %v280 = vunpack.c.l.b16 %v86
  %v281 = vunpack.c.l.b16 %v87
  %v282 = vunpack.c.l.b16 %v88
  %v283 = vunpack.c.l.b16 %v89
  %v284 = vunpack.c.l.b16 %v90
  %v285 = vunpack.c.l.b16 %v91
  %v286 = vunpack.c.l.b16 %v92
  %v287 = vunpack.c.l.b16 %v93
  %v288 = vunpack.c.l.b16 %v94
  %v289 = vunpack.c.l.b16 %v95
  %v290 = vunpack.c.l.b16 %v96
  %v291 = vunpack.c.l.b16 %v97
  %v292 = vunpack.c.l.b16 %v98
  %v293 = vunpack.c.l.b16 %v99
  %v294 = vunpack.c.l.b16 %v100
  %v295 = vunpack.c.l.b16 %v101
  %v296 = vunpack.c.l.b16 %v102
  %v297 = vunpack.c.l.b16 %v103
  %v298 = vunpack.c.l.b16 %v104
  %v299 = vunpack.c.l.b16 %v105
  %v300 = vunpack.c.l.b16 %v106
  %v301 = vunpack.c.l.b16 %v107
  %v302 = vunpack.c.l.b16 %v108
  %v303 = vunpack.c.l.b16 %v109
  %v304 = vunpack.c.l.b16 %v110
  %v305 = vunpack.c.l.b16 %v111
  %v306 = vunpack.c.l.b16 %v112
  %v307 = vunpack.c.l.b16 %v113
  %v308 = vunpack.c.l.b16 %v114
  %v309 = vunpack.c.l.b16 %v115
  %v310 = vunpack.c.l.b16 %v116
  %v311 = vunpack.c.l.b16 %v117
  %v312 = vunpack.c.l.b16 %v118
  %v313 = vpack.c.b16 %v242, %v241
  %v314 = vpack.c.b16 %v244, %v243
  %v315 = vpack.c.b16 %v246, %v245
  %v316 = vpack.c.b16 %v248, %v247
  %v317 = vpack.c.b16 %v250, %v249
  %v318 = vpack.c.b16 %v252, %v251
  %v319 = vpack.c.b16 %v254, %v253
  %v320 = vpack.c.b16 %v256, %v255
  %v321 = vpack.c.b16 %v258, %v257
  %v322 = vpack.c.b16 %v260, %v259
  %v323 = vpack.c.b16 %v262, %v261
  %v324 = vpack.c.b16 %v264, %v263
  %v325 = vpack.c.b16 %v266, %v265
  %v326 = vpack.c.b16 %v268, %v267
  %v327 = vpack.c.b16 %v270, %v269
  %v328 = vpack.c.b16 %v272, %v271
  %v329 = vpack.c.b16 %v274, %v273
  %v330 = vpack.c.b16 %v276, %v275
  %v331 = vpack.c.b16 %v278, %v277
  %v332 = vpack.c.b16 %v280, %v279
  %v333 = vpack.c.b16 %v282, %v281
  %v334 = vpack.c.b16 %v284, %v283
  %v335 = vpack.c.b16 %v286, %v285
  %v336 = vpack.c.b16 %v288, %v287
  %v337 = vpack.c.b16 %v290, %v289
  %v338 = vpack.c.b16 %v292, %v291
  %v339 = vpack.c.b16 %v294, %v293
  %v340 = vpack.c.b16 %v296, %v295
  %v341 = vpack.c.b16 %v298, %v297
  %v342 = vpack.c.b16 %v300, %v299
  %v343 = vpack.c.b16 %v302, %v301
  %v344 = vpack.c.b16 %v304, %v303
  %v345 = vpack.c.b16 %v306, %v305
  %v346 = vpack.c.b16 %v308, %v307
  %v347 = vpack.c.b16 %v310, %v309
  %v348 = vpack.c.b16 %v312, %v311
  %vm385 = vcmask 523264
  %v387 = vsel %vm385, %v155, 0
  %v390 = vsel %vm385, %v160, 0
  %392 = vmatprep.subr.bf16.mxu0 0
  %393 = vmatpush1.bf16.msra.mxu0 %v313
  %394 = vmatprep.subr.bf16.mxu0 0
  %395 = vmatpush1.bf16.msra.mxu0 %v314
  %396 = vmatprep.subr.bf16.mxu0 0
  %397 = vmatpush1.bf16.msra.mxu0 %v315
  %398 = vmatprep.subr.bf16.mxu0 0
  %399 = vmatpush1.bf16.msra.mxu0 %v316
  %400 = vmatprep.subr.bf16.mxu0 0
  %401 = vmatpush1.bf16.msra.mxu0 %v317
  %402 = vmatprep.subr.bf16.mxu0 0
  %403 = vmatpush1.bf16.msra.mxu0 %v318
  %404 = vmatprep.subr.bf16.mxu0 0
  %405 = vmatpush1.bf16.msra.mxu0 %v319
  %406 = vmatprep.subr.bf16.mxu0 0
  %407 = vmatpush1.bf16.msra.mxu0 %v320
  %408 = vmatprep.subr.bf16.mxu0 0
  %409 = vmatpush1.bf16.msra.mxu0 %v321
  %410 = vmatprep.subr.bf16.mxu0 0
  %411 = vmatpush1.bf16.msra.mxu0 %v322
  %412 = vmatprep.subr.bf16.mxu0 0
  %413 = vmatpush1.bf16.msra.mxu0 %v323
  %414 = vmatprep.subr.bf16.mxu0 0
  %415 = vmatpush1.bf16.msra.mxu0 %v324
  %416 = vmatprep.subr.bf16.mxu0 0
  %417 = vmatpush1.bf16.msra.mxu0 %v325
  %418 = vmatprep.subr.bf16.mxu0 0
  %419 = vmatpush1.bf16.msra.mxu0 %v326
  %420 = vmatprep.subr.bf16.mxu0 0
  %421 = vmatpush1.bf16.msra.mxu0 %v327
  %422 = vmatprep.subr.bf16.mxu0 0
  %423 = vmatpush1.bf16.msra.mxu0 %v328
  %424 = vmatprep.mubr.bf16.mxu0 %v152
  %425 = vmatmul.mubr.bf16.gmra.mrb[0].mxu0 %v151
  %v426 = vpop.f32.mrb[0].mxu0
  %v427 = vadd.f32 0.0, %v426
  %v428 = vpop.f32.mrb[0].mxu0
  %v429 = vpop.f32.mrb[0].mxu0
  %v430 = vadd.f32 0.0, %v429
  %v431 = vpop.f32.mrb[0].mxu0
  %432 = vmatprep.mubr.bf16.mxu0 %v157
  %433 = vmatmul.mubr.bf16.gmra.mrb[0].mxu0 %v156
  %v434 = vpop.f32.mrb[0].mxu0
  %v435 = vadd.f32 0.0, %v434
  %v436 = vpop.f32.mrb[0].mxu0
  %v437 = vpop.f32.mrb[0].mxu0
  %v438 = vadd.f32 0.0, %v437
  %v439 = vpop.f32.mrb[0].mxu0
  %440 = vdwg.mxu0
  %441 = vmatprep.subr.bf16.mxu0 0
  %442 = vmatpush1.bf16.msra.mxu0 %v329
  %443 = vmatprep.subr.bf16.mxu0 0
  %444 = vmatpush1.bf16.msra.mxu0 %v330
  %445 = vmatprep.subr.bf16.mxu0 0
  %446 = vmatpush1.bf16.msra.mxu0 %v331
  %447 = vmatprep.subr.bf16.mxu0 0
  %448 = vmatpush1.bf16.msra.mxu0 %v332
  %449 = vmatprep.subr.bf16.mxu0 0
  %450 = vmatpush1.bf16.msra.mxu0 %v333
  %451 = vmatprep.subr.bf16.mxu0 0
  %452 = vmatpush1.bf16.msra.mxu0 %v334
  %453 = vmatprep.subr.bf16.mxu0 0
  %454 = vmatpush1.bf16.msra.mxu0 %v335
  %455 = vmatprep.subr.bf16.mxu0 0
  %456 = vmatpush1.bf16.msra.mxu0 %v336
  %457 = vmatprep.subr.bf16.mxu0 0
  %458 = vmatpush1.bf16.msra.mxu0 %v337
  %459 = vmatprep.subr.bf16.mxu0 0
  %460 = vmatpush1.bf16.msra.mxu0 %v338
  %461 = vmatprep.subr.bf16.mxu0 0
  %462 = vmatpush1.bf16.msra.mxu0 %v339
  %463 = vmatprep.subr.bf16.mxu0 0
  %464 = vmatpush1.bf16.msra.mxu0 %v340
  %465 = vmatprep.subr.bf16.mxu0 0
  %466 = vmatpush1.bf16.msra.mxu0 %v341
  %467 = vmatprep.subr.bf16.mxu0 0
  %468 = vmatpush1.bf16.msra.mxu0 %v342
  %469 = vmatprep.subr.bf16.mxu0 0
  %470 = vmatpush1.bf16.msra.mxu0 %v343
  %471 = vmatprep.subr.bf16.mxu0 0
  %472 = vmatpush1.bf16.msra.mxu0 %v344
  %473 = vmatprep.mubr.bf16.mxu0 %v154
  %474 = vmatmul.mubr.bf16.gmra.mrb[0].mxu0 %v153
  %v475 = vpop.f32.mrb[0].mxu0
  %v476 = vadd.f32 %v427, %v475
  %v477 = vpop.f32.mrb[0].mxu0
  %v478 = vpop.f32.mrb[0].mxu0
  %v479 = vadd.f32 %v430, %v478
  %v480 = vpop.f32.mrb[0].mxu0
  %481 = vmatprep.mubr.bf16.mxu0 %v159
  %482 = vmatmul.mubr.bf16.gmra.mrb[0].mxu0 %v158
  %v483 = vpop.f32.mrb[0].mxu0
  %v484 = vadd.f32 %v435, %v483
  %v485 = vpop.f32.mrb[0].mxu0
  %v486 = vpop.f32.mrb[0].mxu0
  %v487 = vadd.f32 %v438, %v486
  %v488 = vpop.f32.mrb[0].mxu0
  %489 = vdwg.mxu0
  %490 = vmatprep.subr.bf16.mxu0 0
  %491 = vmatpush1.bf16.msra.mxu0 %v345
  %492 = vmatprep.subr.bf16.mxu0 0
  %493 = vmatpush1.bf16.msra.mxu0 %v346
  %494 = vmatprep.subr.bf16.mxu0 0
  %495 = vmatpush1.bf16.msra.mxu0 %v347
  %496 = vmatprep.subr.bf16.mxu0 0
  %497 = vmatpush1.bf16.msra.mxu0 %v348
  %498 = vmatprep.subr.bf16.mxu0 0
  %499 = vmatpush1.bf16.msra.mxu0 0
  %500 = vmatprep.subr.bf16.mxu0 0
  %501 = vmatpush1.bf16.msra.mxu0 0
  %502 = vmatprep.subr.bf16.mxu0 0
  %503 = vmatpush1.bf16.msra.mxu0 0
  %504 = vmatprep.subr.bf16.mxu0 0
  %505 = vmatpush1.bf16.msra.mxu0 0
  %506 = vmatprep.subr.bf16.mxu0 0
  %507 = vmatpush1.bf16.msra.mxu0 0
  %508 = vmatprep.subr.bf16.mxu0 0
  %509 = vmatpush1.bf16.msra.mxu0 0
  %510 = vmatprep.subr.bf16.mxu0 0
  %511 = vmatpush1.bf16.msra.mxu0 0
  %512 = vmatprep.subr.bf16.mxu0 0
  %513 = vmatpush1.bf16.msra.mxu0 0
  %514 = vmatprep.subr.bf16.mxu0 0
  %515 = vmatpush1.bf16.msra.mxu0 0
  %516 = vmatprep.subr.bf16.mxu0 0
  %517 = vmatpush1.bf16.msra.mxu0 0
  %518 = vmatprep.subr.bf16.mxu0 0
  %519 = vmatpush1.bf16.msra.mxu0 0
  %520 = vmatprep.subr.bf16.mxu0 0
  %521 = vmatpush1.bf16.msra.mxu0 0
  %522 = vmatprep.mubr.bf16.mxu0 0
  %523 = vmatmul.mubr.bf16.gmra.mrb[0].mxu0 %v387
  %v524 = vpop.f32.mrb[0].mxu0
  %v525 = vadd.f32 %v476, %v524
  %v526 = vpop.f32.mrb[0].mxu0
  %v527 = vpop.f32.mrb[0].mxu0
  %v528 = vadd.f32 %v479, %v527
  %v529 = vpop.f32.mrb[0].mxu0
  %530 = vmatprep.mubr.bf16.mxu0 0
  %531 = vmatmul.mubr.bf16.gmra.mrb[0].mxu0 %v390
  %v532 = vpop.f32.mrb[0].mxu0
  %v533 = vadd.f32 %v484, %v532
  %v534 = vpop.f32.mrb[0].mxu0
  %v535 = vpop.f32.mrb[0].mxu0
  %v536 = vadd.f32 %v487, %v535
  %v537 = vpop.f32.mrb[0].mxu0
  %538 = vdwg.mxu0
  %v539 = vadd.f32 %v31, %v525
  %v540 = vadd.f32 %v32, %v528
  %v541 = vadd.f32 %v33, %v533
  %v542 = vadd.f32 %v34, %v536
  %543 = vst.msk [vmem:[%s3] sm:$0xff] %vm385, %v539
  %544 = vst.msk [vmem:[%s3 + $0x8] sm:$0xff] %vm385, %v540
  %545 = vst.msk [vmem:[%s3 + $0x10] sm:$0xff] %vm385, %v541
  %546 = vst.msk [vmem:[%s3 + $0x18] sm:$0xff] %vm385, %v542
  // Predicated region
  $region18: #{feature_extraction_forward.67} parent=0 // pred_check
    %p547 = pneg %p15
  $region19: #{feature_extraction_forward.67} parent=0 // pred_check_branch
    %549 = sbr.rel (%p547) target = $region21
  $region20: #{feature_extraction_forward.67} parent=0 // pred_region
    %v550 = vld [vmem:[%s3] sm:$0xff]
    %v551 = vld [vmem:[%s3 + $0x8] sm:$0xff]
    %v552 = vld [vmem:[%s3 + $0x10] sm:$0xff]
    %v553 = vld [vmem:[%s3 + $0x18] sm:$0xff]
    %v554 = vmax.f32 %v550, 0.0
    %v555 = vmax.f32 %v551, 0.0
    %v556 = vmax.f32 %v552, 0.0
    %v557 = vmax.f32 %v553, 0.0
    %558 = vst.msk [vmem:[%s3] sm:$0xff] %vm385, %v554
    %559 = vst.msk [vmem:[%s3 + $0x8] sm:$0xff] %vm385, %v555
    %560 = vst.msk [vmem:[%s3 + $0x10] sm:$0xff] %vm385, %v556
    %561 = vst.msk [vmem:[%s3 + $0x18] sm:$0xff] %vm385, %v557
  $region21: #{feature_extraction_forward.67} parent=0 // pred_fallthru
    _
  // Predicated region
  $region22: #{feature_extraction_forward.67} parent=0 // pred_check
    _
  $region23: #{feature_extraction_forward.67} parent=0 // pred_check_branch
    %563 = sbr.rel (0) target = $region25
  $region24: #{feature_extraction_forward.67} parent=0 // pred_region
    _
  $region25: #{feature_extraction_forward.67} parent=0 // pred_fallthru
    _
  // Predicated region
  $region26: #{feature_extraction_forward.67} parent=0 // pred_check
    _
  $region27: #{feature_extraction_forward.67} parent=0 // pred_check_branch
    %565 = sbr.rel (0) target = $region29
  $region28: #{feature_extraction_forward.67} parent=0 // pred_region
    _
  $region29: #{feature_extraction_forward.67} parent=0 // pred_fallthru
    _

// kernel: feature_extraction_forward.66
$region0: #{feature_extraction_forward.66}
  #allocation0 [shape = 'u32[]', space=smem, size = 0x4, offset = 0x4, fixed_abs, tag = 'smem constant byte address 0x4 - core index']
  #allocation1 [shape = 'u32[144,128]{1,0:T(1,128)}', space=vmem, size = 0x12000, scoped, tag = 'internal scratch']
  %s0 = inlined_call_operand.vmem [shape: bf16[32,576], index: 0, kind: input, shape index: {}]
  %s1 = inlined_call_operand.vmem [shape: bf16[576,64], index: 1, kind: input, shape index: {}]
  %s2 = inlined_call_operand.vmem [shape: f32[1,64], index: 2, kind: input, shape index: {}]
  %s3 = inlined_call_operand.vmem [shape: f32[32,64], index: 3, kind: input, shape index: {}]
  %s4 = inlined_call_operand.vmem [shape: f32[32,64], index: 4, kind: output, shape index: {}]
  %s5 = sld [smem:[#allocation0]]
  $region34: #{feature_extraction_forward.66} parent=0
    _
  %s7 = ssub.s32 1, %s5
  %s8 = scalar_select 0, %s7, %s5
  // Predicated region
  $region2: #{feature_extraction_forward.66} parent=0 // pred_check
    _
  $region3: #{feature_extraction_forward.66} parent=0 // pred_check_branch
    %10 = sbr.rel (0) target = $region5
  $region4: #{feature_extraction_forward.66} parent=0 // pred_region
    _
  $region5: #{feature_extraction_forward.66} parent=0 // pred_fallthru
    _
  // Predicated region
  $region6: #{feature_extraction_forward.66} parent=0 // pred_check
    _
  $region7: #{feature_extraction_forward.66} parent=0 // pred_check_branch
    %12 = sbr.rel (0) target = $region9
  $region8: #{feature_extraction_forward.66} parent=0 // pred_region
    _
  $region9: #{feature_extraction_forward.66} parent=0 // pred_fallthru
    _
  // Predicated region
  $region10: #{feature_extraction_forward.66} parent=0 // pred_check
    _
  $region11: #{feature_extraction_forward.66} parent=0 // pred_check_branch
    %14 = sbr.rel (0) target = $region13
  $region12: #{feature_extraction_forward.66} parent=0 // pred_region
    _
  $region13: #{feature_extraction_forward.66} parent=0 // pred_fallthru
    _
  // Predicated region
  $region14: #{feature_extraction_forward.66} parent=0 // pred_check
    _
  $region15: #{feature_extraction_forward.66} parent=0 // pred_check_branch
    %16 = sbr.rel (0) target = $region17
  $region16: #{feature_extraction_forward.66} parent=0 // pred_region
    _
  $region17: #{feature_extraction_forward.66} parent=0 // pred_fallthru
    _
  %p18 = scmp.eq.s32.totalorder 0, 0
  // Predicated region
  $region18: #{feature_extraction_forward.66} parent=0 // pred_check
    %p19 = pneg %p18
  $region19: #{feature_extraction_forward.66} parent=0 // pred_check_branch
    %21 = sbr.rel (%p19) target = $region21
  $region20: #{feature_extraction_forward.66} parent=0 // pred_region
    %v22 = vld [vmem:[%s2] sm:$0x1]
    %v24 = vlaneseq
    %v25 = vshrl.u32 %v24, 7
    %v26 = vsub.s32 0, %v25
    %v27 = vrot.slane %v22, %v26
    %vm29 = vcmask 523264
    %30 = vst.msk [vmem:[%s4] sm:$0xff] %vm29, %v27
    %31 = vst.msk [vmem:[%s4 + $0x8] sm:$0xff] %vm29, %v27
    %32 = vst.msk [vmem:[%s4 + $0x10] sm:$0xff] %vm29, %v27
    %33 = vst.msk [vmem:[%s4 + $0x18] sm:$0xff] %vm29, %v27
  $region21: #{feature_extraction_forward.66} parent=0 // pred_fallthru
    _
  %v34 = vld [vmem:[%s4] sm:$0xff]
  %v35 = vld [vmem:[%s4 + $0x8] sm:$0xff]
  %v36 = vld [vmem:[%s4 + $0x10] sm:$0xff]
  %v37 = vld [vmem:[%s4 + $0x18] sm:$0xff]
  %v38 = vld [vmem:[%s0] sm:$0xff]
  %v39 = vld [vmem:[%s0 + $0x8] sm:$0xff]
  %v40 = vld [vmem:[%s0 + $0x10] sm:$0xf]
  %v41 = vld [vmem:[%s0 + $0x14] sm:$0xff]
  %v42 = vld [vmem:[%s0 + $0x1c] sm:$0xff]
  %v43 = vld [vmem:[%s0 + $0x24] sm:$0xf]
  %v44 = vld [vmem:[%s0 + $0x28] sm:$0xff]
  %v45 = vld [vmem:[%s0 + $0x30] sm:$0xff]
  %v46 = vld [vmem:[%s0 + $0x38] sm:$0xf]
  %v47 = vld [vmem:[%s0 + $0x3c] sm:$0xff]
  %v48 = vld [vmem:[%s0 + $0x44] sm:$0xff]
  %v49 = vld [vmem:[%s0 + $0x4c] sm:$0xf]
  %v50 = vld [vmem:[%s1] sm:$0xf]
  %v51 = vld [vmem:[%s1 + $0x4] sm:$0xf]
  %v52 = vld [vmem:[%s1 + $0x8] sm:$0xf]
  %v53 = vld [vmem:[%s1 + $0xc] sm:$0xf]
  %v54 = vld [vmem:[%s1 + $0x10] sm:$0xf]
  %v55 = vld [vmem:[%s1 + $0x14] sm:$0xf]
  %v56 = vld [vmem:[%s1 + $0x18] sm:$0xf]
  %v57 = vld [vmem:[%s1 + $0x1c] sm:$0xf]
  %v58 = vld [vmem:[%s1 + $0x20] sm:$0xf]
  %v59 = vld [vmem:[%s1 + $0x24] sm:$0xf]
  %v60 = vld [vmem:[%s1 + $0x28] sm:$0xf]
  %v61 = vld [vmem:[%s1 + $0x2c] sm:$0xf]
  %v62 = vld [vmem:[%s1 + $0x30] sm:$0xf]
  %v63 = vld [vmem:[%s1 + $0x34] sm:$0xf]
  %v64 = vld [vmem:[%s1 + $0x38] sm:$0xf]
  %v65 = vld [vmem:[%s1 + $0x3c] sm:$0xf]
  %v66 = vld [vmem:[%s1 + $0x40] sm:$0xf]
  %v67 = vld [vmem:[%s1 + $0x44] sm:$0xf]
  %v68 = vld [vmem:[%s1 + $0x48] sm:$0xf]
  %v69 = vld [vmem:[%s1 + $0x4c] sm:$0xf]
  %v70 = vld [vmem:[%s1 + $0x50] sm:$0xf]
  %v71 = vld [vmem:[%s1 + $0x54] sm:$0xf]
  %v72 = vld [vmem:[%s1 + $0x58] sm:$0xf]
  %v73 = vld [vmem:[%s1 + $0x5c] sm:$0xf]
  %v74 = vld [vmem:[%s1 + $0x60] sm:$0xf]
  %v75 = vld [vmem:[%s1 + $0x64] sm:$0xf]
  %v76 = vld [vmem:[%s1 + $0x68] sm:$0xf]
  %v77 = vld [vmem:[%s1 + $0x6c] sm:$0xf]
  %v78 = vld [vmem:[%s1 + $0x70] sm:$0xf]
  %v79 = vld [vmem:[%s1 + $0x74] sm:$0xf]
  %v80 = vld [vmem:[%s1 + $0x78] sm:$0xf]
  %v81 = vld [vmem:[%s1 + $0x7c] sm:$0xf]
  %v82 = vld [vmem:[%s1 + $0x80] sm:$0xf]
  %v83 = vld [vmem:[%s1 + $0x84] sm:$0xf]
  %v84 = vld [vmem:[%s1 + $0x88] sm:$0xf]
  %v85 = vld [vmem:[%s1 + $0x8c] sm:$0xf]
  %v86 = vld [vmem:[%s1 + $0x90] sm:$0xf]
  %v87 = vld [vmem:[%s1 + $0x94] sm:$0xf]
  %v88 = vld [vmem:[%s1 + $0x98] sm:$0xf]
  %v89 = vld [vmem:[%s1 + $0x9c] sm:$0xf]
  %v90 = vld [vmem:[%s1 + $0xa0] sm:$0xf]
  %v91 = vld [vmem:[%s1 + $0xa4] sm:$0xf]
  %v92 = vld [vmem:[%s1 + $0xa8] sm:$0xf]
  %v93 = vld [vmem:[%s1 + $0xac] sm:$0xf]
  %v94 = vld [vmem:[%s1 + $0xb0] sm:$0xf]
  %v95 = vld [vmem:[%s1 + $0xb4] sm:$0xf]
  %v96 = vld [vmem:[%s1 + $0xb8] sm:$0xf]
  %v97 = vld [vmem:[%s1 + $0xbc] sm:$0xf]
  %v98 = vld [vmem:[%s1 + $0xc0] sm:$0xf]
  %v99 = vld [vmem:[%s1 + $0xc4] sm:$0xf]
  %v100 = vld [vmem:[%s1 + $0xc8] sm:$0xf]
  %v101 = vld [vmem:[%s1 + $0xcc] sm:$0xf]
  %v102 = vld [vmem:[%s1 + $0xd0] sm:$0xf]
  %v103 = vld [vmem:[%s1 + $0xd4] sm:$0xf]
  %v104 = vld [vmem:[%s1 + $0xd8] sm:$0xf]
  %v105 = vld [vmem:[%s1 + $0xdc] sm:$0xf]
  %v106 = vld [vmem:[%s1 + $0xe0] sm:$0xf]
  %v107 = vld [vmem:[%s1 + $0xe4] sm:$0xf]
  %v108 = vld [vmem:[%s1 + $0xe8] sm:$0xf]
  %v109 = vld [vmem:[%s1 + $0xec] sm:$0xf]
  %v110 = vld [vmem:[%s1 + $0xf0] sm:$0xf]
  %v111 = vld [vmem:[%s1 + $0xf4] sm:$0xf]
  %v112 = vld [vmem:[%s1 + $0xf8] sm:$0xf]
  %v113 = vld [vmem:[%s1 + $0xfc] sm:$0xf]
  %v114 = vld [vmem:[%s1 + $0x100] sm:$0xf]
  %v115 = vld [vmem:[%s1 + $0x104] sm:$0xf]
  %v116 = vld [vmem:[%s1 + $0x108] sm:$0xf]
  %v117 = vld [vmem:[%s1 + $0x10c] sm:$0xf]
  %v118 = vld [vmem:[%s1 + $0x110] sm:$0xf]
  %v119 = vld [vmem:[%s1 + $0x114] sm:$0xf]
  %v120 = vld [vmem:[%s1 + $0x118] sm:$0xf]
  %v121 = vld [vmem:[%s1 + $0x11c] sm:$0xf]
  %v134 = vunpack.c.l.b16 %v38
  %v135 = vunpack.c.h.b16 %v38
  %v136 = vunpack.c.l.b16 %v39
  %v137 = vunpack.c.h.b16 %v39
  %v138 = vunpack.c.l.b16 %v40
  %v139 = vunpack.c.l.b16 %v41
  %v140 = vunpack.c.h.b16 %v41
  %v141 = vunpack.c.l.b16 %v42
  %v142 = vunpack.c.h.b16 %v42
  %v143 = vunpack.c.l.b16 %v43
  %v144 = vunpack.c.l.b16 %v44
  %v145 = vunpack.c.h.b16 %v44
  %v146 = vunpack.c.l.b16 %v45
  %v147 = vunpack.c.h.b16 %v45
  %v148 = vunpack.c.l.b16 %v46
  %v149 = vunpack.c.l.b16 %v47
  %v150 = vunpack.c.h.b16 %v47
  %v151 = vunpack.c.l.b16 %v48
  %v152 = vunpack.c.h.b16 %v48
  %v153 = vunpack.c.l.b16 %v49
  %v154 = vpack.c.b16 %v139, %v134
  %v155 = vpack.c.b16 %v140, %v135
  %v156 = vpack.c.b16 %v141, %v136
  %v157 = vpack.c.b16 %v142, %v137
  %v158 = vpack.c.b16 %v143, %v138
  %v159 = vpack.c.b16 %v149, %v144
  %v160 = vpack.c.b16 %v150, %v145
  %v161 = vpack.c.b16 %v151, %v146
  %v162 = vpack.c.b16 %v152, %v147
  %v163 = vpack.c.b16 %v153, %v148
  %v244 = vunpack.c.l.b16 %v50
  %v245 = vunpack.c.l.b16 %v51
  %v246 = vunpack.c.l.b16 %v52
  %v247 = vunpack.c.l.b16 %v53
  %v248 = vunpack.c.l.b16 %v54
  %v249 = vunpack.c.l.b16 %v55
  %v250 = vunpack.c.l.b16 %v56
  %v251 = vunpack.c.l.b16 %v57
  %v252 = vunpack.c.l.b16 %v58
  %v253 = vunpack.c.l.b16 %v59
  %v254 = vunpack.c.l.b16 %v60
  %v255 = vunpack.c.l.b16 %v61
  %v256 = vunpack.c.l.b16 %v62
  %v257 = vunpack.c.l.b16 %v63
  %v258 = vunpack.c.l.b16 %v64
  %v259 = vunpack.c.l.b16 %v65
  %v260 = vunpack.c.l.b16 %v66
  %v261 = vunpack.c.l.b16 %v67
  %v262 = vunpack.c.l.b16 %v68
  %v263 = vunpack.c.l.b16 %v69
  %v264 = vunpack.c.l.b16 %v70
  %v265 = vunpack.c.l.b16 %v71
  %v266 = vunpack.c.l.b16 %v72
  %v267 = vunpack.c.l.b16 %v73
  %v268 = vunpack.c.l.b16 %v74
  %v269 = vunpack.c.l.b16 %v75
  %v270 = vunpack.c.l.b16 %v76
  %v271 = vunpack.c.l.b16 %v77
  %v272 = vunpack.c.l.b16 %v78
  %v273 = vunpack.c.l.b16 %v79
  %v274 = vunpack.c.l.b16 %v80
  %v275 = vunpack.c.l.b16 %v81
  %v276 = vunpack.c.l.b16 %v82
  %v277 = vunpack.c.l.b16 %v83
  %v278 = vunpack.c.l.b16 %v84
  %v279 = vunpack.c.l.b16 %v85
  %v280 = vunpack.c.l.b16 %v86
  %v281 = vunpack.c.l.b16 %v87
  %v282 = vunpack.c.l.b16 %v88
  %v283 = vunpack.c.l.b16 %v89
  %v284 = vunpack.c.l.b16 %v90
  %v285 = vunpack.c.l.b16 %v91
  %v286 = vunpack.c.l.b16 %v92
  %v287 = vunpack.c.l.b16 %v93
  %v288 = vunpack.c.l.b16 %v94
  %v289 = vunpack.c.l.b16 %v95
  %v290 = vunpack.c.l.b16 %v96
  %v291 = vunpack.c.l.b16 %v97
  %v292 = vunpack.c.l.b16 %v98
  %v293 = vunpack.c.l.b16 %v99
  %v294 = vunpack.c.l.b16 %v100
  %v295 = vunpack.c.l.b16 %v101
  %v296 = vunpack.c.l.b16 %v102
  %v297 = vunpack.c.l.b16 %v103
  %v298 = vunpack.c.l.b16 %v104
  %v299 = vunpack.c.l.b16 %v105
  %v300 = vunpack.c.l.b16 %v106
  %v301 = vunpack.c.l.b16 %v107
  %v302 = vunpack.c.l.b16 %v108
  %v303 = vunpack.c.l.b16 %v109
  %v304 = vunpack.c.l.b16 %v110
  %v305 = vunpack.c.l.b16 %v111
  %v306 = vunpack.c.l.b16 %v112
  %v307 = vunpack.c.l.b16 %v113
  %v308 = vunpack.c.l.b16 %v114
  %v309 = vunpack.c.l.b16 %v115
  %v310 = vunpack.c.l.b16 %v116
  %v311 = vunpack.c.l.b16 %v117
  %v312 = vunpack.c.l.b16 %v118
  %v313 = vunpack.c.l.b16 %v119
  %v314 = vunpack.c.l.b16 %v120
  %v315 = vunpack.c.l.b16 %v121
  %v316 = vpack.c.b16 %v245, %v244
  %v317 = vpack.c.b16 %v247, %v246
  %v318 = vpack.c.b16 %v249, %v248
  %v319 = vpack.c.b16 %v251, %v250
  %v320 = vpack.c.b16 %v253, %v252
  %v321 = vpack.c.b16 %v255, %v254
  %v322 = vpack.c.b16 %v257, %v256
  %v323 = vpack.c.b16 %v259, %v258
  %v324 = vpack.c.b16 %v261, %v260
  %v325 = vpack.c.b16 %v263, %v262
  %v326 = vpack.c.b16 %v265, %v264
  %v327 = vpack.c.b16 %v267, %v266
  %v328 = vpack.c.b16 %v269, %v268
  %v329 = vpack.c.b16 %v271, %v270
  %v330 = vpack.c.b16 %v273, %v272
  %v331 = vpack.c.b16 %v275, %v274
  %v332 = vpack.c.b16 %v277, %v276
  %v333 = vpack.c.b16 %v279, %v278
  %v334 = vpack.c.b16 %v281, %v280
  %v335 = vpack.c.b16 %v283, %v282
  %v336 = vpack.c.b16 %v285, %v284
  %v337 = vpack.c.b16 %v287, %v286
  %v338 = vpack.c.b16 %v289, %v288
  %v339 = vpack.c.b16 %v291, %v290
  %v340 = vpack.c.b16 %v293, %v292
  %v341 = vpack.c.b16 %v295, %v294
  %v342 = vpack.c.b16 %v297, %v296
  %v343 = vpack.c.b16 %v299, %v298
  %v344 = vpack.c.b16 %v301, %v300
  %v345 = vpack.c.b16 %v303, %v302
  %v346 = vpack.c.b16 %v305, %v304
  %v347 = vpack.c.b16 %v307, %v306
  %v348 = vpack.c.b16 %v309, %v308
  %v349 = vpack.c.b16 %v311, %v310
  %v350 = vpack.c.b16 %v313, %v312
  %v351 = vpack.c.b16 %v315, %v314
  %vm388 = vcmask 523264
  %v390 = vsel %vm388, %v158, 0
  %v393 = vsel %vm388, %v163, 0
  %395 = vmatprep.subr.bf16.mxu0 0
  %396 = vmatpush1.bf16.msra.mxu0 %v316
  %397 = vmatprep.subr.bf16.mxu0 0
  %398 = vmatpush1.bf16.msra.mxu0 %v317
  %399 = vmatprep.subr.bf16.mxu0 0
  %400 = vmatpush1.bf16.msra.mxu0 %v318
  %401 = vmatprep.subr.bf16.mxu0 0
  %402 = vmatpush1.bf16.msra.mxu0 %v319
  %403 = vmatprep.subr.bf16.mxu0 0
  %404 = vmatpush1.bf16.msra.mxu0 %v320
  %405 = vmatprep.subr.bf16.mxu0 0
  %406 = vmatpush1.bf16.msra.mxu0 %v321
  %407 = vmatprep.subr.bf16.mxu0 0
  %408 = vmatpush1.bf16.msra.mxu0 %v322
  %409 = vmatprep.subr.bf16.mxu0 0
  %410 = vmatpush1.bf16.msra.mxu0 %v323
  %411 = vmatprep.subr.bf16.mxu0 0
  %412 = vmatpush1.bf16.msra.mxu0 %v324
  %413 = vmatprep.subr.bf16.mxu0 0
  %414 = vmatpush1.bf16.msra.mxu0 %v325
  %415 = vmatprep.subr.bf16.mxu0 0
  %416 = vmatpush1.bf16.msra.mxu0 %v326
  %417 = vmatprep.subr.bf16.mxu0 0
  %418 = vmatpush1.bf16.msra.mxu0 %v327
  %419 = vmatprep.subr.bf16.mxu0 0
  %420 = vmatpush1.bf16.msra.mxu0 %v328
  %421 = vmatprep.subr.bf16.mxu0 0
  %422 = vmatpush1.bf16.msra.mxu0 %v329
  %423 = vmatprep.subr.bf16.mxu0 0
  %424 = vmatpush1.bf16.msra.mxu0 %v330
  %425 = vmatprep.subr.bf16.mxu0 0
  %426 = vmatpush1.bf16.msra.mxu0 %v331
  %427 = vmatprep.mubr.bf16.mxu0 %v155
  %428 = vmatmul.mubr.bf16.gmra.mrb[0].mxu0 %v154
  %v429 = vpop.f32.mrb[0].mxu0
  %v430 = vadd.f32 0.0, %v429
  %v431 = vpop.f32.mrb[0].mxu0
  %v432 = vpop.f32.mrb[0].mxu0
  %v433 = vadd.f32 0.0, %v432
  %v434 = vpop.f32.mrb[0].mxu0
  %435 = vmatprep.mubr.bf16.mxu0 %v160
  %436 = vmatmul.mubr.bf16.gmra.mrb[0].mxu0 %v159
  %v437 = vpop.f32.mrb[0].mxu0
  %v438 = vadd.f32 0.0, %v437
  %v439 = vpop.f32.mrb[0].mxu0
  %v440 = vpop.f32.mrb[0].mxu0
  %v441 = vadd.f32 0.0, %v440
  %v442 = vpop.f32.mrb[0].mxu0
  %443 = vdwg.mxu0
  %444 = vmatprep.subr.bf16.mxu0 0
  %445 = vmatpush1.bf16.msra.mxu0 %v332
  %446 = vmatprep.subr.bf16.mxu0 0
  %447 = vmatpush1.bf16.msra.mxu0 %v333
  %448 = vmatprep.subr.bf16.mxu0 0
  %449 = vmatpush1.bf16.msra.mxu0 %v334
  %450 = vmatprep.subr.bf16.mxu0 0
  %451 = vmatpush1.bf16.msra.mxu0 %v335
  %452 = vmatprep.subr.bf16.mxu0 0
  %453 = vmatpush1.bf16.msra.mxu0 %v336
  %454 = vmatprep.subr.bf16.mxu0 0
  %455 = vmatpush1.bf16.msra.mxu0 %v337
  %456 = vmatprep.subr.bf16.mxu0 0
  %457 = vmatpush1.bf16.msra.mxu0 %v338
  %458 = vmatprep.subr.bf16.mxu0 0
  %459 = vmatpush1.bf16.msra.mxu0 %v339
  %460 = vmatprep.subr.bf16.mxu0 0
  %461 = vmatpush1.bf16.msra.mxu0 %v340
  %462 = vmatprep.subr.bf16.mxu0 0
  %463 = vmatpush1.bf16.msra.mxu0 %v341
  %464 = vmatprep.subr.bf16.mxu0 0
  %465 = vmatpush1.bf16.msra.mxu0 %v342
  %466 = vmatprep.subr.bf16.mxu0 0
  %467 = vmatpush1.bf16.msra.mxu0 %v343
  %468 = vmatprep.subr.bf16.mxu0 0
  %469 = vmatpush1.bf16.msra.mxu0 %v344
  %470 = vmatprep.subr.bf16.mxu0 0
  %471 = vmatpush1.bf16.msra.mxu0 %v345
  %472 = vmatprep.subr.bf16.mxu0 0
  %473 = vmatpush1.bf16.msra.mxu0 %v346
  %474 = vmatprep.subr.bf16.mxu0 0
  %475 = vmatpush1.bf16.msra.mxu0 %v347
  %476 = vmatprep.mubr.bf16.mxu0 %v157
  %477 = vmatmul.mubr.bf16.gmra.mrb[0].mxu0 %v156
  %v478 = vpop.f32.mrb[0].mxu0
  %v479 = vadd.f32 %v430, %v478
  %v480 = vpop.f32.mrb[0].mxu0
  %v481 = vpop.f32.mrb[0].mxu0
  %v482 = vadd.f32 %v433, %v481
  %v483 = vpop.f32.mrb[0].mxu0
  %484 = vmatprep.mubr.bf16.mxu0 %v162
  %485 = vmatmul.mubr.bf16.gmra.mrb[0].mxu0 %v161
  %v486 = vpop.f32.mrb[0].mxu0
  %v487 = vadd.f32 %v438, %v486
  %v488 = vpop.f32.mrb[0].mxu0
  %v489 = vpop.f32.mrb[0].mxu0
  %v490 = vadd.f32 %v441, %v489
  %v491 = vpop.f32.mrb[0].mxu0
  %492 = vdwg.mxu0
  %493 = vmatprep.subr.bf16.mxu0 0
  %494 = vmatpush1.bf16.msra.mxu0 %v348
  %495 = vmatprep.subr.bf16.mxu0 0
  %496 = vmatpush1.bf16.msra.mxu0 %v349
  %497 = vmatprep.subr.bf16.mxu0 0
  %498 = vmatpush1.bf16.msra.mxu0 %v350
  %499 = vmatprep.subr.bf16.mxu0 0
  %500 = vmatpush1.bf16.msra.mxu0 %v351
  %501 = vmatprep.subr.bf16.mxu0 0
  %502 = vmatpush1.bf16.msra.mxu0 0
  %503 = vmatprep.subr.bf16.mxu0 0
  %504 = vmatpush1.bf16.msra.mxu0 0
  %505 = vmatprep.subr.bf16.mxu0 0
  %506 = vmatpush1.bf16.msra.mxu0 0
  %507 = vmatprep.subr.bf16.mxu0 0
  %508 = vmatpush1.bf16.msra.mxu0 0
  %509 = vmatprep.subr.bf16.mxu0 0
  %510 = vmatpush1.bf16.msra.mxu0 0
  %511 = vmatprep.subr.bf16.mxu0 0
  %512 = vmatpush1.bf16.msra.mxu0 0
  %513 = vmatprep.subr.bf16.mxu0 0
  %514 = vmatpush1.bf16.msra.mxu0 0
  %515 = vmatprep.subr.bf16.mxu0 0
  %516 = vmatpush1.bf16.msra.mxu0 0
  %517 = vmatprep.subr.bf16.mxu0 0
  %518 = vmatpush1.bf16.msra.mxu0 0
  %519 = vmatprep.subr.bf16.mxu0 0
  %520 = vmatpush1.bf16.msra.mxu0 0
  %521 = vmatprep.subr.bf16.mxu0 0
  %522 = vmatpush1.bf16.msra.mxu0 0
  %523 = vmatprep.subr.bf16.mxu0 0
  %524 = vmatpush1.bf16.msra.mxu0 0
  %525 = vmatprep.mubr.bf16.mxu0 0
  %526 = vmatmul.mubr.bf16.gmra.mrb[0].mxu0 %v390
  %v527 = vpop.f32.mrb[0].mxu0
  %v528 = vadd.f32 %v479, %v527
  %v529 = vpop.f32.mrb[0].mxu0
  %v530 = vpop.f32.mrb[0].mxu0
  %v531 = vadd.f32 %v482, %v530
  %v532 = vpop.f32.mrb[0].mxu0
  %533 = vmatprep.mubr.bf16.mxu0 0
  %534 = vmatmul.mubr.bf16.gmra.mrb[0].mxu0 %v393
  %v535 = vpop.f32.mrb[0].mxu0
  %v536 = vadd.f32 %v487, %v535
  %v537 = vpop.f32.mrb[0].mxu0
  %v538 = vpop.f32.mrb[0].mxu0
  %v539 = vadd.f32 %v490, %v538
  %v540 = vpop.f32.mrb[0].mxu0
  %541 = vdwg.mxu0
  %v542 = vadd.f32 %v34, %v528
  %v543 = vadd.f32 %v35, %v531
  %v544 = vadd.f32 %v36, %v536
  %v545 = vadd.f32 %v37, %v539
  %546 = vst.msk [vmem:[%s4] sm:$0xff] %vm388, %v542
  %547 = vst.msk [vmem:[%s4 + $0x8] sm:$0xff] %vm388, %v543
  %548 = vst.msk [vmem:[%s4 + $0x10] sm:$0xff] %vm388, %v544
  %549 = vst.msk [vmem:[%s4 + $0x18] sm:$0xff] %vm388, %v545
  // Predicated region
  $region22: #{feature_extraction_forward.66} parent=0 // pred_check
    %p550 = pneg %p18
  $region23: #{feature_extraction_forward.66} parent=0 // pred_check_branch
    %552 = sbr.rel (%p550) target = $region25
  $region24: #{feature_extraction_forward.66} parent=0 // pred_region
    %v553 = vld [vmem:[%s4] sm:$0xff]
    %v554 = vld [vmem:[%s4 + $0x8] sm:$0xff]
    %v555 = vld [vmem:[%s4 + $0x10] sm:$0xff]
    %v556 = vld [vmem:[%s4 + $0x18] sm:$0xff]
    %v557 = vld [vmem:[%s3] sm:$0xff]
    %v558 = vld [vmem:[%s3 + $0x8] sm:$0xff]
    %v559 = vld [vmem:[%s3 + $0x10] sm:$0xff]
    %v560 = vld [vmem:[%s3 + $0x18] sm:$0xff]
    %v561 = vadd.f32 %v553, %v557
    %v562 = vadd.f32 %v554, %v558
    %v563 = vadd.f32 %v555, %v559
    %v564 = vadd.f32 %v556, %v560
    %565 = vst.msk [vmem:[%s4] sm:$0xff] %vm388, %v561
    %566 = vst.msk [vmem:[%s4 + $0x8] sm:$0xff] %vm388, %v562
    %567 = vst.msk [vmem:[%s4 + $0x10] sm:$0xff] %vm388, %v563
    %568 = vst.msk [vmem:[%s4 + $0x18] sm:$0xff] %vm388, %v564
  $region25: #{feature_extraction_forward.66} parent=0 // pred_fallthru
    _
  // Predicated region
  $region26: #{feature_extraction_forward.66} parent=0 // pred_check
    _
  $region27: #{feature_extraction_forward.66} parent=0 // pred_check_branch
    %570 = sbr.rel (0) target = $region29
  $region28: #{feature_extraction_forward.66} parent=0 // pred_region
    _
  $region29: #{feature_extraction_forward.66} parent=0 // pred_fallthru
    _
  // Predicated region
  $region30: #{feature_extraction_forward.66} parent=0 // pred_check
    _
  $region31: #{feature_extraction_forward.66} parent=0 // pred_check_branch
    %572 = sbr.rel (0) target = $region33
  $region32: #{feature_extraction_forward.66} parent=0 // pred_region
    _
  $region33: #{feature_extraction_forward.66} parent=0 // pred_fallthru
    _

// kernel: feature_extraction_forward.97
$region0: #{feature_extraction_forward.97}
  #allocation0 [shape = 'u32[]', space=smem, size = 0x4, offset = 0x4, fixed_abs, tag = 'smem constant byte address 0x4 - core index']
  #allocation1 [shape = 'u32[144,128]{1,0:T(1,128)}', space=vmem, size = 0x12000, scoped, tag = 'internal scratch']
  %s0 = inlined_call_operand.vmem [shape: bf16[32,576], index: 0, kind: input, shape index: {}]
  %s1 = inlined_call_operand.vmem [shape: bf16[576,128], index: 1, kind: input, shape index: {}]
  %s2 = inlined_call_operand.vmem [shape: f32[1,128], index: 2, kind: input, shape index: {}]
  %s3 = inlined_call_operand.vmem [shape: f32[32,128], index: 3, kind: output, shape index: {}]
  %s4 = sld [smem:[#allocation0]]
  $region30: #{feature_extraction_forward.97} parent=0
    _
  %s6 = ssub.s32 1, %s4
  %s7 = scalar_select 0, %s6, %s4
  // Predicated region
  $region2: #{feature_extraction_forward.97} parent=0 // pred_check
    _
  $region3: #{feature_extraction_forward.97} parent=0 // pred_check_branch
    %9 = sbr.rel (0) target = $region5
  $region4: #{feature_extraction_forward.97} parent=0 // pred_region
    _
  $region5: #{feature_extraction_forward.97} parent=0 // pred_fallthru
    _
  // Predicated region
  $region6: #{feature_extraction_forward.97} parent=0 // pred_check
    _
  $region7: #{feature_extraction_forward.97} parent=0 // pred_check_branch
    %11 = sbr.rel (0) target = $region9
  $region8: #{feature_extraction_forward.97} parent=0 // pred_region
    _
  $region9: #{feature_extraction_forward.97} parent=0 // pred_fallthru
    _
  // Predicated region
  $region10: #{feature_extraction_forward.97} parent=0 // pred_check
    _
  $region11: #{feature_extraction_forward.97} parent=0 // pred_check_branch
    %13 = sbr.rel (0) target = $region13
  $region12: #{feature_extraction_forward.97} parent=0 // pred_region
    _
  $region13: #{feature_extraction_forward.97} parent=0 // pred_fallthru
    _
  %p15 = scmp.eq.s32.totalorder 0, 0
  // Predicated region
  $region14: #{feature_extraction_forward.97} parent=0 // pred_check
    %p16 = pneg %p15
  $region15: #{feature_extraction_forward.97} parent=0 // pred_check_branch
    %18 = sbr.rel (%p16) target = $region17
  $region16: #{feature_extraction_forward.97} parent=0 // pred_region
    %v19 = vld [vmem:[%s2] sm:$0x1]
    %v21 = vlaneseq
    %v22 = vshrl.u32 %v21, 7
    %v23 = vsub.s32 0, %v22
    %v24 = vrot.slane %v19, %v23
    %26 = vst [vmem:[%s3] sm:$0xff] %v24
    %27 = vst [vmem:[%s3 + $0x8] sm:$0xff] %v24
    %28 = vst [vmem:[%s3 + $0x10] sm:$0xff] %v24
    %29 = vst [vmem:[%s3 + $0x18] sm:$0xff] %v24
  $region17: #{feature_extraction_forward.97} parent=0 // pred_fallthru
    _
  %v30 = vld [vmem:[%s3] sm:$0xff]
  %v31 = vld [vmem:[%s3 + $0x8] sm:$0xff]
  %v32 = vld [vmem:[%s3 + $0x10] sm:$0xff]
  %v33 = vld [vmem:[%s3 + $0x18] sm:$0xff]
  %v34 = vld [vmem:[%s0] sm:$0xff]
  %v35 = vld [vmem:[%s0 + $0x8] sm:$0xff]
  %v36 = vld [vmem:[%s0 + $0x10] sm:$0xf]
  %v37 = vld [vmem:[%s0 + $0x14] sm:$0xff]
  %v38 = vld [vmem:[%s0 + $0x1c] sm:$0xff]
  %v39 = vld [vmem:[%s0 + $0x24] sm:$0xf]
  %v40 = vld [vmem:[%s0 + $0x28] sm:$0xff]
  %v41 = vld [vmem:[%s0 + $0x30] sm:$0xff]
  %v42 = vld [vmem:[%s0 + $0x38] sm:$0xf]
  %v43 = vld [vmem:[%s0 + $0x3c] sm:$0xff]
  %v44 = vld [vmem:[%s0 + $0x44] sm:$0xff]
  %v45 = vld [vmem:[%s0 + $0x4c] sm:$0xf]
  %v46 = vld [vmem:[%s1] sm:$0xf]
  %v47 = vld [vmem:[%s1 + $0x4] sm:$0xf]
  %v48 = vld [vmem:[%s1 + $0x8] sm:$0xf]
  %v49 = vld [vmem:[%s1 + $0xc] sm:$0xf]
  %v50 = vld [vmem:[%s1 + $0x10] sm:$0xf]
  %v51 = vld [vmem:[%s1 + $0x14] sm:$0xf]
  %v52 = vld [vmem:[%s1 + $0x18] sm:$0xf]
  %v53 = vld [vmem:[%s1 + $0x1c] sm:$0xf]
  %v54 = vld [vmem:[%s1 + $0x20] sm:$0xf]
  %v55 = vld [vmem:[%s1 + $0x24] sm:$0xf]
  %v56 = vld [vmem:[%s1 + $0x28] sm:$0xf]
  %v57 = vld [vmem:[%s1 + $0x2c] sm:$0xf]
  %v58 = vld [vmem:[%s1 + $0x30] sm:$0xf]
  %v59 = vld [vmem:[%s1 + $0x34] sm:$0xf]
  %v60 = vld [vmem:[%s1 + $0x38] sm:$0xf]
  %v61 = vld [vmem:[%s1 + $0x3c] sm:$0xf]
  %v62 = vld [vmem:[%s1 + $0x40] sm:$0xf]
  %v63 = vld [vmem:[%s1 + $0x44] sm:$0xf]
  %v64 = vld [vmem:[%s1 + $0x48] sm:$0xf]
  %v65 = vld [vmem:[%s1 + $0x4c] sm:$0xf]
  %v66 = vld [vmem:[%s1 + $0x50] sm:$0xf]
  %v67 = vld [vmem:[%s1 + $0x54] sm:$0xf]
  %v68 = vld [vmem:[%s1 + $0x58] sm:$0xf]
  %v69 = vld [vmem:[%s1 + $0x5c] sm:$0xf]
  %v70 = vld [vmem:[%s1 + $0x60] sm:$0xf]
  %v71 = vld [vmem:[%s1 + $0x64] sm:$0xf]
  %v72 = vld [vmem:[%s1 + $0x68] sm:$0xf]
  %v73 = vld [vmem:[%s1 + $0x6c] sm:$0xf]
  %v74 = vld [vmem:[%s1 + $0x70] sm:$0xf]
  %v75 = vld [vmem:[%s1 + $0x74] sm:$0xf]
  %v76 = vld [vmem:[%s1 + $0x78] sm:$0xf]
  %v77 = vld [vmem:[%s1 + $0x7c] sm:$0xf]
  %v78 = vld [vmem:[%s1 + $0x80] sm:$0xf]
  %v79 = vld [vmem:[%s1 + $0x84] sm:$0xf]
  %v80 = vld [vmem:[%s1 + $0x88] sm:$0xf]
  %v81 = vld [vmem:[%s1 + $0x8c] sm:$0xf]
  %v82 = vld [vmem:[%s1 + $0x90] sm:$0xf]
  %v83 = vld [vmem:[%s1 + $0x94] sm:$0xf]
  %v84 = vld [vmem:[%s1 + $0x98] sm:$0xf]
  %v85 = vld [vmem:[%s1 + $0x9c] sm:$0xf]
  %v86 = vld [vmem:[%s1 + $0xa0] sm:$0xf]
  %v87 = vld [vmem:[%s1 + $0xa4] sm:$0xf]
  %v88 = vld [vmem:[%s1 + $0xa8] sm:$0xf]
  %v89 = vld [vmem:[%s1 + $0xac] sm:$0xf]
  %v90 = vld [vmem:[%s1 + $0xb0] sm:$0xf]
  %v91 = vld [vmem:[%s1 + $0xb4] sm:$0xf]
  %v92 = vld [vmem:[%s1 + $0xb8] sm:$0xf]
  %v93 = vld [vmem:[%s1 + $0xbc] sm:$0xf]
  %v94 = vld [vmem:[%s1 + $0xc0] sm:$0xf]
  %v95 = vld [vmem:[%s1 + $0xc4] sm:$0xf]
  %v96 = vld [vmem:[%s1 + $0xc8] sm:$0xf]
  %v97 = vld [vmem:[%s1 + $0xcc] sm:$0xf]
  %v98 = vld [vmem:[%s1 + $0xd0] sm:$0xf]
  %v99 = vld [vmem:[%s1 + $0xd4] sm:$0xf]
  %v100 = vld [vmem:[%s1 + $0xd8] sm:$0xf]
  %v101 = vld [vmem:[%s1 + $0xdc] sm:$0xf]
  %v102 = vld [vmem:[%s1 + $0xe0] sm:$0xf]
  %v103 = vld [vmem:[%s1 + $0xe4] sm:$0xf]
  %v104 = vld [vmem:[%s1 + $0xe8] sm:$0xf]
  %v105 = vld [vmem:[%s1 + $0xec] sm:$0xf]
  %v106 = vld [vmem:[%s1 + $0xf0] sm:$0xf]
  %v107 = vld [vmem:[%s1 + $0xf4] sm:$0xf]
  %v108 = vld [vmem:[%s1 + $0xf8] sm:$0xf]
  %v109 = vld [vmem:[%s1 + $0xfc] sm:$0xf]
  %v110 = vld [vmem:[%s1 + $0x100] sm:$0xf]
  %v111 = vld [vmem:[%s1 + $0x104] sm:$0xf]
  %v112 = vld [vmem:[%s1 + $0x108] sm:$0xf]
  %v113 = vld [vmem:[%s1 + $0x10c] sm:$0xf]
  %v114 = vld [vmem:[%s1 + $0x110] sm:$0xf]
  %v115 = vld [vmem:[%s1 + $0x114] sm:$0xf]
  %v116 = vld [vmem:[%s1 + $0x118] sm:$0xf]
  %v117 = vld [vmem:[%s1 + $0x11c] sm:$0xf]
  %v130 = vunpack.c.l.b16 %v34
  %v131 = vunpack.c.h.b16 %v34
  %v132 = vunpack.c.l.b16 %v35
  %v133 = vunpack.c.h.b16 %v35
  %v134 = vunpack.c.l.b16 %v36
  %v135 = vunpack.c.l.b16 %v37
  %v136 = vunpack.c.h.b16 %v37
  %v137 = vunpack.c.l.b16 %v38
  %v138 = vunpack.c.h.b16 %v38
  %v139 = vunpack.c.l.b16 %v39
  %v140 = vunpack.c.l.b16 %v40
  %v141 = vunpack.c.h.b16 %v40
  %v142 = vunpack.c.l.b16 %v41
  %v143 = vunpack.c.h.b16 %v41
  %v144 = vunpack.c.l.b16 %v42
  %v145 = vunpack.c.l.b16 %v43
  %v146 = vunpack.c.h.b16 %v43
  %v147 = vunpack.c.l.b16 %v44
  %v148 = vunpack.c.h.b16 %v44
  %v149 = vunpack.c.l.b16 %v45
  %v150 = vpack.c.b16 %v135, %v130
  %v151 = vpack.c.b16 %v136, %v131
  %v152 = vpack.c.b16 %v137, %v132
  %v153 = vpack.c.b16 %v138, %v133
  %v154 = vpack.c.b16 %v139, %v134
  %v155 = vpack.c.b16 %v145, %v140
  %v156 = vpack.c.b16 %v146, %v141
  %v157 = vpack.c.b16 %v147, %v142
  %v158 = vpack.c.b16 %v148, %v143
  %v159 = vpack.c.b16 %v149, %v144
  %v240 = vunpack.c.l.b16 %v46
  %v241 = vunpack.c.l.b16 %v47
  %v242 = vunpack.c.l.b16 %v48
  %v243 = vunpack.c.l.b16 %v49
  %v244 = vunpack.c.l.b16 %v50
  %v245 = vunpack.c.l.b16 %v51
  %v246 = vunpack.c.l.b16 %v52
  %v247 = vunpack.c.l.b16 %v53
  %v248 = vunpack.c.l.b16 %v54
  %v249 = vunpack.c.l.b16 %v55
  %v250 = vunpack.c.l.b16 %v56
  %v251 = vunpack.c.l.b16 %v57
  %v252 = vunpack.c.l.b16 %v58
  %v253 = vunpack.c.l.b16 %v59
  %v254 = vunpack.c.l.b16 %v60
  %v255 = vunpack.c.l.b16 %v61
  %v256 = vunpack.c.l.b16 %v62
  %v257 = vunpack.c.l.b16 %v63
  %v258 = vunpack.c.l.b16 %v64
  %v259 = vunpack.c.l.b16 %v65
  %v260 = vunpack.c.l.b16 %v66
  %v261 = vunpack.c.l.b16 %v67
  %v262 = vunpack.c.l.b16 %v68
  %v263 = vunpack.c.l.b16 %v69
  %v264 = vunpack.c.l.b16 %v70
  %v265 = vunpack.c.l.b16 %v71
  %v266 = vunpack.c.l.b16 %v72
  %v267 = vunpack.c.l.b16 %v73
  %v268 = vunpack.c.l.b16 %v74
  %v269 = vunpack.c.l.b16 %v75
  %v270 = vunpack.c.l.b16 %v76
  %v271 = vunpack.c.l.b16 %v77
  %v272 = vunpack.c.l.b16 %v78
  %v273 = vunpack.c.l.b16 %v79
  %v274 = vunpack.c.l.b16 %v80
  %v275 = vunpack.c.l.b16 %v81
  %v276 = vunpack.c.l.b16 %v82
  %v277 = vunpack.c.l.b16 %v83
  %v278 = vunpack.c.l.b16 %v84
  %v279 = vunpack.c.l.b16 %v85
  %v280 = vunpack.c.l.b16 %v86
  %v281 = vunpack.c.l.b16 %v87
  %v282 = vunpack.c.l.b16 %v88
  %v283 = vunpack.c.l.b16 %v89
  %v284 = vunpack.c.l.b16 %v90
  %v285 = vunpack.c.l.b16 %v91
  %v286 = vunpack.c.l.b16 %v92
  %v287 = vunpack.c.l.b16 %v93
  %v288 = vunpack.c.l.b16 %v94
  %v289 = vunpack.c.l.b16 %v95
  %v290 = vunpack.c.l.b16 %v96
  %v291 = vunpack.c.l.b16 %v97
  %v292 = vunpack.c.l.b16 %v98
  %v293 = vunpack.c.l.b16 %v99
  %v294 = vunpack.c.l.b16 %v100
  %v295 = vunpack.c.l.b16 %v101
  %v296 = vunpack.c.l.b16 %v102
  %v297 = vunpack.c.l.b16 %v103
  %v298 = vunpack.c.l.b16 %v104
  %v299 = vunpack.c.l.b16 %v105
  %v300 = vunpack.c.l.b16 %v106
  %v301 = vunpack.c.l.b16 %v107
  %v302 = vunpack.c.l.b16 %v108
  %v303 = vunpack.c.l.b16 %v109
  %v304 = vunpack.c.l.b16 %v110
  %v305 = vunpack.c.l.b16 %v111
  %v306 = vunpack.c.l.b16 %v112
  %v307 = vunpack.c.l.b16 %v113
  %v308 = vunpack.c.l.b16 %v114
  %v309 = vunpack.c.l.b16 %v115
  %v310 = vunpack.c.l.b16 %v116
  %v311 = vunpack.c.l.b16 %v117
  %v312 = vpack.c.b16 %v241, %v240
  %v313 = vpack.c.b16 %v243, %v242
  %v314 = vpack.c.b16 %v245, %v244
  %v315 = vpack.c.b16 %v247, %v246
  %v316 = vpack.c.b16 %v249, %v248
  %v317 = vpack.c.b16 %v251, %v250
  %v318 = vpack.c.b16 %v253, %v252
  %v319 = vpack.c.b16 %v255, %v254
  %v320 = vpack.c.b16 %v257, %v256
  %v321 = vpack.c.b16 %v259, %v258
  %v322 = vpack.c.b16 %v261, %v260
  %v323 = vpack.c.b16 %v263, %v262
  %v324 = vpack.c.b16 %v265, %v264
  %v325 = vpack.c.b16 %v267, %v266
  %v326 = vpack.c.b16 %v269, %v268
  %v327 = vpack.c.b16 %v271, %v270
  %v328 = vpack.c.b16 %v273, %v272
  %v329 = vpack.c.b16 %v275, %v274
  %v330 = vpack.c.b16 %v277, %v276
  %v331 = vpack.c.b16 %v279, %v278
  %v332 = vpack.c.b16 %v281, %v280
  %v333 = vpack.c.b16 %v283, %v282
  %v334 = vpack.c.b16 %v285, %v284
  %v335 = vpack.c.b16 %v287, %v286
  %v336 = vpack.c.b16 %v289, %v288
  %v337 = vpack.c.b16 %v291, %v290
  %v338 = vpack.c.b16 %v293, %v292
  %v339 = vpack.c.b16 %v295, %v294
  %v340 = vpack.c.b16 %v297, %v296
  %v341 = vpack.c.b16 %v299, %v298
  %v342 = vpack.c.b16 %v301, %v300
  %v343 = vpack.c.b16 %v303, %v302
  %v344 = vpack.c.b16 %v305, %v304
  %v345 = vpack.c.b16 %v307, %v306
  %v346 = vpack.c.b16 %v309, %v308
  %v347 = vpack.c.b16 %v311, %v310
  %vm384 = vcmask 523264
  %v386 = vsel %vm384, %v154, 0
  %v389 = vsel %vm384, %v159, 0
  %391 = vmatprep.subr.bf16.mxu0 0
  %392 = vmatpush1.bf16.msra.mxu0 %v312
  %393 = vmatprep.subr.bf16.mxu0 0
  %394 = vmatpush1.bf16.msra.mxu0 %v313
  %395 = vmatprep.subr.bf16.mxu0 0
  %396 = vmatpush1.bf16.msra.mxu0 %v314
  %397 = vmatprep.subr.bf16.mxu0 0
  %398 = vmatpush1.bf16.msra.mxu0 %v315
  %399 = vmatprep.subr.bf16.mxu0 0
  %400 = vmatpush1.bf16.msra.mxu0 %v316
  %401 = vmatprep.subr.bf16.mxu0 0
  %402 = vmatpush1.bf16.msra.mxu0 %v317
  %403 = vmatprep.subr.bf16.mxu0 0
  %404 = vmatpush1.bf16.msra.mxu0 %v318
  %405 = vmatprep.subr.bf16.mxu0 0
  %406 = vmatpush1.bf16.msra.mxu0 %v319
  %407 = vmatprep.subr.bf16.mxu0 0
  %408 = vmatpush1.bf16.msra.mxu0 %v320
  %409 = vmatprep.subr.bf16.mxu0 0
  %410 = vmatpush1.bf16.msra.mxu0 %v321
  %411 = vmatprep.subr.bf16.mxu0 0
  %412 = vmatpush1.bf16.msra.mxu0 %v322
  %413 = vmatprep.subr.bf16.mxu0 0
  %414 = vmatpush1.bf16.msra.mxu0 %v323
  %415 = vmatprep.subr.bf16.mxu0 0
  %416 = vmatpush1.bf16.msra.mxu0 %v324
  %417 = vmatprep.subr.bf16.mxu0 0
  %418 = vmatpush1.bf16.msra.mxu0 %v325
  %419 = vmatprep.subr.bf16.mxu0 0
  %420 = vmatpush1.bf16.msra.mxu0 %v326
  %421 = vmatprep.subr.bf16.mxu0 0
  %422 = vmatpush1.bf16.msra.mxu0 %v327
  %423 = vmatprep.mubr.bf16.mxu0 %v151
  %424 = vmatmul.mubr.bf16.gmra.mrb[0].mxu0 %v150
  %v425 = vpop.f32.mrb[0].mxu0
  %v426 = vadd.f32 0.0, %v425
  %v427 = vpop.f32.mrb[0].mxu0
  %v428 = vpop.f32.mrb[0].mxu0
  %v429 = vadd.f32 0.0, %v428
  %v430 = vpop.f32.mrb[0].mxu0
  %431 = vmatprep.mubr.bf16.mxu0 %v156
  %432 = vmatmul.mubr.bf16.gmra.mrb[0].mxu0 %v155
  %v433 = vpop.f32.mrb[0].mxu0
  %v434 = vadd.f32 0.0, %v433
  %v435 = vpop.f32.mrb[0].mxu0
  %v436 = vpop.f32.mrb[0].mxu0
  %v437 = vadd.f32 0.0, %v436
  %v438 = vpop.f32.mrb[0].mxu0
  %439 = vdwg.mxu0
  %440 = vmatprep.subr.bf16.mxu0 0
  %441 = vmatpush1.bf16.msra.mxu0 %v328
  %442 = vmatprep.subr.bf16.mxu0 0
  %443 = vmatpush1.bf16.msra.mxu0 %v329
  %444 = vmatprep.subr.bf16.mxu0 0
  %445 = vmatpush1.bf16.msra.mxu0 %v330
  %446 = vmatprep.subr.bf16.mxu0 0
  %447 = vmatpush1.bf16.msra.mxu0 %v331
  %448 = vmatprep.subr.bf16.mxu0 0
  %449 = vmatpush1.bf16.msra.mxu0 %v332
  %450 = vmatprep.subr.bf16.mxu0 0
  %451 = vmatpush1.bf16.msra.mxu0 %v333
  %452 = vmatprep.subr.bf16.mxu0 0
  %453 = vmatpush1.bf16.msra.mxu0 %v334
  %454 = vmatprep.subr.bf16.mxu0 0
  %455 = vmatpush1.bf16.msra.mxu0 %v335
  %456 = vmatprep.subr.bf16.mxu0 0
  %457 = vmatpush1.bf16.msra.mxu0 %v336
  %458 = vmatprep.subr.bf16.mxu0 0
  %459 = vmatpush1.bf16.msra.mxu0 %v337
  %460 = vmatprep.subr.bf16.mxu0 0
  %461 = vmatpush1.bf16.msra.mxu0 %v338
  %462 = vmatprep.subr.bf16.mxu0 0
  %463 = vmatpush1.bf16.msra.mxu0 %v339
  %464 = vmatprep.subr.bf16.mxu0 0
  %465 = vmatpush1.bf16.msra.mxu0 %v340
  %466 = vmatprep.subr.bf16.mxu0 0
  %467 = vmatpush1.bf16.msra.mxu0 %v341
  %468 = vmatprep.subr.bf16.mxu0 0
  %469 = vmatpush1.bf16.msra.mxu0 %v342
  %470 = vmatprep.subr.bf16.mxu0 0
  %471 = vmatpush1.bf16.msra.mxu0 %v343
  %472 = vmatprep.mubr.bf16.mxu0 %v153
  %473 = vmatmul.mubr.bf16.gmra.mrb[0].mxu0 %v152
  %v474 = vpop.f32.mrb[0].mxu0
  %v475 = vadd.f32 %v426, %v474
  %v476 = vpop.f32.mrb[0].mxu0
  %v477 = vpop.f32.mrb[0].mxu0
  %v478 = vadd.f32 %v429, %v477
  %v479 = vpop.f32.mrb[0].mxu0
  %480 = vmatprep.mubr.bf16.mxu0 %v158
  %481 = vmatmul.mubr.bf16.gmra.mrb[0].mxu0 %v157
  %v482 = vpop.f32.mrb[0].mxu0
  %v483 = vadd.f32 %v434, %v482
  %v484 = vpop.f32.mrb[0].mxu0
  %v485 = vpop.f32.mrb[0].mxu0
  %v486 = vadd.f32 %v437, %v485
  %v487 = vpop.f32.mrb[0].mxu0
  %488 = vdwg.mxu0
  %489 = vmatprep.subr.bf16.mxu0 0
  %490 = vmatpush1.bf16.msra.mxu0 %v344
  %491 = vmatprep.subr.bf16.mxu0 0
  %492 = vmatpush1.bf16.msra.mxu0 %v345
  %493 = vmatprep.subr.bf16.mxu0 0
  %494 = vmatpush1.bf16.msra.mxu0 %v346
  %495 = vmatprep.subr.bf16.mxu0 0
  %496 = vmatpush1.bf16.msra.mxu0 %v347
  %497 = vmatprep.subr.bf16.mxu0 0
  %498 = vmatpush1.bf16.msra.mxu0 0
  %499 = vmatprep.subr.bf16.mxu0 0
  %500 = vmatpush1.bf16.msra.mxu0 0
  %501 = vmatprep.subr.bf16.mxu0 0
  %502 = vmatpush1.bf16.msra.mxu0 0
  %503 = vmatprep.subr.bf16.mxu0 0
  %504 = vmatpush1.bf16.msra.mxu0 0
  %505 = vmatprep.subr.bf16.mxu0 0
  %506 = vmatpush1.bf16.msra.mxu0 0
  %507 = vmatprep.subr.bf16.mxu0 0
  %508 = vmatpush1.bf16.msra.mxu0 0
  %509 = vmatprep.subr.bf16.mxu0 0
  %510 = vmatpush1.bf16.msra.mxu0 0
  %511 = vmatprep.subr.bf16.mxu0 0
  %512 = vmatpush1.bf16.msra.mxu0 0
  %513 = vmatprep.subr.bf16.mxu0 0
  %514 = vmatpush1.bf16.msra.mxu0 0
  %515 = vmatprep.subr.bf16.mxu0 0
  %516 = vmatpush1.bf16.msra.mxu0 0
  %517 = vmatprep.subr.bf16.mxu0 0
  %518 = vmatpush1.bf16.msra.mxu0 0
  %519 = vmatprep.subr.bf16.mxu0 0
  %520 = vmatpush1.bf16.msra.mxu0 0
  %521 = vmatprep.mubr.bf16.mxu0 0
  %522 = vmatmul.mubr.bf16.gmra.mrb[0].mxu0 %v386
  %v523 = vpop.f32.mrb[0].mxu0
  %v524 = vadd.f32 %v475, %v523
  %v525 = vpop.f32.mrb[0].mxu0
  %v526 = vpop.f32.mrb[0].mxu0
  %v527 = vadd.f32 %v478, %v526
  %v528 = vpop.f32.mrb[0].mxu0
  %529 = vmatprep.mubr.bf16.mxu0 0
  %530 = vmatmul.mubr.bf16.gmra.mrb[0].mxu0 %v389
  %v531 = vpop.f32.mrb[0].mxu0
  %v532 = vadd.f32 %v483, %v531
  %v533 = vpop.f32.mrb[0].mxu0
  %v534 = vpop.f32.mrb[0].mxu0
  %v535 = vadd.f32 %v486, %v534
  %v536 = vpop.f32.mrb[0].mxu0
  %537 = vdwg.mxu0
  %v538 = vadd.f32 %v30, %v524
  %v539 = vadd.f32 %v31, %v527
  %v540 = vadd.f32 %v32, %v532
  %v541 = vadd.f32 %v33, %v535
  %542 = vst [vmem:[%s3] sm:$0xff] %v538
  %543 = vst [vmem:[%s3 + $0x8] sm:$0xff] %v539
  %544 = vst [vmem:[%s3 + $0x10] sm:$0xff] %v540
  %545 = vst [vmem:[%s3 + $0x18] sm:$0xff] %v541
  // Predicated region
  $region18: #{feature_extraction_forward.97} parent=0 // pred_check
    %p546 = pneg %p15
  $region19: #{feature_extraction_forward.97} parent=0 // pred_check_branch
    %548 = sbr.rel (%p546) target = $region21
  $region20: #{feature_extraction_forward.97} parent=0 // pred_region
    %v549 = vld [vmem:[%s3] sm:$0xff]
    %v550 = vld [vmem:[%s3 + $0x8] sm:$0xff]
    %v551 = vld [vmem:[%s3 + $0x10] sm:$0xff]
    %v552 = vld [vmem:[%s3 + $0x18] sm:$0xff]
    %v553 = vmax.f32 %v549, 0.0
    %v554 = vmax.f32 %v550, 0.0
    %v555 = vmax.f32 %v551, 0.0
    %v556 = vmax.f32 %v552, 0.0
    %557 = vst [vmem:[%s3] sm:$0xff] %v553
    %558 = vst [vmem:[%s3 + $0x8] sm:$0xff] %v554
    %559 = vst [vmem:[%s3 + $0x10] sm:$0xff] %v555
    %560 = vst [vmem:[%s3 + $0x18] sm:$0xff] %v556
  $region21: #{feature_extraction_forward.97} parent=0 // pred_fallthru
    _
  // Predicated region
  $region22: #{feature_extraction_forward.97} parent=0 // pred_check
    _
  $region23: #{feature_extraction_forward.97} parent=0 // pred_check_branch
    %562 = sbr.rel (0) target = $region25
  $region24: #{feature_extraction_forward.97} parent=0 // pred_region
    _
  $region25: #{feature_extraction_forward.97} parent=0 // pred_fallthru
    _
  // Predicated region
  $region26: #{feature_extraction_forward.97} parent=0 // pred_check
    _
  $region27: #{feature_extraction_forward.97} parent=0 // pred_check_branch
    %564 = sbr.rel (0) target = $region29
  $region28: #{feature_extraction_forward.97} parent=0 // pred_region
    _
  $region29: #{feature_extraction_forward.97} parent=0 // pred_fallthru
    _

// kernel: feature_extraction_forward.98
$region0: #{feature_extraction_forward.98}
  #allocation0 [shape = 'u32[]', space=smem, size = 0x4, offset = 0x4, fixed_abs, tag = 'smem constant byte address 0x4 - core index']
  #allocation1 [shape = 'u32[144,128]{1,0:T(1,128)}', space=vmem, size = 0x12000, scoped, tag = 'internal scratch']
  %s0 = inlined_call_operand.vmem [shape: bf16[32,64], index: 0, kind: input, shape index: {}]
  %s1 = inlined_call_operand.vmem [shape: bf16[64,128], index: 1, kind: input, shape index: {}]
  %s2 = inlined_call_operand.vmem [shape: f32[1,128], index: 2, kind: input, shape index: {}]
  %s3 = inlined_call_operand.vmem [shape: f32[32,128], index: 3, kind: output, shape index: {}]
  %s4 = sld [smem:[#allocation0]]
  $region26: #{feature_extraction_forward.98} parent=0
    _
  %s6 = ssub.s32 1, %s4
  %s7 = scalar_select 0, %s6, %s4
  // Predicated region
  $region2: #{feature_extraction_forward.98} parent=0 // pred_check
    _
  $region3: #{feature_extraction_forward.98} parent=0 // pred_check_branch
    %9 = sbr.rel (0) target = $region5
  $region4: #{feature_extraction_forward.98} parent=0 // pred_region
    _
  $region5: #{feature_extraction_forward.98} parent=0 // pred_fallthru
    _
  // Predicated region
  $region6: #{feature_extraction_forward.98} parent=0 // pred_check
    _
  $region7: #{feature_extraction_forward.98} parent=0 // pred_check_branch
    %11 = sbr.rel (0) target = $region9
  $region8: #{feature_extraction_forward.98} parent=0 // pred_region
    _
  $region9: #{feature_extraction_forward.98} parent=0 // pred_fallthru
    _
  // Predicated region
  $region10: #{feature_extraction_forward.98} parent=0 // pred_check
    _
  $region11: #{feature_extraction_forward.98} parent=0 // pred_check_branch
    %13 = sbr.rel (0) target = $region13
  $region12: #{feature_extraction_forward.98} parent=0 // pred_region
    _
  $region13: #{feature_extraction_forward.98} parent=0 // pred_fallthru
    _
  %p15 = scmp.eq.s32.totalorder 0, 0
  // Predicated region
  $region14: #{feature_extraction_forward.98} parent=0 // pred_check
    %p16 = pneg %p15
  $region15: #{feature_extraction_forward.98} parent=0 // pred_check_branch
    %18 = sbr.rel (%p16) target = $region17
  $region16: #{feature_extraction_forward.98} parent=0 // pred_region
    %v19 = vld [vmem:[%s2] sm:$0x1]
    %v21 = vlaneseq
    %v22 = vshrl.u32 %v21, 7
    %v23 = vsub.s32 0, %v22
    %v24 = vrot.slane %v19, %v23
    %26 = vst [vmem:[%s3] sm:$0xff] %v24
    %27 = vst [vmem:[%s3 + $0x8] sm:$0xff] %v24
    %28 = vst [vmem:[%s3 + $0x10] sm:$0xff] %v24
    %29 = vst [vmem:[%s3 + $0x18] sm:$0xff] %v24
  $region17: #{feature_extraction_forward.98} parent=0 // pred_fallthru
    _
  %v30 = vld [vmem:[%s3] sm:$0xff]
  %v31 = vld [vmem:[%s3 + $0x8] sm:$0xff]
  %v32 = vld [vmem:[%s3 + $0x10] sm:$0xff]
  %v33 = vld [vmem:[%s3 + $0x18] sm:$0xff]
  %v34 = vld [vmem:[%s0] sm:$0xf]
  %v35 = vld [vmem:[%s0 + $0x4] sm:$0xf]
  %v36 = vld [vmem:[%s0 + $0x8] sm:$0xf]
  %v37 = vld [vmem:[%s0 + $0xc] sm:$0xf]
  %v38 = vld [vmem:[%s1] sm:$0xf]
  %v39 = vld [vmem:[%s1 + $0x4] sm:$0xf]
  %v40 = vld [vmem:[%s1 + $0x8] sm:$0xf]
  %v41 = vld [vmem:[%s1 + $0xc] sm:$0xf]
  %v42 = vld [vmem:[%s1 + $0x10] sm:$0xf]
  %v43 = vld [vmem:[%s1 + $0x14] sm:$0xf]
  %v44 = vld [vmem:[%s1 + $0x18] sm:$0xf]
  %v45 = vld [vmem:[%s1 + $0x1c] sm:$0xf]
  %v50 = vunpack.c.l.b16 %v34
  %v51 = vunpack.c.l.b16 %v35
  %v52 = vunpack.c.l.b16 %v36
  %v53 = vunpack.c.l.b16 %v37
  %v54 = vpack.c.b16 %v51, %v50
  %v55 = vpack.c.b16 %v53, %v52
  %v64 = vunpack.c.l.b16 %v38
  %v65 = vunpack.c.l.b16 %v39
  %v66 = vunpack.c.l.b16 %v40
  %v67 = vunpack.c.l.b16 %v41
  %v68 = vunpack.c.l.b16 %v42
  %v69 = vunpack.c.l.b16 %v43
  %v70 = vunpack.c.l.b16 %v44
  %v71 = vunpack.c.l.b16 %v45
  %v72 = vpack.c.b16 %v65, %v64
  %v73 = vpack.c.b16 %v67, %v66
  %v74 = vpack.c.b16 %v69, %v68
  %v75 = vpack.c.b16 %v71, %v70
  %vm80 = vcmask 523264
  %v82 = vsel %vm80, %v54, 0
  %v85 = vsel %vm80, %v55, 0
  %87 = vmatprep.subr.bf16.mxu0 0
  %88 = vmatpush1.bf16.msra.mxu0 %v72
  %89 = vmatprep.subr.bf16.mxu0 0
  %90 = vmatpush1.bf16.msra.mxu0 %v73
  %91 = vmatprep.subr.bf16.mxu0 0
  %92 = vmatpush1.bf16.msra.mxu0 %v74
  %93 = vmatprep.subr.bf16.mxu0 0
  %94 = vmatpush1.bf16.msra.mxu0 %v75
  %95 = vmatprep.subr.bf16.mxu0 0
  %96 = vmatpush1.bf16.msra.mxu0 0
  %97 = vmatprep.subr.bf16.mxu0 0
  %98 = vmatpush1.bf16.msra.mxu0 0
  %99 = vmatprep.subr.bf16.mxu0 0
  %100 = vmatpush1.bf16.msra.mxu0 0
  %101 = vmatprep.subr.bf16.mxu0 0
  %102 = vmatpush1.bf16.msra.mxu0 0
  %103 = vmatprep.subr.bf16.mxu0 0
  %104 = vmatpush1.bf16.msra.mxu0 0
  %105 = vmatprep.subr.bf16.mxu0 0
  %106 = vmatpush1.bf16.msra.mxu0 0
  %107 = vmatprep.subr.bf16.mxu0 0
  %108 = vmatpush1.bf16.msra.mxu0 0
  %109 = vmatprep.subr.bf16.mxu0 0
  %110 = vmatpush1.bf16.msra.mxu0 0
  %111 = vmatprep.subr.bf16.mxu0 0
  %112 = vmatpush1.bf16.msra.mxu0 0
  %113 = vmatprep.subr.bf16.mxu0 0
  %114 = vmatpush1.bf16.msra.mxu0 0
  %115 = vmatprep.subr.bf16.mxu0 0
  %116 = vmatpush1.bf16.msra.mxu0 0
  %117 = vmatprep.subr.bf16.mxu0 0
  %118 = vmatpush1.bf16.msra.mxu0 0
  %119 = vmatprep.mubr.bf16.mxu0 0
  %120 = vmatmul.mubr.bf16.gmra.mrb[0].mxu0 %v82
  %v121 = vpop.f32.mrb[0].mxu0
  %v122 = vadd.f32 0.0, %v121
  %v123 = vpop.f32.mrb[0].mxu0
  %v124 = vpop.f32.mrb[0].mxu0
  %v125 = vadd.f32 0.0, %v124
  %v126 = vpop.f32.mrb[0].mxu0
  %127 = vmatprep.mubr.bf16.mxu0 0
  %128 = vmatmul.mubr.bf16.gmra.mrb[0].mxu0 %v85
  %v129 = vpop.f32.mrb[0].mxu0
  %v130 = vadd.f32 0.0, %v129
  %v131 = vpop.f32.mrb[0].mxu0
  %v132 = vpop.f32.mrb[0].mxu0
  %v133 = vadd.f32 0.0, %v132
  %v134 = vpop.f32.mrb[0].mxu0
  %135 = vdwg.mxu0
  %v136 = vadd.f32 %v30, %v122
  %v137 = vadd.f32 %v31, %v125
  %v138 = vadd.f32 %v32, %v130
  %v139 = vadd.f32 %v33, %v133
  %140 = vst [vmem:[%s3] sm:$0xff] %v136
  %141 = vst [vmem:[%s3 + $0x8] sm:$0xff] %v137
  %142 = vst [vmem:[%s3 + $0x10] sm:$0xff] %v138
  %143 = vst [vmem:[%s3 + $0x18] sm:$0xff] %v139
  // Predicated region
  $region18: #{feature_extraction_forward.98} parent=0 // pred_check
    _
  $region19: #{feature_extraction_forward.98} parent=0 // pred_check_branch
    %145 = sbr.rel (0) target = $region21
  $region20: #{feature_extraction_forward.98} parent=0 // pred_region
    _
  $region21: #{feature_extraction_forward.98} parent=0 // pred_fallthru
    _
  // Predicated region
  $region22: #{feature_extraction_forward.98} parent=0 // pred_check
    _
  $region23: #{feature_extraction_forward.98} parent=0 // pred_check_branch
    %147 = sbr.rel (0) target = $region25
  $region24: #{feature_extraction_forward.98} parent=0 // pred_region
    _
  $region25: #{feature_extraction_forward.98} parent=0 // pred_fallthru
    _

// kernel: feature_extraction_forward.99
$region0: #{feature_extraction_forward.99}
  #allocation0 [shape = 'u32[]', space=smem, size = 0x4, offset = 0x4, fixed_abs, tag = 'smem constant byte address 0x4 - core index']
  #allocation1 [shape = 'u32[144,128]{1,0:T(1,128)}', space=vmem, size = 0x12000, scoped, tag = 'internal scratch']
  %s0 = inlined_call_operand.vmem [shape: bf16[32,1152], index: 0, kind: input, shape index: {}]
  %s1 = inlined_call_operand.vmem [shape: bf16[1152,128], index: 1, kind: input, shape index: {}]
  %s2 = inlined_call_operand.vmem [shape: f32[1,128], index: 2, kind: input, shape index: {}]
  %s3 = inlined_call_operand.vmem [shape: f32[32,128], index: 3, kind: input, shape index: {}]
  %s4 = inlined_call_operand.vmem [shape: f32[32,128], index: 4, kind: output, shape index: {}]
  %s5 = sld [smem:[#allocation0]]
  $region34: #{feature_extraction_forward.99} parent=0
    _
  %s7 = ssub.s32 1, %s5
  %s8 = scalar_select 0, %s7, %s5
  // Predicated region
  $region2: #{feature_extraction_forward.99} parent=0 // pred_check
    _
  $region3: #{feature_extraction_forward.99} parent=0 // pred_check_branch
    %10 = sbr.rel (0) target = $region5
  $region4: #{feature_extraction_forward.99} parent=0 // pred_region
    _
  $region5: #{feature_extraction_forward.99} parent=0 // pred_fallthru
    _
  // Predicated region
  $region6: #{feature_extraction_forward.99} parent=0 // pred_check
    _
  $region7: #{feature_extraction_forward.99} parent=0 // pred_check_branch
    %12 = sbr.rel (0) target = $region9
  $region8: #{feature_extraction_forward.99} parent=0 // pred_region
    _
  $region9: #{feature_extraction_forward.99} parent=0 // pred_fallthru
    _
  // Predicated region
  $region10: #{feature_extraction_forward.99} parent=0 // pred_check
    _
  $region11: #{feature_extraction_forward.99} parent=0 // pred_check_branch
    %14 = sbr.rel (0) target = $region13
  $region12: #{feature_extraction_forward.99} parent=0 // pred_region
    _
  $region13: #{feature_extraction_forward.99} parent=0 // pred_fallthru
    _
  // Predicated region
  $region14: #{feature_extraction_forward.99} parent=0 // pred_check
    _
  $region15: #{feature_extraction_forward.99} parent=0 // pred_check_branch
    %16 = sbr.rel (0) target = $region17
  $region16: #{feature_extraction_forward.99} parent=0 // pred_region
    _
  $region17: #{feature_extraction_forward.99} parent=0 // pred_fallthru
    _
  %p18 = scmp.eq.s32.totalorder 0, 0
  // Predicated region
  $region18: #{feature_extraction_forward.99} parent=0 // pred_check
    %p19 = pneg %p18
  $region19: #{feature_extraction_forward.99} parent=0 // pred_check_branch
    %21 = sbr.rel (%p19) target = $region21
  $region20: #{feature_extraction_forward.99} parent=0 // pred_region
    %v22 = vld [vmem:[%s2] sm:$0x1]
    %v24 = vlaneseq
    %v25 = vshrl.u32 %v24, 7
    %v26 = vsub.s32 0, %v25
    %v27 = vrot.slane %v22, %v26
    %29 = vst [vmem:[%s4] sm:$0xff] %v27
    %30 = vst [vmem:[%s4 + $0x8] sm:$0xff] %v27
    %31 = vst [vmem:[%s4 + $0x10] sm:$0xff] %v27
    %32 = vst [vmem:[%s4 + $0x18] sm:$0xff] %v27
  $region21: #{feature_extraction_forward.99} parent=0 // pred_fallthru
    _
  %v33 = vld [vmem:[%s4] sm:$0xff]
  %v34 = vld [vmem:[%s4 + $0x8] sm:$0xff]
  %v35 = vld [vmem:[%s4 + $0x10] sm:$0xff]
  %v36 = vld [vmem:[%s4 + $0x18] sm:$0xff]
  %v37 = vld [vmem:[%s0] sm:$0xff]
  %v38 = vld [vmem:[%s0 + $0x8] sm:$0xff]
  %v39 = vld [vmem:[%s0 + $0x10] sm:$0xff]
  %v40 = vld [vmem:[%s0 + $0x18] sm:$0xff]
  %v41 = vld [vmem:[%s0 + $0x20] sm:$0xf]
  %v42 = vld [vmem:[%s0 + $0x24] sm:$0xff]
  %v43 = vld [vmem:[%s0 + $0x2c] sm:$0xff]
  %v44 = vld [vmem:[%s0 + $0x34] sm:$0xff]
  %v45 = vld [vmem:[%s0 + $0x3c] sm:$0xff]
  %v46 = vld [vmem:[%s0 + $0x44] sm:$0xf]
  %v47 = vld [vmem:[%s0 + $0x48] sm:$0xff]
  %v48 = vld [vmem:[%s0 + $0x50] sm:$0xff]
  %v49 = vld [vmem:[%s0 + $0x58] sm:$0xff]
  %v50 = vld [vmem:[%s0 + $0x60] sm:$0xff]
  %v51 = vld [vmem:[%s0 + $0x68] sm:$0xf]
  %v52 = vld [vmem:[%s0 + $0x6c] sm:$0xff]
  %v53 = vld [vmem:[%s0 + $0x74] sm:$0xff]
  %v54 = vld [vmem:[%s0 + $0x7c] sm:$0xff]
  %v55 = vld [vmem:[%s0 + $0x84] sm:$0xff]
  %v56 = vld [vmem:[%s0 + $0x8c] sm:$0xf]
  %v57 = vld [vmem:[%s1] sm:$0xf]
  %v58 = vld [vmem:[%s1 + $0x4] sm:$0xf]
  %v59 = vld [vmem:[%s1 + $0x8] sm:$0xf]
  %v60 = vld [vmem:[%s1 + $0xc] sm:$0xf]
  %v61 = vld [vmem:[%s1 + $0x10] sm:$0xf]
  %v62 = vld [vmem:[%s1 + $0x14] sm:$0xf]
  %v63 = vld [vmem:[%s1 + $0x18] sm:$0xf]
  %v64 = vld [vmem:[%s1 + $0x1c] sm:$0xf]
  %v65 = vld [vmem:[%s1 + $0x20] sm:$0xf]
  %v66 = vld [vmem:[%s1 + $0x24] sm:$0xf]
  %v67 = vld [vmem:[%s1 + $0x28] sm:$0xf]
  %v68 = vld [vmem:[%s1 + $0x2c] sm:$0xf]
  %v69 = vld [vmem:[%s1 + $0x30] sm:$0xf]
  %v70 = vld [vmem:[%s1 + $0x34] sm:$0xf]
  %v71 = vld [vmem:[%s1 + $0x38] sm:$0xf]
  %v72 = vld [vmem:[%s1 + $0x3c] sm:$0xf]
  %v73 = vld [vmem:[%s1 + $0x40] sm:$0xf]
  %v74 = vld [vmem:[%s1 + $0x44] sm:$0xf]
  %v75 = vld [vmem:[%s1 + $0x48] sm:$0xf]
  %v76 = vld [vmem:[%s1 + $0x4c] sm:$0xf]
  %v77 = vld [vmem:[%s1 + $0x50] sm:$0xf]
  %v78 = vld [vmem:[%s1 + $0x54] sm:$0xf]
  %v79 = vld [vmem:[%s1 + $0x58] sm:$0xf]
  %v80 = vld [vmem:[%s1 + $0x5c] sm:$0xf]
  %v81 = vld [vmem:[%s1 + $0x60] sm:$0xf]
  %v82 = vld [vmem:[%s1 + $0x64] sm:$0xf]
  %v83 = vld [vmem:[%s1 + $0x68] sm:$0xf]
  %v84 = vld [vmem:[%s1 + $0x6c] sm:$0xf]
  %v85 = vld [vmem:[%s1 + $0x70] sm:$0xf]
  %v86 = vld [vmem:[%s1 + $0x74] sm:$0xf]
  %v87 = vld [vmem:[%s1 + $0x78] sm:$0xf]
  %v88 = vld [vmem:[%s1 + $0x7c] sm:$0xf]
  %v89 = vld [vmem:[%s1 + $0x80] sm:$0xf]
  %v90 = vld [vmem:[%s1 + $0x84] sm:$0xf]
  %v91 = vld [vmem:[%s1 + $0x88] sm:$0xf]
  %v92 = vld [vmem:[%s1 + $0x8c] sm:$0xf]
  %v93 = vld [vmem:[%s1 + $0x90] sm:$0xf]
  %v94 = vld [vmem:[%s1 + $0x94] sm:$0xf]
  %v95 = vld [vmem:[%s1 + $0x98] sm:$0xf]
  %v96 = vld [vmem:[%s1 + $0x9c] sm:$0xf]
  %v97 = vld [vmem:[%s1 + $0xa0] sm:$0xf]
  %v98 = vld [vmem:[%s1 + $0xa4] sm:$0xf]
  %v99 = vld [vmem:[%s1 + $0xa8] sm:$0xf]
  %v100 = vld [vmem:[%s1 + $0xac] sm:$0xf]
  %v101 = vld [vmem:[%s1 + $0xb0] sm:$0xf]
  %v102 = vld [vmem:[%s1 + $0xb4] sm:$0xf]
  %v103 = vld [vmem:[%s1 + $0xb8] sm:$0xf]
  %v104 = vld [vmem:[%s1 + $0xbc] sm:$0xf]
  %v105 = vld [vmem:[%s1 + $0xc0] sm:$0xf]
  %v106 = vld [vmem:[%s1 + $0xc4] sm:$0xf]
  %v107 = vld [vmem:[%s1 + $0xc8] sm:$0xf]
  %v108 = vld [vmem:[%s1 + $0xcc] sm:$0xf]
  %v109 = vld [vmem:[%s1 + $0xd0] sm:$0xf]
  %v110 = vld [vmem:[%s1 + $0xd4] sm:$0xf]
  %v111 = vld [vmem:[%s1 + $0xd8] sm:$0xf]
  %v112 = vld [vmem:[%s1 + $0xdc] sm:$0xf]
  %v113 = vld [vmem:[%s1 + $0xe0] sm:$0xf]
  %v114 = vld [vmem:[%s1 + $0xe4] sm:$0xf]
  %v115 = vld [vmem:[%s1 + $0xe8] sm:$0xf]
  %v116 = vld [vmem:[%s1 + $0xec] sm:$0xf]
  %v117 = vld [vmem:[%s1 + $0xf0] sm:$0xf]
  %v118 = vld [vmem:[%s1 + $0xf4] sm:$0xf]
  %v119 = vld [vmem:[%s1 + $0xf8] sm:$0xf]
  %v120 = vld [vmem:[%s1 + $0xfc] sm:$0xf]
  %v121 = vld [vmem:[%s1 + $0x100] sm:$0xf]
  %v122 = vld [vmem:[%s1 + $0x104] sm:$0xf]
  %v123 = vld [vmem:[%s1 + $0x108] sm:$0xf]
  %v124 = vld [vmem:[%s1 + $0x10c] sm:$0xf]
  %v125 = vld [vmem:[%s1 + $0x110] sm:$0xf]
  %v126 = vld [vmem:[%s1 + $0x114] sm:$0xf]
  %v127 = vld [vmem:[%s1 + $0x118] sm:$0xf]
  %v128 = vld [vmem:[%s1 + $0x11c] sm:$0xf]
  %v129 = vld [vmem:[%s1 + $0x120] sm:$0xf]
  %v130 = vld [vmem:[%s1 + $0x124] sm:$0xf]
  %v131 = vld [vmem:[%s1 + $0x128] sm:$0xf]
  %v132 = vld [vmem:[%s1 + $0x12c] sm:$0xf]
  %v133 = vld [vmem:[%s1 + $0x130] sm:$0xf]
  %v134 = vld [vmem:[%s1 + $0x134] sm:$0xf]
  %v135 = vld [vmem:[%s1 + $0x138] sm:$0xf]
  %v136 = vld [vmem:[%s1 + $0x13c] sm:$0xf]
  %v137 = vld [vmem:[%s1 + $0x140] sm:$0xf]
  %v138 = vld [vmem:[%s1 + $0x144] sm:$0xf]
  %v139 = vld [vmem:[%s1 + $0x148] sm:$0xf]
  %v140 = vld [vmem:[%s1 + $0x14c] sm:$0xf]
  %v141 = vld [vmem:[%s1 + $0x150] sm:$0xf]
  %v142 = vld [vmem:[%s1 + $0x154] sm:$0xf]
  %v143 = vld [vmem:[%s1 + $0x158] sm:$0xf]
  %v144 = vld [vmem:[%s1 + $0x15c] sm:$0xf]
  %v145 = vld [vmem:[%s1 + $0x160] sm:$0xf]
  %v146 = vld [vmem:[%s1 + $0x164] sm:$0xf]
  %v147 = vld [vmem:[%s1 + $0x168] sm:$0xf]
  %v148 = vld [vmem:[%s1 + $0x16c] sm:$0xf]
  %v149 = vld [vmem:[%s1 + $0x170] sm:$0xf]
  %v150 = vld [vmem:[%s1 + $0x174] sm:$0xf]
  %v151 = vld [vmem:[%s1 + $0x178] sm:$0xf]
  %v152 = vld [vmem:[%s1 + $0x17c] sm:$0xf]
  %v153 = vld [vmem:[%s1 + $0x180] sm:$0xf]
  %v154 = vld [vmem:[%s1 + $0x184] sm:$0xf]
  %v155 = vld [vmem:[%s1 + $0x188] sm:$0xf]
  %v156 = vld [vmem:[%s1 + $0x18c] sm:$0xf]
  %v157 = vld [vmem:[%s1 + $0x190] sm:$0xf]
  %v158 = vld [vmem:[%s1 + $0x194] sm:$0xf]
  %v159 = vld [vmem:[%s1 + $0x198] sm:$0xf]
  %v160 = vld [vmem:[%s1 + $0x19c] sm:$0xf]
  %v161 = vld [vmem:[%s1 + $0x1a0] sm:$0xf]
  %v162 = vld [vmem:[%s1 + $0x1a4] sm:$0xf]
  %v163 = vld [vmem:[%s1 + $0x1a8] sm:$0xf]
  %v164 = vld [vmem:[%s1 + $0x1ac] sm:$0xf]
  %v165 = vld [vmem:[%s1 + $0x1b0] sm:$0xf]
  %v166 = vld [vmem:[%s1 + $0x1b4] sm:$0xf]
  %v167 = vld [vmem:[%s1 + $0x1b8] sm:$0xf]
  %v168 = vld [vmem:[%s1 + $0x1bc] sm:$0xf]
  %v169 = vld [vmem:[%s1 + $0x1c0] sm:$0xf]
  %v170 = vld [vmem:[%s1 + $0x1c4] sm:$0xf]
  %v171 = vld [vmem:[%s1 + $0x1c8] sm:$0xf]
  %v172 = vld [vmem:[%s1 + $0x1cc] sm:$0xf]
  %v173 = vld [vmem:[%s1 + $0x1d0] sm:$0xf]
  %v174 = vld [vmem:[%s1 + $0x1d4] sm:$0xf]
  %v175 = vld [vmem:[%s1 + $0x1d8] sm:$0xf]
  %v176 = vld [vmem:[%s1 + $0x1dc] sm:$0xf]
  %v177 = vld [vmem:[%s1 + $0x1e0] sm:$0xf]
  %v178 = vld [vmem:[%s1 + $0x1e4] sm:$0xf]
  %v179 = vld [vmem:[%s1 + $0x1e8] sm:$0xf]
  %v180 = vld [vmem:[%s1 + $0x1ec] sm:$0xf]
  %v181 = vld [vmem:[%s1 + $0x1f0] sm:$0xf]
  %v182 = vld [vmem:[%s1 + $0x1f4] sm:$0xf]
  %v183 = vld [vmem:[%s1 + $0x1f8] sm:$0xf]
  %v184 = vld [vmem:[%s1 + $0x1fc] sm:$0xf]
  %v185 = vld [vmem:[%s1 + $0x200] sm:$0xf]
  %v186 = vld [vmem:[%s1 + $0x204] sm:$0xf]
  %v187 = vld [vmem:[%s1 + $0x208] sm:$0xf]
  %v188 = vld [vmem:[%s1 + $0x20c] sm:$0xf]
  %v189 = vld [vmem:[%s1 + $0x210] sm:$0xf]
  %v190 = vld [vmem:[%s1 + $0x214] sm:$0xf]
  %v191 = vld [vmem:[%s1 + $0x218] sm:$0xf]
  %v192 = vld [vmem:[%s1 + $0x21c] sm:$0xf]
  %v193 = vld [vmem:[%s1 + $0x220] sm:$0xf]
  %v194 = vld [vmem:[%s1 + $0x224] sm:$0xf]
  %v195 = vld [vmem:[%s1 + $0x228] sm:$0xf]
  %v196 = vld [vmem:[%s1 + $0x22c] sm:$0xf]
  %v197 = vld [vmem:[%s1 + $0x230] sm:$0xf]
  %v198 = vld [vmem:[%s1 + $0x234] sm:$0xf]
  %v199 = vld [vmem:[%s1 + $0x238] sm:$0xf]
  %v200 = vld [vmem:[%s1 + $0x23c] sm:$0xf]
  %v221 = vunpack.c.l.b16 %v37
  %v222 = vunpack.c.h.b16 %v37
  %v223 = vunpack.c.l.b16 %v38
  %v224 = vunpack.c.h.b16 %v38
  %v225 = vunpack.c.l.b16 %v39
  %v226 = vunpack.c.h.b16 %v39
  %v227 = vunpack.c.l.b16 %v40
  %v228 = vunpack.c.h.b16 %v40
  %v229 = vunpack.c.l.b16 %v41
  %v230 = vunpack.c.l.b16 %v42
  %v231 = vunpack.c.h.b16 %v42
  %v232 = vunpack.c.l.b16 %v43
  %v233 = vunpack.c.h.b16 %v43
  %v234 = vunpack.c.l.b16 %v44
  %v235 = vunpack.c.h.b16 %v44
  %v236 = vunpack.c.l.b16 %v45
  %v237 = vunpack.c.h.b16 %v45
  %v238 = vunpack.c.l.b16 %v46
  %v239 = vunpack.c.l.b16 %v47
  %v240 = vunpack.c.h.b16 %v47
  %v241 = vunpack.c.l.b16 %v48
  %v242 = vunpack.c.h.b16 %v48
  %v243 = vunpack.c.l.b16 %v49
  %v244 = vunpack.c.h.b16 %v49
  %v245 = vunpack.c.l.b16 %v50
  %v246 = vunpack.c.h.b16 %v50
  %v247 = vunpack.c.l.b16 %v51
  %v248 = vunpack.c.l.b16 %v52
  %v249 = vunpack.c.h.b16 %v52
  %v250 = vunpack.c.l.b16 %v53
  %v251 = vunpack.c.h.b16 %v53
  %v252 = vunpack.c.l.b16 %v54
  %v253 = vunpack.c.h.b16 %v54
  %v254 = vunpack.c.l.b16 %v55
  %v255 = vunpack.c.h.b16 %v55
  %v256 = vunpack.c.l.b16 %v56
  %v257 = vpack.c.b16 %v230, %v221
  %v258 = vpack.c.b16 %v231, %v222
  %v259 = vpack.c.b16 %v232, %v223
  %v260 = vpack.c.b16 %v233, %v224
  %v261 = vpack.c.b16 %v234, %v225
  %v262 = vpack.c.b16 %v235, %v226
  %v263 = vpack.c.b16 %v236, %v227
  %v264 = vpack.c.b16 %v237, %v228
  %v265 = vpack.c.b16 %v238, %v229
  %v266 = vpack.c.b16 %v248, %v239
  %v267 = vpack.c.b16 %v249, %v240
  %v268 = vpack.c.b16 %v250, %v241
  %v269 = vpack.c.b16 %v251, %v242
  %v270 = vpack.c.b16 %v252, %v243
  %v271 = vpack.c.b16 %v253, %v244
  %v272 = vpack.c.b16 %v254, %v245
  %v273 = vpack.c.b16 %v255, %v246
  %v274 = vpack.c.b16 %v256, %v247
  %v437 = vunpack.c.l.b16 %v57
  %v438 = vunpack.c.l.b16 %v58
  %v439 = vunpack.c.l.b16 %v59
  %v440 = vunpack.c.l.b16 %v60
  %v441 = vunpack.c.l.b16 %v61
  %v442 = vunpack.c.l.b16 %v62
  %v443 = vunpack.c.l.b16 %v63
  %v444 = vunpack.c.l.b16 %v64
  %v445 = vunpack.c.l.b16 %v65
  %v446 = vunpack.c.l.b16 %v66
  %v447 = vunpack.c.l.b16 %v67
  %v448 = vunpack.c.l.b16 %v68
  %v449 = vunpack.c.l.b16 %v69
  %v450 = vunpack.c.l.b16 %v70
  %v451 = vunpack.c.l.b16 %v71
  %v452 = vunpack.c.l.b16 %v72
  %v453 = vunpack.c.l.b16 %v73
  %v454 = vunpack.c.l.b16 %v74
  %v455 = vunpack.c.l.b16 %v75
  %v456 = vunpack.c.l.b16 %v76
  %v457 = vunpack.c.l.b16 %v77
  %v458 = vunpack.c.l.b16 %v78
  %v459 = vunpack.c.l.b16 %v79
  %v460 = vunpack.c.l.b16 %v80
  %v461 = vunpack.c.l.b16 %v81
  %v462 = vunpack.c.l.b16 %v82
  %v463 = vunpack.c.l.b16 %v83
  %v464 = vunpack.c.l.b16 %v84
  %v465 = vunpack.c.l.b16 %v85
  %v466 = vunpack.c.l.b16 %v86
  %v467 = vunpack.c.l.b16 %v87
  %v468 = vunpack.c.l.b16 %v88
  %v469 = vunpack.c.l.b16 %v89
  %v470 = vunpack.c.l.b16 %v90
  %v471 = vunpack.c.l.b16 %v91
  %v472 = vunpack.c.l.b16 %v92
  %v473 = vunpack.c.l.b16 %v93
  %v474 = vunpack.c.l.b16 %v94
  %v475 = vunpack.c.l.b16 %v95
  %v476 = vunpack.c.l.b16 %v96
  %v477 = vunpack.c.l.b16 %v97
  %v478 = vunpack.c.l.b16 %v98
  %v479 = vunpack.c.l.b16 %v99
  %v480 = vunpack.c.l.b16 %v100
  %v481 = vunpack.c.l.b16 %v101
  %v482 = vunpack.c.l.b16 %v102
  %v483 = vunpack.c.l.b16 %v103
  %v484 = vunpack.c.l.b16 %v104
  %v485 = vunpack.c.l.b16 %v105
  %v486 = vunpack.c.l.b16 %v106
  %v487 = vunpack.c.l.b16 %v107
  %v488 = vunpack.c.l.b16 %v108
  %v489 = vunpack.c.l.b16 %v109
  %v490 = vunpack.c.l.b16 %v110
  %v491 = vunpack.c.l.b16 %v111
  %v492 = vunpack.c.l.b16 %v112
  %v493 = vunpack.c.l.b16 %v113
  %v494 = vunpack.c.l.b16 %v114
  %v495 = vunpack.c.l.b16 %v115
  %v496 = vunpack.c.l.b16 %v116
  %v497 = vunpack.c.l.b16 %v117
  %v498 = vunpack.c.l.b16 %v118
  %v499 = vunpack.c.l.b16 %v119
  %v500 = vunpack.c.l.b16 %v120
  %v501 = vunpack.c.l.b16 %v121
  %v502 = vunpack.c.l.b16 %v122
  %v503 = vunpack.c.l.b16 %v123
  %v504 = vunpack.c.l.b16 %v124
  %v505 = vunpack.c.l.b16 %v125
  %v506 = vunpack.c.l.b16 %v126
  %v507 = vunpack.c.l.b16 %v127
  %v508 = vunpack.c.l.b16 %v128
  %v509 = vunpack.c.l.b16 %v129
  %v510 = vunpack.c.l.b16 %v130
  %v511 = vunpack.c.l.b16 %v131
  %v512 = vunpack.c.l.b16 %v132
  %v513 = vunpack.c.l.b16 %v133
  %v514 = vunpack.c.l.b16 %v134
  %v515 = vunpack.c.l.b16 %v135
  %v516 = vunpack.c.l.b16 %v136
  %v517 = vunpack.c.l.b16 %v137
  %v518 = vunpack.c.l.b16 %v138
  %v519 = vunpack.c.l.b16 %v139
  %v520 = vunpack.c.l.b16 %v140
  %v521 = vunpack.c.l.b16 %v141
  %v522 = vunpack.c.l.b16 %v142
  %v523 = vunpack.c.l.b16 %v143
  %v524 = vunpack.c.l.b16 %v144
  %v525 = vunpack.c.l.b16 %v145
  %v526 = vunpack.c.l.b16 %v146
  %v527 = vunpack.c.l.b16 %v147
  %v528 = vunpack.c.l.b16 %v148
  %v529 = vunpack.c.l.b16 %v149
  %v530 = vunpack.c.l.b16 %v150
  %v531 = vunpack.c.l.b16 %v151
  %v532 = vunpack.c.l.b16 %v152
  %v533 = vunpack.c.l.b16 %v153
  %v534 = vunpack.c.l.b16 %v154
  %v535 = vunpack.c.l.b16 %v155
  %v536 = vunpack.c.l.b16 %v156
  %v537 = vunpack.c.l.b16 %v157
  %v538 = vunpack.c.l.b16 %v158
  %v539 = vunpack.c.l.b16 %v159
  %v540 = vunpack.c.l.b16 %v160
  %v541 = vunpack.c.l.b16 %v161
  %v542 = vunpack.c.l.b16 %v162
  %v543 = vunpack.c.l.b16 %v163
  %v544 = vunpack.c.l.b16 %v164
  %v545 = vunpack.c.l.b16 %v165
  %v546 = vunpack.c.l.b16 %v166
  %v547 = vunpack.c.l.b16 %v167
  %v548 = vunpack.c.l.b16 %v168
  %v549 = vunpack.c.l.b16 %v169
  %v550 = vunpack.c.l.b16 %v170
  %v551 = vunpack.c.l.b16 %v171
  %v552 = vunpack.c.l.b16 %v172
  %v553 = vunpack.c.l.b16 %v173
  %v554 = vunpack.c.l.b16 %v174
  %v555 = vunpack.c.l.b16 %v175
  %v556 = vunpack.c.l.b16 %v176
  %v557 = vunpack.c.l.b16 %v177
  %v558 = vunpack.c.l.b16 %v178
  %v559 = vunpack.c.l.b16 %v179
  %v560 = vunpack.c.l.b16 %v180
  %v561 = vunpack.c.l.b16 %v181
  %v562 = vunpack.c.l.b16 %v182
  %v563 = vunpack.c.l.b16 %v183
  %v564 = vunpack.c.l.b16 %v184
  %v565 = vunpack.c.l.b16 %v185
  %v566 = vunpack.c.l.b16 %v186
  %v567 = vunpack.c.l.b16 %v187
  %v568 = vunpack.c.l.b16 %v188
  %v569 = vunpack.c.l.b16 %v189
  %v570 = vunpack.c.l.b16 %v190
  %v571 = vunpack.c.l.b16 %v191
  %v572 = vunpack.c.l.b16 %v192
  %v573 = vunpack.c.l.b16 %v193
  %v574 = vunpack.c.l.b16 %v194
  %v575 = vunpack.c.l.b16 %v195
  %v576 = vunpack.c.l.b16 %v196
  %v577 = vunpack.c.l.b16 %v197
  %v578 = vunpack.c.l.b16 %v198
  %v579 = vunpack.c.l.b16 %v199
  %v580 = vunpack.c.l.b16 %v200
  %v581 = vpack.c.b16 %v438, %v437
  %v582 = vpack.c.b16 %v440, %v439
  %v583 = vpack.c.b16 %v442, %v441
  %v584 = vpack.c.b16 %v444, %v443
  %v585 = vpack.c.b16 %v446, %v445
  %v586 = vpack.c.b16 %v448, %v447
  %v587 = vpack.c.b16 %v450, %v449
  %v588 = vpack.c.b16 %v452, %v451
  %v589 = vpack.c.b16 %v454, %v453
  %v590 = vpack.c.b16 %v456, %v455
  %v591 = vpack.c.b16 %v458, %v457
  %v592 = vpack.c.b16 %v460, %v459
  %v593 = vpack.c.b16 %v462, %v461
  %v594 = vpack.c.b16 %v464, %v463
  %v595 = vpack.c.b16 %v466, %v465
  %v596 = vpack.c.b16 %v468, %v467
  %v597 = vpack.c.b16 %v470, %v469
  %v598 = vpack.c.b16 %v472, %v471
  %v599 = vpack.c.b16 %v474, %v473
  %v600 = vpack.c.b16 %v476, %v475
  %v601 = vpack.c.b16 %v478, %v477
  %v602 = vpack.c.b16 %v480, %v479
  %v603 = vpack.c.b16 %v482, %v481
  %v604 = vpack.c.b16 %v484, %v483
  %v605 = vpack.c.b16 %v486, %v485
  %v606 = vpack.c.b16 %v488, %v487
  %v607 = vpack.c.b16 %v490, %v489
  %v608 = vpack.c.b16 %v492, %v491
  %v609 = vpack.c.b16 %v494, %v493
  %v610 = vpack.c.b16 %v496, %v495
  %v611 = vpack.c.b16 %v498, %v497
  %v612 = vpack.c.b16 %v500, %v499
  %v613 = vpack.c.b16 %v502, %v501
  %v614 = vpack.c.b16 %v504, %v503
  %v615 = vpack.c.b16 %v506, %v505
  %v616 = vpack.c.b16 %v508, %v507
  %v617 = vpack.c.b16 %v510, %v509
  %v618 = vpack.c.b16 %v512, %v511
  %v619 = vpack.c.b16 %v514, %v513
  %v620 = vpack.c.b16 %v516, %v515
  %v621 = vpack.c.b16 %v518, %v517
  %v622 = vpack.c.b16 %v520, %v519
  %v623 = vpack.c.b16 %v522, %v521
  %v624 = vpack.c.b16 %v524, %v523
  %v625 = vpack.c.b16 %v526, %v525
  %v626 = vpack.c.b16 %v528, %v527
  %v627 = vpack.c.b16 %v530, %v529
  %v628 = vpack.c.b16 %v532, %v531
  %v629 = vpack.c.b16 %v534, %v533
  %v630 = vpack.c.b16 %v536, %v535
  %v631 = vpack.c.b16 %v538, %v537
  %v632 = vpack.c.b16 %v540, %v539
  %v633 = vpack.c.b16 %v542, %v541
  %v634 = vpack.c.b16 %v544, %v543
  %v635 = vpack.c.b16 %v546, %v545
  %v636 = vpack.c.b16 %v548, %v547
  %v637 = vpack.c.b16 %v550, %v549
  %v638 = vpack.c.b16 %v552, %v551
  %v639 = vpack.c.b16 %v554, %v553
  %v640 = vpack.c.b16 %v556, %v555
  %v641 = vpack.c.b16 %v558, %v557
  %v642 = vpack.c.b16 %v560, %v559
  %v643 = vpack.c.b16 %v562, %v561
  %v644 = vpack.c.b16 %v564, %v563
  %v645 = vpack.c.b16 %v566, %v565
  %v646 = vpack.c.b16 %v568, %v567
  %v647 = vpack.c.b16 %v570, %v569
  %v648 = vpack.c.b16 %v572, %v571
  %v649 = vpack.c.b16 %v574, %v573
  %v650 = vpack.c.b16 %v576, %v575
  %v651 = vpack.c.b16 %v578, %v577
  %v652 = vpack.c.b16 %v580, %v579
  %725 = vmatprep.subr.bf16.mxu0 0
  %726 = vmatpush1.bf16.msra.mxu0 %v581
  %727 = vmatprep.subr.bf16.mxu0 0
  %728 = vmatpush1.bf16.msra.mxu0 %v582
  %729 = vmatprep.subr.bf16.mxu0 0
  %730 = vmatpush1.bf16.msra.mxu0 %v583
  %731 = vmatprep.subr.bf16.mxu0 0
  %732 = vmatpush1.bf16.msra.mxu0 %v584
  %733 = vmatprep.subr.bf16.mxu0 0
  %734 = vmatpush1.bf16.msra.mxu0 %v585
  %735 = vmatprep.subr.bf16.mxu0 0
  %736 = vmatpush1.bf16.msra.mxu0 %v586
  %737 = vmatprep.subr.bf16.mxu0 0
  %738 = vmatpush1.bf16.msra.mxu0 %v587
  %739 = vmatprep.subr.bf16.mxu0 0
  %740 = vmatpush1.bf16.msra.mxu0 %v588
  %741 = vmatprep.subr.bf16.mxu0 0
  %742 = vmatpush1.bf16.msra.mxu0 %v589
  %743 = vmatprep.subr.bf16.mxu0 0
  %744 = vmatpush1.bf16.msra.mxu0 %v590
  %745 = vmatprep.subr.bf16.mxu0 0
  %746 = vmatpush1.bf16.msra.mxu0 %v591
  %747 = vmatprep.subr.bf16.mxu0 0
  %748 = vmatpush1.bf16.msra.mxu0 %v592
  %749 = vmatprep.subr.bf16.mxu0 0
  %750 = vmatpush1.bf16.msra.mxu0 %v593
  %751 = vmatprep.subr.bf16.mxu0 0
  %752 = vmatpush1.bf16.msra.mxu0 %v594
  %753 = vmatprep.subr.bf16.mxu0 0
  %754 = vmatpush1.bf16.msra.mxu0 %v595
  %755 = vmatprep.subr.bf16.mxu0 0
  %756 = vmatpush1.bf16.msra.mxu0 %v596
  %757 = vmatprep.mubr.bf16.mxu0 %v258
  %758 = vmatmul.mubr.bf16.gmra.mrb[0].mxu0 %v257
  %v759 = vpop.f32.mrb[0].mxu0
  %v760 = vadd.f32 0.0, %v759
  %v761 = vpop.f32.mrb[0].mxu0
  %v762 = vpop.f32.mrb[0].mxu0
  %v763 = vadd.f32 0.0, %v762
  %v764 = vpop.f32.mrb[0].mxu0
  %765 = vmatprep.mubr.bf16.mxu0 %v267
  %766 = vmatmul.mubr.bf16.gmra.mrb[0].mxu0 %v266
  %v767 = vpop.f32.mrb[0].mxu0
  %v768 = vadd.f32 0.0, %v767
  %v769 = vpop.f32.mrb[0].mxu0
  %v770 = vpop.f32.mrb[0].mxu0
  %v771 = vadd.f32 0.0, %v770
  %v772 = vpop.f32.mrb[0].mxu0
  %773 = vdwg.mxu0
  %774 = vmatprep.subr.bf16.mxu0 0
  %775 = vmatpush1.bf16.msra.mxu0 %v597
  %776 = vmatprep.subr.bf16.mxu0 0
  %777 = vmatpush1.bf16.msra.mxu0 %v598
  %778 = vmatprep.subr.bf16.mxu0 0
  %779 = vmatpush1.bf16.msra.mxu0 %v599
  %780 = vmatprep.subr.bf16.mxu0 0
  %781 = vmatpush1.bf16.msra.mxu0 %v600
  %782 = vmatprep.subr.bf16.mxu0 0
  %783 = vmatpush1.bf16.msra.mxu0 %v601
  %784 = vmatprep.subr.bf16.mxu0 0
  %785 = vmatpush1.bf16.msra.mxu0 %v602
  %786 = vmatprep.subr.bf16.mxu0 0
  %787 = vmatpush1.bf16.msra.mxu0 %v603
  %788 = vmatprep.subr.bf16.mxu0 0
  %789 = vmatpush1.bf16.msra.mxu0 %v604
  %790 = vmatprep.subr.bf16.mxu0 0
  %791 = vmatpush1.bf16.msra.mxu0 %v605
  %792 = vmatprep.subr.bf16.mxu0 0
  %793 = vmatpush1.bf16.msra.mxu0 %v606
  %794 = vmatprep.subr.bf16.mxu0 0
  %795 = vmatpush1.bf16.msra.mxu0 %v607
  %796 = vmatprep.subr.bf16.mxu0 0
  %797 = vmatpush1.bf16.msra.mxu0 %v608
  %798 = vmatprep.subr.bf16.mxu0 0
  %799 = vmatpush1.bf16.msra.mxu0 %v609
  %800 = vmatprep.subr.bf16.mxu0 0
  %801 = vmatpush1.bf16.msra.mxu0 %v610
  %802 = vmatprep.subr.bf16.mxu0 0
  %803 = vmatpush1.bf16.msra.mxu0 %v611
  %804 = vmatprep.subr.bf16.mxu0 0
  %805 = vmatpush1.bf16.msra.mxu0 %v612
  %806 = vmatprep.mubr.bf16.mxu0 %v260
  %807 = vmatmul.mubr.bf16.gmra.mrb[0].mxu0 %v259
  %v808 = vpop.f32.mrb[0].mxu0
  %v809 = vadd.f32 %v760, %v808
  %v810 = vpop.f32.mrb[0].mxu0
  %v811 = vpop.f32.mrb[0].mxu0
  %v812 = vadd.f32 %v763, %v811
  %v813 = vpop.f32.mrb[0].mxu0
  %814 = vmatprep.mubr.bf16.mxu0 %v269
  %815 = vmatmul.mubr.bf16.gmra.mrb[0].mxu0 %v268
  %v816 = vpop.f32.mrb[0].mxu0
  %v817 = vadd.f32 %v768, %v816
  %v818 = vpop.f32.mrb[0].mxu0
  %v819 = vpop.f32.mrb[0].mxu0
  %v820 = vadd.f32 %v771, %v819
  %v821 = vpop.f32.mrb[0].mxu0
  %822 = vdwg.mxu0
  %823 = vmatprep.subr.bf16.mxu0 0
  %824 = vmatpush1.bf16.msra.mxu0 %v613
  %825 = vmatprep.subr.bf16.mxu0 0
  %826 = vmatpush1.bf16.msra.mxu0 %v614
  %827 = vmatprep.subr.bf16.mxu0 0
  %828 = vmatpush1.bf16.msra.mxu0 %v615
  %829 = vmatprep.subr.bf16.mxu0 0
  %830 = vmatpush1.bf16.msra.mxu0 %v616
  %831 = vmatprep.subr.bf16.mxu0 0
  %832 = vmatpush1.bf16.msra.mxu0 %v617
  %833 = vmatprep.subr.bf16.mxu0 0
  %834 = vmatpush1.bf16.msra.mxu0 %v618
  %835 = vmatprep.subr.bf16.mxu0 0
  %836 = vmatpush1.bf16.msra.mxu0 %v619
  %837 = vmatprep.subr.bf16.mxu0 0
  %838 = vmatpush1.bf16.msra.mxu0 %v620
  %839 = vmatprep.subr.bf16.mxu0 0
  %840 = vmatpush1.bf16.msra.mxu0 %v621
  %841 = vmatprep.subr.bf16.mxu0 0
  %842 = vmatpush1.bf16.msra.mxu0 %v622
  %843 = vmatprep.subr.bf16.mxu0 0
  %844 = vmatpush1.bf16.msra.mxu0 %v623
  %845 = vmatprep.subr.bf16.mxu0 0
  %846 = vmatpush1.bf16.msra.mxu0 %v624
  %847 = vmatprep.subr.bf16.mxu0 0
  %848 = vmatpush1.bf16.msra.mxu0 %v625
  %849 = vmatprep.subr.bf16.mxu0 0
  %850 = vmatpush1.bf16.msra.mxu0 %v626
  %851 = vmatprep.subr.bf16.mxu0 0
  %852 = vmatpush1.bf16.msra.mxu0 %v627
  %853 = vmatprep.subr.bf16.mxu0 0
  %854 = vmatpush1.bf16.msra.mxu0 %v628
  %855 = vmatprep.mubr.bf16.mxu0 %v262
  %856 = vmatmul.mubr.bf16.gmra.mrb[0].mxu0 %v261
  %v857 = vpop.f32.mrb[0].mxu0
  %v858 = vadd.f32 %v809, %v857
  %v859 = vpop.f32.mrb[0].mxu0
  %v860 = vpop.f32.mrb[0].mxu0
  %v861 = vadd.f32 %v812, %v860
  %v862 = vpop.f32.mrb[0].mxu0
  %863 = vmatprep.mubr.bf16.mxu0 %v271
  %864 = vmatmul.mubr.bf16.gmra.mrb[0].mxu0 %v270
  %v865 = vpop.f32.mrb[0].mxu0
  %v866 = vadd.f32 %v817, %v865
  %v867 = vpop.f32.mrb[0].mxu0
  %v868 = vpop.f32.mrb[0].mxu0
  %v869 = vadd.f32 %v820, %v868
  %v870 = vpop.f32.mrb[0].mxu0
  %871 = vdwg.mxu0
  %872 = vmatprep.subr.bf16.mxu0 0
  %873 = vmatpush1.bf16.msra.mxu0 %v629
  %874 = vmatprep.subr.bf16.mxu0 0
  %875 = vmatpush1.bf16.msra.mxu0 %v630
  %876 = vmatprep.subr.bf16.mxu0 0
  %877 = vmatpush1.bf16.msra.mxu0 %v631
  %878 = vmatprep.subr.bf16.mxu0 0
  %879 = vmatpush1.bf16.msra.mxu0 %v632
  %880 = vmatprep.subr.bf16.mxu0 0
  %881 = vmatpush1.bf16.msra.mxu0 %v633
  %882 = vmatprep.subr.bf16.mxu0 0
  %883 = vmatpush1.bf16.msra.mxu0 %v634
  %884 = vmatprep.subr.bf16.mxu0 0
  %885 = vmatpush1.bf16.msra.mxu0 %v635
  %886 = vmatprep.subr.bf16.mxu0 0
  %887 = vmatpush1.bf16.msra.mxu0 %v636
  %888 = vmatprep.subr.bf16.mxu0 0
  %889 = vmatpush1.bf16.msra.mxu0 %v637
  %890 = vmatprep.subr.bf16.mxu0 0
  %891 = vmatpush1.bf16.msra.mxu0 %v638
  %892 = vmatprep.subr.bf16.mxu0 0
  %893 = vmatpush1.bf16.msra.mxu0 %v639
  %894 = vmatprep.subr.bf16.mxu0 0
  %895 = vmatpush1.bf16.msra.mxu0 %v640
  %896 = vmatprep.subr.bf16.mxu0 0
  %897 = vmatpush1.bf16.msra.mxu0 %v641
  %898 = vmatprep.subr.bf16.mxu0 0
  %899 = vmatpush1.bf16.msra.mxu0 %v642
  %900 = vmatprep.subr.bf16.mxu0 0
  %901 = vmatpush1.bf16.msra.mxu0 %v643
  %902 = vmatprep.subr.bf16.mxu0 0
  %903 = vmatpush1.bf16.msra.mxu0 %v644
  %904 = vmatprep.mubr.bf16.mxu0 %v264
  %905 = vmatmul.mubr.bf16.gmra.mrb[0].mxu0 %v263
  %v906 = vpop.f32.mrb[0].mxu0
  %v907 = vadd.f32 %v858, %v906
  %v908 = vpop.f32.mrb[0].mxu0
  %v909 = vpop.f32.mrb[0].mxu0
  %v910 = vadd.f32 %v861, %v909
  %v911 = vpop.f32.mrb[0].mxu0
  %912 = vmatprep.mubr.bf16.mxu0 %v273
  %913 = vmatmul.mubr.bf16.gmra.mrb[0].mxu0 %v272
  %v914 = vpop.f32.mrb[0].mxu0
  %v915 = vadd.f32 %v866, %v914
  %v916 = vpop.f32.mrb[0].mxu0
  %v917 = vpop.f32.mrb[0].mxu0
  %v918 = vadd.f32 %v869, %v917
  %v919 = vpop.f32.mrb[0].mxu0
  %920 = vdwg.mxu0
  %921 = vmatprep.subr.bf16.mxu0 0
  %922 = vmatpush1.bf16.msra.mxu0 %v645
  %923 = vmatprep.subr.bf16.mxu0 0
  %924 = vmatpush1.bf16.msra.mxu0 %v646
  %925 = vmatprep.subr.bf16.mxu0 0
  %926 = vmatpush1.bf16.msra.mxu0 %v647
  %927 = vmatprep.subr.bf16.mxu0 0
  %928 = vmatpush1.bf16.msra.mxu0 %v648
  %929 = vmatprep.subr.bf16.mxu0 0
  %930 = vmatpush1.bf16.msra.mxu0 %v649
  %931 = vmatprep.subr.bf16.mxu0 0
  %932 = vmatpush1.bf16.msra.mxu0 %v650
  %933 = vmatprep.subr.bf16.mxu0 0
  %934 = vmatpush1.bf16.msra.mxu0 %v651
  %935 = vmatprep.subr.bf16.mxu0 0
  %936 = vmatpush1.bf16.msra.mxu0 %v652
  %937 = vmatprep.subr.bf16.mxu0 0
  %938 = vmatpush1.bf16.msra.mxu0 0
  %939 = vmatprep.subr.bf16.mxu0 0
  %940 = vmatpush1.bf16.msra.mxu0 0
  %941 = vmatprep.subr.bf16.mxu0 0
  %942 = vmatpush1.bf16.msra.mxu0 0
  %943 = vmatprep.subr.bf16.mxu0 0
  %944 = vmatpush1.bf16.msra.mxu0 0
  %945 = vmatprep.subr.bf16.mxu0 0
  %946 = vmatpush1.bf16.msra.mxu0 0
  %947 = vmatprep.subr.bf16.mxu0 0
  %948 = vmatpush1.bf16.msra.mxu0 0
  %949 = vmatprep.subr.bf16.mxu0 0
  %950 = vmatpush1.bf16.msra.mxu0 0
  %951 = vmatprep.subr.bf16.mxu0 0
  %952 = vmatpush1.bf16.msra.mxu0 0
  %953 = vmatprep.mubr.bf16.mxu0 0
  %954 = vmatmul.mubr.bf16.gmra.mrb[0].mxu0 %v265
  %v955 = vpop.f32.mrb[0].mxu0
  %v956 = vadd.f32 %v907, %v955
  %v957 = vpop.f32.mrb[0].mxu0
  %v958 = vpop.f32.mrb[0].mxu0
  %v959 = vadd.f32 %v910, %v958
  %v960 = vpop.f32.mrb[0].mxu0
  %961 = vmatprep.mubr.bf16.mxu0 0
  %962 = vmatmul.mubr.bf16.gmra.mrb[0].mxu0 %v274
  %v963 = vpop.f32.mrb[0].mxu0
  %v964 = vadd.f32 %v915, %v963
  %v965 = vpop.f32.mrb[0].mxu0
  %v966 = vpop.f32.mrb[0].mxu0
  %v967 = vadd.f32 %v918, %v966
  %v968 = vpop.f32.mrb[0].mxu0
  %969 = vdwg.mxu0
  %v970 = vadd.f32 %v33, %v956
  %v971 = vadd.f32 %v34, %v959
  %v972 = vadd.f32 %v35, %v964
  %v973 = vadd.f32 %v36, %v967
  %974 = vst [vmem:[%s4] sm:$0xff] %v970
  %975 = vst [vmem:[%s4 + $0x8] sm:$0xff] %v971
  %976 = vst [vmem:[%s4 + $0x10] sm:$0xff] %v972
  %977 = vst [vmem:[%s4 + $0x18] sm:$0xff] %v973
  // Predicated region
  $region22: #{feature_extraction_forward.99} parent=0 // pred_check
    %p978 = pneg %p18
  $region23: #{feature_extraction_forward.99} parent=0 // pred_check_branch
    %980 = sbr.rel (%p978) target = $region25
  $region24: #{feature_extraction_forward.99} parent=0 // pred_region
    %v981 = vld [vmem:[%s4] sm:$0xff]
    %v982 = vld [vmem:[%s4 + $0x8] sm:$0xff]
    %v983 = vld [vmem:[%s4 + $0x10] sm:$0xff]
    %v984 = vld [vmem:[%s4 + $0x18] sm:$0xff]
    %v985 = vld [vmem:[%s3] sm:$0xff]
    %v986 = vld [vmem:[%s3 + $0x8] sm:$0xff]
    %v987 = vld [vmem:[%s3 + $0x10] sm:$0xff]
    %v988 = vld [vmem:[%s3 + $0x18] sm:$0xff]
    %v989 = vadd.f32 %v981, %v985
    %v990 = vadd.f32 %v982, %v986
    %v991 = vadd.f32 %v983, %v987
    %v992 = vadd.f32 %v984, %v988
    %993 = vst [vmem:[%s4] sm:$0xff] %v989
    %994 = vst [vmem:[%s4 + $0x8] sm:$0xff] %v990
    %995 = vst [vmem:[%s4 + $0x10] sm:$0xff] %v991
    %996 = vst [vmem:[%s4 + $0x18] sm:$0xff] %v992
  $region25: #{feature_extraction_forward.99} parent=0 // pred_fallthru
    _
  // Predicated region
  $region26: #{feature_extraction_forward.99} parent=0 // pred_check
    _
  $region27: #{feature_extraction_forward.99} parent=0 // pred_check_branch
    %998 = sbr.rel (0) target = $region29
  $region28: #{feature_extraction_forward.99} parent=0 // pred_region
    _
  $region29: #{feature_extraction_forward.99} parent=0 // pred_fallthru
    _
  // Predicated region
  $region30: #{feature_extraction_forward.99} parent=0 // pred_check
    _
  $region31: #{feature_extraction_forward.99} parent=0 // pred_check_branch
    %1000 = sbr.rel (0) target = $region33
  $region32: #{feature_extraction_forward.99} parent=0 // pred_region
    _
  $region33: #{feature_extraction_forward.99} parent=0 // pred_fallthru
    _

// kernel: feature_extraction_forward.100
$region0: #{feature_extraction_forward.100}
  #allocation0 [shape = 'u32[]', space=smem, size = 0x4, offset = 0x4, fixed_abs, tag = 'smem constant byte address 0x4 - core index']
  #allocation1 [shape = 'u32[144,128]{1,0:T(1,128)}', space=vmem, size = 0x12000, scoped, tag = 'internal scratch']
  %s0 = inlined_call_operand.vmem [shape: bf16[32,1152], index: 0, kind: input, shape index: {}]
  %s1 = inlined_call_operand.vmem [shape: bf16[1152,128], index: 1, kind: input, shape index: {}]
  %s2 = inlined_call_operand.vmem [shape: f32[1,128], index: 2, kind: input, shape index: {}]
  %s3 = inlined_call_operand.vmem [shape: f32[32,128], index: 3, kind: output, shape index: {}]
  %s4 = sld [smem:[#allocation0]]
  $region30: #{feature_extraction_forward.100} parent=0
    _
  %s6 = ssub.s32 1, %s4
  %s7 = scalar_select 0, %s6, %s4
  // Predicated region
  $region2: #{feature_extraction_forward.100} parent=0 // pred_check
    _
  $region3: #{feature_extraction_forward.100} parent=0 // pred_check_branch
    %9 = sbr.rel (0) target = $region5
  $region4: #{feature_extraction_forward.100} parent=0 // pred_region
    _
  $region5: #{feature_extraction_forward.100} parent=0 // pred_fallthru
    _
  // Predicated region
  $region6: #{feature_extraction_forward.100} parent=0 // pred_check
    _
  $region7: #{feature_extraction_forward.100} parent=0 // pred_check_branch
    %11 = sbr.rel (0) target = $region9
  $region8: #{feature_extraction_forward.100} parent=0 // pred_region
    _
  $region9: #{feature_extraction_forward.100} parent=0 // pred_fallthru
    _
  // Predicated region
  $region10: #{feature_extraction_forward.100} parent=0 // pred_check
    _
  $region11: #{feature_extraction_forward.100} parent=0 // pred_check_branch
    %13 = sbr.rel (0) target = $region13
  $region12: #{feature_extraction_forward.100} parent=0 // pred_region
    _
  $region13: #{feature_extraction_forward.100} parent=0 // pred_fallthru
    _
  %p15 = scmp.eq.s32.totalorder 0, 0
  // Predicated region
  $region14: #{feature_extraction_forward.100} parent=0 // pred_check
    %p16 = pneg %p15
  $region15: #{feature_extraction_forward.100} parent=0 // pred_check_branch
    %18 = sbr.rel (%p16) target = $region17
  $region16: #{feature_extraction_forward.100} parent=0 // pred_region
    %v19 = vld [vmem:[%s2] sm:$0x1]
    %v21 = vlaneseq
    %v22 = vshrl.u32 %v21, 7
    %v23 = vsub.s32 0, %v22
    %v24 = vrot.slane %v19, %v23
    %26 = vst [vmem:[%s3] sm:$0xff] %v24
    %27 = vst [vmem:[%s3 + $0x8] sm:$0xff] %v24
    %28 = vst [vmem:[%s3 + $0x10] sm:$0xff] %v24
    %29 = vst [vmem:[%s3 + $0x18] sm:$0xff] %v24
  $region17: #{feature_extraction_forward.100} parent=0 // pred_fallthru
    _
  %v30 = vld [vmem:[%s3] sm:$0xff]
  %v31 = vld [vmem:[%s3 + $0x8] sm:$0xff]
  %v32 = vld [vmem:[%s3 + $0x10] sm:$0xff]
  %v33 = vld [vmem:[%s3 + $0x18] sm:$0xff]
  %v34 = vld [vmem:[%s0] sm:$0xff]
  %v35 = vld [vmem:[%s0 + $0x8] sm:$0xff]
  %v36 = vld [vmem:[%s0 + $0x10] sm:$0xff]
  %v37 = vld [vmem:[%s0 + $0x18] sm:$0xff]
  %v38 = vld [vmem:[%s0 + $0x20] sm:$0xf]
  %v39 = vld [vmem:[%s0 + $0x24] sm:$0xff]
  %v40 = vld [vmem:[%s0 + $0x2c] sm:$0xff]
  %v41 = vld [vmem:[%s0 + $0x34] sm:$0xff]
  %v42 = vld [vmem:[%s0 + $0x3c] sm:$0xff]
  %v43 = vld [vmem:[%s0 + $0x44] sm:$0xf]
  %v44 = vld [vmem:[%s0 + $0x48] sm:$0xff]
  %v45 = vld [vmem:[%s0 + $0x50] sm:$0xff]
  %v46 = vld [vmem:[%s0 + $0x58] sm:$0xff]
  %v47 = vld [vmem:[%s0 + $0x60] sm:$0xff]
  %v48 = vld [vmem:[%s0 + $0x68] sm:$0xf]
  %v49 = vld [vmem:[%s0 + $0x6c] sm:$0xff]
  %v50 = vld [vmem:[%s0 + $0x74] sm:$0xff]
  %v51 = vld [vmem:[%s0 + $0x7c] sm:$0xff]
  %v52 = vld [vmem:[%s0 + $0x84] sm:$0xff]
  %v53 = vld [vmem:[%s0 + $0x8c] sm:$0xf]
  %v54 = vld [vmem:[%s1] sm:$0xf]
  %v55 = vld [vmem:[%s1 + $0x4] sm:$0xf]
  %v56 = vld [vmem:[%s1 + $0x8] sm:$0xf]
  %v57 = vld [vmem:[%s1 + $0xc] sm:$0xf]
  %v58 = vld [vmem:[%s1 + $0x10] sm:$0xf]
  %v59 = vld [vmem:[%s1 + $0x14] sm:$0xf]
  %v60 = vld [vmem:[%s1 + $0x18] sm:$0xf]
  %v61 = vld [vmem:[%s1 + $0x1c] sm:$0xf]
  %v62 = vld [vmem:[%s1 + $0x20] sm:$0xf]
  %v63 = vld [vmem:[%s1 + $0x24] sm:$0xf]
  %v64 = vld [vmem:[%s1 + $0x28] sm:$0xf]
  %v65 = vld [vmem:[%s1 + $0x2c] sm:$0xf]
  %v66 = vld [vmem:[%s1 + $0x30] sm:$0xf]
  %v67 = vld [vmem:[%s1 + $0x34] sm:$0xf]
  %v68 = vld [vmem:[%s1 + $0x38] sm:$0xf]
  %v69 = vld [vmem:[%s1 + $0x3c] sm:$0xf]
  %v70 = vld [vmem:[%s1 + $0x40] sm:$0xf]
  %v71 = vld [vmem:[%s1 + $0x44] sm:$0xf]
  %v72 = vld [vmem:[%s1 + $0x48] sm:$0xf]
  %v73 = vld [vmem:[%s1 + $0x4c] sm:$0xf]
  %v74 = vld [vmem:[%s1 + $0x50] sm:$0xf]
  %v75 = vld [vmem:[%s1 + $0x54] sm:$0xf]
  %v76 = vld [vmem:[%s1 + $0x58] sm:$0xf]
  %v77 = vld [vmem:[%s1 + $0x5c] sm:$0xf]
  %v78 = vld [vmem:[%s1 + $0x60] sm:$0xf]
  %v79 = vld [vmem:[%s1 + $0x64] sm:$0xf]
  %v80 = vld [vmem:[%s1 + $0x68] sm:$0xf]
  %v81 = vld [vmem:[%s1 + $0x6c] sm:$0xf]
  %v82 = vld [vmem:[%s1 + $0x70] sm:$0xf]
  %v83 = vld [vmem:[%s1 + $0x74] sm:$0xf]
  %v84 = vld [vmem:[%s1 + $0x78] sm:$0xf]
  %v85 = vld [vmem:[%s1 + $0x7c] sm:$0xf]
  %v86 = vld [vmem:[%s1 + $0x80] sm:$0xf]
  %v87 = vld [vmem:[%s1 + $0x84] sm:$0xf]
  %v88 = vld [vmem:[%s1 + $0x88] sm:$0xf]
  %v89 = vld [vmem:[%s1 + $0x8c] sm:$0xf]
  %v90 = vld [vmem:[%s1 + $0x90] sm:$0xf]
  %v91 = vld [vmem:[%s1 + $0x94] sm:$0xf]
  %v92 = vld [vmem:[%s1 + $0x98] sm:$0xf]
  %v93 = vld [vmem:[%s1 + $0x9c] sm:$0xf]
  %v94 = vld [vmem:[%s1 + $0xa0] sm:$0xf]
  %v95 = vld [vmem:[%s1 + $0xa4] sm:$0xf]
  %v96 = vld [vmem:[%s1 + $0xa8] sm:$0xf]
  %v97 = vld [vmem:[%s1 + $0xac] sm:$0xf]
  %v98 = vld [vmem:[%s1 + $0xb0] sm:$0xf]
  %v99 = vld [vmem:[%s1 + $0xb4] sm:$0xf]
  %v100 = vld [vmem:[%s1 + $0xb8] sm:$0xf]
  %v101 = vld [vmem:[%s1 + $0xbc] sm:$0xf]
  %v102 = vld [vmem:[%s1 + $0xc0] sm:$0xf]
  %v103 = vld [vmem:[%s1 + $0xc4] sm:$0xf]
  %v104 = vld [vmem:[%s1 + $0xc8] sm:$0xf]
  %v105 = vld [vmem:[%s1 + $0xcc] sm:$0xf]
  %v106 = vld [vmem:[%s1 + $0xd0] sm:$0xf]
  %v107 = vld [vmem:[%s1 + $0xd4] sm:$0xf]
  %v108 = vld [vmem:[%s1 + $0xd8] sm:$0xf]
  %v109 = vld [vmem:[%s1 + $0xdc] sm:$0xf]
  %v110 = vld [vmem:[%s1 + $0xe0] sm:$0xf]
  %v111 = vld [vmem:[%s1 + $0xe4] sm:$0xf]
  %v112 = vld [vmem:[%s1 + $0xe8] sm:$0xf]
  %v113 = vld [vmem:[%s1 + $0xec] sm:$0xf]
  %v114 = vld [vmem:[%s1 + $0xf0] sm:$0xf]
  %v115 = vld [vmem:[%s1 + $0xf4] sm:$0xf]
  %v116 = vld [vmem:[%s1 + $0xf8] sm:$0xf]
  %v117 = vld [vmem:[%s1 + $0xfc] sm:$0xf]
  %v118 = vld [vmem:[%s1 + $0x100] sm:$0xf]
  %v119 = vld [vmem:[%s1 + $0x104] sm:$0xf]
  %v120 = vld [vmem:[%s1 + $0x108] sm:$0xf]
  %v121 = vld [vmem:[%s1 + $0x10c] sm:$0xf]
  %v122 = vld [vmem:[%s1 + $0x110] sm:$0xf]
  %v123 = vld [vmem:[%s1 + $0x114] sm:$0xf]
  %v124 = vld [vmem:[%s1 + $0x118] sm:$0xf]
  %v125 = vld [vmem:[%s1 + $0x11c] sm:$0xf]
  %v126 = vld [vmem:[%s1 + $0x120] sm:$0xf]
  %v127 = vld [vmem:[%s1 + $0x124] sm:$0xf]
  %v128 = vld [vmem:[%s1 + $0x128] sm:$0xf]
  %v129 = vld [vmem:[%s1 + $0x12c] sm:$0xf]
  %v130 = vld [vmem:[%s1 + $0x130] sm:$0xf]
  %v131 = vld [vmem:[%s1 + $0x134] sm:$0xf]
  %v132 = vld [vmem:[%s1 + $0x138] sm:$0xf]
  %v133 = vld [vmem:[%s1 + $0x13c] sm:$0xf]
  %v134 = vld [vmem:[%s1 + $0x140] sm:$0xf]
  %v135 = vld [vmem:[%s1 + $0x144] sm:$0xf]
  %v136 = vld [vmem:[%s1 + $0x148] sm:$0xf]
  %v137 = vld [vmem:[%s1 + $0x14c] sm:$0xf]
  %v138 = vld [vmem:[%s1 + $0x150] sm:$0xf]
  %v139 = vld [vmem:[%s1 + $0x154] sm:$0xf]
  %v140 = vld [vmem:[%s1 + $0x158] sm:$0xf]
  %v141 = vld [vmem:[%s1 + $0x15c] sm:$0xf]
  %v142 = vld [vmem:[%s1 + $0x160] sm:$0xf]
  %v143 = vld [vmem:[%s1 + $0x164] sm:$0xf]
  %v144 = vld [vmem:[%s1 + $0x168] sm:$0xf]
  %v145 = vld [vmem:[%s1 + $0x16c] sm:$0xf]
  %v146 = vld [vmem:[%s1 + $0x170] sm:$0xf]
  %v147 = vld [vmem:[%s1 + $0x174] sm:$0xf]
  %v148 = vld [vmem:[%s1 + $0x178] sm:$0xf]
  %v149 = vld [vmem:[%s1 + $0x17c] sm:$0xf]
  %v150 = vld [vmem:[%s1 + $0x180] sm:$0xf]
  %v151 = vld [vmem:[%s1 + $0x184] sm:$0xf]
  %v152 = vld [vmem:[%s1 + $0x188] sm:$0xf]
  %v153 = vld [vmem:[%s1 + $0x18c] sm:$0xf]
  %v154 = vld [vmem:[%s1 + $0x190] sm:$0xf]
  %v155 = vld [vmem:[%s1 + $0x194] sm:$0xf]
  %v156 = vld [vmem:[%s1 + $0x198] sm:$0xf]
  %v157 = vld [vmem:[%s1 + $0x19c] sm:$0xf]
  %v158 = vld [vmem:[%s1 + $0x1a0] sm:$0xf]
  %v159 = vld [vmem:[%s1 + $0x1a4] sm:$0xf]
  %v160 = vld [vmem:[%s1 + $0x1a8] sm:$0xf]
  %v161 = vld [vmem:[%s1 + $0x1ac] sm:$0xf]
  %v162 = vld [vmem:[%s1 + $0x1b0] sm:$0xf]
  %v163 = vld [vmem:[%s1 + $0x1b4] sm:$0xf]
  %v164 = vld [vmem:[%s1 + $0x1b8] sm:$0xf]
  %v165 = vld [vmem:[%s1 + $0x1bc] sm:$0xf]
  %v166 = vld [vmem:[%s1 + $0x1c0] sm:$0xf]
  %v167 = vld [vmem:[%s1 + $0x1c4] sm:$0xf]
  %v168 = vld [vmem:[%s1 + $0x1c8] sm:$0xf]
  %v169 = vld [vmem:[%s1 + $0x1cc] sm:$0xf]
  %v170 = vld [vmem:[%s1 + $0x1d0] sm:$0xf]
  %v171 = vld [vmem:[%s1 + $0x1d4] sm:$0xf]
  %v172 = vld [vmem:[%s1 + $0x1d8] sm:$0xf]
  %v173 = vld [vmem:[%s1 + $0x1dc] sm:$0xf]
  %v174 = vld [vmem:[%s1 + $0x1e0] sm:$0xf]
  %v175 = vld [vmem:[%s1 + $0x1e4] sm:$0xf]
  %v176 = vld [vmem:[%s1 + $0x1e8] sm:$0xf]
  %v177 = vld [vmem:[%s1 + $0x1ec] sm:$0xf]
  %v178 = vld [vmem:[%s1 + $0x1f0] sm:$0xf]
  %v179 = vld [vmem:[%s1 + $0x1f4] sm:$0xf]
  %v180 = vld [vmem:[%s1 + $0x1f8] sm:$0xf]
  %v181 = vld [vmem:[%s1 + $0x1fc] sm:$0xf]
  %v182 = vld [vmem:[%s1 + $0x200] sm:$0xf]
  %v183 = vld [vmem:[%s1 + $0x204] sm:$0xf]
  %v184 = vld [vmem:[%s1 + $0x208] sm:$0xf]
  %v185 = vld [vmem:[%s1 + $0x20c] sm:$0xf]
  %v186 = vld [vmem:[%s1 + $0x210] sm:$0xf]
  %v187 = vld [vmem:[%s1 + $0x214] sm:$0xf]
  %v188 = vld [vmem:[%s1 + $0x218] sm:$0xf]
  %v189 = vld [vmem:[%s1 + $0x21c] sm:$0xf]
  %v190 = vld [vmem:[%s1 + $0x220] sm:$0xf]
  %v191 = vld [vmem:[%s1 + $0x224] sm:$0xf]
  %v192 = vld [vmem:[%s1 + $0x228] sm:$0xf]
  %v193 = vld [vmem:[%s1 + $0x22c] sm:$0xf]
  %v194 = vld [vmem:[%s1 + $0x230] sm:$0xf]
  %v195 = vld [vmem:[%s1 + $0x234] sm:$0xf]
  %v196 = vld [vmem:[%s1 + $0x238] sm:$0xf]
  %v197 = vld [vmem:[%s1 + $0x23c] sm:$0xf]
  %v218 = vunpack.c.l.b16 %v34
  %v219 = vunpack.c.h.b16 %v34
  %v220 = vunpack.c.l.b16 %v35
  %v221 = vunpack.c.h.b16 %v35
  %v222 = vunpack.c.l.b16 %v36
  %v223 = vunpack.c.h.b16 %v36
  %v224 = vunpack.c.l.b16 %v37
  %v225 = vunpack.c.h.b16 %v37
  %v226 = vunpack.c.l.b16 %v38
  %v227 = vunpack.c.l.b16 %v39
  %v228 = vunpack.c.h.b16 %v39
  %v229 = vunpack.c.l.b16 %v40
  %v230 = vunpack.c.h.b16 %v40
  %v231 = vunpack.c.l.b16 %v41
  %v232 = vunpack.c.h.b16 %v41
  %v233 = vunpack.c.l.b16 %v42
  %v234 = vunpack.c.h.b16 %v42
  %v235 = vunpack.c.l.b16 %v43
  %v236 = vunpack.c.l.b16 %v44
  %v237 = vunpack.c.h.b16 %v44
  %v238 = vunpack.c.l.b16 %v45
  %v239 = vunpack.c.h.b16 %v45
  %v240 = vunpack.c.l.b16 %v46
  %v241 = vunpack.c.h.b16 %v46
  %v242 = vunpack.c.l.b16 %v47
  %v243 = vunpack.c.h.b16 %v47
  %v244 = vunpack.c.l.b16 %v48
  %v245 = vunpack.c.l.b16 %v49
  %v246 = vunpack.c.h.b16 %v49
  %v247 = vunpack.c.l.b16 %v50
  %v248 = vunpack.c.h.b16 %v50
  %v249 = vunpack.c.l.b16 %v51
  %v250 = vunpack.c.h.b16 %v51
  %v251 = vunpack.c.l.b16 %v52
  %v252 = vunpack.c.h.b16 %v52
  %v253 = vunpack.c.l.b16 %v53
  %v254 = vpack.c.b16 %v227, %v218
  %v255 = vpack.c.b16 %v228, %v219
  %v256 = vpack.c.b16 %v229, %v220
  %v257 = vpack.c.b16 %v230, %v221
  %v258 = vpack.c.b16 %v231, %v222
  %v259 = vpack.c.b16 %v232, %v223
  %v260 = vpack.c.b16 %v233, %v224
  %v261 = vpack.c.b16 %v234, %v225
  %v262 = vpack.c.b16 %v235, %v226
  %v263 = vpack.c.b16 %v245, %v236
  %v264 = vpack.c.b16 %v246, %v237
  %v265 = vpack.c.b16 %v247, %v238
  %v266 = vpack.c.b16 %v248, %v239
  %v267 = vpack.c.b16 %v249, %v240
  %v268 = vpack.c.b16 %v250, %v241
  %v269 = vpack.c.b16 %v251, %v242
  %v270 = vpack.c.b16 %v252, %v243
  %v271 = vpack.c.b16 %v253, %v244
  %v434 = vunpack.c.l.b16 %v54
  %v435 = vunpack.c.l.b16 %v55
  %v436 = vunpack.c.l.b16 %v56
  %v437 = vunpack.c.l.b16 %v57
  %v438 = vunpack.c.l.b16 %v58
  %v439 = vunpack.c.l.b16 %v59
  %v440 = vunpack.c.l.b16 %v60
  %v441 = vunpack.c.l.b16 %v61
  %v442 = vunpack.c.l.b16 %v62
  %v443 = vunpack.c.l.b16 %v63
  %v444 = vunpack.c.l.b16 %v64
  %v445 = vunpack.c.l.b16 %v65
  %v446 = vunpack.c.l.b16 %v66
  %v447 = vunpack.c.l.b16 %v67
  %v448 = vunpack.c.l.b16 %v68
  %v449 = vunpack.c.l.b16 %v69
  %v450 = vunpack.c.l.b16 %v70
  %v451 = vunpack.c.l.b16 %v71
  %v452 = vunpack.c.l.b16 %v72
  %v453 = vunpack.c.l.b16 %v73
  %v454 = vunpack.c.l.b16 %v74
  %v455 = vunpack.c.l.b16 %v75
  %v456 = vunpack.c.l.b16 %v76
  %v457 = vunpack.c.l.b16 %v77
  %v458 = vunpack.c.l.b16 %v78
  %v459 = vunpack.c.l.b16 %v79
  %v460 = vunpack.c.l.b16 %v80
  %v461 = vunpack.c.l.b16 %v81
  %v462 = vunpack.c.l.b16 %v82
  %v463 = vunpack.c.l.b16 %v83
  %v464 = vunpack.c.l.b16 %v84
  %v465 = vunpack.c.l.b16 %v85
  %v466 = vunpack.c.l.b16 %v86
  %v467 = vunpack.c.l.b16 %v87
  %v468 = vunpack.c.l.b16 %v88
  %v469 = vunpack.c.l.b16 %v89
  %v470 = vunpack.c.l.b16 %v90
  %v471 = vunpack.c.l.b16 %v91
  %v472 = vunpack.c.l.b16 %v92
  %v473 = vunpack.c.l.b16 %v93
  %v474 = vunpack.c.l.b16 %v94
  %v475 = vunpack.c.l.b16 %v95
  %v476 = vunpack.c.l.b16 %v96
  %v477 = vunpack.c.l.b16 %v97
  %v478 = vunpack.c.l.b16 %v98
  %v479 = vunpack.c.l.b16 %v99
  %v480 = vunpack.c.l.b16 %v100
  %v481 = vunpack.c.l.b16 %v101
  %v482 = vunpack.c.l.b16 %v102
  %v483 = vunpack.c.l.b16 %v103
  %v484 = vunpack.c.l.b16 %v104
  %v485 = vunpack.c.l.b16 %v105
  %v486 = vunpack.c.l.b16 %v106
  %v487 = vunpack.c.l.b16 %v107
  %v488 = vunpack.c.l.b16 %v108
  %v489 = vunpack.c.l.b16 %v109
  %v490 = vunpack.c.l.b16 %v110
  %v491 = vunpack.c.l.b16 %v111
  %v492 = vunpack.c.l.b16 %v112
  %v493 = vunpack.c.l.b16 %v113
  %v494 = vunpack.c.l.b16 %v114
  %v495 = vunpack.c.l.b16 %v115
  %v496 = vunpack.c.l.b16 %v116
  %v497 = vunpack.c.l.b16 %v117
  %v498 = vunpack.c.l.b16 %v118
  %v499 = vunpack.c.l.b16 %v119
  %v500 = vunpack.c.l.b16 %v120
  %v501 = vunpack.c.l.b16 %v121
  %v502 = vunpack.c.l.b16 %v122
  %v503 = vunpack.c.l.b16 %v123
  %v504 = vunpack.c.l.b16 %v124
  %v505 = vunpack.c.l.b16 %v125
  %v506 = vunpack.c.l.b16 %v126
  %v507 = vunpack.c.l.b16 %v127
  %v508 = vunpack.c.l.b16 %v128
  %v509 = vunpack.c.l.b16 %v129
  %v510 = vunpack.c.l.b16 %v130
  %v511 = vunpack.c.l.b16 %v131
  %v512 = vunpack.c.l.b16 %v132
  %v513 = vunpack.c.l.b16 %v133
  %v514 = vunpack.c.l.b16 %v134
  %v515 = vunpack.c.l.b16 %v135
  %v516 = vunpack.c.l.b16 %v136
  %v517 = vunpack.c.l.b16 %v137
  %v518 = vunpack.c.l.b16 %v138
  %v519 = vunpack.c.l.b16 %v139
  %v520 = vunpack.c.l.b16 %v140
  %v521 = vunpack.c.l.b16 %v141
  %v522 = vunpack.c.l.b16 %v142
  %v523 = vunpack.c.l.b16 %v143
  %v524 = vunpack.c.l.b16 %v144
  %v525 = vunpack.c.l.b16 %v145
  %v526 = vunpack.c.l.b16 %v146
  %v527 = vunpack.c.l.b16 %v147
  %v528 = vunpack.c.l.b16 %v148
  %v529 = vunpack.c.l.b16 %v149
  %v530 = vunpack.c.l.b16 %v150
  %v531 = vunpack.c.l.b16 %v151
  %v532 = vunpack.c.l.b16 %v152
  %v533 = vunpack.c.l.b16 %v153
  %v534 = vunpack.c.l.b16 %v154
  %v535 = vunpack.c.l.b16 %v155
  %v536 = vunpack.c.l.b16 %v156
  %v537 = vunpack.c.l.b16 %v157
  %v538 = vunpack.c.l.b16 %v158
  %v539 = vunpack.c.l.b16 %v159
  %v540 = vunpack.c.l.b16 %v160
  %v541 = vunpack.c.l.b16 %v161
  %v542 = vunpack.c.l.b16 %v162
  %v543 = vunpack.c.l.b16 %v163
  %v544 = vunpack.c.l.b16 %v164
  %v545 = vunpack.c.l.b16 %v165
  %v546 = vunpack.c.l.b16 %v166
  %v547 = vunpack.c.l.b16 %v167
  %v548 = vunpack.c.l.b16 %v168
  %v549 = vunpack.c.l.b16 %v169
  %v550 = vunpack.c.l.b16 %v170
  %v551 = vunpack.c.l.b16 %v171
  %v552 = vunpack.c.l.b16 %v172
  %v553 = vunpack.c.l.b16 %v173
  %v554 = vunpack.c.l.b16 %v174
  %v555 = vunpack.c.l.b16 %v175
  %v556 = vunpack.c.l.b16 %v176
  %v557 = vunpack.c.l.b16 %v177
  %v558 = vunpack.c.l.b16 %v178
  %v559 = vunpack.c.l.b16 %v179
  %v560 = vunpack.c.l.b16 %v180
  %v561 = vunpack.c.l.b16 %v181
  %v562 = vunpack.c.l.b16 %v182
  %v563 = vunpack.c.l.b16 %v183
  %v564 = vunpack.c.l.b16 %v184
  %v565 = vunpack.c.l.b16 %v185
  %v566 = vunpack.c.l.b16 %v186
  %v567 = vunpack.c.l.b16 %v187
  %v568 = vunpack.c.l.b16 %v188
  %v569 = vunpack.c.l.b16 %v189
  %v570 = vunpack.c.l.b16 %v190
  %v571 = vunpack.c.l.b16 %v191
  %v572 = vunpack.c.l.b16 %v192
  %v573 = vunpack.c.l.b16 %v193
  %v574 = vunpack.c.l.b16 %v194
  %v575 = vunpack.c.l.b16 %v195
  %v576 = vunpack.c.l.b16 %v196
  %v577 = vunpack.c.l.b16 %v197
  %v578 = vpack.c.b16 %v435, %v434
  %v579 = vpack.c.b16 %v437, %v436
  %v580 = vpack.c.b16 %v439, %v438
  %v581 = vpack.c.b16 %v441, %v440
  %v582 = vpack.c.b16 %v443, %v442
  %v583 = vpack.c.b16 %v445, %v444
  %v584 = vpack.c.b16 %v447, %v446
  %v585 = vpack.c.b16 %v449, %v448
  %v586 = vpack.c.b16 %v451, %v450
  %v587 = vpack.c.b16 %v453, %v452
  %v588 = vpack.c.b16 %v455, %v454
  %v589 = vpack.c.b16 %v457, %v456
  %v590 = vpack.c.b16 %v459, %v458
  %v591 = vpack.c.b16 %v461, %v460
  %v592 = vpack.c.b16 %v463, %v462
  %v593 = vpack.c.b16 %v465, %v464
  %v594 = vpack.c.b16 %v467, %v466
  %v595 = vpack.c.b16 %v469, %v468
  %v596 = vpack.c.b16 %v471, %v470
  %v597 = vpack.c.b16 %v473, %v472
  %v598 = vpack.c.b16 %v475, %v474
  %v599 = vpack.c.b16 %v477, %v476
  %v600 = vpack.c.b16 %v479, %v478
  %v601 = vpack.c.b16 %v481, %v480
  %v602 = vpack.c.b16 %v483, %v482
  %v603 = vpack.c.b16 %v485, %v484
  %v604 = vpack.c.b16 %v487, %v486
  %v605 = vpack.c.b16 %v489, %v488
  %v606 = vpack.c.b16 %v491, %v490
  %v607 = vpack.c.b16 %v493, %v492
  %v608 = vpack.c.b16 %v495, %v494
  %v609 = vpack.c.b16 %v497, %v496
  %v610 = vpack.c.b16 %v499, %v498
  %v611 = vpack.c.b16 %v501, %v500
  %v612 = vpack.c.b16 %v503, %v502
  %v613 = vpack.c.b16 %v505, %v504
  %v614 = vpack.c.b16 %v507, %v506
  %v615 = vpack.c.b16 %v509, %v508
  %v616 = vpack.c.b16 %v511, %v510
  %v617 = vpack.c.b16 %v513, %v512
  %v618 = vpack.c.b16 %v515, %v514
  %v619 = vpack.c.b16 %v517, %v516
  %v620 = vpack.c.b16 %v519, %v518
  %v621 = vpack.c.b16 %v521, %v520
  %v622 = vpack.c.b16 %v523, %v522
  %v623 = vpack.c.b16 %v525, %v524
  %v624 = vpack.c.b16 %v527, %v526
  %v625 = vpack.c.b16 %v529, %v528
  %v626 = vpack.c.b16 %v531, %v530
  %v627 = vpack.c.b16 %v533, %v532
  %v628 = vpack.c.b16 %v535, %v534
  %v629 = vpack.c.b16 %v537, %v536
  %v630 = vpack.c.b16 %v539, %v538
  %v631 = vpack.c.b16 %v541, %v540
  %v632 = vpack.c.b16 %v543, %v542
  %v633 = vpack.c.b16 %v545, %v544
  %v634 = vpack.c.b16 %v547, %v546
  %v635 = vpack.c.b16 %v549, %v548
  %v636 = vpack.c.b16 %v551, %v550
  %v637 = vpack.c.b16 %v553, %v552
  %v638 = vpack.c.b16 %v555, %v554
  %v639 = vpack.c.b16 %v557, %v556
  %v640 = vpack.c.b16 %v559, %v558
  %v641 = vpack.c.b16 %v561, %v560
  %v642 = vpack.c.b16 %v563, %v562
  %v643 = vpack.c.b16 %v565, %v564
  %v644 = vpack.c.b16 %v567, %v566
  %v645 = vpack.c.b16 %v569, %v568
  %v646 = vpack.c.b16 %v571, %v570
  %v647 = vpack.c.b16 %v573, %v572
  %v648 = vpack.c.b16 %v575, %v574
  %v649 = vpack.c.b16 %v577, %v576
  %722 = vmatprep.subr.bf16.mxu0 0
  %723 = vmatpush1.bf16.msra.mxu0 %v578
  %724 = vmatprep.subr.bf16.mxu0 0
  %725 = vmatpush1.bf16.msra.mxu0 %v579
  %726 = vmatprep.subr.bf16.mxu0 0
  %727 = vmatpush1.bf16.msra.mxu0 %v580
  %728 = vmatprep.subr.bf16.mxu0 0
  %729 = vmatpush1.bf16.msra.mxu0 %v581
  %730 = vmatprep.subr.bf16.mxu0 0
  %731 = vmatpush1.bf16.msra.mxu0 %v582
  %732 = vmatprep.subr.bf16.mxu0 0
  %733 = vmatpush1.bf16.msra.mxu0 %v583
  %734 = vmatprep.subr.bf16.mxu0 0
  %735 = vmatpush1.bf16.msra.mxu0 %v584
  %736 = vmatprep.subr.bf16.mxu0 0
  %737 = vmatpush1.bf16.msra.mxu0 %v585
  %738 = vmatprep.subr.bf16.mxu0 0
  %739 = vmatpush1.bf16.msra.mxu0 %v586
  %740 = vmatprep.subr.bf16.mxu0 0
  %741 = vmatpush1.bf16.msra.mxu0 %v587
  %742 = vmatprep.subr.bf16.mxu0 0
  %743 = vmatpush1.bf16.msra.mxu0 %v588
  %744 = vmatprep.subr.bf16.mxu0 0
  %745 = vmatpush1.bf16.msra.mxu0 %v589
  %746 = vmatprep.subr.bf16.mxu0 0
  %747 = vmatpush1.bf16.msra.mxu0 %v590
  %748 = vmatprep.subr.bf16.mxu0 0
  %749 = vmatpush1.bf16.msra.mxu0 %v591
  %750 = vmatprep.subr.bf16.mxu0 0
  %751 = vmatpush1.bf16.msra.mxu0 %v592
  %752 = vmatprep.subr.bf16.mxu0 0
  %753 = vmatpush1.bf16.msra.mxu0 %v593
  %754 = vmatprep.mubr.bf16.mxu0 %v255
  %755 = vmatmul.mubr.bf16.gmra.mrb[0].mxu0 %v254
  %v756 = vpop.f32.mrb[0].mxu0
  %v757 = vadd.f32 0.0, %v756
  %v758 = vpop.f32.mrb[0].mxu0
  %v759 = vpop.f32.mrb[0].mxu0
  %v760 = vadd.f32 0.0, %v759
  %v761 = vpop.f32.mrb[0].mxu0
  %762 = vmatprep.mubr.bf16.mxu0 %v264
  %763 = vmatmul.mubr.bf16.gmra.mrb[0].mxu0 %v263
  %v764 = vpop.f32.mrb[0].mxu0
  %v765 = vadd.f32 0.0, %v764
  %v766 = vpop.f32.mrb[0].mxu0
  %v767 = vpop.f32.mrb[0].mxu0
  %v768 = vadd.f32 0.0, %v767
  %v769 = vpop.f32.mrb[0].mxu0
  %770 = vdwg.mxu0
  %771 = vmatprep.subr.bf16.mxu0 0
  %772 = vmatpush1.bf16.msra.mxu0 %v594
  %773 = vmatprep.subr.bf16.mxu0 0
  %774 = vmatpush1.bf16.msra.mxu0 %v595
  %775 = vmatprep.subr.bf16.mxu0 0
  %776 = vmatpush1.bf16.msra.mxu0 %v596
  %777 = vmatprep.subr.bf16.mxu0 0
  %778 = vmatpush1.bf16.msra.mxu0 %v597
  %779 = vmatprep.subr.bf16.mxu0 0
  %780 = vmatpush1.bf16.msra.mxu0 %v598
  %781 = vmatprep.subr.bf16.mxu0 0
  %782 = vmatpush1.bf16.msra.mxu0 %v599
  %783 = vmatprep.subr.bf16.mxu0 0
  %784 = vmatpush1.bf16.msra.mxu0 %v600
  %785 = vmatprep.subr.bf16.mxu0 0
  %786 = vmatpush1.bf16.msra.mxu0 %v601
  %787 = vmatprep.subr.bf16.mxu0 0
  %788 = vmatpush1.bf16.msra.mxu0 %v602
  %789 = vmatprep.subr.bf16.mxu0 0
  %790 = vmatpush1.bf16.msra.mxu0 %v603
  %791 = vmatprep.subr.bf16.mxu0 0
  %792 = vmatpush1.bf16.msra.mxu0 %v604
  %793 = vmatprep.subr.bf16.mxu0 0
  %794 = vmatpush1.bf16.msra.mxu0 %v605
  %795 = vmatprep.subr.bf16.mxu0 0
  %796 = vmatpush1.bf16.msra.mxu0 %v606
  %797 = vmatprep.subr.bf16.mxu0 0
  %798 = vmatpush1.bf16.msra.mxu0 %v607
  %799 = vmatprep.subr.bf16.mxu0 0
  %800 = vmatpush1.bf16.msra.mxu0 %v608
  %801 = vmatprep.subr.bf16.mxu0 0
  %802 = vmatpush1.bf16.msra.mxu0 %v609
  %803 = vmatprep.mubr.bf16.mxu0 %v257
  %804 = vmatmul.mubr.bf16.gmra.mrb[0].mxu0 %v256
  %v805 = vpop.f32.mrb[0].mxu0
  %v806 = vadd.f32 %v757, %v805
  %v807 = vpop.f32.mrb[0].mxu0
  %v808 = vpop.f32.mrb[0].mxu0
  %v809 = vadd.f32 %v760, %v808
  %v810 = vpop.f32.mrb[0].mxu0
  %811 = vmatprep.mubr.bf16.mxu0 %v266
  %812 = vmatmul.mubr.bf16.gmra.mrb[0].mxu0 %v265
  %v813 = vpop.f32.mrb[0].mxu0
  %v814 = vadd.f32 %v765, %v813
  %v815 = vpop.f32.mrb[0].mxu0
  %v816 = vpop.f32.mrb[0].mxu0
  %v817 = vadd.f32 %v768, %v816
  %v818 = vpop.f32.mrb[0].mxu0
  %819 = vdwg.mxu0
  %820 = vmatprep.subr.bf16.mxu0 0
  %821 = vmatpush1.bf16.msra.mxu0 %v610
  %822 = vmatprep.subr.bf16.mxu0 0
  %823 = vmatpush1.bf16.msra.mxu0 %v611
  %824 = vmatprep.subr.bf16.mxu0 0
  %825 = vmatpush1.bf16.msra.mxu0 %v612
  %826 = vmatprep.subr.bf16.mxu0 0
  %827 = vmatpush1.bf16.msra.mxu0 %v613
  %828 = vmatprep.subr.bf16.mxu0 0
  %829 = vmatpush1.bf16.msra.mxu0 %v614
  %830 = vmatprep.subr.bf16.mxu0 0
  %831 = vmatpush1.bf16.msra.mxu0 %v615
  %832 = vmatprep.subr.bf16.mxu0 0
  %833 = vmatpush1.bf16.msra.mxu0 %v616
  %834 = vmatprep.subr.bf16.mxu0 0
  %835 = vmatpush1.bf16.msra.mxu0 %v617
  %836 = vmatprep.subr.bf16.mxu0 0
  %837 = vmatpush1.bf16.msra.mxu0 %v618
  %838 = vmatprep.subr.bf16.mxu0 0
  %839 = vmatpush1.bf16.msra.mxu0 %v619
  %840 = vmatprep.subr.bf16.mxu0 0
  %841 = vmatpush1.bf16.msra.mxu0 %v620
  %842 = vmatprep.subr.bf16.mxu0 0
  %843 = vmatpush1.bf16.msra.mxu0 %v621
  %844 = vmatprep.subr.bf16.mxu0 0
  %845 = vmatpush1.bf16.msra.mxu0 %v622
  %846 = vmatprep.subr.bf16.mxu0 0
  %847 = vmatpush1.bf16.msra.mxu0 %v623
  %848 = vmatprep.subr.bf16.mxu0 0
  %849 = vmatpush1.bf16.msra.mxu0 %v624
  %850 = vmatprep.subr.bf16.mxu0 0
  %851 = vmatpush1.bf16.msra.mxu0 %v625
  %852 = vmatprep.mubr.bf16.mxu0 %v259
  %853 = vmatmul.mubr.bf16.gmra.mrb[0].mxu0 %v258
  %v854 = vpop.f32.mrb[0].mxu0
  %v855 = vadd.f32 %v806, %v854
  %v856 = vpop.f32.mrb[0].mxu0
  %v857 = vpop.f32.mrb[0].mxu0
  %v858 = vadd.f32 %v809, %v857
  %v859 = vpop.f32.mrb[0].mxu0
  %860 = vmatprep.mubr.bf16.mxu0 %v268
  %861 = vmatmul.mubr.bf16.gmra.mrb[0].mxu0 %v267
  %v862 = vpop.f32.mrb[0].mxu0
  %v863 = vadd.f32 %v814, %v862
  %v864 = vpop.f32.mrb[0].mxu0
  %v865 = vpop.f32.mrb[0].mxu0
  %v866 = vadd.f32 %v817, %v865
  %v867 = vpop.f32.mrb[0].mxu0
  %868 = vdwg.mxu0
  %869 = vmatprep.subr.bf16.mxu0 0
  %870 = vmatpush1.bf16.msra.mxu0 %v626
  %871 = vmatprep.subr.bf16.mxu0 0
  %872 = vmatpush1.bf16.msra.mxu0 %v627
  %873 = vmatprep.subr.bf16.mxu0 0
  %874 = vmatpush1.bf16.msra.mxu0 %v628
  %875 = vmatprep.subr.bf16.mxu0 0
  %876 = vmatpush1.bf16.msra.mxu0 %v629
  %877 = vmatprep.subr.bf16.mxu0 0
  %878 = vmatpush1.bf16.msra.mxu0 %v630
  %879 = vmatprep.subr.bf16.mxu0 0
  %880 = vmatpush1.bf16.msra.mxu0 %v631
  %881 = vmatprep.subr.bf16.mxu0 0
  %882 = vmatpush1.bf16.msra.mxu0 %v632
  %883 = vmatprep.subr.bf16.mxu0 0
  %884 = vmatpush1.bf16.msra.mxu0 %v633
  %885 = vmatprep.subr.bf16.mxu0 0
  %886 = vmatpush1.bf16.msra.mxu0 %v634
  %887 = vmatprep.subr.bf16.mxu0 0
  %888 = vmatpush1.bf16.msra.mxu0 %v635
  %889 = vmatprep.subr.bf16.mxu0 0
  %890 = vmatpush1.bf16.msra.mxu0 %v636
  %891 = vmatprep.subr.bf16.mxu0 0
  %892 = vmatpush1.bf16.msra.mxu0 %v637
  %893 = vmatprep.subr.bf16.mxu0 0
  %894 = vmatpush1.bf16.msra.mxu0 %v638
  %895 = vmatprep.subr.bf16.mxu0 0
  %896 = vmatpush1.bf16.msra.mxu0 %v639
  %897 = vmatprep.subr.bf16.mxu0 0
  %898 = vmatpush1.bf16.msra.mxu0 %v640
  %899 = vmatprep.subr.bf16.mxu0 0
  %900 = vmatpush1.bf16.msra.mxu0 %v641
  %901 = vmatprep.mubr.bf16.mxu0 %v261
  %902 = vmatmul.mubr.bf16.gmra.mrb[0].mxu0 %v260
  %v903 = vpop.f32.mrb[0].mxu0
  %v904 = vadd.f32 %v855, %v903
  %v905 = vpop.f32.mrb[0].mxu0
  %v906 = vpop.f32.mrb[0].mxu0
  %v907 = vadd.f32 %v858, %v906
  %v908 = vpop.f32.mrb[0].mxu0
  %909 = vmatprep.mubr.bf16.mxu0 %v270
  %910 = vmatmul.mubr.bf16.gmra.mrb[0].mxu0 %v269
  %v911 = vpop.f32.mrb[0].mxu0
  %v912 = vadd.f32 %v863, %v911
  %v913 = vpop.f32.mrb[0].mxu0
  %v914 = vpop.f32.mrb[0].mxu0
  %v915 = vadd.f32 %v866, %v914
  %v916 = vpop.f32.mrb[0].mxu0
  %917 = vdwg.mxu0
  %918 = vmatprep.subr.bf16.mxu0 0
  %919 = vmatpush1.bf16.msra.mxu0 %v642
  %920 = vmatprep.subr.bf16.mxu0 0
  %921 = vmatpush1.bf16.msra.mxu0 %v643
  %922 = vmatprep.subr.bf16.mxu0 0
  %923 = vmatpush1.bf16.msra.mxu0 %v644
  %924 = vmatprep.subr.bf16.mxu0 0
  %925 = vmatpush1.bf16.msra.mxu0 %v645
  %926 = vmatprep.subr.bf16.mxu0 0
  %927 = vmatpush1.bf16.msra.mxu0 %v646
  %928 = vmatprep.subr.bf16.mxu0 0
  %929 = vmatpush1.bf16.msra.mxu0 %v647
  %930 = vmatprep.subr.bf16.mxu0 0
  %931 = vmatpush1.bf16.msra.mxu0 %v648
  %932 = vmatprep.subr.bf16.mxu0 0
  %933 = vmatpush1.bf16.msra.mxu0 %v649
  %934 = vmatprep.subr.bf16.mxu0 0
  %935 = vmatpush1.bf16.msra.mxu0 0
  %936 = vmatprep.subr.bf16.mxu0 0
  %937 = vmatpush1.bf16.msra.mxu0 0
  %938 = vmatprep.subr.bf16.mxu0 0
  %939 = vmatpush1.bf16.msra.mxu0 0
  %940 = vmatprep.subr.bf16.mxu0 0
  %941 = vmatpush1.bf16.msra.mxu0 0
  %942 = vmatprep.subr.bf16.mxu0 0
  %943 = vmatpush1.bf16.msra.mxu0 0
  %944 = vmatprep.subr.bf16.mxu0 0
  %945 = vmatpush1.bf16.msra.mxu0 0
  %946 = vmatprep.subr.bf16.mxu0 0
  %947 = vmatpush1.bf16.msra.mxu0 0
  %948 = vmatprep.subr.bf16.mxu0 0
  %949 = vmatpush1.bf16.msra.mxu0 0
  %950 = vmatprep.mubr.bf16.mxu0 0
  %951 = vmatmul.mubr.bf16.gmra.mrb[0].mxu0 %v262
  %v952 = vpop.f32.mrb[0].mxu0
  %v953 = vadd.f32 %v904, %v952
  %v954 = vpop.f32.mrb[0].mxu0
  %v955 = vpop.f32.mrb[0].mxu0
  %v956 = vadd.f32 %v907, %v955
  %v957 = vpop.f32.mrb[0].mxu0
  %958 = vmatprep.mubr.bf16.mxu0 0
  %959 = vmatmul.mubr.bf16.gmra.mrb[0].mxu0 %v271
  %v960 = vpop.f32.mrb[0].mxu0
  %v961 = vadd.f32 %v912, %v960
  %v962 = vpop.f32.mrb[0].mxu0
  %v963 = vpop.f32.mrb[0].mxu0
  %v964 = vadd.f32 %v915, %v963
  %v965 = vpop.f32.mrb[0].mxu0
  %966 = vdwg.mxu0
  %v967 = vadd.f32 %v30, %v953
  %v968 = vadd.f32 %v31, %v956
  %v969 = vadd.f32 %v32, %v961
  %v970 = vadd.f32 %v33, %v964
  %971 = vst [vmem:[%s3] sm:$0xff] %v967
  %972 = vst [vmem:[%s3 + $0x8] sm:$0xff] %v968
  %973 = vst [vmem:[%s3 + $0x10] sm:$0xff] %v969
  %974 = vst [vmem:[%s3 + $0x18] sm:$0xff] %v970
  // Predicated region
  $region18: #{feature_extraction_forward.100} parent=0 // pred_check
    %p975 = pneg %p15
  $region19: #{feature_extraction_forward.100} parent=0 // pred_check_branch
    %977 = sbr.rel (%p975) target = $region21
  $region20: #{feature_extraction_forward.100} parent=0 // pred_region
    %v978 = vld [vmem:[%s3] sm:$0xff]
    %v979 = vld [vmem:[%s3 + $0x8] sm:$0xff]
    %v980 = vld [vmem:[%s3 + $0x10] sm:$0xff]
    %v981 = vld [vmem:[%s3 + $0x18] sm:$0xff]
    %v982 = vmax.f32 %v978, 0.0
    %v983 = vmax.f32 %v979, 0.0
    %v984 = vmax.f32 %v980, 0.0
    %v985 = vmax.f32 %v981, 0.0
    %986 = vst [vmem:[%s3] sm:$0xff] %v982
    %987 = vst [vmem:[%s3 + $0x8] sm:$0xff] %v983
    %988 = vst [vmem:[%s3 + $0x10] sm:$0xff] %v984
    %989 = vst [vmem:[%s3 + $0x18] sm:$0xff] %v985
  $region21: #{feature_extraction_forward.100} parent=0 // pred_fallthru
    _
  // Predicated region
  $region22: #{feature_extraction_forward.100} parent=0 // pred_check
    _
  $region23: #{feature_extraction_forward.100} parent=0 // pred_check_branch
    %991 = sbr.rel (0) target = $region25
  $region24: #{feature_extraction_forward.100} parent=0 // pred_region
    _
  $region25: #{feature_extraction_forward.100} parent=0 // pred_fallthru
    _
  // Predicated region
  $region26: #{feature_extraction_forward.100} parent=0 // pred_check
    _
  $region27: #{feature_extraction_forward.100} parent=0 // pred_check_branch
    %993 = sbr.rel (0) target = $region29
  $region28: #{feature_extraction_forward.100} parent=0 // pred_region
    _
  $region29: #{feature_extraction_forward.100} parent=0 // pred_fallthru
    _

</llo_original>
